<compile_context>
chip_gen: v7x
topology: tpu7x:2x2x1
jax: 0.10.0
libtpu: 0.0.40
codegen_flags: <defaults>
</compile_context>

<pallas_src>
import jax
import jax.numpy as jnp
from jax.experimental import pallas as pl
from jax.experimental.pallas import tpu as pltpu


# ---------------- synthetic hyper-parameters (the module's `arguments` dict) ----------------
ARGS = dict(
    coder_actf="elu",
    coder_dropout=0.0,      # eval mode -> identity
    coder_layers=2,
    coder_units=8,
    block_length=16,
    block_padding=0,
    redundancy=4,           # Linear in_features = block_length + block_padding + redundancy
    rate="onethird",        # -> 3 code streams
    channel="awgn",         # != 'continuous' -> Quantizer is applied
    continuous_coder=False,
)

BN_EPS = 1e-5


def make_actf(name):
    if name == "elu":
        return lambda v: jnp.where(v > 0, v, jnp.exp(v) - 1.0)
    if name == "relu":
        return lambda v: jnp.maximum(v, 0.0)
    if name == "tanh":
        return jnp.tanh
    if name == "sigmoid":
        return lambda v: 1.0 / (1.0 + jnp.exp(-v))
    if name == "leakyrelu":
        return lambda v: jnp.where(v > 0, v, 0.01 * v)
    return lambda v: v


def _ceil_to(x, m):
    return (x + m - 1) // m * m


def _tab_layout(B, U, blen, N2, N1):
    """Column layout of the packed per-row table operand (shared by wrapper and kernel)."""
    lay, off = {}, 0

    def add(name, width):
        nonlocal off
        lay[name] = (off, off + width)
        off += width

    add("mask2d", 2 * U)       # rows [0, N2)
    add("wexp2d", 2 * blen)    # rows [0, N2)
    add("mask1d", U)           # rows [0, N1)
    add("wexp1d", blen)        # rows [0, N1)
    add("ind2d", N2)           # rows [0, B)
    off = _ceil_to(off, 128)   # keep the remaining 2-row tables on a fresh lane tile
    add("ind1d", N1)           # rows [0, B)
    add("bias", 3 * blen)      # rows [0, B)
    return lay, (max(N2, N1, 8), off)


# ---------------- the fused Pallas kernel ----------------
def make_kernel(B, U, NL, blen, N2, N1, quantize, actf_name):
    act = make_actf(actf_name)
    U2 = 2 * U
    FIRST = 6 * NL                     # index of the first-layer weight in the tap stacks
    lay, _ = _tab_layout(B, U, blen, N2, N1)

    def shift_rows(x, k):
        # result[r] = x[r + k]; rows shifted in from outside are zero (they only ever feed
        # masked or never-read positions, and zero keeps every value finite).
        if k == 0:
            return x
        z = jnp.zeros((abs(k), x.shape[1]), x.dtype)
        if k > 0:
            return jnp.concatenate([x[k:], z], axis=0)
        return jnp.concatenate([z, x[:k]], axis=0)

    def conv3(h, w0, w1, w2):
        # 'same' 3-tap conv along the batch-stacked, padded row axis:
        #   y[r] = h[r-1] @ w0 + h[r] @ w1 + h[r+1] @ w2
        y = jnp.dot(h, w1, preferred_element_type=jnp.float32)
        y = y + jnp.dot(shift_rows(h, -1), w0, preferred_element_type=jnp.float32)
        y = y + jnp.dot(shift_rows(h, 1), w2, preferred_element_type=jnp.float32)
        return y

    def kernel(pan_ref, w2d_ref, w2f_ref, w1d_ref, w1f_ref, bnst_ref, tab_ref, out_ref):
        relu = lambda v: jnp.maximum(v, 0.0)

        pan = pan_ref[...]
        bnst = bnst_ref[...]
        tab = tab_ref[...]

        def tcol(name, nrows):
            c0, c1 = lay[name]
            return tab[0:nrows, c0:c1]

        def bn(i, width):
            # folded BatchNorm(eval) + conv bias -> per-channel (scale, shift) rows
            return bnst[2 * i:2 * i + 1, 0:width], bnst[2 * i + 1:2 * i + 2, 0:width]

        m2 = tcol("mask2d", N2) > 0.0
        m1 = tcol("mask1d", N1) > 0.0
        wexp2d = tcol("wexp2d", N2)
        wexp1d = tcol("wexp1d", N1)
        ind2d = tcol("ind2d", B)
        ind1d = tcol("ind1d", B)
        bias = tcol("bias", B)

        # ============ 2D branch on (sys, p1); spatial columns packed [left | right] ============
        s, t = bn(0, U2)
        h = jnp.dot(pan[0:N2, :], w2d_ref[FIRST][0:8, :], preferred_element_type=jnp.float32)
        h = jnp.where(m2, relu(h * s + t), 0.0)

        for i in range(NL):                                     # ResNetBlock2d stack
            sc = h
            s, t = bn(1 + 2 * i, U2)
            b0 = 6 * i
            y = conv3(h, w2d_ref[b0], w2d_ref[b0 + 1], w2d_ref[b0 + 2])
            y = jnp.where(m2, relu(y * s + t), 0.0)
            s, t = bn(2 + 2 * i, U2)
            b1 = 6 * i + 3
            y = conv3(y, w2d_ref[b1], w2d_ref[b1 + 1], w2d_ref[b1 + 2])
            h = jnp.where(m2, relu(y * s + t + sc), 0.0)

        # final Conv2d(U->1, 3x3) with weights pre-broadcast over the head lanes, fused with the
        # sys / p1 Linear heads via one indicator matmul (conv bias folded into the head bias).
        yf = jnp.dot(h, w2f_ref[1], preferred_element_type=jnp.float32)
        yf = yf + jnp.dot(shift_rows(h, -1), w2f_ref[0], preferred_element_type=jnp.float32)
        yf = yf + jnp.dot(shift_rows(h, 1), w2f_ref[2], preferred_element_type=jnp.float32)
        out2d = jnp.dot(ind2d, yf * wexp2d, preferred_element_type=jnp.float32)   # (B, 2*blen)

        # ===================== 1D branch on p2 =====================
        s, t = bn(1 + 2 * NL, U)
        g = jnp.dot(pan[0:N1, 6:8], w1d_ref[FIRST][0:2, :], preferred_element_type=jnp.float32)
        g = jnp.where(m1, relu(g * s + t), 0.0)

        for i in range(NL):                                     # ResNetBlock stack
            sc = g
            s, t = bn(2 + 2 * NL + 2 * i, U)
            b0 = 6 * i
            y = conv3(g, w1d_ref[b0], w1d_ref[b0 + 1], w1d_ref[b0 + 2])
            y = jnp.where(m1, relu(y * s + t), 0.0)
            s, t = bn(3 + 2 * NL + 2 * i, U)
            b1 = 6 * i + 3
            y = conv3(y, w1d_ref[b1], w1d_ref[b1 + 1], w1d_ref[b1 + 2])
            g = jnp.where(m1, relu(y * s + t + sc), 0.0)

        # final Conv1d(U->1, k=6, pad=2) pre-broadcast over head lanes, fused with the p2 head
        yg = jnp.dot(g, w1f_ref[0], preferred_element_type=jnp.float32)
        for k in range(1, 6):
            yg = yg + jnp.dot(shift_rows(g, k), w1f_ref[k], preferred_element_type=jnp.float32)
        out1d = jnp.dot(ind1d, yg * wexp1d, preferred_element_type=jnp.float32)   # (B, blen)

        # ===================== Linear-head bias, activation, Quantizer =====================
        o = act(jnp.concatenate([out2d, out1d], axis=1) + bias)
        if quantize:
            # TODO(synk): Quantizer source not provided; assumed clamp(-1, 1) + round.
            o = jnp.round(jnp.clip(o, -1.0, 1.0))
        out_ref[...] = o

    return kernel


# ---------------- wrapper: host-side packing + single pallas_call ----------------
def resnet_coder_forward(inputs, params, args):
    assert args["rate"] == "onethird", "only rate='onethird' (3 streams) is implemented"
    B, L, NS = inputs.shape
    U = args["coder_units"]
    NL = args["coder_layers"]
    blen = args["block_length"]
    assert L == blen + args["block_padding"] + args["redundancy"]
    assert NS == 3
    quantize = (args["channel"] != "continuous") or args["continuous_coder"]

    f32 = jnp.float32
    U2 = 2 * U
    L1 = L + 1                          # 1D-branch length after Conv1d(k=2, pad=1)
    SEG2 = _ceil_to(L + 2, 8)           # per-sequence padded segment length, 2D branch
    SEG1 = _ceil_to(L1 + 4, 8)          # per-sequence padded segment length, 1D branch
    N2 = B * SEG2
    N1 = B * SEG1
    FIRST = 6 * NL
    lay, tab_shape = _tab_layout(B, U, blen, N2, N1)

    def fold_bn(bn_p, conv_bias):
        scale = bn_p["gamma"] / jnp.sqrt(bn_p["var"] + BN_EPS)
        shift = bn_p["beta"] + (conv_bias - bn_p["mean"]) * scale
        return scale, shift

    def pack2d_tap(w, kh):
        # channel-last (3, 3, cin, cout) Conv2d weight -> (2*cin, 2*cout) matrix for height tap
        # kh acting on packed [left | right] input columns and producing packed
        # [out-left(sys) | out-right(p1)] columns (the width-2 'same' conv unrolled).
        top = jnp.concatenate([w[kh, 1], w[kh, 0]], axis=1)     # input column 0 (sys side)
        bot = jnp.concatenate([w[kh, 2], w[kh, 1]], axis=1)     # input column 1 (p1 side)
        return jnp.concatenate([top, bot], axis=0)

    # ---------- conv-weight stacks ----------
    w2d = jnp.zeros((FIRST + 1, U2, U2), f32)
    for i, blk in enumerate(params["rb2d"]):
        for c, wname in enumerate(("w1", "w2")):
            for kh in range(3):
                w2d = w2d.at[6 * i + 3 * c + kh].set(pack2d_tap(blk[wname], kh))
    w2d = w2d.at[FIRST, 0:6, :].set(
        jnp.concatenate([pack2d_tap(params["cnn1_2d_w"], kh) for kh in range(3)], axis=0))

    w2f = jnp.stack([
        jnp.concatenate([jnp.tile(pack2d_tap(params["cnn2_2d_w"], kh)[:, 0:1], (1, blen)),
                         jnp.tile(pack2d_tap(params["cnn2_2d_w"], kh)[:, 1:2], (1, blen))],
                        axis=1)
        for kh in range(3)])                                    # (3, 2U, 2*blen)

    w1d = jnp.zeros((FIRST + 1, U, U), f32)
    for i, blk in enumerate(params["rb1d"]):
        for c, wname in enumerate(("w1", "w2")):
            for k in range(3):
                w1d = w1d.at[6 * i + 3 * c + k].set(blk[wname][k])
    w1d = w1d.at[FIRST, 0:2, :].set(params["cnn1_1d_w"].reshape(2, U))

    w1f = jnp.stack([jnp.tile(params["cnn2_1d_w"][k], (1, blen)) for k in range(6)])  # (6,U,blen)

    # ---------- folded BatchNorm (eval) scale/shift table (conv biases folded in) ----------
    bn_rows = []

    def add_bn(bn_p, bias_p, tile2):
        sc, sh = fold_bn(bn_p, bias_p)
        if tile2:
            sc, sh = jnp.tile(sc, 2), jnp.tile(sh, 2)
        bn_rows.append(jnp.pad(sc, (0, U2 - sc.shape[0])))
        bn_rows.append(jnp.pad(sh, (0, U2 - sh.shape[0])))

    add_bn(params["bn1_2d"], params["cnn1_2d_b"], True)
    for blk in params["rb2d"]:
        add_bn(blk["bn1"], blk["b1"], True)
        add_bn(blk["bn2"], blk["b2"], True)
    add_bn(params["bn1_1d"], params["cnn1_1d_b"], False)
    for blk in params["rb1d"]:
        add_bn(blk["bn1"], blk["b1"], False)
        add_bn(blk["bn2"], blk["b2"], False)
    bnst = jnp.stack(bn_rows)                                   # (4*(1+2*NL), 2U)

    # ---------- first-layer window panels (host-side im2col, off the critical path) ----------
    sp = jnp.pad(inputs[:, :, 0], ((0, 0), (1, 1)))             # sys, zero-padded
    pp = jnp.pad(inputs[:, :, 1], ((0, 0), (1, 1)))             # p1
    qp = jnp.pad(inputs[:, :, 2], ((0, 0), (1, 1)))             # p2

    r2 = jnp.arange(N2)
    off2 = r2 % SEG2
    bat2 = r2 // SEG2
    valid2 = (off2 >= 1) & (off2 <= L)                          # data rows of the 2D layout
    l2 = jnp.clip(off2 - 1, 0, L - 1)
    pan2d = jnp.stack([sp[bat2, l2], pp[bat2, l2],
                       sp[bat2, l2 + 1], pp[bat2, l2 + 1],
                       sp[bat2, l2 + 2], pp[bat2, l2 + 2]], axis=1)
    pan2d = jnp.where(valid2[:, None], pan2d, 0.0)              # (N2, 6)

    r1 = jnp.arange(N1)
    off1 = r1 % SEG1
    bat1 = r1 // SEG1
    valid1 = (off1 >= 2) & (off1 <= L1 + 1)                     # data rows of the 1D layout
    i1 = jnp.clip(off1 - 2, 0, L1 - 1)
    pan1d = jnp.stack([qp[bat1, i1], qp[bat1, i1 + 1]], axis=1)
    pan1d = jnp.where(valid1[:, None], pan1d, 0.0)              # (N1, 2)

    pan = jnp.zeros((max(N2, N1), 8), f32)
    pan = pan.at[0:N2, 0:6].set(pan2d)
    pan = pan.at[0:N1, 6:8].set(pan1d)

    # ---------- per-row tables: masks, expanded head weights, batch indicators, head bias ------
    lw, lb = params["lin_w"], params["lin_b"]                   # torch layout (3,blen,L), (3,blen)
    tab = jnp.zeros(tab_shape, f32)

    def put(name, nrows, val, t):
        c0, c1 = lay[name]
        return t.at[0:nrows, c0:c1].set(val)

    tab = put("mask2d", N2, jnp.tile(valid2.astype(f32)[:, None], (1, U2)), tab)
    tab = put("wexp2d", N2,
              jnp.concatenate([jnp.where(valid2[:, None], lw[0].T[l2], 0.0),
                               jnp.where(valid2[:, None], lw[1].T[l2], 0.0)], axis=1), tab)
    tab = put("mask1d", N1, jnp.tile(valid1.astype(f32)[:, None], (1, U)), tab)
    valid_out1 = off1 < L                                       # rows holding final-conv outputs
    tab = put("wexp1d", N1,
              jnp.where(valid_out1[:, None], lw[2].T[jnp.clip(off1, 0, L - 1)], 0.0), tab)
    tab = put("ind2d", B, (bat2[None, :] == jnp.arange(B)[:, None]).astype(f32), tab)
    tab = put("ind1d", B, (bat1[None, :] == jnp.arange(B)[:, None]).astype(f32), tab)
    head_bias = jnp.concatenate([lb[0] + params["cnn2_2d_b"][0] * jnp.sum(lw[0], axis=1),
                                 lb[1] + params["cnn2_2d_b"][0] * jnp.sum(lw[1], axis=1),
                                 lb[2] + params["cnn2_1d_b"][0] * jnp.sum(lw[2], axis=1)])
    tab = put("bias", B, jnp.tile(head_bias[None, :], (B, 1)), tab)

    # ---------- one fused, gridless pallas_call ----------
    operands = [pan, w2d, w2f, w1d, w1f, bnst, tab]
    kernel = make_kernel(B, U, NL, blen, N2, N1, quantize, args["coder_actf"])
    out = pl.pallas_call(
        kernel,
        out_shape=jax.ShapeDtypeStruct((B, 3 * blen), jnp.float32),
        in_specs=[pl.BlockSpec(memory_space=pltpu.MemorySpace.VMEM)] * len(operands),
        out_specs=pl.BlockSpec(memory_space=pltpu.MemorySpace.VMEM),
    )(*operands)

    # (B, [sys | p1 | p2] * blen) -> (B, blen, 3), matching torch.cat([x_sys, x_p1, x_p2], dim=2)
    return jnp.transpose(out.reshape(B, 3, blen), (0, 2, 1))


# ---------------- deterministic parameter init ----------------
def init_params(key, args):
    U = args["coder_units"]
    NL = args["coder_layers"]
    blen = args["block_length"]
    L = blen + args["block_padding"] + args["redundancy"]
    keys = iter(jax.random.split(key, 256))

    def u(shape, scale):
        return jax.random.uniform(next(keys), shape, jnp.float32, -scale, scale)

    def bn(c):
        return dict(gamma=1.0 + u((c,), 0.2), beta=u((c,), 0.2), mean=u((c,), 0.2),
                    var=jax.random.uniform(next(keys), (c,), jnp.float32, 0.5, 1.5))

    def rb2d():
        return dict(w1=u((3, 3, U, U), 0.2), b1=u((U,), 0.1), bn1=bn(U),
                    w2=u((3, 3, U, U), 0.2), b2=u((U,), 0.1), bn2=bn(U))

    def rb1d():
        return dict(w1=u((3, U, U), 0.25), b1=u((U,), 0.1), bn1=bn(U),
                    w2=u((3, U, U), 0.25), b2=u((U,), 0.1), bn2=bn(U))

    # Conv weights stored channel-last: (kh, kw, Cin, Cout) / (K, Cin, Cout)
    # (= torch Conv weight (Cout, Cin, kh[, kw]) transposed); Linear weights in torch (out, in).
    return dict(
        cnn1_2d_w=u((3, 3, 1, U), 0.5), cnn1_2d_b=u((U,), 0.2), bn1_2d=bn(U),
        rb2d=[rb2d() for _ in range(NL)],
        cnn2_2d_w=u((3, 3, U, 1), 0.3), cnn2_2d_b=u((1,), 0.2),
        cnn1_1d_w=u((2, 1, U), 0.5), cnn1_1d_b=u((U,), 0.2), bn1_1d=bn(U),
        rb1d=[rb1d() for _ in range(NL)],
        cnn2_1d_w=u((6, U, 1), 0.3), cnn2_1d_b=u((1,), 0.2),
        lin_w=u((3, blen, L), 0.3),
        lin_b=u((3, blen), 0.2),
    )


# ---------------- pure-JAX reference (same math, torch-style formulation, no Pallas) ----------------
def reference_forward(inputs, params, args):
    act = make_actf(args["coder_actf"])
    relu = lambda v: jnp.maximum(v, 0.0)
    quantize = (args["channel"] != "continuous") or args["continuous_coder"]
    B, L, _ = inputs.shape

    def bn_apply(x, bn):
        return (x - bn["mean"]) / jnp.sqrt(bn["var"] + BN_EPS) * bn["gamma"] + bn["beta"]

    def conv2d(x, w, b):                    # x (B,H,W,Cin), w (3,3,Cin,Cout), pad 1
        H, W = x.shape[1], x.shape[2]
        xp = jnp.pad(x, ((0, 0), (1, 1), (1, 1), (0, 0)))
        out = jnp.zeros(x.shape[:3] + (w.shape[3],), jnp.float32)
        for dh in range(3):
            for dw in range(3):
                out = out + jnp.einsum("bhwc,co->bhwo", xp[:, dh:dh + H, dw:dw + W, :], w[dh, dw])
        return out + b

    def conv1d(x, w, b, pad):               # x (B,Lx,Cin), w (K,Cin,Cout)
        K = w.shape[0]
        Lo = x.shape[1] + 2 * pad - K + 1
        xp = jnp.pad(x, ((0, 0), (pad, pad), (0, 0)))
        out = jnp.zeros((x.shape[0], Lo, w.shape[2]), jnp.float32)
        for k in range(K):
            out = out + jnp.einsum("blc,co->blo", xp[:, k:k + Lo, :], w[k])
        return out + b

    # 2D branch
    h = inputs[:, :, 0:2][..., None]
    h = relu(bn_apply(conv2d(h, params["cnn1_2d_w"], params["cnn1_2d_b"]), params["bn1_2d"]))
    for blk in params["rb2d"]:
        sc = h
        y = relu(bn_apply(conv2d(h, blk["w1"], blk["b1"]), blk["bn1"]))
        y = bn_apply(conv2d(y, blk["w2"], blk["b2"]), blk["bn2"])
        h = relu(y + sc)
    h = conv2d(h, params["cnn2_2d_w"], params["cnn2_2d_b"])     # (B, L, 2, 1)
    x_sys, x_p1 = h[:, :, 0, 0], h[:, :, 1, 0]

    # 1D branch
    g = inputs[:, :, 2:3]
    g = relu(bn_apply(conv1d(g, params["cnn1_1d_w"], params["cnn1_1d_b"], 1), params["bn1_1d"]))
    for blk in params["rb1d"]:
        sc = g
        y = relu(bn_apply(conv1d(g, blk["w1"], blk["b1"], 1), blk["bn1"]))
        y = bn_apply(conv1d(y, blk["w2"], blk["b2"], 1), blk["bn2"])
        g = relu(y + sc)
    g = conv1d(g, params["cnn2_1d_w"], params["cnn2_1d_b"], 2)  # (B, L, 1)
    x_p2 = g[:, :, 0]

    def head(v, i):
        return act(v @ params["lin_w"][i].T + params["lin_b"][i])

    out = jnp.stack([head(x_sys, 0), head(x_p1, 1), head(x_p2, 2)], axis=-1)
    if quantize:
        out = jnp.round(jnp.clip(out, -1.0, 1.0))
    return out


if __name__ == "__main__":
    args = ARGS
    B = 2
    L = args["block_length"] + args["block_padding"] + args["redundancy"]

    key = jax.random.PRNGKey(0)
    k_in, k_par = jax.random.split(key)
    inputs = jax.random.normal(k_in, (B, L, 3), jnp.float32)
    params = init_params(k_par, args)

    out = jax.block_until_ready(resnet_coder_forward(inputs, params, args))
    ref = reference_forward(inputs, params, args)

    assert out.shape == (B, args["block_length"], 3), out.shape
    match = float(jnp.mean((out == ref).astype(jnp.float32)))
    assert match > 0.98, f"mismatch fraction: {1.0 - match}"
    print("KERNEL_OK")
</pallas_src>

<mosaic_0001>
module attributes {stable_mosaic.version = 11 : i64} {
  func.func @kernel(%arg0: memref<64x8xf32, #tpu.memory_space<vmem>>, %arg1: memref<13x16x16xf32, #tpu.memory_space<vmem>>, %arg2: memref<3x16x32xf32, #tpu.memory_space<vmem>>, %arg3: memref<13x8x8xf32, #tpu.memory_space<vmem>>, %arg4: memref<6x8x16xf32, #tpu.memory_space<vmem>>, %arg5: memref<20x16xf32, #tpu.memory_space<vmem>>, %arg6: memref<64x240xf32, #tpu.memory_space<vmem>>, %arg7: memref<2x48xf32, #tpu.memory_space<vmem>>) attributes {dimension_semantics = [], scalar_prefetch = 0 : i64, scratch_operands = 0 : i64, tpu.core_type = #tpu.core_type<tc>} {
    %c0 = arith.constant 0 : index
    %c0_0 = arith.constant 0 : index
    %0 = vector.load %arg0[%c0, %c0_0] : memref<64x8xf32, #tpu.memory_space<vmem>>, vector<64x8xf32>
    %c0_1 = arith.constant 0 : index
    %c0_2 = arith.constant 0 : index
    %1 = vector.load %arg5[%c0_1, %c0_2] : memref<20x16xf32, #tpu.memory_space<vmem>>, vector<20x16xf32>
    %c0_3 = arith.constant 0 : index
    %c0_4 = arith.constant 0 : index
    %2 = vector.load %arg6[%c0_3, %c0_4] : memref<64x240xf32, #tpu.memory_space<vmem>>, vector<64x240xf32>
    %3 = vector.extract_strided_slice %2 {offsets = [0, 0], sizes = [48, 16], strides = [1, 1]} : vector<64x240xf32> to vector<48x16xf32>
    %cst = arith.constant 0.000000e+00 : f32
    %4 = vector.broadcast %cst : f32 to vector<48x16xf32>
    %5 = arith.cmpf ogt, %3, %4 : vector<48x16xf32>
    %6 = vector.extract_strided_slice %2 {offsets = [0, 48], sizes = [64, 8], strides = [1, 1]} : vector<64x240xf32> to vector<64x8xf32>
    %cst_5 = arith.constant 0.000000e+00 : f32
    %7 = vector.broadcast %cst_5 : f32 to vector<64x8xf32>
    %8 = arith.cmpf ogt, %6, %7 : vector<64x8xf32>
    %9 = vector.extract_strided_slice %2 {offsets = [0, 16], sizes = [48, 32], strides = [1, 1]} : vector<64x240xf32> to vector<48x32xf32>
    %10 = vector.extract_strided_slice %2 {offsets = [0, 56], sizes = [64, 16], strides = [1, 1]} : vector<64x240xf32> to vector<64x16xf32>
    %11 = vector.extract_strided_slice %2 {offsets = [0, 72], sizes = [2, 48], strides = [1, 1]} : vector<64x240xf32> to vector<2x48xf32>
    %12 = vector.extract_strided_slice %2 {offsets = [0, 128], sizes = [2, 64], strides = [1, 1]} : vector<64x240xf32> to vector<2x64xf32>
    %13 = vector.extract_strided_slice %2 {offsets = [0, 192], sizes = [2, 48], strides = [1, 1]} : vector<64x240xf32> to vector<2x48xf32>
    %14 = vector.extract_strided_slice %1 {offsets = [0, 0], sizes = [1, 16], strides = [1, 1]} : vector<20x16xf32> to vector<1x16xf32>
    %15 = vector.extract_strided_slice %1 {offsets = [1, 0], sizes = [1, 16], strides = [1, 1]} : vector<20x16xf32> to vector<1x16xf32>
    %16 = vector.extract_strided_slice %0 {offsets = [0, 0], sizes = [48, 8], strides = [1, 1]} : vector<64x8xf32> to vector<48x8xf32>
    %c12 = arith.constant 12 : index
    %c0_6 = arith.constant 0 : index
    %c0_7 = arith.constant 0 : index
    %17 = vector.load %arg1[%c12, %c0_6, %c0_7] : memref<13x16x16xf32, #tpu.memory_space<vmem>>, vector<1x16x16xf32>
    %18 = vector.shape_cast %17 : vector<1x16x16xf32> to vector<16x16xf32>
    %19 = vector.extract_strided_slice %18 {offsets = [0, 0], sizes = [8, 16], strides = [1, 1]} : vector<16x16xf32> to vector<8x16xf32>
    %cst_8 = arith.constant dense<0.000000e+00> : vector<48x16xf32>
    %20 = tpu.matmul %16, %19, %cst_8 {dimension_numbers = #tpu.dot_dimension_numbers<[1], [0], [0], [1], [0, 0, 1, 1], [], []>} : vector<48x8xf32>, vector<8x16xf32>, vector<48x16xf32> -> vector<48x16xf32>
    %21 = vector.broadcast %14 : vector<1x16xf32> to vector<48x16xf32>
    %22 = arith.mulf %20, %21 : vector<48x16xf32>
    %23 = vector.broadcast %15 : vector<1x16xf32> to vector<48x16xf32>
    %24 = arith.addf %22, %23 : vector<48x16xf32>
    %cst_9 = arith.constant 0.000000e+00 : f32
    %25 = vector.broadcast %cst_9 : f32 to vector<48x16xf32>
    %26 = arith.maximumf %24, %25 : vector<48x16xf32>
    %cst_10 = arith.constant 0.000000e+00 : f32
    %27 = vector.broadcast %cst_10 : f32 to vector<48x16xf32>
    %28 = arith.select %5, %26, %27 : vector<48x16xi1>, vector<48x16xf32>
    %29 = vector.extract_strided_slice %1 {offsets = [2, 0], sizes = [1, 16], strides = [1, 1]} : vector<20x16xf32> to vector<1x16xf32>
    %30 = vector.extract_strided_slice %1 {offsets = [3, 0], sizes = [1, 16], strides = [1, 1]} : vector<20x16xf32> to vector<1x16xf32>
    %c0_11 = arith.constant 0 : index
    %c0_12 = arith.constant 0 : index
    %c0_13 = arith.constant 0 : index
    %31 = vector.load %arg1[%c0_11, %c0_12, %c0_13] : memref<13x16x16xf32, #tpu.memory_space<vmem>>, vector<1x16x16xf32>
    %32 = vector.shape_cast %31 : vector<1x16x16xf32> to vector<16x16xf32>
    %c1 = arith.constant 1 : index
    %c0_14 = arith.constant 0 : index
    %c0_15 = arith.constant 0 : index
    %33 = vector.load %arg1[%c1, %c0_14, %c0_15] : memref<13x16x16xf32, #tpu.memory_space<vmem>>, vector<1x16x16xf32>
    %34 = vector.shape_cast %33 : vector<1x16x16xf32> to vector<16x16xf32>
    %c2 = arith.constant 2 : index
    %c0_16 = arith.constant 0 : index
    %c0_17 = arith.constant 0 : index
    %35 = vector.load %arg1[%c2, %c0_16, %c0_17] : memref<13x16x16xf32, #tpu.memory_space<vmem>>, vector<1x16x16xf32>
    %36 = vector.shape_cast %35 : vector<1x16x16xf32> to vector<16x16xf32>
    %cst_18 = arith.constant dense<0.000000e+00> : vector<48x16xf32>
    %37 = tpu.matmul %28, %34, %cst_18 {dimension_numbers = #tpu.dot_dimension_numbers<[1], [0], [0], [1], [0, 0, 1, 1], [], []>} : vector<48x16xf32>, vector<16x16xf32>, vector<48x16xf32> -> vector<48x16xf32>
    %cst_19 = arith.constant 0.000000e+00 : f32
    %38 = vector.broadcast %cst_19 : f32 to vector<1x16xf32>
    %39 = vector.extract_strided_slice %28 {offsets = [0, 0], sizes = [47, 16], strides = [1, 1]} : vector<48x16xf32> to vector<47x16xf32>
    %40 = tpu.concatenate %38, %39 in 0 : vector<1x16xf32>, vector<47x16xf32> -> vector<48x16xf32>
    %cst_20 = arith.constant dense<0.000000e+00> : vector<48x16xf32>
    %41 = tpu.matmul %40, %32, %cst_20 {dimension_numbers = #tpu.dot_dimension_numbers<[1], [0], [0], [1], [0, 0, 1, 1], [], []>} : vector<48x16xf32>, vector<16x16xf32>, vector<48x16xf32> -> vector<48x16xf32>
    %42 = arith.addf %37, %41 : vector<48x16xf32>
    %cst_21 = arith.constant 0.000000e+00 : f32
    %43 = vector.broadcast %cst_21 : f32 to vector<1x16xf32>
    %44 = vector.extract_strided_slice %28 {offsets = [1, 0], sizes = [47, 16], strides = [1, 1]} : vector<48x16xf32> to vector<47x16xf32>
    %45 = tpu.concatenate %44, %43 in 0 : vector<47x16xf32>, vector<1x16xf32> -> vector<48x16xf32>
    %cst_22 = arith.constant dense<0.000000e+00> : vector<48x16xf32>
    %46 = tpu.matmul %45, %36, %cst_22 {dimension_numbers = #tpu.dot_dimension_numbers<[1], [0], [0], [1], [0, 0, 1, 1], [], []>} : vector<48x16xf32>, vector<16x16xf32>, vector<48x16xf32> -> vector<48x16xf32>
    %47 = arith.addf %42, %46 : vector<48x16xf32>
    %48 = vector.broadcast %29 : vector<1x16xf32> to vector<48x16xf32>
    %49 = arith.mulf %47, %48 : vector<48x16xf32>
    %50 = vector.broadcast %30 : vector<1x16xf32> to vector<48x16xf32>
    %51 = arith.addf %49, %50 : vector<48x16xf32>
    %cst_23 = arith.constant 0.000000e+00 : f32
    %52 = vector.broadcast %cst_23 : f32 to vector<48x16xf32>
    %53 = arith.maximumf %51, %52 : vector<48x16xf32>
    %cst_24 = arith.constant 0.000000e+00 : f32
    %54 = vector.broadcast %cst_24 : f32 to vector<48x16xf32>
    %55 = arith.select %5, %53, %54 : vector<48x16xi1>, vector<48x16xf32>
    %56 = vector.extract_strided_slice %1 {offsets = [4, 0], sizes = [1, 16], strides = [1, 1]} : vector<20x16xf32> to vector<1x16xf32>
    %57 = vector.extract_strided_slice %1 {offsets = [5, 0], sizes = [1, 16], strides = [1, 1]} : vector<20x16xf32> to vector<1x16xf32>
    %c3 = arith.constant 3 : index
    %c0_25 = arith.constant 0 : index
    %c0_26 = arith.constant 0 : index
    %58 = vector.load %arg1[%c3, %c0_25, %c0_26] : memref<13x16x16xf32, #tpu.memory_space<vmem>>, vector<1x16x16xf32>
    %59 = vector.shape_cast %58 : vector<1x16x16xf32> to vector<16x16xf32>
    %c4 = arith.constant 4 : index
    %c0_27 = arith.constant 0 : index
    %c0_28 = arith.constant 0 : index
    %60 = vector.load %arg1[%c4, %c0_27, %c0_28] : memref<13x16x16xf32, #tpu.memory_space<vmem>>, vector<1x16x16xf32>
    %61 = vector.shape_cast %60 : vector<1x16x16xf32> to vector<16x16xf32>
    %c5 = arith.constant 5 : index
    %c0_29 = arith.constant 0 : index
    %c0_30 = arith.constant 0 : index
    %62 = vector.load %arg1[%c5, %c0_29, %c0_30] : memref<13x16x16xf32, #tpu.memory_space<vmem>>, vector<1x16x16xf32>
    %63 = vector.shape_cast %62 : vector<1x16x16xf32> to vector<16x16xf32>
    %cst_31 = arith.constant dense<0.000000e+00> : vector<48x16xf32>
    %64 = tpu.matmul %55, %61, %cst_31 {dimension_numbers = #tpu.dot_dimension_numbers<[1], [0], [0], [1], [0, 0, 1, 1], [], []>} : vector<48x16xf32>, vector<16x16xf32>, vector<48x16xf32> -> vector<48x16xf32>
    %cst_32 = arith.constant 0.000000e+00 : f32
    %65 = vector.broadcast %cst_32 : f32 to vector<1x16xf32>
    %66 = vector.extract_strided_slice %55 {offsets = [0, 0], sizes = [47, 16], strides = [1, 1]} : vector<48x16xf32> to vector<47x16xf32>
    %67 = tpu.concatenate %65, %66 in 0 : vector<1x16xf32>, vector<47x16xf32> -> vector<48x16xf32>
    %cst_33 = arith.constant dense<0.000000e+00> : vector<48x16xf32>
    %68 = tpu.matmul %67, %59, %cst_33 {dimension_numbers = #tpu.dot_dimension_numbers<[1], [0], [0], [1], [0, 0, 1, 1], [], []>} : vector<48x16xf32>, vector<16x16xf32>, vector<48x16xf32> -> vector<48x16xf32>
    %69 = arith.addf %64, %68 : vector<48x16xf32>
    %cst_34 = arith.constant 0.000000e+00 : f32
    %70 = vector.broadcast %cst_34 : f32 to vector<1x16xf32>
    %71 = vector.extract_strided_slice %55 {offsets = [1, 0], sizes = [47, 16], strides = [1, 1]} : vector<48x16xf32> to vector<47x16xf32>
    %72 = tpu.concatenate %71, %70 in 0 : vector<47x16xf32>, vector<1x16xf32> -> vector<48x16xf32>
    %cst_35 = arith.constant dense<0.000000e+00> : vector<48x16xf32>
    %73 = tpu.matmul %72, %63, %cst_35 {dimension_numbers = #tpu.dot_dimension_numbers<[1], [0], [0], [1], [0, 0, 1, 1], [], []>} : vector<48x16xf32>, vector<16x16xf32>, vector<48x16xf32> -> vector<48x16xf32>
    %74 = arith.addf %69, %73 : vector<48x16xf32>
    %75 = vector.broadcast %56 : vector<1x16xf32> to vector<48x16xf32>
    %76 = arith.mulf %74, %75 : vector<48x16xf32>
    %77 = vector.broadcast %57 : vector<1x16xf32> to vector<48x16xf32>
    %78 = arith.addf %76, %77 : vector<48x16xf32>
    %79 = arith.addf %78, %28 : vector<48x16xf32>
    %cst_36 = arith.constant 0.000000e+00 : f32
    %80 = vector.broadcast %cst_36 : f32 to vector<48x16xf32>
    %81 = arith.maximumf %79, %80 : vector<48x16xf32>
    %cst_37 = arith.constant 0.000000e+00 : f32
    %82 = vector.broadcast %cst_37 : f32 to vector<48x16xf32>
    %83 = arith.select %5, %81, %82 : vector<48x16xi1>, vector<48x16xf32>
    %84 = vector.extract_strided_slice %1 {offsets = [6, 0], sizes = [1, 16], strides = [1, 1]} : vector<20x16xf32> to vector<1x16xf32>
    %85 = vector.extract_strided_slice %1 {offsets = [7, 0], sizes = [1, 16], strides = [1, 1]} : vector<20x16xf32> to vector<1x16xf32>
    %c6 = arith.constant 6 : index
    %c0_38 = arith.constant 0 : index
    %c0_39 = arith.constant 0 : index
    %86 = vector.load %arg1[%c6, %c0_38, %c0_39] : memref<13x16x16xf32, #tpu.memory_space<vmem>>, vector<1x16x16xf32>
    %87 = vector.shape_cast %86 : vector<1x16x16xf32> to vector<16x16xf32>
    %c7 = arith.constant 7 : index
    %c0_40 = arith.constant 0 : index
    %c0_41 = arith.constant 0 : index
    %88 = vector.load %arg1[%c7, %c0_40, %c0_41] : memref<13x16x16xf32, #tpu.memory_space<vmem>>, vector<1x16x16xf32>
    %89 = vector.shape_cast %88 : vector<1x16x16xf32> to vector<16x16xf32>
    %c8 = arith.constant 8 : index
    %c0_42 = arith.constant 0 : index
    %c0_43 = arith.constant 0 : index
    %90 = vector.load %arg1[%c8, %c0_42, %c0_43] : memref<13x16x16xf32, #tpu.memory_space<vmem>>, vector<1x16x16xf32>
    %91 = vector.shape_cast %90 : vector<1x16x16xf32> to vector<16x16xf32>
    %cst_44 = arith.constant dense<0.000000e+00> : vector<48x16xf32>
    %92 = tpu.matmul %83, %89, %cst_44 {dimension_numbers = #tpu.dot_dimension_numbers<[1], [0], [0], [1], [0, 0, 1, 1], [], []>} : vector<48x16xf32>, vector<16x16xf32>, vector<48x16xf32> -> vector<48x16xf32>
    %cst_45 = arith.constant 0.000000e+00 : f32
    %93 = vector.broadcast %cst_45 : f32 to vector<1x16xf32>
    %94 = vector.extract_strided_slice %83 {offsets = [0, 0], sizes = [47, 16], strides = [1, 1]} : vector<48x16xf32> to vector<47x16xf32>
    %95 = tpu.concatenate %93, %94 in 0 : vector<1x16xf32>, vector<47x16xf32> -> vector<48x16xf32>
    %cst_46 = arith.constant dense<0.000000e+00> : vector<48x16xf32>
    %96 = tpu.matmul %95, %87, %cst_46 {dimension_numbers = #tpu.dot_dimension_numbers<[1], [0], [0], [1], [0, 0, 1, 1], [], []>} : vector<48x16xf32>, vector<16x16xf32>, vector<48x16xf32> -> vector<48x16xf32>
    %97 = arith.addf %92, %96 : vector<48x16xf32>
    %cst_47 = arith.constant 0.000000e+00 : f32
    %98 = vector.broadcast %cst_47 : f32 to vector<1x16xf32>
    %99 = vector.extract_strided_slice %83 {offsets = [1, 0], sizes = [47, 16], strides = [1, 1]} : vector<48x16xf32> to vector<47x16xf32>
    %100 = tpu.concatenate %99, %98 in 0 : vector<47x16xf32>, vector<1x16xf32> -> vector<48x16xf32>
    %cst_48 = arith.constant dense<0.000000e+00> : vector<48x16xf32>
    %101 = tpu.matmul %100, %91, %cst_48 {dimension_numbers = #tpu.dot_dimension_numbers<[1], [0], [0], [1], [0, 0, 1, 1], [], []>} : vector<48x16xf32>, vector<16x16xf32>, vector<48x16xf32> -> vector<48x16xf32>
    %102 = arith.addf %97, %101 : vector<48x16xf32>
    %103 = vector.broadcast %84 : vector<1x16xf32> to vector<48x16xf32>
    %104 = arith.mulf %102, %103 : vector<48x16xf32>
    %105 = vector.broadcast %85 : vector<1x16xf32> to vector<48x16xf32>
    %106 = arith.addf %104, %105 : vector<48x16xf32>
    %cst_49 = arith.constant 0.000000e+00 : f32
    %107 = vector.broadcast %cst_49 : f32 to vector<48x16xf32>
    %108 = arith.maximumf %106, %107 : vector<48x16xf32>
    %cst_50 = arith.constant 0.000000e+00 : f32
    %109 = vector.broadcast %cst_50 : f32 to vector<48x16xf32>
    %110 = arith.select %5, %108, %109 : vector<48x16xi1>, vector<48x16xf32>
    %111 = vector.extract_strided_slice %1 {offsets = [8, 0], sizes = [1, 16], strides = [1, 1]} : vector<20x16xf32> to vector<1x16xf32>
    %112 = vector.extract_strided_slice %1 {offsets = [9, 0], sizes = [1, 16], strides = [1, 1]} : vector<20x16xf32> to vector<1x16xf32>
    %c9 = arith.constant 9 : index
    %c0_51 = arith.constant 0 : index
    %c0_52 = arith.constant 0 : index
    %113 = vector.load %arg1[%c9, %c0_51, %c0_52] : memref<13x16x16xf32, #tpu.memory_space<vmem>>, vector<1x16x16xf32>
    %114 = vector.shape_cast %113 : vector<1x16x16xf32> to vector<16x16xf32>
    %c10 = arith.constant 10 : index
    %c0_53 = arith.constant 0 : index
    %c0_54 = arith.constant 0 : index
    %115 = vector.load %arg1[%c10, %c0_53, %c0_54] : memref<13x16x16xf32, #tpu.memory_space<vmem>>, vector<1x16x16xf32>
    %116 = vector.shape_cast %115 : vector<1x16x16xf32> to vector<16x16xf32>
    %c11 = arith.constant 11 : index
    %c0_55 = arith.constant 0 : index
    %c0_56 = arith.constant 0 : index
    %117 = vector.load %arg1[%c11, %c0_55, %c0_56] : memref<13x16x16xf32, #tpu.memory_space<vmem>>, vector<1x16x16xf32>
    %118 = vector.shape_cast %117 : vector<1x16x16xf32> to vector<16x16xf32>
    %cst_57 = arith.constant dense<0.000000e+00> : vector<48x16xf32>
    %119 = tpu.matmul %110, %116, %cst_57 {dimension_numbers = #tpu.dot_dimension_numbers<[1], [0], [0], [1], [0, 0, 1, 1], [], []>} : vector<48x16xf32>, vector<16x16xf32>, vector<48x16xf32> -> vector<48x16xf32>
    %cst_58 = arith.constant 0.000000e+00 : f32
    %120 = vector.broadcast %cst_58 : f32 to vector<1x16xf32>
    %121 = vector.extract_strided_slice %110 {offsets = [0, 0], sizes = [47, 16], strides = [1, 1]} : vector<48x16xf32> to vector<47x16xf32>
    %122 = tpu.concatenate %120, %121 in 0 : vector<1x16xf32>, vector<47x16xf32> -> vector<48x16xf32>
    %cst_59 = arith.constant dense<0.000000e+00> : vector<48x16xf32>
    %123 = tpu.matmul %122, %114, %cst_59 {dimension_numbers = #tpu.dot_dimension_numbers<[1], [0], [0], [1], [0, 0, 1, 1], [], []>} : vector<48x16xf32>, vector<16x16xf32>, vector<48x16xf32> -> vector<48x16xf32>
    %124 = arith.addf %119, %123 : vector<48x16xf32>
    %cst_60 = arith.constant 0.000000e+00 : f32
    %125 = vector.broadcast %cst_60 : f32 to vector<1x16xf32>
    %126 = vector.extract_strided_slice %110 {offsets = [1, 0], sizes = [47, 16], strides = [1, 1]} : vector<48x16xf32> to vector<47x16xf32>
    %127 = tpu.concatenate %126, %125 in 0 : vector<47x16xf32>, vector<1x16xf32> -> vector<48x16xf32>
    %cst_61 = arith.constant dense<0.000000e+00> : vector<48x16xf32>
    %128 = tpu.matmul %127, %118, %cst_61 {dimension_numbers = #tpu.dot_dimension_numbers<[1], [0], [0], [1], [0, 0, 1, 1], [], []>} : vector<48x16xf32>, vector<16x16xf32>, vector<48x16xf32> -> vector<48x16xf32>
    %129 = arith.addf %124, %128 : vector<48x16xf32>
    %130 = vector.broadcast %111 : vector<1x16xf32> to vector<48x16xf32>
    %131 = arith.mulf %129, %130 : vector<48x16xf32>
    %132 = vector.broadcast %112 : vector<1x16xf32> to vector<48x16xf32>
    %133 = arith.addf %131, %132 : vector<48x16xf32>
    %134 = arith.addf %133, %83 : vector<48x16xf32>
    %cst_62 = arith.constant 0.000000e+00 : f32
    %135 = vector.broadcast %cst_62 : f32 to vector<48x16xf32>
    %136 = arith.maximumf %134, %135 : vector<48x16xf32>
    %cst_63 = arith.constant 0.000000e+00 : f32
    %137 = vector.broadcast %cst_63 : f32 to vector<48x16xf32>
    %138 = arith.select %5, %136, %137 : vector<48x16xi1>, vector<48x16xf32>
    %c1_64 = arith.constant 1 : index
    %c0_65 = arith.constant 0 : index
    %c0_66 = arith.constant 0 : index
    %139 = vector.load %arg2[%c1_64, %c0_65, %c0_66] : memref<3x16x32xf32, #tpu.memory_space<vmem>>, vector<1x16x32xf32>
    %140 = vector.shape_cast %139 : vector<1x16x32xf32> to vector<16x32xf32>
    %cst_67 = arith.constant dense<0.000000e+00> : vector<48x32xf32>
    %141 = tpu.matmul %138, %140, %cst_67 {dimension_numbers = #tpu.dot_dimension_numbers<[1], [0], [0], [1], [0, 0, 1, 1], [], []>} : vector<48x16xf32>, vector<16x32xf32>, vector<48x32xf32> -> vector<48x32xf32>
    %cst_68 = arith.constant 0.000000e+00 : f32
    %142 = vector.broadcast %cst_68 : f32 to vector<1x16xf32>
    %143 = vector.extract_strided_slice %138 {offsets = [0, 0], sizes = [47, 16], strides = [1, 1]} : vector<48x16xf32> to vector<47x16xf32>
    %144 = tpu.concatenate %142, %143 in 0 : vector<1x16xf32>, vector<47x16xf32> -> vector<48x16xf32>
    %c0_69 = arith.constant 0 : index
    %c0_70 = arith.constant 0 : index
    %c0_71 = arith.constant 0 : index
    %145 = vector.load %arg2[%c0_69, %c0_70, %c0_71] : memref<3x16x32xf32, #tpu.memory_space<vmem>>, vector<1x16x32xf32>
    %146 = vector.shape_cast %145 : vector<1x16x32xf32> to vector<16x32xf32>
    %cst_72 = arith.constant dense<0.000000e+00> : vector<48x32xf32>
    %147 = tpu.matmul %144, %146, %cst_72 {dimension_numbers = #tpu.dot_dimension_numbers<[1], [0], [0], [1], [0, 0, 1, 1], [], []>} : vector<48x16xf32>, vector<16x32xf32>, vector<48x32xf32> -> vector<48x32xf32>
    %148 = arith.addf %141, %147 : vector<48x32xf32>
    %cst_73 = arith.constant 0.000000e+00 : f32
    %149 = vector.broadcast %cst_73 : f32 to vector<1x16xf32>
    %150 = vector.extract_strided_slice %138 {offsets = [1, 0], sizes = [47, 16], strides = [1, 1]} : vector<48x16xf32> to vector<47x16xf32>
    %151 = tpu.concatenate %150, %149 in 0 : vector<47x16xf32>, vector<1x16xf32> -> vector<48x16xf32>
    %c2_74 = arith.constant 2 : index
    %c0_75 = arith.constant 0 : index
    %c0_76 = arith.constant 0 : index
    %152 = vector.load %arg2[%c2_74, %c0_75, %c0_76] : memref<3x16x32xf32, #tpu.memory_space<vmem>>, vector<1x16x32xf32>
    %153 = vector.shape_cast %152 : vector<1x16x32xf32> to vector<16x32xf32>
    %cst_77 = arith.constant dense<0.000000e+00> : vector<48x32xf32>
    %154 = tpu.matmul %151, %153, %cst_77 {dimension_numbers = #tpu.dot_dimension_numbers<[1], [0], [0], [1], [0, 0, 1, 1], [], []>} : vector<48x16xf32>, vector<16x32xf32>, vector<48x32xf32> -> vector<48x32xf32>
    %155 = arith.addf %148, %154 : vector<48x32xf32>
    %156 = arith.mulf %155, %9 : vector<48x32xf32>
    %cst_78 = arith.constant dense<0.000000e+00> : vector<2x32xf32>
    %157 = tpu.matmul %11, %156, %cst_78 {dimension_numbers = #tpu.dot_dimension_numbers<[1], [0], [0], [1], [0, 0, 1, 1], [], []>} : vector<2x48xf32>, vector<48x32xf32>, vector<2x32xf32> -> vector<2x32xf32>
    %158 = vector.extract_strided_slice %1 {offsets = [10, 0], sizes = [1, 8], strides = [1, 1]} : vector<20x16xf32> to vector<1x8xf32>
    %159 = vector.extract_strided_slice %1 {offsets = [11, 0], sizes = [1, 8], strides = [1, 1]} : vector<20x16xf32> to vector<1x8xf32>
    %160 = vector.extract_strided_slice %0 {offsets = [0, 6], sizes = [64, 2], strides = [1, 1]} : vector<64x8xf32> to vector<64x2xf32>
    %c12_79 = arith.constant 12 : index
    %c0_80 = arith.constant 0 : index
    %c0_81 = arith.constant 0 : index
    %161 = vector.load %arg3[%c12_79, %c0_80, %c0_81] : memref<13x8x8xf32, #tpu.memory_space<vmem>>, vector<1x8x8xf32>
    %162 = vector.shape_cast %161 : vector<1x8x8xf32> to vector<8x8xf32>
    %163 = vector.extract_strided_slice %162 {offsets = [0, 0], sizes = [2, 8], strides = [1, 1]} : vector<8x8xf32> to vector<2x8xf32>
    %cst_82 = arith.constant dense<0.000000e+00> : vector<64x8xf32>
    %164 = tpu.matmul %160, %163, %cst_82 {dimension_numbers = #tpu.dot_dimension_numbers<[1], [0], [0], [1], [0, 0, 1, 1], [], []>} : vector<64x2xf32>, vector<2x8xf32>, vector<64x8xf32> -> vector<64x8xf32>
    %165 = vector.broadcast %158 : vector<1x8xf32> to vector<64x8xf32>
    %166 = arith.mulf %164, %165 : vector<64x8xf32>
    %167 = vector.broadcast %159 : vector<1x8xf32> to vector<64x8xf32>
    %168 = arith.addf %166, %167 : vector<64x8xf32>
    %cst_83 = arith.constant 0.000000e+00 : f32
    %169 = vector.broadcast %cst_83 : f32 to vector<64x8xf32>
    %170 = arith.maximumf %168, %169 : vector<64x8xf32>
    %cst_84 = arith.constant 0.000000e+00 : f32
    %171 = vector.broadcast %cst_84 : f32 to vector<64x8xf32>
    %172 = arith.select %8, %170, %171 : vector<64x8xi1>, vector<64x8xf32>
    %173 = vector.extract_strided_slice %1 {offsets = [12, 0], sizes = [1, 8], strides = [1, 1]} : vector<20x16xf32> to vector<1x8xf32>
    %174 = vector.extract_strided_slice %1 {offsets = [13, 0], sizes = [1, 8], strides = [1, 1]} : vector<20x16xf32> to vector<1x8xf32>
    %c0_85 = arith.constant 0 : index
    %c0_86 = arith.constant 0 : index
    %c0_87 = arith.constant 0 : index
    %175 = vector.load %arg3[%c0_85, %c0_86, %c0_87] : memref<13x8x8xf32, #tpu.memory_space<vmem>>, vector<1x8x8xf32>
    %176 = vector.shape_cast %175 : vector<1x8x8xf32> to vector<8x8xf32>
    %c1_88 = arith.constant 1 : index
    %c0_89 = arith.constant 0 : index
    %c0_90 = arith.constant 0 : index
    %177 = vector.load %arg3[%c1_88, %c0_89, %c0_90] : memref<13x8x8xf32, #tpu.memory_space<vmem>>, vector<1x8x8xf32>
    %178 = vector.shape_cast %177 : vector<1x8x8xf32> to vector<8x8xf32>
    %c2_91 = arith.constant 2 : index
    %c0_92 = arith.constant 0 : index
    %c0_93 = arith.constant 0 : index
    %179 = vector.load %arg3[%c2_91, %c0_92, %c0_93] : memref<13x8x8xf32, #tpu.memory_space<vmem>>, vector<1x8x8xf32>
    %180 = vector.shape_cast %179 : vector<1x8x8xf32> to vector<8x8xf32>
    %cst_94 = arith.constant dense<0.000000e+00> : vector<64x8xf32>
    %181 = tpu.matmul %172, %178, %cst_94 {dimension_numbers = #tpu.dot_dimension_numbers<[1], [0], [0], [1], [0, 0, 1, 1], [], []>} : vector<64x8xf32>, vector<8x8xf32>, vector<64x8xf32> -> vector<64x8xf32>
    %cst_95 = arith.constant 0.000000e+00 : f32
    %182 = vector.broadcast %cst_95 : f32 to vector<1x8xf32>
    %183 = vector.extract_strided_slice %172 {offsets = [0, 0], sizes = [63, 8], strides = [1, 1]} : vector<64x8xf32> to vector<63x8xf32>
    %184 = tpu.concatenate %182, %183 in 0 : vector<1x8xf32>, vector<63x8xf32> -> vector<64x8xf32>
    %cst_96 = arith.constant dense<0.000000e+00> : vector<64x8xf32>
    %185 = tpu.matmul %184, %176, %cst_96 {dimension_numbers = #tpu.dot_dimension_numbers<[1], [0], [0], [1], [0, 0, 1, 1], [], []>} : vector<64x8xf32>, vector<8x8xf32>, vector<64x8xf32> -> vector<64x8xf32>
    %186 = arith.addf %181, %185 : vector<64x8xf32>
    %cst_97 = arith.constant 0.000000e+00 : f32
    %187 = vector.broadcast %cst_97 : f32 to vector<1x8xf32>
    %188 = vector.extract_strided_slice %172 {offsets = [1, 0], sizes = [63, 8], strides = [1, 1]} : vector<64x8xf32> to vector<63x8xf32>
    %189 = tpu.concatenate %188, %187 in 0 : vector<63x8xf32>, vector<1x8xf32> -> vector<64x8xf32>
    %cst_98 = arith.constant dense<0.000000e+00> : vector<64x8xf32>
    %190 = tpu.matmul %189, %180, %cst_98 {dimension_numbers = #tpu.dot_dimension_numbers<[1], [0], [0], [1], [0, 0, 1, 1], [], []>} : vector<64x8xf32>, vector<8x8xf32>, vector<64x8xf32> -> vector<64x8xf32>
    %191 = arith.addf %186, %190 : vector<64x8xf32>
    %192 = vector.broadcast %173 : vector<1x8xf32> to vector<64x8xf32>
    %193 = arith.mulf %191, %192 : vector<64x8xf32>
    %194 = vector.broadcast %174 : vector<1x8xf32> to vector<64x8xf32>
    %195 = arith.addf %193, %194 : vector<64x8xf32>
    %cst_99 = arith.constant 0.000000e+00 : f32
    %196 = vector.broadcast %cst_99 : f32 to vector<64x8xf32>
    %197 = arith.maximumf %195, %196 : vector<64x8xf32>
    %cst_100 = arith.constant 0.000000e+00 : f32
    %198 = vector.broadcast %cst_100 : f32 to vector<64x8xf32>
    %199 = arith.select %8, %197, %198 : vector<64x8xi1>, vector<64x8xf32>
    %200 = vector.extract_strided_slice %1 {offsets = [14, 0], sizes = [1, 8], strides = [1, 1]} : vector<20x16xf32> to vector<1x8xf32>
    %201 = vector.extract_strided_slice %1 {offsets = [15, 0], sizes = [1, 8], strides = [1, 1]} : vector<20x16xf32> to vector<1x8xf32>
    %c3_101 = arith.constant 3 : index
    %c0_102 = arith.constant 0 : index
    %c0_103 = arith.constant 0 : index
    %202 = vector.load %arg3[%c3_101, %c0_102, %c0_103] : memref<13x8x8xf32, #tpu.memory_space<vmem>>, vector<1x8x8xf32>
    %203 = vector.shape_cast %202 : vector<1x8x8xf32> to vector<8x8xf32>
    %c4_104 = arith.constant 4 : index
    %c0_105 = arith.constant 0 : index
    %c0_106 = arith.constant 0 : index
    %204 = vector.load %arg3[%c4_104, %c0_105, %c0_106] : memref<13x8x8xf32, #tpu.memory_space<vmem>>, vector<1x8x8xf32>
    %205 = vector.shape_cast %204 : vector<1x8x8xf32> to vector<8x8xf32>
    %c5_107 = arith.constant 5 : index
    %c0_108 = arith.constant 0 : index
    %c0_109 = arith.constant 0 : index
    %206 = vector.load %arg3[%c5_107, %c0_108, %c0_109] : memref<13x8x8xf32, #tpu.memory_space<vmem>>, vector<1x8x8xf32>
    %207 = vector.shape_cast %206 : vector<1x8x8xf32> to vector<8x8xf32>
    %cst_110 = arith.constant dense<0.000000e+00> : vector<64x8xf32>
    %208 = tpu.matmul %199, %205, %cst_110 {dimension_numbers = #tpu.dot_dimension_numbers<[1], [0], [0], [1], [0, 0, 1, 1], [], []>} : vector<64x8xf32>, vector<8x8xf32>, vector<64x8xf32> -> vector<64x8xf32>
    %cst_111 = arith.constant 0.000000e+00 : f32
    %209 = vector.broadcast %cst_111 : f32 to vector<1x8xf32>
    %210 = vector.extract_strided_slice %199 {offsets = [0, 0], sizes = [63, 8], strides = [1, 1]} : vector<64x8xf32> to vector<63x8xf32>
    %211 = tpu.concatenate %209, %210 in 0 : vector<1x8xf32>, vector<63x8xf32> -> vector<64x8xf32>
    %cst_112 = arith.constant dense<0.000000e+00> : vector<64x8xf32>
    %212 = tpu.matmul %211, %203, %cst_112 {dimension_numbers = #tpu.dot_dimension_numbers<[1], [0], [0], [1], [0, 0, 1, 1], [], []>} : vector<64x8xf32>, vector<8x8xf32>, vector<64x8xf32> -> vector<64x8xf32>
    %213 = arith.addf %208, %212 : vector<64x8xf32>
    %cst_113 = arith.constant 0.000000e+00 : f32
    %214 = vector.broadcast %cst_113 : f32 to vector<1x8xf32>
    %215 = vector.extract_strided_slice %199 {offsets = [1, 0], sizes = [63, 8], strides = [1, 1]} : vector<64x8xf32> to vector<63x8xf32>
    %216 = tpu.concatenate %215, %214 in 0 : vector<63x8xf32>, vector<1x8xf32> -> vector<64x8xf32>
    %cst_114 = arith.constant dense<0.000000e+00> : vector<64x8xf32>
    %217 = tpu.matmul %216, %207, %cst_114 {dimension_numbers = #tpu.dot_dimension_numbers<[1], [0], [0], [1], [0, 0, 1, 1], [], []>} : vector<64x8xf32>, vector<8x8xf32>, vector<64x8xf32> -> vector<64x8xf32>
    %218 = arith.addf %213, %217 : vector<64x8xf32>
    %219 = vector.broadcast %200 : vector<1x8xf32> to vector<64x8xf32>
    %220 = arith.mulf %218, %219 : vector<64x8xf32>
    %221 = vector.broadcast %201 : vector<1x8xf32> to vector<64x8xf32>
    %222 = arith.addf %220, %221 : vector<64x8xf32>
    %223 = arith.addf %222, %172 : vector<64x8xf32>
    %cst_115 = arith.constant 0.000000e+00 : f32
    %224 = vector.broadcast %cst_115 : f32 to vector<64x8xf32>
    %225 = arith.maximumf %223, %224 : vector<64x8xf32>
    %cst_116 = arith.constant 0.000000e+00 : f32
    %226 = vector.broadcast %cst_116 : f32 to vector<64x8xf32>
    %227 = arith.select %8, %225, %226 : vector<64x8xi1>, vector<64x8xf32>
    %228 = vector.extract_strided_slice %1 {offsets = [16, 0], sizes = [1, 8], strides = [1, 1]} : vector<20x16xf32> to vector<1x8xf32>
    %229 = vector.extract_strided_slice %1 {offsets = [17, 0], sizes = [1, 8], strides = [1, 1]} : vector<20x16xf32> to vector<1x8xf32>
    %c6_117 = arith.constant 6 : index
    %c0_118 = arith.constant 0 : index
    %c0_119 = arith.constant 0 : index
    %230 = vector.load %arg3[%c6_117, %c0_118, %c0_119] : memref<13x8x8xf32, #tpu.memory_space<vmem>>, vector<1x8x8xf32>
    %231 = vector.shape_cast %230 : vector<1x8x8xf32> to vector<8x8xf32>
    %c7_120 = arith.constant 7 : index
    %c0_121 = arith.constant 0 : index
    %c0_122 = arith.constant 0 : index
    %232 = vector.load %arg3[%c7_120, %c0_121, %c0_122] : memref<13x8x8xf32, #tpu.memory_space<vmem>>, vector<1x8x8xf32>
    %233 = vector.shape_cast %232 : vector<1x8x8xf32> to vector<8x8xf32>
    %c8_123 = arith.constant 8 : index
    %c0_124 = arith.constant 0 : index
    %c0_125 = arith.constant 0 : index
    %234 = vector.load %arg3[%c8_123, %c0_124, %c0_125] : memref<13x8x8xf32, #tpu.memory_space<vmem>>, vector<1x8x8xf32>
    %235 = vector.shape_cast %234 : vector<1x8x8xf32> to vector<8x8xf32>
    %cst_126 = arith.constant dense<0.000000e+00> : vector<64x8xf32>
    %236 = tpu.matmul %227, %233, %cst_126 {dimension_numbers = #tpu.dot_dimension_numbers<[1], [0], [0], [1], [0, 0, 1, 1], [], []>} : vector<64x8xf32>, vector<8x8xf32>, vector<64x8xf32> -> vector<64x8xf32>
    %cst_127 = arith.constant 0.000000e+00 : f32
    %237 = vector.broadcast %cst_127 : f32 to vector<1x8xf32>
    %238 = vector.extract_strided_slice %227 {offsets = [0, 0], sizes = [63, 8], strides = [1, 1]} : vector<64x8xf32> to vector<63x8xf32>
    %239 = tpu.concatenate %237, %238 in 0 : vector<1x8xf32>, vector<63x8xf32> -> vector<64x8xf32>
    %cst_128 = arith.constant dense<0.000000e+00> : vector<64x8xf32>
    %240 = tpu.matmul %239, %231, %cst_128 {dimension_numbers = #tpu.dot_dimension_numbers<[1], [0], [0], [1], [0, 0, 1, 1], [], []>} : vector<64x8xf32>, vector<8x8xf32>, vector<64x8xf32> -> vector<64x8xf32>
    %241 = arith.addf %236, %240 : vector<64x8xf32>
    %cst_129 = arith.constant 0.000000e+00 : f32
    %242 = vector.broadcast %cst_129 : f32 to vector<1x8xf32>
    %243 = vector.extract_strided_slice %227 {offsets = [1, 0], sizes = [63, 8], strides = [1, 1]} : vector<64x8xf32> to vector<63x8xf32>
    %244 = tpu.concatenate %243, %242 in 0 : vector<63x8xf32>, vector<1x8xf32> -> vector<64x8xf32>
    %cst_130 = arith.constant dense<0.000000e+00> : vector<64x8xf32>
    %245 = tpu.matmul %244, %235, %cst_130 {dimension_numbers = #tpu.dot_dimension_numbers<[1], [0], [0], [1], [0, 0, 1, 1], [], []>} : vector<64x8xf32>, vector<8x8xf32>, vector<64x8xf32> -> vector<64x8xf32>
    %246 = arith.addf %241, %245 : vector<64x8xf32>
    %247 = vector.broadcast %228 : vector<1x8xf32> to vector<64x8xf32>
    %248 = arith.mulf %246, %247 : vector<64x8xf32>
    %249 = vector.broadcast %229 : vector<1x8xf32> to vector<64x8xf32>
    %250 = arith.addf %248, %249 : vector<64x8xf32>
    %cst_131 = arith.constant 0.000000e+00 : f32
    %251 = vector.broadcast %cst_131 : f32 to vector<64x8xf32>
    %252 = arith.maximumf %250, %251 : vector<64x8xf32>
    %cst_132 = arith.constant 0.000000e+00 : f32
    %253 = vector.broadcast %cst_132 : f32 to vector<64x8xf32>
    %254 = arith.select %8, %252, %253 : vector<64x8xi1>, vector<64x8xf32>
    %255 = vector.extract_strided_slice %1 {offsets = [18, 0], sizes = [1, 8], strides = [1, 1]} : vector<20x16xf32> to vector<1x8xf32>
    %256 = vector.extract_strided_slice %1 {offsets = [19, 0], sizes = [1, 8], strides = [1, 1]} : vector<20x16xf32> to vector<1x8xf32>
    %c9_133 = arith.constant 9 : index
    %c0_134 = arith.constant 0 : index
    %c0_135 = arith.constant 0 : index
    %257 = vector.load %arg3[%c9_133, %c0_134, %c0_135] : memref<13x8x8xf32, #tpu.memory_space<vmem>>, vector<1x8x8xf32>
    %258 = vector.shape_cast %257 : vector<1x8x8xf32> to vector<8x8xf32>
    %c10_136 = arith.constant 10 : index
    %c0_137 = arith.constant 0 : index
    %c0_138 = arith.constant 0 : index
    %259 = vector.load %arg3[%c10_136, %c0_137, %c0_138] : memref<13x8x8xf32, #tpu.memory_space<vmem>>, vector<1x8x8xf32>
    %260 = vector.shape_cast %259 : vector<1x8x8xf32> to vector<8x8xf32>
    %c11_139 = arith.constant 11 : index
    %c0_140 = arith.constant 0 : index
    %c0_141 = arith.constant 0 : index
    %261 = vector.load %arg3[%c11_139, %c0_140, %c0_141] : memref<13x8x8xf32, #tpu.memory_space<vmem>>, vector<1x8x8xf32>
    %262 = vector.shape_cast %261 : vector<1x8x8xf32> to vector<8x8xf32>
    %cst_142 = arith.constant dense<0.000000e+00> : vector<64x8xf32>
    %263 = tpu.matmul %254, %260, %cst_142 {dimension_numbers = #tpu.dot_dimension_numbers<[1], [0], [0], [1], [0, 0, 1, 1], [], []>} : vector<64x8xf32>, vector<8x8xf32>, vector<64x8xf32> -> vector<64x8xf32>
    %cst_143 = arith.constant 0.000000e+00 : f32
    %264 = vector.broadcast %cst_143 : f32 to vector<1x8xf32>
    %265 = vector.extract_strided_slice %254 {offsets = [0, 0], sizes = [63, 8], strides = [1, 1]} : vector<64x8xf32> to vector<63x8xf32>
    %266 = tpu.concatenate %264, %265 in 0 : vector<1x8xf32>, vector<63x8xf32> -> vector<64x8xf32>
    %cst_144 = arith.constant dense<0.000000e+00> : vector<64x8xf32>
    %267 = tpu.matmul %266, %258, %cst_144 {dimension_numbers = #tpu.dot_dimension_numbers<[1], [0], [0], [1], [0, 0, 1, 1], [], []>} : vector<64x8xf32>, vector<8x8xf32>, vector<64x8xf32> -> vector<64x8xf32>
    %268 = arith.addf %263, %267 : vector<64x8xf32>
    %cst_145 = arith.constant 0.000000e+00 : f32
    %269 = vector.broadcast %cst_145 : f32 to vector<1x8xf32>
    %270 = vector.extract_strided_slice %254 {offsets = [1, 0], sizes = [63, 8], strides = [1, 1]} : vector<64x8xf32> to vector<63x8xf32>
    %271 = tpu.concatenate %270, %269 in 0 : vector<63x8xf32>, vector<1x8xf32> -> vector<64x8xf32>
    %cst_146 = arith.constant dense<0.000000e+00> : vector<64x8xf32>
    %272 = tpu.matmul %271, %262, %cst_146 {dimension_numbers = #tpu.dot_dimension_numbers<[1], [0], [0], [1], [0, 0, 1, 1], [], []>} : vector<64x8xf32>, vector<8x8xf32>, vector<64x8xf32> -> vector<64x8xf32>
    %273 = arith.addf %268, %272 : vector<64x8xf32>
    %274 = vector.broadcast %255 : vector<1x8xf32> to vector<64x8xf32>
    %275 = arith.mulf %273, %274 : vector<64x8xf32>
    %276 = vector.broadcast %256 : vector<1x8xf32> to vector<64x8xf32>
    %277 = arith.addf %275, %276 : vector<64x8xf32>
    %278 = arith.addf %277, %227 : vector<64x8xf32>
    %cst_147 = arith.constant 0.000000e+00 : f32
    %279 = vector.broadcast %cst_147 : f32 to vector<64x8xf32>
    %280 = arith.maximumf %278, %279 : vector<64x8xf32>
    %cst_148 = arith.constant 0.000000e+00 : f32
    %281 = vector.broadcast %cst_148 : f32 to vector<64x8xf32>
    %282 = arith.select %8, %280, %281 : vector<64x8xi1>, vector<64x8xf32>
    %c0_149 = arith.constant 0 : index
    %c0_150 = arith.constant 0 : index
    %c0_151 = arith.constant 0 : index
    %283 = vector.load %arg4[%c0_149, %c0_150, %c0_151] : memref<6x8x16xf32, #tpu.memory_space<vmem>>, vector<1x8x16xf32>
    %284 = vector.shape_cast %283 : vector<1x8x16xf32> to vector<8x16xf32>
    %cst_152 = arith.constant dense<0.000000e+00> : vector<64x16xf32>
    %285 = tpu.matmul %282, %284, %cst_152 {dimension_numbers = #tpu.dot_dimension_numbers<[1], [0], [0], [1], [0, 0, 1, 1], [], []>} : vector<64x8xf32>, vector<8x16xf32>, vector<64x16xf32> -> vector<64x16xf32>
    %cst_153 = arith.constant 0.000000e+00 : f32
    %286 = vector.broadcast %cst_153 : f32 to vector<1x8xf32>
    %287 = vector.extract_strided_slice %282 {offsets = [1, 0], sizes = [63, 8], strides = [1, 1]} : vector<64x8xf32> to vector<63x8xf32>
    %288 = tpu.concatenate %287, %286 in 0 : vector<63x8xf32>, vector<1x8xf32> -> vector<64x8xf32>
    %c1_154 = arith.constant 1 : index
    %c0_155 = arith.constant 0 : index
    %c0_156 = arith.constant 0 : index
    %289 = vector.load %arg4[%c1_154, %c0_155, %c0_156] : memref<6x8x16xf32, #tpu.memory_space<vmem>>, vector<1x8x16xf32>
    %290 = vector.shape_cast %289 : vector<1x8x16xf32> to vector<8x16xf32>
    %cst_157 = arith.constant dense<0.000000e+00> : vector<64x16xf32>
    %291 = tpu.matmul %288, %290, %cst_157 {dimension_numbers = #tpu.dot_dimension_numbers<[1], [0], [0], [1], [0, 0, 1, 1], [], []>} : vector<64x8xf32>, vector<8x16xf32>, vector<64x16xf32> -> vector<64x16xf32>
    %292 = arith.addf %285, %291 : vector<64x16xf32>
    %cst_158 = arith.constant 0.000000e+00 : f32
    %293 = vector.broadcast %cst_158 : f32 to vector<2x8xf32>
    %294 = vector.extract_strided_slice %282 {offsets = [2, 0], sizes = [62, 8], strides = [1, 1]} : vector<64x8xf32> to vector<62x8xf32>
    %295 = tpu.concatenate %294, %293 in 0 : vector<62x8xf32>, vector<2x8xf32> -> vector<64x8xf32>
    %c2_159 = arith.constant 2 : index
    %c0_160 = arith.constant 0 : index
    %c0_161 = arith.constant 0 : index
    %296 = vector.load %arg4[%c2_159, %c0_160, %c0_161] : memref<6x8x16xf32, #tpu.memory_space<vmem>>, vector<1x8x16xf32>
    %297 = vector.shape_cast %296 : vector<1x8x16xf32> to vector<8x16xf32>
    %cst_162 = arith.constant dense<0.000000e+00> : vector<64x16xf32>
    %298 = tpu.matmul %295, %297, %cst_162 {dimension_numbers = #tpu.dot_dimension_numbers<[1], [0], [0], [1], [0, 0, 1, 1], [], []>} : vector<64x8xf32>, vector<8x16xf32>, vector<64x16xf32> -> vector<64x16xf32>
    %299 = arith.addf %292, %298 : vector<64x16xf32>
    %cst_163 = arith.constant 0.000000e+00 : f32
    %300 = vector.broadcast %cst_163 : f32 to vector<3x8xf32>
    %301 = vector.extract_strided_slice %282 {offsets = [3, 0], sizes = [61, 8], strides = [1, 1]} : vector<64x8xf32> to vector<61x8xf32>
    %302 = tpu.concatenate %301, %300 in 0 : vector<61x8xf32>, vector<3x8xf32> -> vector<64x8xf32>
    %c3_164 = arith.constant 3 : index
    %c0_165 = arith.constant 0 : index
    %c0_166 = arith.constant 0 : index
    %303 = vector.load %arg4[%c3_164, %c0_165, %c0_166] : memref<6x8x16xf32, #tpu.memory_space<vmem>>, vector<1x8x16xf32>
    %304 = vector.shape_cast %303 : vector<1x8x16xf32> to vector<8x16xf32>
    %cst_167 = arith.constant dense<0.000000e+00> : vector<64x16xf32>
    %305 = tpu.matmul %302, %304, %cst_167 {dimension_numbers = #tpu.dot_dimension_numbers<[1], [0], [0], [1], [0, 0, 1, 1], [], []>} : vector<64x8xf32>, vector<8x16xf32>, vector<64x16xf32> -> vector<64x16xf32>
    %306 = arith.addf %299, %305 : vector<64x16xf32>
    %cst_168 = arith.constant 0.000000e+00 : f32
    %307 = vector.broadcast %cst_168 : f32 to vector<4x8xf32>
    %308 = vector.extract_strided_slice %282 {offsets = [4, 0], sizes = [60, 8], strides = [1, 1]} : vector<64x8xf32> to vector<60x8xf32>
    %309 = tpu.concatenate %308, %307 in 0 : vector<60x8xf32>, vector<4x8xf32> -> vector<64x8xf32>
    %c4_169 = arith.constant 4 : index
    %c0_170 = arith.constant 0 : index
    %c0_171 = arith.constant 0 : index
    %310 = vector.load %arg4[%c4_169, %c0_170, %c0_171] : memref<6x8x16xf32, #tpu.memory_space<vmem>>, vector<1x8x16xf32>
    %311 = vector.shape_cast %310 : vector<1x8x16xf32> to vector<8x16xf32>
    %cst_172 = arith.constant dense<0.000000e+00> : vector<64x16xf32>
    %312 = tpu.matmul %309, %311, %cst_172 {dimension_numbers = #tpu.dot_dimension_numbers<[1], [0], [0], [1], [0, 0, 1, 1], [], []>} : vector<64x8xf32>, vector<8x16xf32>, vector<64x16xf32> -> vector<64x16xf32>
    %313 = arith.addf %306, %312 : vector<64x16xf32>
    %cst_173 = arith.constant 0.000000e+00 : f32
    %314 = vector.broadcast %cst_173 : f32 to vector<5x8xf32>
    %315 = vector.extract_strided_slice %282 {offsets = [5, 0], sizes = [59, 8], strides = [1, 1]} : vector<64x8xf32> to vector<59x8xf32>
    %316 = tpu.concatenate %315, %314 in 0 : vector<59x8xf32>, vector<5x8xf32> -> vector<64x8xf32>
    %c5_174 = arith.constant 5 : index
    %c0_175 = arith.constant 0 : index
    %c0_176 = arith.constant 0 : index
    %317 = vector.load %arg4[%c5_174, %c0_175, %c0_176] : memref<6x8x16xf32, #tpu.memory_space<vmem>>, vector<1x8x16xf32>
    %318 = vector.shape_cast %317 : vector<1x8x16xf32> to vector<8x16xf32>
    %cst_177 = arith.constant dense<0.000000e+00> : vector<64x16xf32>
    %319 = tpu.matmul %316, %318, %cst_177 {dimension_numbers = #tpu.dot_dimension_numbers<[1], [0], [0], [1], [0, 0, 1, 1], [], []>} : vector<64x8xf32>, vector<8x16xf32>, vector<64x16xf32> -> vector<64x16xf32>
    %320 = arith.addf %313, %319 : vector<64x16xf32>
    %321 = arith.mulf %320, %10 : vector<64x16xf32>
    %cst_178 = arith.constant dense<0.000000e+00> : vector<2x16xf32>
    %322 = tpu.matmul %12, %321, %cst_178 {dimension_numbers = #tpu.dot_dimension_numbers<[1], [0], [0], [1], [0, 0, 1, 1], [], []>} : vector<2x64xf32>, vector<64x16xf32>, vector<2x16xf32> -> vector<2x16xf32>
    %323 = tpu.concatenate %157, %322 in 1 : vector<2x32xf32>, vector<2x16xf32> -> vector<2x48xf32>
    %324 = arith.addf %323, %13 : vector<2x48xf32>
    %cst_179 = arith.constant 0.000000e+00 : f32
    %325 = vector.broadcast %cst_179 : f32 to vector<2x48xf32>
    %326 = arith.cmpf ogt, %324, %325 : vector<2x48xf32>
    %327 = math.exp %324 : vector<2x48xf32>
    %cst_180 = arith.constant 1.000000e+00 : f32
    %328 = vector.broadcast %cst_180 : f32 to vector<2x48xf32>
    %329 = arith.subf %327, %328 : vector<2x48xf32>
    %330 = arith.select %326, %324, %329 : vector<2x48xi1>, vector<2x48xf32>
    %cst_181 = arith.constant -1.000000e+00 : f32
    %cst_182 = arith.constant 1.000000e+00 : f32
    %331 = vector.broadcast %cst_181 : f32 to vector<2x48xf32>
    %332 = arith.maximumf %331, %330 : vector<2x48xf32>
    %333 = vector.broadcast %cst_182 : f32 to vector<2x48xf32>
    %334 = arith.minimumf %333, %332 : vector<2x48xf32>
    %335 = math.roundeven %334 : vector<2x48xf32>
    %c0_183 = arith.constant 0 : index
    %c0_184 = arith.constant 0 : index
    %336 = vector.load %arg7[%c0_183, %c0_184] : memref<2x48xf32, #tpu.memory_space<vmem>>, vector<2x48xf32>
    tpu.vector_store %arg7[%c0_183, %c0_184], %335 {strides = array<i32>} : memref<2x48xf32, #tpu.memory_space<vmem>>, vector<2x48xf32>,
    return
  }
}

</mosaic_0001>

<llo_original>
// kernel: tpu_custom_call.1
$region0: #{tpu_custom_call.1}
  #allocation0 [shape = 'u32[]', space=smem, size = 0x4, offset = 0x4, fixed_abs, tag = 'smem constant byte address 0x4 - core index']
  #allocation1 [shape = 'u32[144,128]{1,0:T(1,128)}', space=vmem, size = 0x12000, scoped, tag = 'internal scratch']
  %s0 = inlined_call_operand.vmem [shape: f32[64,8], index: 0, kind: input, shape index: {}]
  %s1 = inlined_call_operand.vmem [shape: f32[13,16,16], index: 1, kind: input, shape index: {}]
  %s2 = inlined_call_operand.hbm [shape: f32[3,16,32], index: 2, kind: input, shape index: {}]
  %s3 = inlined_call_operand.vmem [shape: f32[13,8,8], index: 3, kind: input, shape index: {}]
  %s4 = inlined_call_operand.hbm [shape: f32[6,8,16], index: 4, kind: input, shape index: {}]
  %s5 = inlined_call_operand.vmem [shape: f32[20,16], index: 5, kind: input, shape index: {}]
  %s6 = inlined_call_operand.hbm [shape: f32[64,240], index: 6, kind: input, shape index: {}]
  %s7 = inlined_call_operand.hbm [shape: f32[2,48], index: 7, kind: output, shape index: {}]
  %s8 = sld [smem:[#allocation0]]
  $region50: #{tpu_custom_call.1} parent=0
    _
  %s10 = ssub.s32 1, %s8
  %s11 = scalar_select 0, %s10, %s8
  $region1: #{tpu_custom_call.1} parent=0
    #allocation2 [shape = 'u8[24576]{0}', space=vmem, size = 0x6000, scoped, tag = 'input window, operand 2, single buffered']
    #allocation3 [shape = 's32[1]{0}', space=sflag, size = 0x4, scoped, tag = 'scoped memory for tpu_custom_call.1']
    #allocation4 [shape = 's32[1]{0}', space=sflag, size = 0x4, scoped, tag = 'scoped memory for tpu_custom_call.1']
    #allocation5 [shape = 'u8[24576]{0}', space=vmem, size = 0x6000, scoped, tag = 'input window, operand 4, single buffered']
    #allocation6 [shape = 's32[1]{0}', space=sflag, size = 0x4, scoped, tag = 'scoped memory for tpu_custom_call.1']
    #allocation7 [shape = 'u8[65536]{0}', space=vmem, size = 0x10000, scoped, tag = 'input window, operand 6, single buffered']
    #allocation8 [shape = 'u8[1024]{0}', space=vmem, size = 0x400, scoped, tag = 'output window, operand 0, single buffered']
    %12 = vsyncpa [#allocation3], 0
    %13 = vsyncpa [#allocation6], 0
    %14 = vsyncpa [#allocation4], 0
    // Predicated region
    $region2: #{tpu_custom_call.1} parent=1 // pred_check
      _
    $region3: #{tpu_custom_call.1} parent=1 // pred_check_branch
      %16 = sbr.rel (0) target = $region5
    $region4: #{tpu_custom_call.1} parent=1 // pred_region
      _
    $region5: #{tpu_custom_call.1} parent=1 // pred_fallthru
      _
    // Predicated region
    $region6: #{tpu_custom_call.1} parent=1 // pred_check
      _
    $region7: #{tpu_custom_call.1} parent=1 // pred_check_branch
      %18 = sbr.rel (0) target = $region9
    $region8: #{tpu_custom_call.1} parent=1 // pred_region
      _
    $region9: #{tpu_custom_call.1} parent=1 // pred_fallthru
      _
    // Predicated region
    $region10: #{tpu_custom_call.1} parent=1 // pred_check
      _
    $region11: #{tpu_custom_call.1} parent=1 // pred_check_branch
      %20 = sbr.rel (0) target = $region13
    $region12: #{tpu_custom_call.1} parent=1 // pred_region
      %s22 = ssub.s32 768, 768
      %23 = vsyncadd [#allocation3], %s22
      %s24 = sshll.u32 [#allocation2], 4
      %s25 = int_to_ptr.vmem [resolvable:$true] %s24
      %30 = dma.hbm_to_vmem [thread:$0]  %s2, 768, %s25, [#allocation3], 128, 128, 8
    $region13: #{tpu_custom_call.1} parent=1 // pred_fallthru
      _
    // Predicated region
    $region14: #{tpu_custom_call.1} parent=1 // pred_check
      _
    $region15: #{tpu_custom_call.1} parent=1 // pred_check_branch
      %32 = sbr.rel (0) target = $region17
    $region16: #{tpu_custom_call.1} parent=1 // pred_region
      _
    $region17: #{tpu_custom_call.1} parent=1 // pred_fallthru
      _
    // Predicated region
    $region18: #{tpu_custom_call.1} parent=1 // pred_check
      _
    $region19: #{tpu_custom_call.1} parent=1 // pred_check_branch
      %34 = sbr.rel (0) target = $region21
    $region20: #{tpu_custom_call.1} parent=1 // pred_region
      %s36 = ssub.s32 768, 768
      %37 = vsyncadd [#allocation6], %s36
      %s38 = sshll.u32 [#allocation5], 4
      %s39 = int_to_ptr.vmem [resolvable:$true] %s38
      %44 = dma.hbm_to_vmem [thread:$0]  %s4, 768, %s39, [#allocation6], 128, 128, 8
    $region21: #{tpu_custom_call.1} parent=1 // pred_fallthru
      _
    // Predicated region
    $region22: #{tpu_custom_call.1} parent=1 // pred_check
      _
    $region23: #{tpu_custom_call.1} parent=1 // pred_check_branch
      %46 = sbr.rel (0) target = $region25
    $region24: #{tpu_custom_call.1} parent=1 // pred_region
      _
    $region25: #{tpu_custom_call.1} parent=1 // pred_fallthru
      _
    // Predicated region
    $region26: #{tpu_custom_call.1} parent=1 // pred_check
      _
    $region27: #{tpu_custom_call.1} parent=1 // pred_check_branch
      %48 = sbr.rel (0) target = $region29
    $region28: #{tpu_custom_call.1} parent=1 // pred_region
      %s50 = ssub.s32 2048, 2048
      %51 = vsyncadd [#allocation6], %s50
      %s52 = sshll.u32 [#allocation7], 4
      %s53 = int_to_ptr.vmem [resolvable:$true] %s52
      %58 = dma.hbm_to_vmem [thread:$0]  %s6, 2048, %s53, [#allocation6], 256, 256, 16
    $region29: #{tpu_custom_call.1} parent=1 // pred_fallthru
      _
    // Predicated region
    $region30: #{tpu_custom_call.1} parent=1 // pred_check
      _
    $region31: #{tpu_custom_call.1} parent=1 // pred_check_branch
      %60 = sbr.rel (0) target = $region33
    $region32: #{tpu_custom_call.1} parent=1 // pred_region
      %61 = dma.done [#allocation3], 768
    $region33: #{tpu_custom_call.1} parent=1 // pred_fallthru
      _
    // Predicated region
    $region34: #{tpu_custom_call.1} parent=1 // pred_check
      _
    $region35: #{tpu_custom_call.1} parent=1 // pred_check_branch
      %63 = sbr.rel (0) target = $region37
    $region36: #{tpu_custom_call.1} parent=1 // pred_region
      %64 = dma.done [#allocation6], 768
    $region37: #{tpu_custom_call.1} parent=1 // pred_fallthru
      _
    // Predicated region
    $region38: #{tpu_custom_call.1} parent=1 // pred_check
      _
    $region39: #{tpu_custom_call.1} parent=1 // pred_check_branch
      %66 = sbr.rel (0) target = $region41
    $region40: #{tpu_custom_call.1} parent=1 // pred_region
      %67 = dma.done [#allocation6], 2048
    $region41: #{tpu_custom_call.1} parent=1 // pred_fallthru
      _
    %v68 = vld [vmem:[%s0] sm:$0xff]
    %v69 = vld [vmem:[%s0 + $0x8] sm:$0xff]
    %v70 = vld [vmem:[%s0 + $0x10] sm:$0xff]
    %v71 = vld [vmem:[%s0 + $0x18] sm:$0xff]
    %v72 = vld [vmem:[%s0 + $0x20] sm:$0xff]
    %v73 = vld [vmem:[%s0 + $0x28] sm:$0xff]
    %v74 = vld [vmem:[%s0 + $0x30] sm:$0xff]
    %v75 = vld [vmem:[%s0 + $0x38] sm:$0xff]
    %v76 = vld [vmem:[%s5] sm:$0xff]
    %v77 = vld [vmem:[%s5 + $0x8] sm:$0xff]
    %v78 = vld [vmem:[%s5 + $0x10] sm:$0xf]
    %v79 = vld [vmem:[#allocation7] sm:$0xff]
    %v80 = vld [vmem:[#allocation7 + $0x8] sm:$0xff]
    %v81 = vld [vmem:[#allocation7 + $0x10] sm:$0xff]
    %v82 = vld [vmem:[#allocation7 + $0x20] sm:$0xff]
    %v83 = vld [vmem:[#allocation7 + $0x30] sm:$0xff]
    %v84 = vld [vmem:[#allocation7 + $0x40] sm:$0xff]
    %v85 = vld [vmem:[#allocation7 + $0x50] sm:$0xff]
    %v86 = vld [vmem:[#allocation7 + $0x60] sm:$0xff]
    %v87 = vld [vmem:[#allocation7 + $0x70] sm:$0xff]
    %vm88 = vcmp.gt.f32.partialorder %v79, 0.0
    %vm89 = vcmp.gt.f32.partialorder %v81, 0.0
    %vm90 = vcmp.gt.f32.partialorder %v82, 0.0
    %vm91 = vcmp.gt.f32.partialorder %v83, 0.0
    %vm92 = vcmp.gt.f32.partialorder %v84, 0.0
    %vm93 = vcmp.gt.f32.partialorder %v85, 0.0
    %vm94 = vcmp.gt.f32.partialorder %v86, 0.0
    %vm95 = vcmp.gt.f32.partialorder %v87, 0.0
    %s96 = scalar_lea.vmem %s1, 192
    %v97 = vld [vmem:[%s96] sm:$0xff]
    %vm98 = vcmask 64512
    %v100 = vsel %vm98, %v68, 0
    %v103 = vsel %vm98, %v69, 0
    %v106 = vsel %vm98, %v70, 0
    %v109 = vsel %vm98, %v71, 0
    %v112 = vsel %vm98, %v72, 0
    %v115 = vsel %vm98, %v73, 0
    %117 = vmatprep.subr.mxu0 0.0
    %118 = vmatpush1.msra.mxu0 %v97
    %119 = vmatprep.subr.mxu0 0.0
    %120 = vmatpush1.msra.mxu0 0.0
    %121 = vmatprep.subr.mxu0 0.0
    %122 = vmatpush1.msra.mxu0 0.0
    %123 = vmatprep.subr.mxu0 0.0
    %124 = vmatpush1.msra.mxu0 0.0
    %125 = vmatprep.subr.mxu0 0.0
    %126 = vmatpush1.msra.mxu0 0.0
    %127 = vmatprep.subr.mxu0 0.0
    %128 = vmatpush1.msra.mxu0 0.0
    %129 = vmatprep.subr.mxu0 0.0
    %130 = vmatpush1.msra.mxu0 0.0
    %131 = vmatprep.subr.mxu0 0.0
    %132 = vmatpush1.msra.mxu0 0.0
    %133 = vmatprep.subr.mxu0 0.0
    %134 = vmatpush1.msra.mxu0 0.0
    %135 = vmatprep.subr.mxu0 0.0
    %136 = vmatpush1.msra.mxu0 0.0
    %137 = vmatprep.subr.mxu0 0.0
    %138 = vmatpush1.msra.mxu0 0.0
    %139 = vmatprep.subr.mxu0 0.0
    %140 = vmatpush1.msra.mxu0 0.0
    %141 = vmatprep.subr.mxu0 0.0
    %142 = vmatpush1.msra.mxu0 0.0
    %143 = vmatprep.subr.mxu0 0.0
    %144 = vmatpush1.msra.mxu0 0.0
    %145 = vmatprep.subr.mxu0 0.0
    %146 = vmatpush1.msra.mxu0 0.0
    %147 = vmatprep.subr.mxu0 0.0
    %148 = vmatpush1.msra.mxu0 0.0
    %149 = vmatprep.subr.mxu0 0.0
    %150 = vmatpush1.msra.mxu0 0.0
    %151 = vmatprep.subr.mxu0 0.0
    %152 = vmatpush1.msra.mxu0 0.0
    %153 = vmatprep.subr.mxu0 0.0
    %154 = vmatpush1.msra.mxu0 0.0
    %155 = vmatprep.subr.mxu0 0.0
    %156 = vmatpush1.msra.mxu0 0.0
    %157 = vmatprep.subr.mxu0 0.0
    %158 = vmatpush1.msra.mxu0 0.0
    %159 = vmatprep.subr.mxu0 0.0
    %160 = vmatpush1.msra.mxu0 0.0
    %161 = vmatprep.subr.mxu0 0.0
    %162 = vmatpush1.msra.mxu0 0.0
    %163 = vmatprep.subr.mxu0 0.0
    %164 = vmatpush1.msra.mxu0 0.0
    %165 = vmatprep.subr.mxu0 0.0
    %166 = vmatpush1.msra.mxu0 0.0
    %167 = vmatprep.subr.mxu0 0.0
    %168 = vmatpush1.msra.mxu0 0.0
    %169 = vmatprep.subr.mxu0 0.0
    %170 = vmatpush1.msra.mxu0 0.0
    %171 = vmatprep.subr.mxu0 0.0
    %172 = vmatpush1.msra.mxu0 0.0
    %173 = vmatprep.subr.mxu0 0.0
    %174 = vmatpush1.msra.mxu0 0.0
    %175 = vmatprep.subr.mxu0 0.0
    %176 = vmatpush1.msra.mxu0 0.0
    %177 = vmatprep.subr.mxu0 0.0
    %178 = vmatpush1.msra.mxu0 0.0
    %179 = vmatprep.subr.mxu0 0.0
    %180 = vmatpush1.msra.mxu0 0.0
    %181 = vmatprep.mubr.f32.mxu0 0.0
    %182 = vmatmul.mubr.f32.gmra.mrb[0].mxu0 %v100
    %v183 = vpop.f32.mrb[0].mxu0
    %v184 = vadd.f32 0.0, %v183
    %v185 = vpop.f32.mrb[0].mxu0
    %186 = vmatprep.mubr.f32.mxu0 0.0
    %187 = vmatmul.mubr.f32.gmra.mrb[0].mxu0 %v103
    %v188 = vpop.f32.mrb[0].mxu0
    %v189 = vadd.f32 0.0, %v188
    %v190 = vpop.f32.mrb[0].mxu0
    %191 = vmatprep.mubr.f32.mxu0 0.0
    %192 = vmatmul.mubr.f32.gmra.mrb[0].mxu0 %v106
    %v193 = vpop.f32.mrb[0].mxu0
    %v194 = vadd.f32 0.0, %v193
    %v195 = vpop.f32.mrb[0].mxu0
    %196 = vmatprep.mubr.f32.mxu0 0.0
    %197 = vmatmul.mubr.f32.gmra.mrb[0].mxu0 %v109
    %v198 = vpop.f32.mrb[0].mxu0
    %v199 = vadd.f32 0.0, %v198
    %v200 = vpop.f32.mrb[0].mxu0
    %201 = vmatprep.mubr.f32.mxu0 0.0
    %202 = vmatmul.mubr.f32.gmra.mrb[0].mxu0 %v112
    %v203 = vpop.f32.mrb[0].mxu0
    %v204 = vadd.f32 0.0, %v203
    %v205 = vpop.f32.mrb[0].mxu0
    %206 = vmatprep.mubr.f32.mxu0 0.0
    %207 = vmatmul.mubr.f32.gmra.mrb[0].mxu0 %v115
    %v208 = vpop.f32.mrb[0].mxu0
    %v209 = vadd.f32 0.0, %v208
    %v210 = vpop.f32.mrb[0].mxu0
    %211 = vdwg.mxu0
    %v212 = vlaneseq
    %v213 = vshrl.u32 %v212, 7
    %v214 = vsub.s32 0, %v213
    %v215 = vrot.slane %v76, %v214
    %v216 = vmul.f32 %v184, %v215
    %v217 = vmul.f32 %v189, %v215
    %v218 = vmul.f32 %v194, %v215
    %v219 = vmul.f32 %v199, %v215
    %v220 = vmul.f32 %v204, %v215
    %v221 = vmul.f32 %v209, %v215
    %v222 = vlaneseq
    %v223 = vshrl.u32 %v222, 7
    %v224 = vsub.s32 1, %v223
    %v225 = vrot.slane %v76, %v224
    %v226 = vadd.f32 %v216, %v225
    %v227 = vadd.f32 %v217, %v225
    %v228 = vadd.f32 %v218, %v225
    %v229 = vadd.f32 %v219, %v225
    %v230 = vadd.f32 %v220, %v225
    %v231 = vadd.f32 %v221, %v225
    %v232 = vmax.f32 %v226, 0.0
    %v233 = vmax.f32 %v227, 0.0
    %v234 = vmax.f32 %v228, 0.0
    %v235 = vmax.f32 %v229, 0.0
    %v236 = vmax.f32 %v230, 0.0
    %v237 = vmax.f32 %v231, 0.0
    %v238 = vsel %vm88, %v232, 0.0
    %v239 = vsel %vm89, %v233, 0.0
    %v240 = vsel %vm90, %v234, 0.0
    %v241 = vsel %vm91, %v235, 0.0
    %v242 = vsel %vm92, %v236, 0.0
    %v243 = vsel %vm93, %v237, 0.0
    %v244 = vld [vmem:[%s1] sm:$0xff]
    %v245 = vld [vmem:[%s1 + $0x8] sm:$0xff]
    %s246 = scalar_lea.vmem %s1, 16
    %v247 = vld [vmem:[%s246] sm:$0xff]
    %v248 = vld [vmem:[%s246 + $0x8] sm:$0xff]
    %s249 = scalar_lea.vmem %s1, 32
    %v250 = vld [vmem:[%s249] sm:$0xff]
    %v251 = vld [vmem:[%s249 + $0x8] sm:$0xff]
    %vm258 = vcmask 1040384
    %v259 = vrot.slane %v238, 7
    %v260 = vrot.slane %v239, 7
    %v261 = vsel %vm258, %v259, %v260
    %v262 = vrot.slane %v240, 7
    %v263 = vsel %vm258, %v260, %v262
    %v264 = vrot.slane %v241, 7
    %v265 = vsel %vm258, %v262, %v264
    %v266 = vrot.slane %v242, 7
    %v267 = vsel %vm258, %v264, %v266
    %v268 = vrot.slane %v243, 7
    %v269 = vsel %vm258, %v266, %v268
    %v271 = vsel %vm258, 0.0, %v259
    %vm272 = vcmask 130048
    %v274 = vsel %vm272, %v271, 0
    %v276 = vsel %vm272, %v261, 0
    %v278 = vsel %vm272, %v263, 0
    %v280 = vsel %vm272, %v265, 0
    %v282 = vsel %vm272, %v267, 0
    %v284 = vsel %vm272, %v269, 0
    %286 = vmatprep.subr.mxu0 0.0
    %287 = vmatpush1.msra.mxu0 %v244
    %288 = vmatprep.subr.mxu0 0.0
    %289 = vmatpush1.msra.mxu0 %v245
    %290 = vmatprep.subr.mxu0 0.0
    %291 = vmatpush1.msra.mxu0 0.0
    %292 = vmatprep.subr.mxu0 0.0
    %293 = vmatpush1.msra.mxu0 0.0
    %294 = vmatprep.subr.mxu0 0.0
    %295 = vmatpush1.msra.mxu0 0.0
    %296 = vmatprep.subr.mxu0 0.0
    %297 = vmatpush1.msra.mxu0 0.0
    %298 = vmatprep.subr.mxu0 0.0
    %299 = vmatpush1.msra.mxu0 0.0
    %300 = vmatprep.subr.mxu0 0.0
    %301 = vmatpush1.msra.mxu0 0.0
    %302 = vmatprep.subr.mxu0 0.0
    %303 = vmatpush1.msra.mxu0 0.0
    %304 = vmatprep.subr.mxu0 0.0
    %305 = vmatpush1.msra.mxu0 0.0
    %306 = vmatprep.subr.mxu0 0.0
    %307 = vmatpush1.msra.mxu0 0.0
    %308 = vmatprep.subr.mxu0 0.0
    %309 = vmatpush1.msra.mxu0 0.0
    %310 = vmatprep.subr.mxu0 0.0
    %311 = vmatpush1.msra.mxu0 0.0
    %312 = vmatprep.subr.mxu0 0.0
    %313 = vmatpush1.msra.mxu0 0.0
    %314 = vmatprep.subr.mxu0 0.0
    %315 = vmatpush1.msra.mxu0 0.0
    %316 = vmatprep.subr.mxu0 0.0
    %317 = vmatpush1.msra.mxu0 0.0
    %318 = vmatprep.subr.mxu0 0.0
    %319 = vmatpush1.msra.mxu0 0.0
    %320 = vmatprep.subr.mxu0 0.0
    %321 = vmatpush1.msra.mxu0 0.0
    %322 = vmatprep.subr.mxu0 0.0
    %323 = vmatpush1.msra.mxu0 0.0
    %324 = vmatprep.subr.mxu0 0.0
    %325 = vmatpush1.msra.mxu0 0.0
    %326 = vmatprep.subr.mxu0 0.0
    %327 = vmatpush1.msra.mxu0 0.0
    %328 = vmatprep.subr.mxu0 0.0
    %329 = vmatpush1.msra.mxu0 0.0
    %330 = vmatprep.subr.mxu0 0.0
    %331 = vmatpush1.msra.mxu0 0.0
    %332 = vmatprep.subr.mxu0 0.0
    %333 = vmatpush1.msra.mxu0 0.0
    %334 = vmatprep.subr.mxu0 0.0
    %335 = vmatpush1.msra.mxu0 0.0
    %336 = vmatprep.subr.mxu0 0.0
    %337 = vmatpush1.msra.mxu0 0.0
    %338 = vmatprep.subr.mxu0 0.0
    %339 = vmatpush1.msra.mxu0 0.0
    %340 = vmatprep.subr.mxu0 0.0
    %341 = vmatpush1.msra.mxu0 0.0
    %342 = vmatprep.subr.mxu0 0.0
    %343 = vmatpush1.msra.mxu0 0.0
    %344 = vmatprep.subr.mxu0 0.0
    %345 = vmatpush1.msra.mxu0 0.0
    %346 = vmatprep.subr.mxu0 0.0
    %347 = vmatpush1.msra.mxu0 0.0
    %348 = vmatprep.subr.mxu0 0.0
    %349 = vmatpush1.msra.mxu0 0.0
    %350 = vmatprep.mubr.f32.mxu0 0.0
    %351 = vmatmul.mubr.f32.gmra.mrb[0].mxu0 %v274
    %v352 = vpop.f32.mrb[0].mxu0
    %v353 = vadd.f32 0.0, %v352
    %v354 = vpop.f32.mrb[0].mxu0
    %355 = vmatprep.mubr.f32.mxu0 0.0
    %356 = vmatmul.mubr.f32.gmra.mrb[0].mxu0 %v276
    %v357 = vpop.f32.mrb[0].mxu0
    %v358 = vadd.f32 0.0, %v357
    %v359 = vpop.f32.mrb[0].mxu0
    %360 = vmatprep.mubr.f32.mxu0 0.0
    %361 = vmatmul.mubr.f32.gmra.mrb[0].mxu0 %v278
    %v362 = vpop.f32.mrb[0].mxu0
    %v363 = vadd.f32 0.0, %v362
    %v364 = vpop.f32.mrb[0].mxu0
    %365 = vmatprep.mubr.f32.mxu0 0.0
    %366 = vmatmul.mubr.f32.gmra.mrb[0].mxu0 %v280
    %v367 = vpop.f32.mrb[0].mxu0
    %v368 = vadd.f32 0.0, %v367
    %v369 = vpop.f32.mrb[0].mxu0
    %370 = vmatprep.mubr.f32.mxu0 0.0
    %371 = vmatmul.mubr.f32.gmra.mrb[0].mxu0 %v282
    %v372 = vpop.f32.mrb[0].mxu0
    %v373 = vadd.f32 0.0, %v372
    %v374 = vpop.f32.mrb[0].mxu0
    %375 = vmatprep.mubr.f32.mxu0 0.0
    %376 = vmatmul.mubr.f32.gmra.mrb[0].mxu0 %v284
    %v377 = vpop.f32.mrb[0].mxu0
    %v378 = vadd.f32 0.0, %v377
    %v379 = vpop.f32.mrb[0].mxu0
    %380 = vdwg.mxu0
    %v381 = vsel %vm272, %v238, 0
    %v383 = vsel %vm272, %v239, 0
    %v385 = vsel %vm272, %v240, 0
    %v387 = vsel %vm272, %v241, 0
    %v389 = vsel %vm272, %v242, 0
    %v391 = vsel %vm272, %v243, 0
    %393 = vmatprep.subr.mxu0 0.0
    %394 = vmatpush1.msra.mxu0 %v247
    %395 = vmatprep.subr.mxu0 0.0
    %396 = vmatpush1.msra.mxu0 %v248
    %397 = vmatprep.subr.mxu0 0.0
    %398 = vmatpush1.msra.mxu0 0.0
    %399 = vmatprep.subr.mxu0 0.0
    %400 = vmatpush1.msra.mxu0 0.0
    %401 = vmatprep.subr.mxu0 0.0
    %402 = vmatpush1.msra.mxu0 0.0
    %403 = vmatprep.subr.mxu0 0.0
    %404 = vmatpush1.msra.mxu0 0.0
    %405 = vmatprep.subr.mxu0 0.0
    %406 = vmatpush1.msra.mxu0 0.0
    %407 = vmatprep.subr.mxu0 0.0
    %408 = vmatpush1.msra.mxu0 0.0
    %409 = vmatprep.subr.mxu0 0.0
    %410 = vmatpush1.msra.mxu0 0.0
    %411 = vmatprep.subr.mxu0 0.0
    %412 = vmatpush1.msra.mxu0 0.0
    %413 = vmatprep.subr.mxu0 0.0
    %414 = vmatpush1.msra.mxu0 0.0
    %415 = vmatprep.subr.mxu0 0.0
    %416 = vmatpush1.msra.mxu0 0.0
    %417 = vmatprep.subr.mxu0 0.0
    %418 = vmatpush1.msra.mxu0 0.0
    %419 = vmatprep.subr.mxu0 0.0
    %420 = vmatpush1.msra.mxu0 0.0
    %421 = vmatprep.subr.mxu0 0.0
    %422 = vmatpush1.msra.mxu0 0.0
    %423 = vmatprep.subr.mxu0 0.0
    %424 = vmatpush1.msra.mxu0 0.0
    %425 = vmatprep.subr.mxu0 0.0
    %426 = vmatpush1.msra.mxu0 0.0
    %427 = vmatprep.subr.mxu0 0.0
    %428 = vmatpush1.msra.mxu0 0.0
    %429 = vmatprep.subr.mxu0 0.0
    %430 = vmatpush1.msra.mxu0 0.0
    %431 = vmatprep.subr.mxu0 0.0
    %432 = vmatpush1.msra.mxu0 0.0
    %433 = vmatprep.subr.mxu0 0.0
    %434 = vmatpush1.msra.mxu0 0.0
    %435 = vmatprep.subr.mxu0 0.0
    %436 = vmatpush1.msra.mxu0 0.0
    %437 = vmatprep.subr.mxu0 0.0
    %438 = vmatpush1.msra.mxu0 0.0
    %439 = vmatprep.subr.mxu0 0.0
    %440 = vmatpush1.msra.mxu0 0.0
    %441 = vmatprep.subr.mxu0 0.0
    %442 = vmatpush1.msra.mxu0 0.0
    %443 = vmatprep.subr.mxu0 0.0
    %444 = vmatpush1.msra.mxu0 0.0
    %445 = vmatprep.subr.mxu0 0.0
    %446 = vmatpush1.msra.mxu0 0.0
    %447 = vmatprep.subr.mxu0 0.0
    %448 = vmatpush1.msra.mxu0 0.0
    %449 = vmatprep.subr.mxu0 0.0
    %450 = vmatpush1.msra.mxu0 0.0
    %451 = vmatprep.subr.mxu0 0.0
    %452 = vmatpush1.msra.mxu0 0.0
    %453 = vmatprep.subr.mxu0 0.0
    %454 = vmatpush1.msra.mxu0 0.0
    %455 = vmatprep.subr.mxu0 0.0
    %456 = vmatpush1.msra.mxu0 0.0
    %457 = vmatprep.mubr.f32.mxu0 0.0
    %458 = vmatmul.mubr.f32.gmra.mrb[0].mxu0 %v381
    %v459 = vpop.f32.mrb[0].mxu0
    %v460 = vadd.f32 %v353, %v459
    %v461 = vpop.f32.mrb[0].mxu0
    %462 = vmatprep.mubr.f32.mxu0 0.0
    %463 = vmatmul.mubr.f32.gmra.mrb[0].mxu0 %v383
    %v464 = vpop.f32.mrb[0].mxu0
    %v465 = vadd.f32 %v358, %v464
    %v466 = vpop.f32.mrb[0].mxu0
    %467 = vmatprep.mubr.f32.mxu0 0.0
    %468 = vmatmul.mubr.f32.gmra.mrb[0].mxu0 %v385
    %v469 = vpop.f32.mrb[0].mxu0
    %v470 = vadd.f32 %v363, %v469
    %v471 = vpop.f32.mrb[0].mxu0
    %472 = vmatprep.mubr.f32.mxu0 0.0
    %473 = vmatmul.mubr.f32.gmra.mrb[0].mxu0 %v387
    %v474 = vpop.f32.mrb[0].mxu0
    %v475 = vadd.f32 %v368, %v474
    %v476 = vpop.f32.mrb[0].mxu0
    %477 = vmatprep.mubr.f32.mxu0 0.0
    %478 = vmatmul.mubr.f32.gmra.mrb[0].mxu0 %v389
    %v479 = vpop.f32.mrb[0].mxu0
    %v480 = vadd.f32 %v373, %v479
    %v481 = vpop.f32.mrb[0].mxu0
    %482 = vmatprep.mubr.f32.mxu0 0.0
    %483 = vmatmul.mubr.f32.gmra.mrb[0].mxu0 %v391
    %v484 = vpop.f32.mrb[0].mxu0
    %v485 = vadd.f32 %v378, %v484
    %v486 = vpop.f32.mrb[0].mxu0
    %487 = vdwg.mxu0
    %vm488 = vcmask 1046528
    %v489 = vrot.slane %v238, 1
    %v490 = vrot.slane %v239, 1
    %v491 = vsel %vm488, %v489, %v490
    %v492 = vrot.slane %v240, 1
    %v493 = vsel %vm488, %v490, %v492
    %v494 = vrot.slane %v241, 1
    %v495 = vsel %vm488, %v492, %v494
    %v496 = vrot.slane %v242, 1
    %v497 = vsel %vm488, %v494, %v496
    %v498 = vrot.slane %v243, 1
    %v499 = vsel %vm488, %v496, %v498
    %v501 = vsel %vm488, %v498, 0.0
    %v502 = vsel %vm272, %v491, 0
    %v504 = vsel %vm272, %v493, 0
    %v506 = vsel %vm272, %v495, 0
    %v508 = vsel %vm272, %v497, 0
    %v510 = vsel %vm272, %v499, 0
    %v513 = vsel %vm272, %v501, 0
    %515 = vmatprep.subr.mxu0 0.0
    %516 = vmatpush1.msra.mxu0 %v250
    %517 = vmatprep.subr.mxu0 0.0
    %518 = vmatpush1.msra.mxu0 %v251
    %519 = vmatprep.subr.mxu0 0.0
    %520 = vmatpush1.msra.mxu0 0.0
    %521 = vmatprep.subr.mxu0 0.0
    %522 = vmatpush1.msra.mxu0 0.0
    %523 = vmatprep.subr.mxu0 0.0
    %524 = vmatpush1.msra.mxu0 0.0
    %525 = vmatprep.subr.mxu0 0.0
    %526 = vmatpush1.msra.mxu0 0.0
    %527 = vmatprep.subr.mxu0 0.0
    %528 = vmatpush1.msra.mxu0 0.0
    %529 = vmatprep.subr.mxu0 0.0
    %530 = vmatpush1.msra.mxu0 0.0
    %531 = vmatprep.subr.mxu0 0.0
    %532 = vmatpush1.msra.mxu0 0.0
    %533 = vmatprep.subr.mxu0 0.0
    %534 = vmatpush1.msra.mxu0 0.0
    %535 = vmatprep.subr.mxu0 0.0
    %536 = vmatpush1.msra.mxu0 0.0
    %537 = vmatprep.subr.mxu0 0.0
    %538 = vmatpush1.msra.mxu0 0.0
    %539 = vmatprep.subr.mxu0 0.0
    %540 = vmatpush1.msra.mxu0 0.0
    %541 = vmatprep.subr.mxu0 0.0
    %542 = vmatpush1.msra.mxu0 0.0
    %543 = vmatprep.subr.mxu0 0.0
    %544 = vmatpush1.msra.mxu0 0.0
    %545 = vmatprep.subr.mxu0 0.0
    %546 = vmatpush1.msra.mxu0 0.0
    %547 = vmatprep.subr.mxu0 0.0
    %548 = vmatpush1.msra.mxu0 0.0
    %549 = vmatprep.subr.mxu0 0.0
    %550 = vmatpush1.msra.mxu0 0.0
    %551 = vmatprep.subr.mxu0 0.0
    %552 = vmatpush1.msra.mxu0 0.0
    %553 = vmatprep.subr.mxu0 0.0
    %554 = vmatpush1.msra.mxu0 0.0
    %555 = vmatprep.subr.mxu0 0.0
    %556 = vmatpush1.msra.mxu0 0.0
    %557 = vmatprep.subr.mxu0 0.0
    %558 = vmatpush1.msra.mxu0 0.0
    %559 = vmatprep.subr.mxu0 0.0
    %560 = vmatpush1.msra.mxu0 0.0
    %561 = vmatprep.subr.mxu0 0.0
    %562 = vmatpush1.msra.mxu0 0.0
    %563 = vmatprep.subr.mxu0 0.0
    %564 = vmatpush1.msra.mxu0 0.0
    %565 = vmatprep.subr.mxu0 0.0
    %566 = vmatpush1.msra.mxu0 0.0
    %567 = vmatprep.subr.mxu0 0.0
    %568 = vmatpush1.msra.mxu0 0.0
    %569 = vmatprep.subr.mxu0 0.0
    %570 = vmatpush1.msra.mxu0 0.0
    %571 = vmatprep.subr.mxu0 0.0
    %572 = vmatpush1.msra.mxu0 0.0
    %573 = vmatprep.subr.mxu0 0.0
    %574 = vmatpush1.msra.mxu0 0.0
    %575 = vmatprep.subr.mxu0 0.0
    %576 = vmatpush1.msra.mxu0 0.0
    %577 = vmatprep.subr.mxu0 0.0
    %578 = vmatpush1.msra.mxu0 0.0
    %579 = vmatprep.mubr.f32.mxu0 0.0
    %580 = vmatmul.mubr.f32.gmra.mrb[0].mxu0 %v502
    %v581 = vpop.f32.mrb[0].mxu0
    %v582 = vadd.f32 0.0, %v581
    %v583 = vpop.f32.mrb[0].mxu0
    %584 = vmatprep.mubr.f32.mxu0 0.0
    %585 = vmatmul.mubr.f32.gmra.mrb[0].mxu0 %v504
    %v586 = vpop.f32.mrb[0].mxu0
    %v587 = vadd.f32 0.0, %v586
    %v588 = vpop.f32.mrb[0].mxu0
    %589 = vmatprep.mubr.f32.mxu0 0.0
    %590 = vmatmul.mubr.f32.gmra.mrb[0].mxu0 %v506
    %v591 = vpop.f32.mrb[0].mxu0
    %v592 = vadd.f32 0.0, %v591
    %v593 = vpop.f32.mrb[0].mxu0
    %594 = vmatprep.mubr.f32.mxu0 0.0
    %595 = vmatmul.mubr.f32.gmra.mrb[0].mxu0 %v508
    %v596 = vpop.f32.mrb[0].mxu0
    %v597 = vadd.f32 0.0, %v596
    %v598 = vpop.f32.mrb[0].mxu0
    %599 = vmatprep.mubr.f32.mxu0 0.0
    %600 = vmatmul.mubr.f32.gmra.mrb[0].mxu0 %v510
    %v601 = vpop.f32.mrb[0].mxu0
    %v602 = vadd.f32 0.0, %v601
    %v603 = vpop.f32.mrb[0].mxu0
    %604 = vmatprep.mubr.f32.mxu0 0.0
    %605 = vmatmul.mubr.f32.gmra.mrb[0].mxu0 %v513
    %v606 = vpop.f32.mrb[0].mxu0
    %v607 = vadd.f32 0.0, %v606
    %v608 = vpop.f32.mrb[0].mxu0
    %609 = vdwg.mxu0
    %v610 = vadd.f32 %v460, %v582
    %v611 = vadd.f32 %v465, %v587
    %v612 = vadd.f32 %v470, %v592
    %v613 = vadd.f32 %v475, %v597
    %v614 = vadd.f32 %v480, %v602
    %v615 = vadd.f32 %v485, %v607
    %v616 = vlaneseq
    %v617 = vshrl.u32 %v616, 7
    %v618 = vsub.s32 2, %v617
    %v619 = vrot.slane %v76, %v618
    %v620 = vmul.f32 %v610, %v619
    %v621 = vmul.f32 %v611, %v619
    %v622 = vmul.f32 %v612, %v619
    %v623 = vmul.f32 %v613, %v619
    %v624 = vmul.f32 %v614, %v619
    %v625 = vmul.f32 %v615, %v619
    %v626 = vlaneseq
    %v627 = vshrl.u32 %v626, 7
    %v628 = vsub.s32 3, %v627
    %v629 = vrot.slane %v76, %v628
    %v630 = vadd.f32 %v620, %v629
    %v631 = vadd.f32 %v621, %v629
    %v632 = vadd.f32 %v622, %v629
    %v633 = vadd.f32 %v623, %v629
    %v634 = vadd.f32 %v624, %v629
    %v635 = vadd.f32 %v625, %v629
    %v636 = vmax.f32 %v630, 0.0
    %v637 = vmax.f32 %v631, 0.0
    %v638 = vmax.f32 %v632, 0.0
    %v639 = vmax.f32 %v633, 0.0
    %v640 = vmax.f32 %v634, 0.0
    %v641 = vmax.f32 %v635, 0.0
    %v642 = vsel %vm88, %v636, 0.0
    %v643 = vsel %vm89, %v637, 0.0
    %v644 = vsel %vm90, %v638, 0.0
    %v645 = vsel %vm91, %v639, 0.0
    %v646 = vsel %vm92, %v640, 0.0
    %v647 = vsel %vm93, %v641, 0.0
    %s648 = scalar_lea.vmem %s1, 48
    %v649 = vld [vmem:[%s648] sm:$0xff]
    %v650 = vld [vmem:[%s648 + $0x8] sm:$0xff]
    %s651 = scalar_lea.vmem %s1, 64
    %v652 = vld [vmem:[%s651] sm:$0xff]
    %v653 = vld [vmem:[%s651 + $0x8] sm:$0xff]
    %s654 = scalar_lea.vmem %s1, 80
    %v655 = vld [vmem:[%s654] sm:$0xff]
    %v656 = vld [vmem:[%s654 + $0x8] sm:$0xff]
    %v663 = vrot.slane %v642, 7
    %v664 = vrot.slane %v643, 7
    %v665 = vsel %vm258, %v663, %v664
    %v666 = vrot.slane %v644, 7
    %v667 = vsel %vm258, %v664, %v666
    %v668 = vrot.slane %v645, 7
    %v669 = vsel %vm258, %v666, %v668
    %v670 = vrot.slane %v646, 7
    %v671 = vsel %vm258, %v668, %v670
    %v672 = vrot.slane %v647, 7
    %v673 = vsel %vm258, %v670, %v672
    %v675 = vsel %vm258, 0.0, %v663
    %v677 = vsel %vm272, %v675, 0
    %v679 = vsel %vm272, %v665, 0
    %v681 = vsel %vm272, %v667, 0
    %v683 = vsel %vm272, %v669, 0
    %v685 = vsel %vm272, %v671, 0
    %v687 = vsel %vm272, %v673, 0
    %689 = vmatprep.subr.mxu0 0.0
    %690 = vmatpush1.msra.mxu0 %v649
    %691 = vmatprep.subr.mxu0 0.0
    %692 = vmatpush1.msra.mxu0 %v650
    %693 = vmatprep.subr.mxu0 0.0
    %694 = vmatpush1.msra.mxu0 0.0
    %695 = vmatprep.subr.mxu0 0.0
    %696 = vmatpush1.msra.mxu0 0.0
    %697 = vmatprep.subr.mxu0 0.0
    %698 = vmatpush1.msra.mxu0 0.0
    %699 = vmatprep.subr.mxu0 0.0
    %700 = vmatpush1.msra.mxu0 0.0
    %701 = vmatprep.subr.mxu0 0.0
    %702 = vmatpush1.msra.mxu0 0.0
    %703 = vmatprep.subr.mxu0 0.0
    %704 = vmatpush1.msra.mxu0 0.0
    %705 = vmatprep.subr.mxu0 0.0
    %706 = vmatpush1.msra.mxu0 0.0
    %707 = vmatprep.subr.mxu0 0.0
    %708 = vmatpush1.msra.mxu0 0.0
    %709 = vmatprep.subr.mxu0 0.0
    %710 = vmatpush1.msra.mxu0 0.0
    %711 = vmatprep.subr.mxu0 0.0
    %712 = vmatpush1.msra.mxu0 0.0
    %713 = vmatprep.subr.mxu0 0.0
    %714 = vmatpush1.msra.mxu0 0.0
    %715 = vmatprep.subr.mxu0 0.0
    %716 = vmatpush1.msra.mxu0 0.0
    %717 = vmatprep.subr.mxu0 0.0
    %718 = vmatpush1.msra.mxu0 0.0
    %719 = vmatprep.subr.mxu0 0.0
    %720 = vmatpush1.msra.mxu0 0.0
    %721 = vmatprep.subr.mxu0 0.0
    %722 = vmatpush1.msra.mxu0 0.0
    %723 = vmatprep.subr.mxu0 0.0
    %724 = vmatpush1.msra.mxu0 0.0
    %725 = vmatprep.subr.mxu0 0.0
    %726 = vmatpush1.msra.mxu0 0.0
    %727 = vmatprep.subr.mxu0 0.0
    %728 = vmatpush1.msra.mxu0 0.0
    %729 = vmatprep.subr.mxu0 0.0
    %730 = vmatpush1.msra.mxu0 0.0
    %731 = vmatprep.subr.mxu0 0.0
    %732 = vmatpush1.msra.mxu0 0.0
    %733 = vmatprep.subr.mxu0 0.0
    %734 = vmatpush1.msra.mxu0 0.0
    %735 = vmatprep.subr.mxu0 0.0
    %736 = vmatpush1.msra.mxu0 0.0
    %737 = vmatprep.subr.mxu0 0.0
    %738 = vmatpush1.msra.mxu0 0.0
    %739 = vmatprep.subr.mxu0 0.0
    %740 = vmatpush1.msra.mxu0 0.0
    %741 = vmatprep.subr.mxu0 0.0
    %742 = vmatpush1.msra.mxu0 0.0
    %743 = vmatprep.subr.mxu0 0.0
    %744 = vmatpush1.msra.mxu0 0.0
    %745 = vmatprep.subr.mxu0 0.0
    %746 = vmatpush1.msra.mxu0 0.0
    %747 = vmatprep.subr.mxu0 0.0
    %748 = vmatpush1.msra.mxu0 0.0
    %749 = vmatprep.subr.mxu0 0.0
    %750 = vmatpush1.msra.mxu0 0.0
    %751 = vmatprep.subr.mxu0 0.0
    %752 = vmatpush1.msra.mxu0 0.0
    %753 = vmatprep.mubr.f32.mxu0 0.0
    %754 = vmatmul.mubr.f32.gmra.mrb[0].mxu0 %v677
    %v755 = vpop.f32.mrb[0].mxu0
    %v756 = vadd.f32 0.0, %v755
    %v757 = vpop.f32.mrb[0].mxu0
    %758 = vmatprep.mubr.f32.mxu0 0.0
    %759 = vmatmul.mubr.f32.gmra.mrb[0].mxu0 %v679
    %v760 = vpop.f32.mrb[0].mxu0
    %v761 = vadd.f32 0.0, %v760
    %v762 = vpop.f32.mrb[0].mxu0
    %763 = vmatprep.mubr.f32.mxu0 0.0
    %764 = vmatmul.mubr.f32.gmra.mrb[0].mxu0 %v681
    %v765 = vpop.f32.mrb[0].mxu0
    %v766 = vadd.f32 0.0, %v765
    %v767 = vpop.f32.mrb[0].mxu0
    %768 = vmatprep.mubr.f32.mxu0 0.0
    %769 = vmatmul.mubr.f32.gmra.mrb[0].mxu0 %v683
    %v770 = vpop.f32.mrb[0].mxu0
    %v771 = vadd.f32 0.0, %v770
    %v772 = vpop.f32.mrb[0].mxu0
    %773 = vmatprep.mubr.f32.mxu0 0.0
    %774 = vmatmul.mubr.f32.gmra.mrb[0].mxu0 %v685
    %v775 = vpop.f32.mrb[0].mxu0
    %v776 = vadd.f32 0.0, %v775
    %v777 = vpop.f32.mrb[0].mxu0
    %778 = vmatprep.mubr.f32.mxu0 0.0
    %779 = vmatmul.mubr.f32.gmra.mrb[0].mxu0 %v687
    %v780 = vpop.f32.mrb[0].mxu0
    %v781 = vadd.f32 0.0, %v780
    %v782 = vpop.f32.mrb[0].mxu0
    %783 = vdwg.mxu0
    %v784 = vsel %vm272, %v642, 0
    %v786 = vsel %vm272, %v643, 0
    %v788 = vsel %vm272, %v644, 0
    %v790 = vsel %vm272, %v645, 0
    %v792 = vsel %vm272, %v646, 0
    %v794 = vsel %vm272, %v647, 0
    %796 = vmatprep.subr.mxu0 0.0
    %797 = vmatpush1.msra.mxu0 %v652
    %798 = vmatprep.subr.mxu0 0.0
    %799 = vmatpush1.msra.mxu0 %v653
    %800 = vmatprep.subr.mxu0 0.0
    %801 = vmatpush1.msra.mxu0 0.0
    %802 = vmatprep.subr.mxu0 0.0
    %803 = vmatpush1.msra.mxu0 0.0
    %804 = vmatprep.subr.mxu0 0.0
    %805 = vmatpush1.msra.mxu0 0.0
    %806 = vmatprep.subr.mxu0 0.0
    %807 = vmatpush1.msra.mxu0 0.0
    %808 = vmatprep.subr.mxu0 0.0
    %809 = vmatpush1.msra.mxu0 0.0
    %810 = vmatprep.subr.mxu0 0.0
    %811 = vmatpush1.msra.mxu0 0.0
    %812 = vmatprep.subr.mxu0 0.0
    %813 = vmatpush1.msra.mxu0 0.0
    %814 = vmatprep.subr.mxu0 0.0
    %815 = vmatpush1.msra.mxu0 0.0
    %816 = vmatprep.subr.mxu0 0.0
    %817 = vmatpush1.msra.mxu0 0.0
    %818 = vmatprep.subr.mxu0 0.0
    %819 = vmatpush1.msra.mxu0 0.0
    %820 = vmatprep.subr.mxu0 0.0
    %821 = vmatpush1.msra.mxu0 0.0
    %822 = vmatprep.subr.mxu0 0.0
    %823 = vmatpush1.msra.mxu0 0.0
    %824 = vmatprep.subr.mxu0 0.0
    %825 = vmatpush1.msra.mxu0 0.0
    %826 = vmatprep.subr.mxu0 0.0
    %827 = vmatpush1.msra.mxu0 0.0
    %828 = vmatprep.subr.mxu0 0.0
    %829 = vmatpush1.msra.mxu0 0.0
    %830 = vmatprep.subr.mxu0 0.0
    %831 = vmatpush1.msra.mxu0 0.0
    %832 = vmatprep.subr.mxu0 0.0
    %833 = vmatpush1.msra.mxu0 0.0
    %834 = vmatprep.subr.mxu0 0.0
    %835 = vmatpush1.msra.mxu0 0.0
    %836 = vmatprep.subr.mxu0 0.0
    %837 = vmatpush1.msra.mxu0 0.0
    %838 = vmatprep.subr.mxu0 0.0
    %839 = vmatpush1.msra.mxu0 0.0
    %840 = vmatprep.subr.mxu0 0.0
    %841 = vmatpush1.msra.mxu0 0.0
    %842 = vmatprep.subr.mxu0 0.0
    %843 = vmatpush1.msra.mxu0 0.0
    %844 = vmatprep.subr.mxu0 0.0
    %845 = vmatpush1.msra.mxu0 0.0
    %846 = vmatprep.subr.mxu0 0.0
    %847 = vmatpush1.msra.mxu0 0.0
    %848 = vmatprep.subr.mxu0 0.0
    %849 = vmatpush1.msra.mxu0 0.0
    %850 = vmatprep.subr.mxu0 0.0
    %851 = vmatpush1.msra.mxu0 0.0
    %852 = vmatprep.subr.mxu0 0.0
    %853 = vmatpush1.msra.mxu0 0.0
    %854 = vmatprep.subr.mxu0 0.0
    %855 = vmatpush1.msra.mxu0 0.0
    %856 = vmatprep.subr.mxu0 0.0
    %857 = vmatpush1.msra.mxu0 0.0
    %858 = vmatprep.subr.mxu0 0.0
    %859 = vmatpush1.msra.mxu0 0.0
    %860 = vmatprep.mubr.f32.mxu0 0.0
    %861 = vmatmul.mubr.f32.gmra.mrb[0].mxu0 %v784
    %v862 = vpop.f32.mrb[0].mxu0
    %v863 = vadd.f32 %v756, %v862
    %v864 = vpop.f32.mrb[0].mxu0
    %865 = vmatprep.mubr.f32.mxu0 0.0
    %866 = vmatmul.mubr.f32.gmra.mrb[0].mxu0 %v786
    %v867 = vpop.f32.mrb[0].mxu0
    %v868 = vadd.f32 %v761, %v867
    %v869 = vpop.f32.mrb[0].mxu0
    %870 = vmatprep.mubr.f32.mxu0 0.0
    %871 = vmatmul.mubr.f32.gmra.mrb[0].mxu0 %v788
    %v872 = vpop.f32.mrb[0].mxu0
    %v873 = vadd.f32 %v766, %v872
    %v874 = vpop.f32.mrb[0].mxu0
    %875 = vmatprep.mubr.f32.mxu0 0.0
    %876 = vmatmul.mubr.f32.gmra.mrb[0].mxu0 %v790
    %v877 = vpop.f32.mrb[0].mxu0
    %v878 = vadd.f32 %v771, %v877
    %v879 = vpop.f32.mrb[0].mxu0
    %880 = vmatprep.mubr.f32.mxu0 0.0
    %881 = vmatmul.mubr.f32.gmra.mrb[0].mxu0 %v792
    %v882 = vpop.f32.mrb[0].mxu0
    %v883 = vadd.f32 %v776, %v882
    %v884 = vpop.f32.mrb[0].mxu0
    %885 = vmatprep.mubr.f32.mxu0 0.0
    %886 = vmatmul.mubr.f32.gmra.mrb[0].mxu0 %v794
    %v887 = vpop.f32.mrb[0].mxu0
    %v888 = vadd.f32 %v781, %v887
    %v889 = vpop.f32.mrb[0].mxu0
    %890 = vdwg.mxu0
    %v891 = vrot.slane %v642, 1
    %v892 = vrot.slane %v643, 1
    %v893 = vsel %vm488, %v891, %v892
    %v894 = vrot.slane %v644, 1
    %v895 = vsel %vm488, %v892, %v894
    %v896 = vrot.slane %v645, 1
    %v897 = vsel %vm488, %v894, %v896
    %v898 = vrot.slane %v646, 1
    %v899 = vsel %vm488, %v896, %v898
    %v900 = vrot.slane %v647, 1
    %v901 = vsel %vm488, %v898, %v900
    %v903 = vsel %vm488, %v900, 0.0
    %v904 = vsel %vm272, %v893, 0
    %v906 = vsel %vm272, %v895, 0
    %v908 = vsel %vm272, %v897, 0
    %v910 = vsel %vm272, %v899, 0
    %v912 = vsel %vm272, %v901, 0
    %v915 = vsel %vm272, %v903, 0
    %917 = vmatprep.subr.mxu0 0.0
    %918 = vmatpush1.msra.mxu0 %v655
    %919 = vmatprep.subr.mxu0 0.0
    %920 = vmatpush1.msra.mxu0 %v656
    %921 = vmatprep.subr.mxu0 0.0
    %922 = vmatpush1.msra.mxu0 0.0
    %923 = vmatprep.subr.mxu0 0.0
    %924 = vmatpush1.msra.mxu0 0.0
    %925 = vmatprep.subr.mxu0 0.0
    %926 = vmatpush1.msra.mxu0 0.0
    %927 = vmatprep.subr.mxu0 0.0
    %928 = vmatpush1.msra.mxu0 0.0
    %929 = vmatprep.subr.mxu0 0.0
    %930 = vmatpush1.msra.mxu0 0.0
    %931 = vmatprep.subr.mxu0 0.0
    %932 = vmatpush1.msra.mxu0 0.0
    %933 = vmatprep.subr.mxu0 0.0
    %934 = vmatpush1.msra.mxu0 0.0
    %935 = vmatprep.subr.mxu0 0.0
    %936 = vmatpush1.msra.mxu0 0.0
    %937 = vmatprep.subr.mxu0 0.0
    %938 = vmatpush1.msra.mxu0 0.0
    %939 = vmatprep.subr.mxu0 0.0
    %940 = vmatpush1.msra.mxu0 0.0
    %941 = vmatprep.subr.mxu0 0.0
    %942 = vmatpush1.msra.mxu0 0.0
    %943 = vmatprep.subr.mxu0 0.0
    %944 = vmatpush1.msra.mxu0 0.0
    %945 = vmatprep.subr.mxu0 0.0
    %946 = vmatpush1.msra.mxu0 0.0
    %947 = vmatprep.subr.mxu0 0.0
    %948 = vmatpush1.msra.mxu0 0.0
    %949 = vmatprep.subr.mxu0 0.0
    %950 = vmatpush1.msra.mxu0 0.0
    %951 = vmatprep.subr.mxu0 0.0
    %952 = vmatpush1.msra.mxu0 0.0
    %953 = vmatprep.subr.mxu0 0.0
    %954 = vmatpush1.msra.mxu0 0.0
    %955 = vmatprep.subr.mxu0 0.0
    %956 = vmatpush1.msra.mxu0 0.0
    %957 = vmatprep.subr.mxu0 0.0
    %958 = vmatpush1.msra.mxu0 0.0
    %959 = vmatprep.subr.mxu0 0.0
    %960 = vmatpush1.msra.mxu0 0.0
    %961 = vmatprep.subr.mxu0 0.0
    %962 = vmatpush1.msra.mxu0 0.0
    %963 = vmatprep.subr.mxu0 0.0
    %964 = vmatpush1.msra.mxu0 0.0
    %965 = vmatprep.subr.mxu0 0.0
    %966 = vmatpush1.msra.mxu0 0.0
    %967 = vmatprep.subr.mxu0 0.0
    %968 = vmatpush1.msra.mxu0 0.0
    %969 = vmatprep.subr.mxu0 0.0
    %970 = vmatpush1.msra.mxu0 0.0
    %971 = vmatprep.subr.mxu0 0.0
    %972 = vmatpush1.msra.mxu0 0.0
    %973 = vmatprep.subr.mxu0 0.0
    %974 = vmatpush1.msra.mxu0 0.0
    %975 = vmatprep.subr.mxu0 0.0
    %976 = vmatpush1.msra.mxu0 0.0
    %977 = vmatprep.subr.mxu0 0.0
    %978 = vmatpush1.msra.mxu0 0.0
    %979 = vmatprep.subr.mxu0 0.0
    %980 = vmatpush1.msra.mxu0 0.0
    %981 = vmatprep.mubr.f32.mxu0 0.0
    %982 = vmatmul.mubr.f32.gmra.mrb[0].mxu0 %v904
    %v983 = vpop.f32.mrb[0].mxu0
    %v984 = vadd.f32 0.0, %v983
    %v985 = vpop.f32.mrb[0].mxu0
    %986 = vmatprep.mubr.f32.mxu0 0.0
    %987 = vmatmul.mubr.f32.gmra.mrb[0].mxu0 %v906
    %v988 = vpop.f32.mrb[0].mxu0
    %v989 = vadd.f32 0.0, %v988
    %v990 = vpop.f32.mrb[0].mxu0
    %991 = vmatprep.mubr.f32.mxu0 0.0
    %992 = vmatmul.mubr.f32.gmra.mrb[0].mxu0 %v908
    %v993 = vpop.f32.mrb[0].mxu0
    %v994 = vadd.f32 0.0, %v993
    %v995 = vpop.f32.mrb[0].mxu0
    %996 = vmatprep.mubr.f32.mxu0 0.0
    %997 = vmatmul.mubr.f32.gmra.mrb[0].mxu0 %v910
    %v998 = vpop.f32.mrb[0].mxu0
    %v999 = vadd.f32 0.0, %v998
    %v1000 = vpop.f32.mrb[0].mxu0
    %1001 = vmatprep.mubr.f32.mxu0 0.0
    %1002 = vmatmul.mubr.f32.gmra.mrb[0].mxu0 %v912
    %v1003 = vpop.f32.mrb[0].mxu0
    %v1004 = vadd.f32 0.0, %v1003
    %v1005 = vpop.f32.mrb[0].mxu0
    %1006 = vmatprep.mubr.f32.mxu0 0.0
    %1007 = vmatmul.mubr.f32.gmra.mrb[0].mxu0 %v915
    %v1008 = vpop.f32.mrb[0].mxu0
    %v1009 = vadd.f32 0.0, %v1008
    %v1010 = vpop.f32.mrb[0].mxu0
    %1011 = vdwg.mxu0
    %v1012 = vadd.f32 %v863, %v984
    %v1013 = vadd.f32 %v868, %v989
    %v1014 = vadd.f32 %v873, %v994
    %v1015 = vadd.f32 %v878, %v999
    %v1016 = vadd.f32 %v883, %v1004
    %v1017 = vadd.f32 %v888, %v1009
    %v1018 = vlaneseq
    %v1019 = vshrl.u32 %v1018, 7
    %v1020 = vsub.s32 4, %v1019
    %v1021 = vrot.slane %v76, %v1020
    %v1022 = vmul.f32 %v1012, %v1021
    %v1023 = vmul.f32 %v1013, %v1021
    %v1024 = vmul.f32 %v1014, %v1021
    %v1025 = vmul.f32 %v1015, %v1021
    %v1026 = vmul.f32 %v1016, %v1021
    %v1027 = vmul.f32 %v1017, %v1021
    %v1028 = vlaneseq
    %v1029 = vshrl.u32 %v1028, 7
    %v1030 = vsub.s32 5, %v1029
    %v1031 = vrot.slane %v76, %v1030
    %v1032 = vadd.f32 %v1022, %v1031
    %v1033 = vadd.f32 %v1023, %v1031
    %v1034 = vadd.f32 %v1024, %v1031
    %v1035 = vadd.f32 %v1025, %v1031
    %v1036 = vadd.f32 %v1026, %v1031
    %v1037 = vadd.f32 %v1027, %v1031
    %v1038 = vadd.f32 %v1032, %v238
    %v1039 = vadd.f32 %v1033, %v239
    %v1040 = vadd.f32 %v1034, %v240
    %v1041 = vadd.f32 %v1035, %v241
    %v1042 = vadd.f32 %v1036, %v242
    %v1043 = vadd.f32 %v1037, %v243
    %v1044 = vmax.f32 %v1038, 0.0
    %v1045 = vmax.f32 %v1039, 0.0
    %v1046 = vmax.f32 %v1040, 0.0
    %v1047 = vmax.f32 %v1041, 0.0
    %v1048 = vmax.f32 %v1042, 0.0
    %v1049 = vmax.f32 %v1043, 0.0
    %v1050 = vsel %vm88, %v1044, 0.0
    %v1051 = vsel %vm89, %v1045, 0.0
    %v1052 = vsel %vm90, %v1046, 0.0
    %v1053 = vsel %vm91, %v1047, 0.0
    %v1054 = vsel %vm92, %v1048, 0.0
    %v1055 = vsel %vm93, %v1049, 0.0
    %s1056 = scalar_lea.vmem %s1, 96
    %v1057 = vld [vmem:[%s1056] sm:$0xff]
    %v1058 = vld [vmem:[%s1056 + $0x8] sm:$0xff]
    %s1059 = scalar_lea.vmem %s1, 112
    %v1060 = vld [vmem:[%s1059] sm:$0xff]
    %v1061 = vld [vmem:[%s1059 + $0x8] sm:$0xff]
    %s1062 = scalar_lea.vmem %s1, 128
    %v1063 = vld [vmem:[%s1062] sm:$0xff]
    %v1064 = vld [vmem:[%s1062 + $0x8] sm:$0xff]
    %v1071 = vrot.slane %v1050, 7
    %v1072 = vrot.slane %v1051, 7
    %v1073 = vsel %vm258, %v1071, %v1072
    %v1074 = vrot.slane %v1052, 7
    %v1075 = vsel %vm258, %v1072, %v1074
    %v1076 = vrot.slane %v1053, 7
    %v1077 = vsel %vm258, %v1074, %v1076
    %v1078 = vrot.slane %v1054, 7
    %v1079 = vsel %vm258, %v1076, %v1078
    %v1080 = vrot.slane %v1055, 7
    %v1081 = vsel %vm258, %v1078, %v1080
    %v1083 = vsel %vm258, 0.0, %v1071
    %v1085 = vsel %vm272, %v1083, 0
    %v1087 = vsel %vm272, %v1073, 0
    %v1089 = vsel %vm272, %v1075, 0
    %v1091 = vsel %vm272, %v1077, 0
    %v1093 = vsel %vm272, %v1079, 0
    %v1095 = vsel %vm272, %v1081, 0
    %1097 = vmatprep.subr.mxu0 0.0
    %1098 = vmatpush1.msra.mxu0 %v1057
    %1099 = vmatprep.subr.mxu0 0.0
    %1100 = vmatpush1.msra.mxu0 %v1058
    %1101 = vmatprep.subr.mxu0 0.0
    %1102 = vmatpush1.msra.mxu0 0.0
    %1103 = vmatprep.subr.mxu0 0.0
    %1104 = vmatpush1.msra.mxu0 0.0
    %1105 = vmatprep.subr.mxu0 0.0
    %1106 = vmatpush1.msra.mxu0 0.0
    %1107 = vmatprep.subr.mxu0 0.0
    %1108 = vmatpush1.msra.mxu0 0.0
    %1109 = vmatprep.subr.mxu0 0.0
    %1110 = vmatpush1.msra.mxu0 0.0
    %1111 = vmatprep.subr.mxu0 0.0
    %1112 = vmatpush1.msra.mxu0 0.0
    %1113 = vmatprep.subr.mxu0 0.0
    %1114 = vmatpush1.msra.mxu0 0.0
    %1115 = vmatprep.subr.mxu0 0.0
    %1116 = vmatpush1.msra.mxu0 0.0
    %1117 = vmatprep.subr.mxu0 0.0
    %1118 = vmatpush1.msra.mxu0 0.0
    %1119 = vmatprep.subr.mxu0 0.0
    %1120 = vmatpush1.msra.mxu0 0.0
    %1121 = vmatprep.subr.mxu0 0.0
    %1122 = vmatpush1.msra.mxu0 0.0
    %1123 = vmatprep.subr.mxu0 0.0
    %1124 = vmatpush1.msra.mxu0 0.0
    %1125 = vmatprep.subr.mxu0 0.0
    %1126 = vmatpush1.msra.mxu0 0.0
    %1127 = vmatprep.subr.mxu0 0.0
    %1128 = vmatpush1.msra.mxu0 0.0
    %1129 = vmatprep.subr.mxu0 0.0
    %1130 = vmatpush1.msra.mxu0 0.0
    %1131 = vmatprep.subr.mxu0 0.0
    %1132 = vmatpush1.msra.mxu0 0.0
    %1133 = vmatprep.subr.mxu0 0.0
    %1134 = vmatpush1.msra.mxu0 0.0
    %1135 = vmatprep.subr.mxu0 0.0
    %1136 = vmatpush1.msra.mxu0 0.0
    %1137 = vmatprep.subr.mxu0 0.0
    %1138 = vmatpush1.msra.mxu0 0.0
    %1139 = vmatprep.subr.mxu0 0.0
    %1140 = vmatpush1.msra.mxu0 0.0
    %1141 = vmatprep.subr.mxu0 0.0
    %1142 = vmatpush1.msra.mxu0 0.0
    %1143 = vmatprep.subr.mxu0 0.0
    %1144 = vmatpush1.msra.mxu0 0.0
    %1145 = vmatprep.subr.mxu0 0.0
    %1146 = vmatpush1.msra.mxu0 0.0
    %1147 = vmatprep.subr.mxu0 0.0
    %1148 = vmatpush1.msra.mxu0 0.0
    %1149 = vmatprep.subr.mxu0 0.0
    %1150 = vmatpush1.msra.mxu0 0.0
    %1151 = vmatprep.subr.mxu0 0.0
    %1152 = vmatpush1.msra.mxu0 0.0
    %1153 = vmatprep.subr.mxu0 0.0
    %1154 = vmatpush1.msra.mxu0 0.0
    %1155 = vmatprep.subr.mxu0 0.0
    %1156 = vmatpush1.msra.mxu0 0.0
    %1157 = vmatprep.subr.mxu0 0.0
    %1158 = vmatpush1.msra.mxu0 0.0
    %1159 = vmatprep.subr.mxu0 0.0
    %1160 = vmatpush1.msra.mxu0 0.0
    %1161 = vmatprep.mubr.f32.mxu0 0.0
    %1162 = vmatmul.mubr.f32.gmra.mrb[0].mxu0 %v1085
    %v1163 = vpop.f32.mrb[0].mxu0
    %v1164 = vadd.f32 0.0, %v1163
    %v1165 = vpop.f32.mrb[0].mxu0
    %1166 = vmatprep.mubr.f32.mxu0 0.0
    %1167 = vmatmul.mubr.f32.gmra.mrb[0].mxu0 %v1087
    %v1168 = vpop.f32.mrb[0].mxu0
    %v1169 = vadd.f32 0.0, %v1168
    %v1170 = vpop.f32.mrb[0].mxu0
    %1171 = vmatprep.mubr.f32.mxu0 0.0
    %1172 = vmatmul.mubr.f32.gmra.mrb[0].mxu0 %v1089
    %v1173 = vpop.f32.mrb[0].mxu0
    %v1174 = vadd.f32 0.0, %v1173
    %v1175 = vpop.f32.mrb[0].mxu0
    %1176 = vmatprep.mubr.f32.mxu0 0.0
    %1177 = vmatmul.mubr.f32.gmra.mrb[0].mxu0 %v1091
    %v1178 = vpop.f32.mrb[0].mxu0
    %v1179 = vadd.f32 0.0, %v1178
    %v1180 = vpop.f32.mrb[0].mxu0
    %1181 = vmatprep.mubr.f32.mxu0 0.0
    %1182 = vmatmul.mubr.f32.gmra.mrb[0].mxu0 %v1093
    %v1183 = vpop.f32.mrb[0].mxu0
    %v1184 = vadd.f32 0.0, %v1183
    %v1185 = vpop.f32.mrb[0].mxu0
    %1186 = vmatprep.mubr.f32.mxu0 0.0
    %1187 = vmatmul.mubr.f32.gmra.mrb[0].mxu0 %v1095
    %v1188 = vpop.f32.mrb[0].mxu0
    %v1189 = vadd.f32 0.0, %v1188
    %v1190 = vpop.f32.mrb[0].mxu0
    %1191 = vdwg.mxu0
    %v1192 = vsel %vm272, %v1050, 0
    %v1194 = vsel %vm272, %v1051, 0
    %v1196 = vsel %vm272, %v1052, 0
    %v1198 = vsel %vm272, %v1053, 0
    %v1200 = vsel %vm272, %v1054, 0
    %v1202 = vsel %vm272, %v1055, 0
    %1204 = vmatprep.subr.mxu0 0.0
    %1205 = vmatpush1.msra.mxu0 %v1060
    %1206 = vmatprep.subr.mxu0 0.0
    %1207 = vmatpush1.msra.mxu0 %v1061
    %1208 = vmatprep.subr.mxu0 0.0
    %1209 = vmatpush1.msra.mxu0 0.0
    %1210 = vmatprep.subr.mxu0 0.0
    %1211 = vmatpush1.msra.mxu0 0.0
    %1212 = vmatprep.subr.mxu0 0.0
    %1213 = vmatpush1.msra.mxu0 0.0
    %1214 = vmatprep.subr.mxu0 0.0
    %1215 = vmatpush1.msra.mxu0 0.0
    %1216 = vmatprep.subr.mxu0 0.0
    %1217 = vmatpush1.msra.mxu0 0.0
    %1218 = vmatprep.subr.mxu0 0.0
    %1219 = vmatpush1.msra.mxu0 0.0
    %1220 = vmatprep.subr.mxu0 0.0
    %1221 = vmatpush1.msra.mxu0 0.0
    %1222 = vmatprep.subr.mxu0 0.0
    %1223 = vmatpush1.msra.mxu0 0.0
    %1224 = vmatprep.subr.mxu0 0.0
    %1225 = vmatpush1.msra.mxu0 0.0
    %1226 = vmatprep.subr.mxu0 0.0
    %1227 = vmatpush1.msra.mxu0 0.0
    %1228 = vmatprep.subr.mxu0 0.0
    %1229 = vmatpush1.msra.mxu0 0.0
    %1230 = vmatprep.subr.mxu0 0.0
    %1231 = vmatpush1.msra.mxu0 0.0
    %1232 = vmatprep.subr.mxu0 0.0
    %1233 = vmatpush1.msra.mxu0 0.0
    %1234 = vmatprep.subr.mxu0 0.0
    %1235 = vmatpush1.msra.mxu0 0.0
    %1236 = vmatprep.subr.mxu0 0.0
    %1237 = vmatpush1.msra.mxu0 0.0
    %1238 = vmatprep.subr.mxu0 0.0
    %1239 = vmatpush1.msra.mxu0 0.0
    %1240 = vmatprep.subr.mxu0 0.0
    %1241 = vmatpush1.msra.mxu0 0.0
    %1242 = vmatprep.subr.mxu0 0.0
    %1243 = vmatpush1.msra.mxu0 0.0
    %1244 = vmatprep.subr.mxu0 0.0
    %1245 = vmatpush1.msra.mxu0 0.0
    %1246 = vmatprep.subr.mxu0 0.0
    %1247 = vmatpush1.msra.mxu0 0.0
    %1248 = vmatprep.subr.mxu0 0.0
    %1249 = vmatpush1.msra.mxu0 0.0
    %1250 = vmatprep.subr.mxu0 0.0
    %1251 = vmatpush1.msra.mxu0 0.0
    %1252 = vmatprep.subr.mxu0 0.0
    %1253 = vmatpush1.msra.mxu0 0.0
    %1254 = vmatprep.subr.mxu0 0.0
    %1255 = vmatpush1.msra.mxu0 0.0
    %1256 = vmatprep.subr.mxu0 0.0
    %1257 = vmatpush1.msra.mxu0 0.0
    %1258 = vmatprep.subr.mxu0 0.0
    %1259 = vmatpush1.msra.mxu0 0.0
    %1260 = vmatprep.subr.mxu0 0.0
    %1261 = vmatpush1.msra.mxu0 0.0
    %1262 = vmatprep.subr.mxu0 0.0
    %1263 = vmatpush1.msra.mxu0 0.0
    %1264 = vmatprep.subr.mxu0 0.0
    %1265 = vmatpush1.msra.mxu0 0.0
    %1266 = vmatprep.subr.mxu0 0.0
    %1267 = vmatpush1.msra.mxu0 0.0
    %1268 = vmatprep.mubr.f32.mxu0 0.0
    %1269 = vmatmul.mubr.f32.gmra.mrb[0].mxu0 %v1192
    %v1270 = vpop.f32.mrb[0].mxu0
    %v1271 = vadd.f32 %v1164, %v1270
    %v1272 = vpop.f32.mrb[0].mxu0
    %1273 = vmatprep.mubr.f32.mxu0 0.0
    %1274 = vmatmul.mubr.f32.gmra.mrb[0].mxu0 %v1194
    %v1275 = vpop.f32.mrb[0].mxu0
    %v1276 = vadd.f32 %v1169, %v1275
    %v1277 = vpop.f32.mrb[0].mxu0
    %1278 = vmatprep.mubr.f32.mxu0 0.0
    %1279 = vmatmul.mubr.f32.gmra.mrb[0].mxu0 %v1196
    %v1280 = vpop.f32.mrb[0].mxu0
    %v1281 = vadd.f32 %v1174, %v1280
    %v1282 = vpop.f32.mrb[0].mxu0
    %1283 = vmatprep.mubr.f32.mxu0 0.0
    %1284 = vmatmul.mubr.f32.gmra.mrb[0].mxu0 %v1198
    %v1285 = vpop.f32.mrb[0].mxu0
    %v1286 = vadd.f32 %v1179, %v1285
    %v1287 = vpop.f32.mrb[0].mxu0
    %1288 = vmatprep.mubr.f32.mxu0 0.0
    %1289 = vmatmul.mubr.f32.gmra.mrb[0].mxu0 %v1200
    %v1290 = vpop.f32.mrb[0].mxu0
    %v1291 = vadd.f32 %v1184, %v1290
    %v1292 = vpop.f32.mrb[0].mxu0
    %1293 = vmatprep.mubr.f32.mxu0 0.0
    %1294 = vmatmul.mubr.f32.gmra.mrb[0].mxu0 %v1202
    %v1295 = vpop.f32.mrb[0].mxu0
    %v1296 = vadd.f32 %v1189, %v1295
    %v1297 = vpop.f32.mrb[0].mxu0
    %1298 = vdwg.mxu0
    %v1299 = vrot.slane %v1050, 1
    %v1300 = vrot.slane %v1051, 1
    %v1301 = vsel %vm488, %v1299, %v1300
    %v1302 = vrot.slane %v1052, 1
    %v1303 = vsel %vm488, %v1300, %v1302
    %v1304 = vrot.slane %v1053, 1
    %v1305 = vsel %vm488, %v1302, %v1304
    %v1306 = vrot.slane %v1054, 1
    %v1307 = vsel %vm488, %v1304, %v1306
    %v1308 = vrot.slane %v1055, 1
    %v1309 = vsel %vm488, %v1306, %v1308
    %v1311 = vsel %vm488, %v1308, 0.0
    %v1312 = vsel %vm272, %v1301, 0
    %v1314 = vsel %vm272, %v1303, 0
    %v1316 = vsel %vm272, %v1305, 0
    %v1318 = vsel %vm272, %v1307, 0
    %v1320 = vsel %vm272, %v1309, 0
    %v1323 = vsel %vm272, %v1311, 0
    %1325 = vmatprep.subr.mxu0 0.0
    %1326 = vmatpush1.msra.mxu0 %v1063
    %1327 = vmatprep.subr.mxu0 0.0
    %1328 = vmatpush1.msra.mxu0 %v1064
    %1329 = vmatprep.subr.mxu0 0.0
    %1330 = vmatpush1.msra.mxu0 0.0
    %1331 = vmatprep.subr.mxu0 0.0
    %1332 = vmatpush1.msra.mxu0 0.0
    %1333 = vmatprep.subr.mxu0 0.0
    %1334 = vmatpush1.msra.mxu0 0.0
    %1335 = vmatprep.subr.mxu0 0.0
    %1336 = vmatpush1.msra.mxu0 0.0
    %1337 = vmatprep.subr.mxu0 0.0
    %1338 = vmatpush1.msra.mxu0 0.0
    %1339 = vmatprep.subr.mxu0 0.0
    %1340 = vmatpush1.msra.mxu0 0.0
    %1341 = vmatprep.subr.mxu0 0.0
    %1342 = vmatpush1.msra.mxu0 0.0
    %1343 = vmatprep.subr.mxu0 0.0
    %1344 = vmatpush1.msra.mxu0 0.0
    %1345 = vmatprep.subr.mxu0 0.0
    %1346 = vmatpush1.msra.mxu0 0.0
    %1347 = vmatprep.subr.mxu0 0.0
    %1348 = vmatpush1.msra.mxu0 0.0
    %1349 = vmatprep.subr.mxu0 0.0
    %1350 = vmatpush1.msra.mxu0 0.0
    %1351 = vmatprep.subr.mxu0 0.0
    %1352 = vmatpush1.msra.mxu0 0.0
    %1353 = vmatprep.subr.mxu0 0.0
    %1354 = vmatpush1.msra.mxu0 0.0
    %1355 = vmatprep.subr.mxu0 0.0
    %1356 = vmatpush1.msra.mxu0 0.0
    %1357 = vmatprep.subr.mxu0 0.0
    %1358 = vmatpush1.msra.mxu0 0.0
    %1359 = vmatprep.subr.mxu0 0.0
    %1360 = vmatpush1.msra.mxu0 0.0
    %1361 = vmatprep.subr.mxu0 0.0
    %1362 = vmatpush1.msra.mxu0 0.0
    %1363 = vmatprep.subr.mxu0 0.0
    %1364 = vmatpush1.msra.mxu0 0.0
    %1365 = vmatprep.subr.mxu0 0.0
    %1366 = vmatpush1.msra.mxu0 0.0
    %1367 = vmatprep.subr.mxu0 0.0
    %1368 = vmatpush1.msra.mxu0 0.0
    %1369 = vmatprep.subr.mxu0 0.0
    %1370 = vmatpush1.msra.mxu0 0.0
    %1371 = vmatprep.subr.mxu0 0.0
    %1372 = vmatpush1.msra.mxu0 0.0
    %1373 = vmatprep.subr.mxu0 0.0
    %1374 = vmatpush1.msra.mxu0 0.0
    %1375 = vmatprep.subr.mxu0 0.0
    %1376 = vmatpush1.msra.mxu0 0.0
    %1377 = vmatprep.subr.mxu0 0.0
    %1378 = vmatpush1.msra.mxu0 0.0
    %1379 = vmatprep.subr.mxu0 0.0
    %1380 = vmatpush1.msra.mxu0 0.0
    %1381 = vmatprep.subr.mxu0 0.0
    %1382 = vmatpush1.msra.mxu0 0.0
    %1383 = vmatprep.subr.mxu0 0.0
    %1384 = vmatpush1.msra.mxu0 0.0
    %1385 = vmatprep.subr.mxu0 0.0
    %1386 = vmatpush1.msra.mxu0 0.0
    %1387 = vmatprep.subr.mxu0 0.0
    %1388 = vmatpush1.msra.mxu0 0.0
    %1389 = vmatprep.mubr.f32.mxu0 0.0
    %1390 = vmatmul.mubr.f32.gmra.mrb[0].mxu0 %v1312
    %v1391 = vpop.f32.mrb[0].mxu0
    %v1392 = vadd.f32 0.0, %v1391
    %v1393 = vpop.f32.mrb[0].mxu0
    %1394 = vmatprep.mubr.f32.mxu0 0.0
    %1395 = vmatmul.mubr.f32.gmra.mrb[0].mxu0 %v1314
    %v1396 = vpop.f32.mrb[0].mxu0
    %v1397 = vadd.f32 0.0, %v1396
    %v1398 = vpop.f32.mrb[0].mxu0
    %1399 = vmatprep.mubr.f32.mxu0 0.0
    %1400 = vmatmul.mubr.f32.gmra.mrb[0].mxu0 %v1316
    %v1401 = vpop.f32.mrb[0].mxu0
    %v1402 = vadd.f32 0.0, %v1401
    %v1403 = vpop.f32.mrb[0].mxu0
    %1404 = vmatprep.mubr.f32.mxu0 0.0
    %1405 = vmatmul.mubr.f32.gmra.mrb[0].mxu0 %v1318
    %v1406 = vpop.f32.mrb[0].mxu0
    %v1407 = vadd.f32 0.0, %v1406
    %v1408 = vpop.f32.mrb[0].mxu0
    %1409 = vmatprep.mubr.f32.mxu0 0.0
    %1410 = vmatmul.mubr.f32.gmra.mrb[0].mxu0 %v1320
    %v1411 = vpop.f32.mrb[0].mxu0
    %v1412 = vadd.f32 0.0, %v1411
    %v1413 = vpop.f32.mrb[0].mxu0
    %1414 = vmatprep.mubr.f32.mxu0 0.0
    %1415 = vmatmul.mubr.f32.gmra.mrb[0].mxu0 %v1323
    %v1416 = vpop.f32.mrb[0].mxu0
    %v1417 = vadd.f32 0.0, %v1416
    %v1418 = vpop.f32.mrb[0].mxu0
    %1419 = vdwg.mxu0
    %v1420 = vadd.f32 %v1271, %v1392
    %v1421 = vadd.f32 %v1276, %v1397
    %v1422 = vadd.f32 %v1281, %v1402
    %v1423 = vadd.f32 %v1286, %v1407
    %v1424 = vadd.f32 %v1291, %v1412
    %v1425 = vadd.f32 %v1296, %v1417
    %v1426 = vlaneseq
    %v1427 = vshrl.u32 %v1426, 7
    %v1428 = vsub.s32 6, %v1427
    %v1429 = vrot.slane %v76, %v1428
    %v1430 = vmul.f32 %v1420, %v1429
    %v1431 = vmul.f32 %v1421, %v1429
    %v1432 = vmul.f32 %v1422, %v1429
    %v1433 = vmul.f32 %v1423, %v1429
    %v1434 = vmul.f32 %v1424, %v1429
    %v1435 = vmul.f32 %v1425, %v1429
    %v1436 = vlaneseq
    %v1437 = vshrl.u32 %v1436, 7
    %v1438 = vsub.s32 7, %v1437
    %v1439 = vrot.slane %v76, %v1438
    %v1440 = vadd.f32 %v1430, %v1439
    %v1441 = vadd.f32 %v1431, %v1439
    %v1442 = vadd.f32 %v1432, %v1439
    %v1443 = vadd.f32 %v1433, %v1439
    %v1444 = vadd.f32 %v1434, %v1439
    %v1445 = vadd.f32 %v1435, %v1439
    %v1446 = vmax.f32 %v1440, 0.0
    %v1447 = vmax.f32 %v1441, 0.0
    %v1448 = vmax.f32 %v1442, 0.0
    %v1449 = vmax.f32 %v1443, 0.0
    %v1450 = vmax.f32 %v1444, 0.0
    %v1451 = vmax.f32 %v1445, 0.0
    %v1452 = vsel %vm88, %v1446, 0.0
    %v1453 = vsel %vm89, %v1447, 0.0
    %v1454 = vsel %vm90, %v1448, 0.0
    %v1455 = vsel %vm91, %v1449, 0.0
    %v1456 = vsel %vm92, %v1450, 0.0
    %v1457 = vsel %vm93, %v1451, 0.0
    %s1458 = scalar_lea.vmem %s1, 144
    %v1459 = vld [vmem:[%s1458] sm:$0xff]
    %v1460 = vld [vmem:[%s1458 + $0x8] sm:$0xff]
    %s1461 = scalar_lea.vmem %s1, 160
    %v1462 = vld [vmem:[%s1461] sm:$0xff]
    %v1463 = vld [vmem:[%s1461 + $0x8] sm:$0xff]
    %s1464 = scalar_lea.vmem %s1, 176
    %v1465 = vld [vmem:[%s1464] sm:$0xff]
    %v1466 = vld [vmem:[%s1464 + $0x8] sm:$0xff]
    %v1473 = vrot.slane %v1452, 7
    %v1474 = vrot.slane %v1453, 7
    %v1475 = vsel %vm258, %v1473, %v1474
    %v1476 = vrot.slane %v1454, 7
    %v1477 = vsel %vm258, %v1474, %v1476
    %v1478 = vrot.slane %v1455, 7
    %v1479 = vsel %vm258, %v1476, %v1478
    %v1480 = vrot.slane %v1456, 7
    %v1481 = vsel %vm258, %v1478, %v1480
    %v1482 = vrot.slane %v1457, 7
    %v1483 = vsel %vm258, %v1480, %v1482
    %v1485 = vsel %vm258, 0.0, %v1473
    %v1487 = vsel %vm272, %v1485, 0
    %v1489 = vsel %vm272, %v1475, 0
    %v1491 = vsel %vm272, %v1477, 0
    %v1493 = vsel %vm272, %v1479, 0
    %v1495 = vsel %vm272, %v1481, 0
    %v1497 = vsel %vm272, %v1483, 0
    %1499 = vmatprep.subr.mxu0 0.0
    %1500 = vmatpush1.msra.mxu0 %v1459
    %1501 = vmatprep.subr.mxu0 0.0
    %1502 = vmatpush1.msra.mxu0 %v1460
    %1503 = vmatprep.subr.mxu0 0.0
    %1504 = vmatpush1.msra.mxu0 0.0
    %1505 = vmatprep.subr.mxu0 0.0
    %1506 = vmatpush1.msra.mxu0 0.0
    %1507 = vmatprep.subr.mxu0 0.0
    %1508 = vmatpush1.msra.mxu0 0.0
    %1509 = vmatprep.subr.mxu0 0.0
    %1510 = vmatpush1.msra.mxu0 0.0
    %1511 = vmatprep.subr.mxu0 0.0
    %1512 = vmatpush1.msra.mxu0 0.0
    %1513 = vmatprep.subr.mxu0 0.0
    %1514 = vmatpush1.msra.mxu0 0.0
    %1515 = vmatprep.subr.mxu0 0.0
    %1516 = vmatpush1.msra.mxu0 0.0
    %1517 = vmatprep.subr.mxu0 0.0
    %1518 = vmatpush1.msra.mxu0 0.0
    %1519 = vmatprep.subr.mxu0 0.0
    %1520 = vmatpush1.msra.mxu0 0.0
    %1521 = vmatprep.subr.mxu0 0.0
    %1522 = vmatpush1.msra.mxu0 0.0
    %1523 = vmatprep.subr.mxu0 0.0
    %1524 = vmatpush1.msra.mxu0 0.0
    %1525 = vmatprep.subr.mxu0 0.0
    %1526 = vmatpush1.msra.mxu0 0.0
    %1527 = vmatprep.subr.mxu0 0.0
    %1528 = vmatpush1.msra.mxu0 0.0
    %1529 = vmatprep.subr.mxu0 0.0
    %1530 = vmatpush1.msra.mxu0 0.0
    %1531 = vmatprep.subr.mxu0 0.0
    %1532 = vmatpush1.msra.mxu0 0.0
    %1533 = vmatprep.subr.mxu0 0.0
    %1534 = vmatpush1.msra.mxu0 0.0
    %1535 = vmatprep.subr.mxu0 0.0
    %1536 = vmatpush1.msra.mxu0 0.0
    %1537 = vmatprep.subr.mxu0 0.0
    %1538 = vmatpush1.msra.mxu0 0.0
    %1539 = vmatprep.subr.mxu0 0.0
    %1540 = vmatpush1.msra.mxu0 0.0
    %1541 = vmatprep.subr.mxu0 0.0
    %1542 = vmatpush1.msra.mxu0 0.0
    %1543 = vmatprep.subr.mxu0 0.0
    %1544 = vmatpush1.msra.mxu0 0.0
    %1545 = vmatprep.subr.mxu0 0.0
    %1546 = vmatpush1.msra.mxu0 0.0
    %1547 = vmatprep.subr.mxu0 0.0
    %1548 = vmatpush1.msra.mxu0 0.0
    %1549 = vmatprep.subr.mxu0 0.0
    %1550 = vmatpush1.msra.mxu0 0.0
    %1551 = vmatprep.subr.mxu0 0.0
    %1552 = vmatpush1.msra.mxu0 0.0
    %1553 = vmatprep.subr.mxu0 0.0
    %1554 = vmatpush1.msra.mxu0 0.0
    %1555 = vmatprep.subr.mxu0 0.0
    %1556 = vmatpush1.msra.mxu0 0.0
    %1557 = vmatprep.subr.mxu0 0.0
    %1558 = vmatpush1.msra.mxu0 0.0
    %1559 = vmatprep.subr.mxu0 0.0
    %1560 = vmatpush1.msra.mxu0 0.0
    %1561 = vmatprep.subr.mxu0 0.0
    %1562 = vmatpush1.msra.mxu0 0.0
    %1563 = vmatprep.mubr.f32.mxu0 0.0
    %1564 = vmatmul.mubr.f32.gmra.mrb[0].mxu0 %v1487
    %v1565 = vpop.f32.mrb[0].mxu0
    %v1566 = vadd.f32 0.0, %v1565
    %v1567 = vpop.f32.mrb[0].mxu0
    %1568 = vmatprep.mubr.f32.mxu0 0.0
    %1569 = vmatmul.mubr.f32.gmra.mrb[0].mxu0 %v1489
    %v1570 = vpop.f32.mrb[0].mxu0
    %v1571 = vadd.f32 0.0, %v1570
    %v1572 = vpop.f32.mrb[0].mxu0
    %1573 = vmatprep.mubr.f32.mxu0 0.0
    %1574 = vmatmul.mubr.f32.gmra.mrb[0].mxu0 %v1491
    %v1575 = vpop.f32.mrb[0].mxu0
    %v1576 = vadd.f32 0.0, %v1575
    %v1577 = vpop.f32.mrb[0].mxu0
    %1578 = vmatprep.mubr.f32.mxu0 0.0
    %1579 = vmatmul.mubr.f32.gmra.mrb[0].mxu0 %v1493
    %v1580 = vpop.f32.mrb[0].mxu0
    %v1581 = vadd.f32 0.0, %v1580
    %v1582 = vpop.f32.mrb[0].mxu0
    %1583 = vmatprep.mubr.f32.mxu0 0.0
    %1584 = vmatmul.mubr.f32.gmra.mrb[0].mxu0 %v1495
    %v1585 = vpop.f32.mrb[0].mxu0
    %v1586 = vadd.f32 0.0, %v1585
    %v1587 = vpop.f32.mrb[0].mxu0
    %1588 = vmatprep.mubr.f32.mxu0 0.0
    %1589 = vmatmul.mubr.f32.gmra.mrb[0].mxu0 %v1497
    %v1590 = vpop.f32.mrb[0].mxu0
    %v1591 = vadd.f32 0.0, %v1590
    %v1592 = vpop.f32.mrb[0].mxu0
    %1593 = vdwg.mxu0
    %v1594 = vsel %vm272, %v1452, 0
    %v1596 = vsel %vm272, %v1453, 0
    %v1598 = vsel %vm272, %v1454, 0
    %v1600 = vsel %vm272, %v1455, 0
    %v1602 = vsel %vm272, %v1456, 0
    %v1604 = vsel %vm272, %v1457, 0
    %1606 = vmatprep.subr.mxu0 0.0
    %1607 = vmatpush1.msra.mxu0 %v1462
    %1608 = vmatprep.subr.mxu0 0.0
    %1609 = vmatpush1.msra.mxu0 %v1463
    %1610 = vmatprep.subr.mxu0 0.0
    %1611 = vmatpush1.msra.mxu0 0.0
    %1612 = vmatprep.subr.mxu0 0.0
    %1613 = vmatpush1.msra.mxu0 0.0
    %1614 = vmatprep.subr.mxu0 0.0
    %1615 = vmatpush1.msra.mxu0 0.0
    %1616 = vmatprep.subr.mxu0 0.0
    %1617 = vmatpush1.msra.mxu0 0.0
    %1618 = vmatprep.subr.mxu0 0.0
    %1619 = vmatpush1.msra.mxu0 0.0
    %1620 = vmatprep.subr.mxu0 0.0
    %1621 = vmatpush1.msra.mxu0 0.0
    %1622 = vmatprep.subr.mxu0 0.0
    %1623 = vmatpush1.msra.mxu0 0.0
    %1624 = vmatprep.subr.mxu0 0.0
    %1625 = vmatpush1.msra.mxu0 0.0
    %1626 = vmatprep.subr.mxu0 0.0
    %1627 = vmatpush1.msra.mxu0 0.0
    %1628 = vmatprep.subr.mxu0 0.0
    %1629 = vmatpush1.msra.mxu0 0.0
    %1630 = vmatprep.subr.mxu0 0.0
    %1631 = vmatpush1.msra.mxu0 0.0
    %1632 = vmatprep.subr.mxu0 0.0
    %1633 = vmatpush1.msra.mxu0 0.0
    %1634 = vmatprep.subr.mxu0 0.0
    %1635 = vmatpush1.msra.mxu0 0.0
    %1636 = vmatprep.subr.mxu0 0.0
    %1637 = vmatpush1.msra.mxu0 0.0
    %1638 = vmatprep.subr.mxu0 0.0
    %1639 = vmatpush1.msra.mxu0 0.0
    %1640 = vmatprep.subr.mxu0 0.0
    %1641 = vmatpush1.msra.mxu0 0.0
    %1642 = vmatprep.subr.mxu0 0.0
    %1643 = vmatpush1.msra.mxu0 0.0
    %1644 = vmatprep.subr.mxu0 0.0
    %1645 = vmatpush1.msra.mxu0 0.0
    %1646 = vmatprep.subr.mxu0 0.0
    %1647 = vmatpush1.msra.mxu0 0.0
    %1648 = vmatprep.subr.mxu0 0.0
    %1649 = vmatpush1.msra.mxu0 0.0
    %1650 = vmatprep.subr.mxu0 0.0
    %1651 = vmatpush1.msra.mxu0 0.0
    %1652 = vmatprep.subr.mxu0 0.0
    %1653 = vmatpush1.msra.mxu0 0.0
    %1654 = vmatprep.subr.mxu0 0.0
    %1655 = vmatpush1.msra.mxu0 0.0
    %1656 = vmatprep.subr.mxu0 0.0
    %1657 = vmatpush1.msra.mxu0 0.0
    %1658 = vmatprep.subr.mxu0 0.0
    %1659 = vmatpush1.msra.mxu0 0.0
    %1660 = vmatprep.subr.mxu0 0.0
    %1661 = vmatpush1.msra.mxu0 0.0
    %1662 = vmatprep.subr.mxu0 0.0
    %1663 = vmatpush1.msra.mxu0 0.0
    %1664 = vmatprep.subr.mxu0 0.0
    %1665 = vmatpush1.msra.mxu0 0.0
    %1666 = vmatprep.subr.mxu0 0.0
    %1667 = vmatpush1.msra.mxu0 0.0
    %1668 = vmatprep.subr.mxu0 0.0
    %1669 = vmatpush1.msra.mxu0 0.0
    %1670 = vmatprep.mubr.f32.mxu0 0.0
    %1671 = vmatmul.mubr.f32.gmra.mrb[0].mxu0 %v1594
    %v1672 = vpop.f32.mrb[0].mxu0
    %v1673 = vadd.f32 %v1566, %v1672
    %v1674 = vpop.f32.mrb[0].mxu0
    %1675 = vmatprep.mubr.f32.mxu0 0.0
    %1676 = vmatmul.mubr.f32.gmra.mrb[0].mxu0 %v1596
    %v1677 = vpop.f32.mrb[0].mxu0
    %v1678 = vadd.f32 %v1571, %v1677
    %v1679 = vpop.f32.mrb[0].mxu0
    %1680 = vmatprep.mubr.f32.mxu0 0.0
    %1681 = vmatmul.mubr.f32.gmra.mrb[0].mxu0 %v1598
    %v1682 = vpop.f32.mrb[0].mxu0
    %v1683 = vadd.f32 %v1576, %v1682
    %v1684 = vpop.f32.mrb[0].mxu0
    %1685 = vmatprep.mubr.f32.mxu0 0.0
    %1686 = vmatmul.mubr.f32.gmra.mrb[0].mxu0 %v1600
    %v1687 = vpop.f32.mrb[0].mxu0
    %v1688 = vadd.f32 %v1581, %v1687
    %v1689 = vpop.f32.mrb[0].mxu0
    %1690 = vmatprep.mubr.f32.mxu0 0.0
    %1691 = vmatmul.mubr.f32.gmra.mrb[0].mxu0 %v1602
    %v1692 = vpop.f32.mrb[0].mxu0
    %v1693 = vadd.f32 %v1586, %v1692
    %v1694 = vpop.f32.mrb[0].mxu0
    %1695 = vmatprep.mubr.f32.mxu0 0.0
    %1696 = vmatmul.mubr.f32.gmra.mrb[0].mxu0 %v1604
    %v1697 = vpop.f32.mrb[0].mxu0
    %v1698 = vadd.f32 %v1591, %v1697
    %v1699 = vpop.f32.mrb[0].mxu0
    %1700 = vdwg.mxu0
    %v1701 = vrot.slane %v1452, 1
    %v1702 = vrot.slane %v1453, 1
    %v1703 = vsel %vm488, %v1701, %v1702
    %v1704 = vrot.slane %v1454, 1
    %v1705 = vsel %vm488, %v1702, %v1704
    %v1706 = vrot.slane %v1455, 1
    %v1707 = vsel %vm488, %v1704, %v1706
    %v1708 = vrot.slane %v1456, 1
    %v1709 = vsel %vm488, %v1706, %v1708
    %v1710 = vrot.slane %v1457, 1
    %v1711 = vsel %vm488, %v1708, %v1710
    %v1713 = vsel %vm488, %v1710, 0.0
    %v1714 = vsel %vm272, %v1703, 0
    %v1716 = vsel %vm272, %v1705, 0
    %v1718 = vsel %vm272, %v1707, 0
    %v1720 = vsel %vm272, %v1709, 0
    %v1722 = vsel %vm272, %v1711, 0
    %v1725 = vsel %vm272, %v1713, 0
    %1727 = vmatprep.subr.mxu0 0.0
    %1728 = vmatpush1.msra.mxu0 %v1465
    %1729 = vmatprep.subr.mxu0 0.0
    %1730 = vmatpush1.msra.mxu0 %v1466
    %1731 = vmatprep.subr.mxu0 0.0
    %1732 = vmatpush1.msra.mxu0 0.0
    %1733 = vmatprep.subr.mxu0 0.0
    %1734 = vmatpush1.msra.mxu0 0.0
    %1735 = vmatprep.subr.mxu0 0.0
    %1736 = vmatpush1.msra.mxu0 0.0
    %1737 = vmatprep.subr.mxu0 0.0
    %1738 = vmatpush1.msra.mxu0 0.0
    %1739 = vmatprep.subr.mxu0 0.0
    %1740 = vmatpush1.msra.mxu0 0.0
    %1741 = vmatprep.subr.mxu0 0.0
    %1742 = vmatpush1.msra.mxu0 0.0
    %1743 = vmatprep.subr.mxu0 0.0
    %1744 = vmatpush1.msra.mxu0 0.0
    %1745 = vmatprep.subr.mxu0 0.0
    %1746 = vmatpush1.msra.mxu0 0.0
    %1747 = vmatprep.subr.mxu0 0.0
    %1748 = vmatpush1.msra.mxu0 0.0
    %1749 = vmatprep.subr.mxu0 0.0
    %1750 = vmatpush1.msra.mxu0 0.0
    %1751 = vmatprep.subr.mxu0 0.0
    %1752 = vmatpush1.msra.mxu0 0.0
    %1753 = vmatprep.subr.mxu0 0.0
    %1754 = vmatpush1.msra.mxu0 0.0
    %1755 = vmatprep.subr.mxu0 0.0
    %1756 = vmatpush1.msra.mxu0 0.0
    %1757 = vmatprep.subr.mxu0 0.0
    %1758 = vmatpush1.msra.mxu0 0.0
    %1759 = vmatprep.subr.mxu0 0.0
    %1760 = vmatpush1.msra.mxu0 0.0
    %1761 = vmatprep.subr.mxu0 0.0
    %1762 = vmatpush1.msra.mxu0 0.0
    %1763 = vmatprep.subr.mxu0 0.0
    %1764 = vmatpush1.msra.mxu0 0.0
    %1765 = vmatprep.subr.mxu0 0.0
    %1766 = vmatpush1.msra.mxu0 0.0
    %1767 = vmatprep.subr.mxu0 0.0
    %1768 = vmatpush1.msra.mxu0 0.0
    %1769 = vmatprep.subr.mxu0 0.0
    %1770 = vmatpush1.msra.mxu0 0.0
    %1771 = vmatprep.subr.mxu0 0.0
    %1772 = vmatpush1.msra.mxu0 0.0
    %1773 = vmatprep.subr.mxu0 0.0
    %1774 = vmatpush1.msra.mxu0 0.0
    %1775 = vmatprep.subr.mxu0 0.0
    %1776 = vmatpush1.msra.mxu0 0.0
    %1777 = vmatprep.subr.mxu0 0.0
    %1778 = vmatpush1.msra.mxu0 0.0
    %1779 = vmatprep.subr.mxu0 0.0
    %1780 = vmatpush1.msra.mxu0 0.0
    %1781 = vmatprep.subr.mxu0 0.0
    %1782 = vmatpush1.msra.mxu0 0.0
    %1783 = vmatprep.subr.mxu0 0.0
    %1784 = vmatpush1.msra.mxu0 0.0
    %1785 = vmatprep.subr.mxu0 0.0
    %1786 = vmatpush1.msra.mxu0 0.0
    %1787 = vmatprep.subr.mxu0 0.0
    %1788 = vmatpush1.msra.mxu0 0.0
    %1789 = vmatprep.subr.mxu0 0.0
    %1790 = vmatpush1.msra.mxu0 0.0
    %1791 = vmatprep.mubr.f32.mxu0 0.0
    %1792 = vmatmul.mubr.f32.gmra.mrb[0].mxu0 %v1714
    %v1793 = vpop.f32.mrb[0].mxu0
    %v1794 = vadd.f32 0.0, %v1793
    %v1795 = vpop.f32.mrb[0].mxu0
    %1796 = vmatprep.mubr.f32.mxu0 0.0
    %1797 = vmatmul.mubr.f32.gmra.mrb[0].mxu0 %v1716
    %v1798 = vpop.f32.mrb[0].mxu0
    %v1799 = vadd.f32 0.0, %v1798
    %v1800 = vpop.f32.mrb[0].mxu0
    %1801 = vmatprep.mubr.f32.mxu0 0.0
    %1802 = vmatmul.mubr.f32.gmra.mrb[0].mxu0 %v1718
    %v1803 = vpop.f32.mrb[0].mxu0
    %v1804 = vadd.f32 0.0, %v1803
    %v1805 = vpop.f32.mrb[0].mxu0
    %1806 = vmatprep.mubr.f32.mxu0 0.0
    %1807 = vmatmul.mubr.f32.gmra.mrb[0].mxu0 %v1720
    %v1808 = vpop.f32.mrb[0].mxu0
    %v1809 = vadd.f32 0.0, %v1808
    %v1810 = vpop.f32.mrb[0].mxu0
    %1811 = vmatprep.mubr.f32.mxu0 0.0
    %1812 = vmatmul.mubr.f32.gmra.mrb[0].mxu0 %v1722
    %v1813 = vpop.f32.mrb[0].mxu0
    %v1814 = vadd.f32 0.0, %v1813
    %v1815 = vpop.f32.mrb[0].mxu0
    %1816 = vmatprep.mubr.f32.mxu0 0.0
    %1817 = vmatmul.mubr.f32.gmra.mrb[0].mxu0 %v1725
    %v1818 = vpop.f32.mrb[0].mxu0
    %v1819 = vadd.f32 0.0, %v1818
    %v1820 = vpop.f32.mrb[0].mxu0
    %1821 = vdwg.mxu0
    %v1822 = vadd.f32 %v1673, %v1794
    %v1823 = vadd.f32 %v1678, %v1799
    %v1824 = vadd.f32 %v1683, %v1804
    %v1825 = vadd.f32 %v1688, %v1809
    %v1826 = vadd.f32 %v1693, %v1814
    %v1827 = vadd.f32 %v1698, %v1819
    %v1828 = vlaneseq
    %v1829 = vshrl.u32 %v1828, 7
    %v1830 = vsub.s32 0, %v1829
    %v1831 = vrot.slane %v77, %v1830
    %v1832 = vmul.f32 %v1822, %v1831
    %v1833 = vmul.f32 %v1823, %v1831
    %v1834 = vmul.f32 %v1824, %v1831
    %v1835 = vmul.f32 %v1825, %v1831
    %v1836 = vmul.f32 %v1826, %v1831
    %v1837 = vmul.f32 %v1827, %v1831
    %v1838 = vlaneseq
    %v1839 = vshrl.u32 %v1838, 7
    %v1840 = vsub.s32 1, %v1839
    %v1841 = vrot.slane %v77, %v1840
    %v1842 = vadd.f32 %v1832, %v1841
    %v1843 = vadd.f32 %v1833, %v1841
    %v1844 = vadd.f32 %v1834, %v1841
    %v1845 = vadd.f32 %v1835, %v1841
    %v1846 = vadd.f32 %v1836, %v1841
    %v1847 = vadd.f32 %v1837, %v1841
    %v1848 = vadd.f32 %v1842, %v1050
    %v1849 = vadd.f32 %v1843, %v1051
    %v1850 = vadd.f32 %v1844, %v1052
    %v1851 = vadd.f32 %v1845, %v1053
    %v1852 = vadd.f32 %v1846, %v1054
    %v1853 = vadd.f32 %v1847, %v1055
    %v1854 = vmax.f32 %v1848, 0.0
    %v1855 = vmax.f32 %v1849, 0.0
    %v1856 = vmax.f32 %v1850, 0.0
    %v1857 = vmax.f32 %v1851, 0.0
    %v1858 = vmax.f32 %v1852, 0.0
    %v1859 = vmax.f32 %v1853, 0.0
    %v1860 = vsel %vm88, %v1854, 0.0
    %v1861 = vsel %vm89, %v1855, 0.0
    %v1862 = vsel %vm90, %v1856, 0.0
    %v1863 = vsel %vm91, %v1857, 0.0
    %v1864 = vsel %vm92, %v1858, 0.0
    %v1865 = vsel %vm93, %v1859, 0.0
    %s1866 = scalar_lea.vmem [#allocation2], 16
    %v1867 = vld [vmem:[%s1866] sm:$0xff]
    %v1868 = vld [vmem:[%s1866 + $0x8] sm:$0xff]
    %v1875 = vrot.slane %v1860, 7
    %v1876 = vrot.slane %v1861, 7
    %v1877 = vsel %vm258, %v1875, %v1876
    %v1878 = vrot.slane %v1862, 7
    %v1879 = vsel %vm258, %v1876, %v1878
    %v1880 = vrot.slane %v1863, 7
    %v1881 = vsel %vm258, %v1878, %v1880
    %v1882 = vrot.slane %v1864, 7
    %v1883 = vsel %vm258, %v1880, %v1882
    %v1884 = vrot.slane %v1865, 7
    %v1885 = vsel %vm258, %v1882, %v1884
    %v1887 = vsel %vm258, 0.0, %v1875
    %v1888 = vld [vmem:[#allocation2] sm:$0xff]
    %v1889 = vld [vmem:[#allocation2 + $0x8] sm:$0xff]
    %v1891 = vsel %vm272, %v1887, 0
    %v1893 = vsel %vm272, %v1877, 0
    %v1895 = vsel %vm272, %v1879, 0
    %v1897 = vsel %vm272, %v1881, 0
    %v1899 = vsel %vm272, %v1883, 0
    %v1901 = vsel %vm272, %v1885, 0
    %1903 = vmatprep.subr.mxu0 0.0
    %1904 = vmatpush1.msra.mxu0 %v1888
    %1905 = vmatprep.subr.mxu0 0.0
    %1906 = vmatpush1.msra.mxu0 %v1889
    %1907 = vmatprep.subr.mxu0 0.0
    %1908 = vmatpush1.msra.mxu0 0.0
    %1909 = vmatprep.subr.mxu0 0.0
    %1910 = vmatpush1.msra.mxu0 0.0
    %1911 = vmatprep.subr.mxu0 0.0
    %1912 = vmatpush1.msra.mxu0 0.0
    %1913 = vmatprep.subr.mxu0 0.0
    %1914 = vmatpush1.msra.mxu0 0.0
    %1915 = vmatprep.subr.mxu0 0.0
    %1916 = vmatpush1.msra.mxu0 0.0
    %1917 = vmatprep.subr.mxu0 0.0
    %1918 = vmatpush1.msra.mxu0 0.0
    %1919 = vmatprep.subr.mxu0 0.0
    %1920 = vmatpush1.msra.mxu0 0.0
    %1921 = vmatprep.subr.mxu0 0.0
    %1922 = vmatpush1.msra.mxu0 0.0
    %1923 = vmatprep.subr.mxu0 0.0
    %1924 = vmatpush1.msra.mxu0 0.0
    %1925 = vmatprep.subr.mxu0 0.0
    %1926 = vmatpush1.msra.mxu0 0.0
    %1927 = vmatprep.subr.mxu0 0.0
    %1928 = vmatpush1.msra.mxu0 0.0
    %1929 = vmatprep.subr.mxu0 0.0
    %1930 = vmatpush1.msra.mxu0 0.0
    %1931 = vmatprep.subr.mxu0 0.0
    %1932 = vmatpush1.msra.mxu0 0.0
    %1933 = vmatprep.subr.mxu0 0.0
    %1934 = vmatpush1.msra.mxu0 0.0
    %1935 = vmatprep.subr.mxu0 0.0
    %1936 = vmatpush1.msra.mxu0 0.0
    %1937 = vmatprep.subr.mxu0 0.0
    %1938 = vmatpush1.msra.mxu0 0.0
    %1939 = vmatprep.subr.mxu0 0.0
    %1940 = vmatpush1.msra.mxu0 0.0
    %1941 = vmatprep.subr.mxu0 0.0
    %1942 = vmatpush1.msra.mxu0 0.0
    %1943 = vmatprep.subr.mxu0 0.0
    %1944 = vmatpush1.msra.mxu0 0.0
    %1945 = vmatprep.subr.mxu0 0.0
    %1946 = vmatpush1.msra.mxu0 0.0
    %1947 = vmatprep.subr.mxu0 0.0
    %1948 = vmatpush1.msra.mxu0 0.0
    %1949 = vmatprep.subr.mxu0 0.0
    %1950 = vmatpush1.msra.mxu0 0.0
    %1951 = vmatprep.subr.mxu0 0.0
    %1952 = vmatpush1.msra.mxu0 0.0
    %1953 = vmatprep.subr.mxu0 0.0
    %1954 = vmatpush1.msra.mxu0 0.0
    %1955 = vmatprep.subr.mxu0 0.0
    %1956 = vmatpush1.msra.mxu0 0.0
    %1957 = vmatprep.subr.mxu0 0.0
    %1958 = vmatpush1.msra.mxu0 0.0
    %1959 = vmatprep.subr.mxu0 0.0
    %1960 = vmatpush1.msra.mxu0 0.0
    %1961 = vmatprep.subr.mxu0 0.0
    %1962 = vmatpush1.msra.mxu0 0.0
    %1963 = vmatprep.subr.mxu0 0.0
    %1964 = vmatpush1.msra.mxu0 0.0
    %1965 = vmatprep.subr.mxu0 0.0
    %1966 = vmatpush1.msra.mxu0 0.0
    %1967 = vmatprep.mubr.f32.mxu0 0.0
    %1968 = vmatmul.mubr.f32.gmra.mrb[0].mxu0 %v1891
    %v1969 = vpop.f32.mrb[0].mxu0
    %v1970 = vadd.f32 0.0, %v1969
    %v1971 = vpop.f32.mrb[0].mxu0
    %1972 = vmatprep.mubr.f32.mxu0 0.0
    %1973 = vmatmul.mubr.f32.gmra.mrb[0].mxu0 %v1893
    %v1974 = vpop.f32.mrb[0].mxu0
    %v1975 = vadd.f32 0.0, %v1974
    %v1976 = vpop.f32.mrb[0].mxu0
    %1977 = vmatprep.mubr.f32.mxu0 0.0
    %1978 = vmatmul.mubr.f32.gmra.mrb[0].mxu0 %v1895
    %v1979 = vpop.f32.mrb[0].mxu0
    %v1980 = vadd.f32 0.0, %v1979
    %v1981 = vpop.f32.mrb[0].mxu0
    %1982 = vmatprep.mubr.f32.mxu0 0.0
    %1983 = vmatmul.mubr.f32.gmra.mrb[0].mxu0 %v1897
    %v1984 = vpop.f32.mrb[0].mxu0
    %v1985 = vadd.f32 0.0, %v1984
    %v1986 = vpop.f32.mrb[0].mxu0
    %1987 = vmatprep.mubr.f32.mxu0 0.0
    %1988 = vmatmul.mubr.f32.gmra.mrb[0].mxu0 %v1899
    %v1989 = vpop.f32.mrb[0].mxu0
    %v1990 = vadd.f32 0.0, %v1989
    %v1991 = vpop.f32.mrb[0].mxu0
    %1992 = vmatprep.mubr.f32.mxu0 0.0
    %1993 = vmatmul.mubr.f32.gmra.mrb[0].mxu0 %v1901
    %v1994 = vpop.f32.mrb[0].mxu0
    %v1995 = vadd.f32 0.0, %v1994
    %v1996 = vpop.f32.mrb[0].mxu0
    %1997 = vdwg.mxu0
    %v1998 = vsel %vm272, %v1860, 0
    %v2000 = vsel %vm272, %v1861, 0
    %v2002 = vsel %vm272, %v1862, 0
    %v2004 = vsel %vm272, %v1863, 0
    %v2006 = vsel %vm272, %v1864, 0
    %v2008 = vsel %vm272, %v1865, 0
    %2010 = vmatprep.subr.mxu0 0.0
    %2011 = vmatpush1.msra.mxu0 %v1867
    %2012 = vmatprep.subr.mxu0 0.0
    %2013 = vmatpush1.msra.mxu0 %v1868
    %2014 = vmatprep.subr.mxu0 0.0
    %2015 = vmatpush1.msra.mxu0 0.0
    %2016 = vmatprep.subr.mxu0 0.0
    %2017 = vmatpush1.msra.mxu0 0.0
    %2018 = vmatprep.subr.mxu0 0.0
    %2019 = vmatpush1.msra.mxu0 0.0
    %2020 = vmatprep.subr.mxu0 0.0
    %2021 = vmatpush1.msra.mxu0 0.0
    %2022 = vmatprep.subr.mxu0 0.0
    %2023 = vmatpush1.msra.mxu0 0.0
    %2024 = vmatprep.subr.mxu0 0.0
    %2025 = vmatpush1.msra.mxu0 0.0
    %2026 = vmatprep.subr.mxu0 0.0
    %2027 = vmatpush1.msra.mxu0 0.0
    %2028 = vmatprep.subr.mxu0 0.0
    %2029 = vmatpush1.msra.mxu0 0.0
    %2030 = vmatprep.subr.mxu0 0.0
    %2031 = vmatpush1.msra.mxu0 0.0
    %2032 = vmatprep.subr.mxu0 0.0
    %2033 = vmatpush1.msra.mxu0 0.0
    %2034 = vmatprep.subr.mxu0 0.0
    %2035 = vmatpush1.msra.mxu0 0.0
    %2036 = vmatprep.subr.mxu0 0.0
    %2037 = vmatpush1.msra.mxu0 0.0
    %2038 = vmatprep.subr.mxu0 0.0
    %2039 = vmatpush1.msra.mxu0 0.0
    %2040 = vmatprep.subr.mxu0 0.0
    %2041 = vmatpush1.msra.mxu0 0.0
    %2042 = vmatprep.subr.mxu0 0.0
    %2043 = vmatpush1.msra.mxu0 0.0
    %2044 = vmatprep.subr.mxu0 0.0
    %2045 = vmatpush1.msra.mxu0 0.0
    %2046 = vmatprep.subr.mxu0 0.0
    %2047 = vmatpush1.msra.mxu0 0.0
    %2048 = vmatprep.subr.mxu0 0.0
    %2049 = vmatpush1.msra.mxu0 0.0
    %2050 = vmatprep.subr.mxu0 0.0
    %2051 = vmatpush1.msra.mxu0 0.0
    %2052 = vmatprep.subr.mxu0 0.0
    %2053 = vmatpush1.msra.mxu0 0.0
    %2054 = vmatprep.subr.mxu0 0.0
    %2055 = vmatpush1.msra.mxu0 0.0
    %2056 = vmatprep.subr.mxu0 0.0
    %2057 = vmatpush1.msra.mxu0 0.0
    %2058 = vmatprep.subr.mxu0 0.0
    %2059 = vmatpush1.msra.mxu0 0.0
    %2060 = vmatprep.subr.mxu0 0.0
    %2061 = vmatpush1.msra.mxu0 0.0
    %2062 = vmatprep.subr.mxu0 0.0
    %2063 = vmatpush1.msra.mxu0 0.0
    %2064 = vmatprep.subr.mxu0 0.0
    %2065 = vmatpush1.msra.mxu0 0.0
    %2066 = vmatprep.subr.mxu0 0.0
    %2067 = vmatpush1.msra.mxu0 0.0
    %2068 = vmatprep.subr.mxu0 0.0
    %2069 = vmatpush1.msra.mxu0 0.0
    %2070 = vmatprep.subr.mxu0 0.0
    %2071 = vmatpush1.msra.mxu0 0.0
    %2072 = vmatprep.subr.mxu0 0.0
    %2073 = vmatpush1.msra.mxu0 0.0
    %2074 = vmatprep.mubr.f32.mxu0 0.0
    %2075 = vmatmul.mubr.f32.gmra.mrb[0].mxu0 %v1998
    %v2076 = vpop.f32.mrb[0].mxu0
    %v2077 = vadd.f32 %v1970, %v2076
    %v2078 = vpop.f32.mrb[0].mxu0
    %2079 = vmatprep.mubr.f32.mxu0 0.0
    %2080 = vmatmul.mubr.f32.gmra.mrb[0].mxu0 %v2000
    %v2081 = vpop.f32.mrb[0].mxu0
    %v2082 = vadd.f32 %v1975, %v2081
    %v2083 = vpop.f32.mrb[0].mxu0
    %2084 = vmatprep.mubr.f32.mxu0 0.0
    %2085 = vmatmul.mubr.f32.gmra.mrb[0].mxu0 %v2002
    %v2086 = vpop.f32.mrb[0].mxu0
    %v2087 = vadd.f32 %v1980, %v2086
    %v2088 = vpop.f32.mrb[0].mxu0
    %2089 = vmatprep.mubr.f32.mxu0 0.0
    %2090 = vmatmul.mubr.f32.gmra.mrb[0].mxu0 %v2004
    %v2091 = vpop.f32.mrb[0].mxu0
    %v2092 = vadd.f32 %v1985, %v2091
    %v2093 = vpop.f32.mrb[0].mxu0
    %2094 = vmatprep.mubr.f32.mxu0 0.0
    %2095 = vmatmul.mubr.f32.gmra.mrb[0].mxu0 %v2006
    %v2096 = vpop.f32.mrb[0].mxu0
    %v2097 = vadd.f32 %v1990, %v2096
    %v2098 = vpop.f32.mrb[0].mxu0
    %2099 = vmatprep.mubr.f32.mxu0 0.0
    %2100 = vmatmul.mubr.f32.gmra.mrb[0].mxu0 %v2008
    %v2101 = vpop.f32.mrb[0].mxu0
    %v2102 = vadd.f32 %v1995, %v2101
    %v2103 = vpop.f32.mrb[0].mxu0
    %2104 = vdwg.mxu0
    %v2105 = vrot.slane %v1860, 1
    %v2106 = vrot.slane %v1861, 1
    %v2107 = vsel %vm488, %v2105, %v2106
    %v2108 = vrot.slane %v1862, 1
    %v2109 = vsel %vm488, %v2106, %v2108
    %v2110 = vrot.slane %v1863, 1
    %v2111 = vsel %vm488, %v2108, %v2110
    %v2112 = vrot.slane %v1864, 1
    %v2113 = vsel %vm488, %v2110, %v2112
    %v2114 = vrot.slane %v1865, 1
    %v2115 = vsel %vm488, %v2112, %v2114
    %v2117 = vsel %vm488, %v2114, 0.0
    %s2118 = scalar_lea.vmem [#allocation2], 32
    %v2119 = vld [vmem:[%s2118] sm:$0xff]
    %v2120 = vld [vmem:[%s2118 + $0x8] sm:$0xff]
    %v2121 = vsel %vm272, %v2107, 0
    %v2123 = vsel %vm272, %v2109, 0
    %v2125 = vsel %vm272, %v2111, 0
    %v2127 = vsel %vm272, %v2113, 0
    %v2129 = vsel %vm272, %v2115, 0
    %v2132 = vsel %vm272, %v2117, 0
    %2134 = vmatprep.subr.mxu0 0.0
    %2135 = vmatpush1.msra.mxu0 %v2119
    %2136 = vmatprep.subr.mxu0 0.0
    %2137 = vmatpush1.msra.mxu0 %v2120
    %2138 = vmatprep.subr.mxu0 0.0
    %2139 = vmatpush1.msra.mxu0 0.0
    %2140 = vmatprep.subr.mxu0 0.0
    %2141 = vmatpush1.msra.mxu0 0.0
    %2142 = vmatprep.subr.mxu0 0.0
    %2143 = vmatpush1.msra.mxu0 0.0
    %2144 = vmatprep.subr.mxu0 0.0
    %2145 = vmatpush1.msra.mxu0 0.0
    %2146 = vmatprep.subr.mxu0 0.0
    %2147 = vmatpush1.msra.mxu0 0.0
    %2148 = vmatprep.subr.mxu0 0.0
    %2149 = vmatpush1.msra.mxu0 0.0
    %2150 = vmatprep.subr.mxu0 0.0
    %2151 = vmatpush1.msra.mxu0 0.0
    %2152 = vmatprep.subr.mxu0 0.0
    %2153 = vmatpush1.msra.mxu0 0.0
    %2154 = vmatprep.subr.mxu0 0.0
    %2155 = vmatpush1.msra.mxu0 0.0
    %2156 = vmatprep.subr.mxu0 0.0
    %2157 = vmatpush1.msra.mxu0 0.0
    %2158 = vmatprep.subr.mxu0 0.0
    %2159 = vmatpush1.msra.mxu0 0.0
    %2160 = vmatprep.subr.mxu0 0.0
    %2161 = vmatpush1.msra.mxu0 0.0
    %2162 = vmatprep.subr.mxu0 0.0
    %2163 = vmatpush1.msra.mxu0 0.0
    %2164 = vmatprep.subr.mxu0 0.0
    %2165 = vmatpush1.msra.mxu0 0.0
    %2166 = vmatprep.subr.mxu0 0.0
    %2167 = vmatpush1.msra.mxu0 0.0
    %2168 = vmatprep.subr.mxu0 0.0
    %2169 = vmatpush1.msra.mxu0 0.0
    %2170 = vmatprep.subr.mxu0 0.0
    %2171 = vmatpush1.msra.mxu0 0.0
    %2172 = vmatprep.subr.mxu0 0.0
    %2173 = vmatpush1.msra.mxu0 0.0
    %2174 = vmatprep.subr.mxu0 0.0
    %2175 = vmatpush1.msra.mxu0 0.0
    %2176 = vmatprep.subr.mxu0 0.0
    %2177 = vmatpush1.msra.mxu0 0.0
    %2178 = vmatprep.subr.mxu0 0.0
    %2179 = vmatpush1.msra.mxu0 0.0
    %2180 = vmatprep.subr.mxu0 0.0
    %2181 = vmatpush1.msra.mxu0 0.0
    %2182 = vmatprep.subr.mxu0 0.0
    %2183 = vmatpush1.msra.mxu0 0.0
    %2184 = vmatprep.subr.mxu0 0.0
    %2185 = vmatpush1.msra.mxu0 0.0
    %2186 = vmatprep.subr.mxu0 0.0
    %2187 = vmatpush1.msra.mxu0 0.0
    %2188 = vmatprep.subr.mxu0 0.0
    %2189 = vmatpush1.msra.mxu0 0.0
    %2190 = vmatprep.subr.mxu0 0.0
    %2191 = vmatpush1.msra.mxu0 0.0
    %2192 = vmatprep.subr.mxu0 0.0
    %2193 = vmatpush1.msra.mxu0 0.0
    %2194 = vmatprep.subr.mxu0 0.0
    %2195 = vmatpush1.msra.mxu0 0.0
    %2196 = vmatprep.subr.mxu0 0.0
    %2197 = vmatpush1.msra.mxu0 0.0
    %2198 = vmatprep.mubr.f32.mxu0 0.0
    %2199 = vmatmul.mubr.f32.gmra.mrb[0].mxu0 %v2121
    %v2200 = vpop.f32.mrb[0].mxu0
    %v2201 = vadd.f32 0.0, %v2200
    %v2202 = vpop.f32.mrb[0].mxu0
    %2203 = vmatprep.mubr.f32.mxu0 0.0
    %2204 = vmatmul.mubr.f32.gmra.mrb[0].mxu0 %v2123
    %v2205 = vpop.f32.mrb[0].mxu0
    %v2206 = vadd.f32 0.0, %v2205
    %v2207 = vpop.f32.mrb[0].mxu0
    %2208 = vmatprep.mubr.f32.mxu0 0.0
    %2209 = vmatmul.mubr.f32.gmra.mrb[0].mxu0 %v2125
    %v2210 = vpop.f32.mrb[0].mxu0
    %v2211 = vadd.f32 0.0, %v2210
    %v2212 = vpop.f32.mrb[0].mxu0
    %2213 = vmatprep.mubr.f32.mxu0 0.0
    %2214 = vmatmul.mubr.f32.gmra.mrb[0].mxu0 %v2127
    %v2215 = vpop.f32.mrb[0].mxu0
    %v2216 = vadd.f32 0.0, %v2215
    %v2217 = vpop.f32.mrb[0].mxu0
    %2218 = vmatprep.mubr.f32.mxu0 0.0
    %2219 = vmatmul.mubr.f32.gmra.mrb[0].mxu0 %v2129
    %v2220 = vpop.f32.mrb[0].mxu0
    %v2221 = vadd.f32 0.0, %v2220
    %v2222 = vpop.f32.mrb[0].mxu0
    %2223 = vmatprep.mubr.f32.mxu0 0.0
    %2224 = vmatmul.mubr.f32.gmra.mrb[0].mxu0 %v2132
    %v2225 = vpop.f32.mrb[0].mxu0
    %v2226 = vadd.f32 0.0, %v2225
    %v2227 = vpop.f32.mrb[0].mxu0
    %2228 = vdwg.mxu0
    %v2229 = vadd.f32 %v2077, %v2201
    %v2230 = vadd.f32 %v2082, %v2206
    %v2231 = vadd.f32 %v2087, %v2211
    %v2232 = vadd.f32 %v2092, %v2216
    %v2233 = vadd.f32 %v2097, %v2221
    %v2234 = vadd.f32 %v2102, %v2226
    %2241 = vrot.lane.b32.xlu0 %v79, 112
    %v2242 = vpop.permute.xlu0 %2241
    %2243 = vrot.lane.b32.xlu0 %v81, 112
    %v2244 = vpop.permute.xlu0 %2243
    %2245 = vrot.lane.b32.xlu0 %v82, 112
    %v2246 = vpop.permute.xlu0 %2245
    %2247 = vrot.lane.b32.xlu0 %v83, 112
    %v2248 = vpop.permute.xlu0 %2247
    %2249 = vrot.lane.b32.xlu0 %v84, 112
    %v2250 = vpop.permute.xlu0 %2249
    %2251 = vrot.lane.b32.xlu0 %v85, 112
    %v2252 = vpop.permute.xlu0 %2251
    %v2259 = vmul.f32 %v2229, %v2242
    %v2260 = vmul.f32 %v2230, %v2244
    %v2261 = vmul.f32 %v2231, %v2246
    %v2262 = vmul.f32 %v2232, %v2248
    %v2263 = vmul.f32 %v2233, %v2250
    %v2264 = vmul.f32 %v2234, %v2252
    %2265 = vrot.lane.b32.xlu0 %v79, 56
    %v2266 = vpop.permute.xlu0 %2265
    %vm2267 = vcmask 392192
    %v2268 = vsel %vm2267, %v2266, 0
    %2270 = vmatprep.subr.mxu0 0.0
    %2271 = vmatpush1.msra.mxu0 %v2259
    %2272 = vmatprep.subr.mxu0 0.0
    %2273 = vmatpush1.msra.mxu0 %v2260
    %2274 = vmatprep.subr.mxu0 0.0
    %2275 = vmatpush1.msra.mxu0 %v2261
    %2276 = vmatprep.subr.mxu0 0.0
    %2277 = vmatpush1.msra.mxu0 %v2262
    %2278 = vmatprep.subr.mxu0 0.0
    %2279 = vmatpush1.msra.mxu0 %v2263
    %2280 = vmatprep.subr.mxu0 0.0
    %2281 = vmatpush1.msra.mxu0 %v2264
    %2282 = vmatprep.subr.mxu0 0.0
    %2283 = vmatpush1.msra.mxu0 0.0
    %2284 = vmatprep.subr.mxu0 0.0
    %2285 = vmatpush1.msra.mxu0 0.0
    %2286 = vmatprep.subr.mxu0 0.0
    %2287 = vmatpush1.msra.mxu0 0.0
    %2288 = vmatprep.subr.mxu0 0.0
    %2289 = vmatpush1.msra.mxu0 0.0
    %2290 = vmatprep.subr.mxu0 0.0
    %2291 = vmatpush1.msra.mxu0 0.0
    %2292 = vmatprep.subr.mxu0 0.0
    %2293 = vmatpush1.msra.mxu0 0.0
    %2294 = vmatprep.subr.mxu0 0.0
    %2295 = vmatpush1.msra.mxu0 0.0
    %2296 = vmatprep.subr.mxu0 0.0
    %2297 = vmatpush1.msra.mxu0 0.0
    %2298 = vmatprep.subr.mxu0 0.0
    %2299 = vmatpush1.msra.mxu0 0.0
    %2300 = vmatprep.subr.mxu0 0.0
    %2301 = vmatpush1.msra.mxu0 0.0
    %2302 = vmatprep.subr.mxu0 0.0
    %2303 = vmatpush1.msra.mxu0 0.0
    %2304 = vmatprep.subr.mxu0 0.0
    %2305 = vmatpush1.msra.mxu0 0.0
    %2306 = vmatprep.subr.mxu0 0.0
    %2307 = vmatpush1.msra.mxu0 0.0
    %2308 = vmatprep.subr.mxu0 0.0
    %2309 = vmatpush1.msra.mxu0 0.0
    %2310 = vmatprep.subr.mxu0 0.0
    %2311 = vmatpush1.msra.mxu0 0.0
    %2312 = vmatprep.subr.mxu0 0.0
    %2313 = vmatpush1.msra.mxu0 0.0
    %2314 = vmatprep.subr.mxu0 0.0
    %2315 = vmatpush1.msra.mxu0 0.0
    %2316 = vmatprep.subr.mxu0 0.0
    %2317 = vmatpush1.msra.mxu0 0.0
    %2318 = vmatprep.subr.mxu0 0.0
    %2319 = vmatpush1.msra.mxu0 0.0
    %2320 = vmatprep.subr.mxu0 0.0
    %2321 = vmatpush1.msra.mxu0 0.0
    %2322 = vmatprep.subr.mxu0 0.0
    %2323 = vmatpush1.msra.mxu0 0.0
    %2324 = vmatprep.subr.mxu0 0.0
    %2325 = vmatpush1.msra.mxu0 0.0
    %2326 = vmatprep.subr.mxu0 0.0
    %2327 = vmatpush1.msra.mxu0 0.0
    %2328 = vmatprep.subr.mxu0 0.0
    %2329 = vmatpush1.msra.mxu0 0.0
    %2330 = vmatprep.subr.mxu0 0.0
    %2331 = vmatpush1.msra.mxu0 0.0
    %2332 = vmatprep.subr.mxu0 0.0
    %2333 = vmatpush1.msra.mxu0 0.0
    %2334 = vmatprep.mubr.f32.mxu0 0.0
    %2335 = vmatmul.mubr.f32.gmra.mrb[0].mxu0 %v2268
    %v2336 = vpop.f32.mrb[0].mxu0
    %v2337 = vadd.f32 0.0, %v2336
    %v2338 = vpop.f32.mrb[0].mxu0
    %2339 = vdwg.mxu0
    %s2340 = scalar_lea.vmem %s3, 96
    %v2341 = vld [vmem:[%s2340] sm:$0xff]
    %2344 = vrot.lane.b32.xlu0 %v68, 122
    %v2345 = vpop.permute.xlu0 %2344
    %2346 = vrot.lane.b32.xlu0 %v69, 122
    %v2347 = vpop.permute.xlu0 %2346
    %2348 = vrot.lane.b32.xlu0 %v70, 122
    %v2349 = vpop.permute.xlu0 %2348
    %2350 = vrot.lane.b32.xlu0 %v71, 122
    %v2351 = vpop.permute.xlu0 %2350
    %2352 = vrot.lane.b32.xlu0 %v72, 122
    %v2353 = vpop.permute.xlu0 %2352
    %2354 = vrot.lane.b32.xlu0 %v73, 122
    %v2355 = vpop.permute.xlu0 %2354
    %2356 = vrot.lane.b32.xlu0 %v74, 122
    %v2357 = vpop.permute.xlu0 %2356
    %2358 = vrot.lane.b32.xlu0 %v75, 122
    %v2359 = vpop.permute.xlu0 %2358
    %vm2360 = vcmask 15360
    %v2361 = vsel %vm2360, %v2345, 0
    %v2363 = vsel %vm2360, %v2347, 0
    %v2365 = vsel %vm2360, %v2349, 0
    %v2367 = vsel %vm2360, %v2351, 0
    %v2369 = vsel %vm2360, %v2353, 0
    %v2371 = vsel %vm2360, %v2355, 0
    %v2373 = vsel %vm2360, %v2357, 0
    %v2375 = vsel %vm2360, %v2359, 0
    %vm2377 = vcmask 1041408
    %v2379 = vsel %vm2377, %v2341, 0
    %2381 = vmatprep.subr.mxu0 0.0
    %2382 = vmatpush1.msra.mxu0 %v2379
    %2383 = vmatprep.subr.mxu0 0.0
    %2384 = vmatpush1.msra.mxu0 0.0
    %2385 = vmatprep.subr.mxu0 0.0
    %2386 = vmatpush1.msra.mxu0 0.0
    %2387 = vmatprep.subr.mxu0 0.0
    %2388 = vmatpush1.msra.mxu0 0.0
    %2389 = vmatprep.subr.mxu0 0.0
    %2390 = vmatpush1.msra.mxu0 0.0
    %2391 = vmatprep.subr.mxu0 0.0
    %2392 = vmatpush1.msra.mxu0 0.0
    %2393 = vmatprep.subr.mxu0 0.0
    %2394 = vmatpush1.msra.mxu0 0.0
    %2395 = vmatprep.subr.mxu0 0.0
    %2396 = vmatpush1.msra.mxu0 0.0
    %2397 = vmatprep.subr.mxu0 0.0
    %2398 = vmatpush1.msra.mxu0 0.0
    %2399 = vmatprep.subr.mxu0 0.0
    %2400 = vmatpush1.msra.mxu0 0.0
    %2401 = vmatprep.subr.mxu0 0.0
    %2402 = vmatpush1.msra.mxu0 0.0
    %2403 = vmatprep.subr.mxu0 0.0
    %2404 = vmatpush1.msra.mxu0 0.0
    %2405 = vmatprep.subr.mxu0 0.0
    %2406 = vmatpush1.msra.mxu0 0.0
    %2407 = vmatprep.subr.mxu0 0.0
    %2408 = vmatpush1.msra.mxu0 0.0
    %2409 = vmatprep.subr.mxu0 0.0
    %2410 = vmatpush1.msra.mxu0 0.0
    %2411 = vmatprep.subr.mxu0 0.0
    %2412 = vmatpush1.msra.mxu0 0.0
    %2413 = vmatprep.subr.mxu0 0.0
    %2414 = vmatpush1.msra.mxu0 0.0
    %2415 = vmatprep.subr.mxu0 0.0
    %2416 = vmatpush1.msra.mxu0 0.0
    %2417 = vmatprep.subr.mxu0 0.0
    %2418 = vmatpush1.msra.mxu0 0.0
    %2419 = vmatprep.subr.mxu0 0.0
    %2420 = vmatpush1.msra.mxu0 0.0
    %2421 = vmatprep.subr.mxu0 0.0
    %2422 = vmatpush1.msra.mxu0 0.0
    %2423 = vmatprep.subr.mxu0 0.0
    %2424 = vmatpush1.msra.mxu0 0.0
    %2425 = vmatprep.subr.mxu0 0.0
    %2426 = vmatpush1.msra.mxu0 0.0
    %2427 = vmatprep.subr.mxu0 0.0
    %2428 = vmatpush1.msra.mxu0 0.0
    %2429 = vmatprep.subr.mxu0 0.0
    %2430 = vmatpush1.msra.mxu0 0.0
    %2431 = vmatprep.subr.mxu0 0.0
    %2432 = vmatpush1.msra.mxu0 0.0
    %2433 = vmatprep.subr.mxu0 0.0
    %2434 = vmatpush1.msra.mxu0 0.0
    %2435 = vmatprep.subr.mxu0 0.0
    %2436 = vmatpush1.msra.mxu0 0.0
    %2437 = vmatprep.subr.mxu0 0.0
    %2438 = vmatpush1.msra.mxu0 0.0
    %2439 = vmatprep.subr.mxu0 0.0
    %2440 = vmatpush1.msra.mxu0 0.0
    %2441 = vmatprep.subr.mxu0 0.0
    %2442 = vmatpush1.msra.mxu0 0.0
    %2443 = vmatprep.subr.mxu0 0.0
    %2444 = vmatpush1.msra.mxu0 0.0
    %2445 = vmatprep.mubr.f32.mxu0 0.0
    %2446 = vmatmul.mubr.f32.gmra.mrb[0].mxu0 %v2361
    %v2447 = vpop.f32.mrb[0].mxu0
    %v2448 = vadd.f32 0.0, %v2447
    %v2449 = vpop.f32.mrb[0].mxu0
    %2450 = vmatprep.mubr.f32.mxu0 0.0
    %2451 = vmatmul.mubr.f32.gmra.mrb[0].mxu0 %v2363
    %v2452 = vpop.f32.mrb[0].mxu0
    %v2453 = vadd.f32 0.0, %v2452
    %v2454 = vpop.f32.mrb[0].mxu0
    %2455 = vmatprep.mubr.f32.mxu0 0.0
    %2456 = vmatmul.mubr.f32.gmra.mrb[0].mxu0 %v2365
    %v2457 = vpop.f32.mrb[0].mxu0
    %v2458 = vadd.f32 0.0, %v2457
    %v2459 = vpop.f32.mrb[0].mxu0
    %2460 = vmatprep.mubr.f32.mxu0 0.0
    %2461 = vmatmul.mubr.f32.gmra.mrb[0].mxu0 %v2367
    %v2462 = vpop.f32.mrb[0].mxu0
    %v2463 = vadd.f32 0.0, %v2462
    %v2464 = vpop.f32.mrb[0].mxu0
    %2465 = vmatprep.mubr.f32.mxu0 0.0
    %2466 = vmatmul.mubr.f32.gmra.mrb[0].mxu0 %v2369
    %v2467 = vpop.f32.mrb[0].mxu0
    %v2468 = vadd.f32 0.0, %v2467
    %v2469 = vpop.f32.mrb[0].mxu0
    %2470 = vmatprep.mubr.f32.mxu0 0.0
    %2471 = vmatmul.mubr.f32.gmra.mrb[0].mxu0 %v2371
    %v2472 = vpop.f32.mrb[0].mxu0
    %v2473 = vadd.f32 0.0, %v2472
    %v2474 = vpop.f32.mrb[0].mxu0
    %2475 = vmatprep.mubr.f32.mxu0 0.0
    %2476 = vmatmul.mubr.f32.gmra.mrb[0].mxu0 %v2373
    %v2477 = vpop.f32.mrb[0].mxu0
    %v2478 = vadd.f32 0.0, %v2477
    %v2479 = vpop.f32.mrb[0].mxu0
    %2480 = vmatprep.mubr.f32.mxu0 0.0
    %2481 = vmatmul.mubr.f32.gmra.mrb[0].mxu0 %v2375
    %v2482 = vpop.f32.mrb[0].mxu0
    %v2483 = vadd.f32 0.0, %v2482
    %v2484 = vpop.f32.mrb[0].mxu0
    %2485 = vdwg.mxu0
    %v2486 = vlaneseq
    %v2487 = vshrl.u32 %v2486, 7
    %v2488 = vsub.s32 2, %v2487
    %v2489 = vrot.slane %v77, %v2488
    %v2490 = vmul.f32 %v2448, %v2489
    %v2491 = vmul.f32 %v2453, %v2489
    %v2492 = vmul.f32 %v2458, %v2489
    %v2493 = vmul.f32 %v2463, %v2489
    %v2494 = vmul.f32 %v2468, %v2489
    %v2495 = vmul.f32 %v2473, %v2489
    %v2496 = vmul.f32 %v2478, %v2489
    %v2497 = vmul.f32 %v2483, %v2489
    %v2498 = vlaneseq
    %v2499 = vshrl.u32 %v2498, 7
    %v2500 = vsub.s32 3, %v2499
    %v2501 = vrot.slane %v77, %v2500
    %v2502 = vadd.f32 %v2490, %v2501
    %v2503 = vadd.f32 %v2491, %v2501
    %v2504 = vadd.f32 %v2492, %v2501
    %v2505 = vadd.f32 %v2493, %v2501
    %v2506 = vadd.f32 %v2494, %v2501
    %v2507 = vadd.f32 %v2495, %v2501
    %v2508 = vadd.f32 %v2496, %v2501
    %v2509 = vadd.f32 %v2497, %v2501
    %v2510 = vmax.f32 %v2502, 0.0
    %v2511 = vmax.f32 %v2503, 0.0
    %v2512 = vmax.f32 %v2504, 0.0
    %v2513 = vmax.f32 %v2505, 0.0
    %v2514 = vmax.f32 %v2506, 0.0
    %v2515 = vmax.f32 %v2507, 0.0
    %v2516 = vmax.f32 %v2508, 0.0
    %v2517 = vmax.f32 %v2509, 0.0
    %2526 = vrot.lane.b32.xlu0 %v2510, 48
    %v2527 = vpop.permute.xlu0 %2526
    %2528 = vrot.lane.b32.xlu0 %v2511, 48
    %v2529 = vpop.permute.xlu0 %2528
    %2530 = vrot.lane.b32.xlu0 %v2512, 48
    %v2531 = vpop.permute.xlu0 %2530
    %2532 = vrot.lane.b32.xlu0 %v2513, 48
    %v2533 = vpop.permute.xlu0 %2532
    %2534 = vrot.lane.b32.xlu0 %v2514, 48
    %v2535 = vpop.permute.xlu0 %2534
    %2536 = vrot.lane.b32.xlu0 %v2515, 48
    %v2537 = vpop.permute.xlu0 %2536
    %2538 = vrot.lane.b32.xlu0 %v2516, 48
    %v2539 = vpop.permute.xlu0 %2538
    %2540 = vrot.lane.b32.xlu0 %v2517, 48
    %v2541 = vpop.permute.xlu0 %2540
    %v2550 = vsel %vm88, %v2527, 0.0
    %v2551 = vsel %vm89, %v2529, 0.0
    %v2552 = vsel %vm90, %v2531, 0.0
    %v2553 = vsel %vm91, %v2533, 0.0
    %v2554 = vsel %vm92, %v2535, 0.0
    %v2555 = vsel %vm93, %v2537, 0.0
    %v2556 = vsel %vm94, %v2539, 0.0
    %v2557 = vsel %vm95, %v2541, 0.0
    %v2558 = vld [vmem:[%s3] sm:$0xff]
    %s2559 = scalar_lea.vmem %s3, 8
    %v2560 = vld [vmem:[%s2559] sm:$0xff]
    %s2561 = scalar_lea.vmem %s3, 16
    %v2562 = vld [vmem:[%s2561] sm:$0xff]
    %v2571 = vrot.slane %v2550, 7
    %v2572 = vrot.slane %v2551, 7
    %v2573 = vsel %vm258, %v2571, %v2572
    %v2574 = vrot.slane %v2552, 7
    %v2575 = vsel %vm258, %v2572, %v2574
    %v2576 = vrot.slane %v2553, 7
    %v2577 = vsel %vm258, %v2574, %v2576
    %v2578 = vrot.slane %v2554, 7
    %v2579 = vsel %vm258, %v2576, %v2578
    %v2580 = vrot.slane %v2555, 7
    %v2581 = vsel %vm258, %v2578, %v2580
    %v2582 = vrot.slane %v2556, 7
    %v2583 = vsel %vm258, %v2580, %v2582
    %v2584 = vrot.slane %v2557, 7
    %v2585 = vsel %vm258, %v2582, %v2584
    %2586 = vrot.lane.b32.xlu0 %v2571, 80
    %v2587 = vpop.permute.xlu0 %2586
    %2588 = vrot.lane.b32.xlu0 %v2573, 80
    %v2589 = vpop.permute.xlu0 %2588
    %2590 = vrot.lane.b32.xlu0 %v2575, 80
    %v2591 = vpop.permute.xlu0 %2590
    %2592 = vrot.lane.b32.xlu0 %v2577, 80
    %v2593 = vpop.permute.xlu0 %2592
    %2594 = vrot.lane.b32.xlu0 %v2579, 80
    %v2595 = vpop.permute.xlu0 %2594
    %2596 = vrot.lane.b32.xlu0 %v2581, 80
    %v2597 = vpop.permute.xlu0 %2596
    %2598 = vrot.lane.b32.xlu0 %v2583, 80
    %v2599 = vpop.permute.xlu0 %2598
    %2600 = vrot.lane.b32.xlu0 %v2585, 80
    %v2601 = vpop.permute.xlu0 %2600
    %v2603 = vsel %vm258, 0.0, %v2587
    %v2605 = vsel %vm98, %v2603, 0
    %v2607 = vsel %vm98, %v2589, 0
    %v2609 = vsel %vm98, %v2591, 0
    %v2611 = vsel %vm98, %v2593, 0
    %v2613 = vsel %vm98, %v2595, 0
    %v2615 = vsel %vm98, %v2597, 0
    %v2617 = vsel %vm98, %v2599, 0
    %v2619 = vsel %vm98, %v2601, 0
    %2621 = vmatprep.subr.mxu0 0.0
    %2622 = vmatpush1.msra.mxu0 %v2558
    %2623 = vmatprep.subr.mxu0 0.0
    %2624 = vmatpush1.msra.mxu0 0.0
    %2625 = vmatprep.subr.mxu0 0.0
    %2626 = vmatpush1.msra.mxu0 0.0
    %2627 = vmatprep.subr.mxu0 0.0
    %2628 = vmatpush1.msra.mxu0 0.0
    %2629 = vmatprep.subr.mxu0 0.0
    %2630 = vmatpush1.msra.mxu0 0.0
    %2631 = vmatprep.subr.mxu0 0.0
    %2632 = vmatpush1.msra.mxu0 0.0
    %2633 = vmatprep.subr.mxu0 0.0
    %2634 = vmatpush1.msra.mxu0 0.0
    %2635 = vmatprep.subr.mxu0 0.0
    %2636 = vmatpush1.msra.mxu0 0.0
    %2637 = vmatprep.subr.mxu0 0.0
    %2638 = vmatpush1.msra.mxu0 0.0
    %2639 = vmatprep.subr.mxu0 0.0
    %2640 = vmatpush1.msra.mxu0 0.0
    %2641 = vmatprep.subr.mxu0 0.0
    %2642 = vmatpush1.msra.mxu0 0.0
    %2643 = vmatprep.subr.mxu0 0.0
    %2644 = vmatpush1.msra.mxu0 0.0
    %2645 = vmatprep.subr.mxu0 0.0
    %2646 = vmatpush1.msra.mxu0 0.0
    %2647 = vmatprep.subr.mxu0 0.0
    %2648 = vmatpush1.msra.mxu0 0.0
    %2649 = vmatprep.subr.mxu0 0.0
    %2650 = vmatpush1.msra.mxu0 0.0
    %2651 = vmatprep.subr.mxu0 0.0
    %2652 = vmatpush1.msra.mxu0 0.0
    %2653 = vmatprep.subr.mxu0 0.0
    %2654 = vmatpush1.msra.mxu0 0.0
    %2655 = vmatprep.subr.mxu0 0.0
    %2656 = vmatpush1.msra.mxu0 0.0
    %2657 = vmatprep.subr.mxu0 0.0
    %2658 = vmatpush1.msra.mxu0 0.0
    %2659 = vmatprep.subr.mxu0 0.0
    %2660 = vmatpush1.msra.mxu0 0.0
    %2661 = vmatprep.subr.mxu0 0.0
    %2662 = vmatpush1.msra.mxu0 0.0
    %2663 = vmatprep.subr.mxu0 0.0
    %2664 = vmatpush1.msra.mxu0 0.0
    %2665 = vmatprep.subr.mxu0 0.0
    %2666 = vmatpush1.msra.mxu0 0.0
    %2667 = vmatprep.subr.mxu0 0.0
    %2668 = vmatpush1.msra.mxu0 0.0
    %2669 = vmatprep.subr.mxu0 0.0
    %2670 = vmatpush1.msra.mxu0 0.0
    %2671 = vmatprep.subr.mxu0 0.0
    %2672 = vmatpush1.msra.mxu0 0.0
    %2673 = vmatprep.subr.mxu0 0.0
    %2674 = vmatpush1.msra.mxu0 0.0
    %2675 = vmatprep.subr.mxu0 0.0
    %2676 = vmatpush1.msra.mxu0 0.0
    %2677 = vmatprep.subr.mxu0 0.0
    %2678 = vmatpush1.msra.mxu0 0.0
    %2679 = vmatprep.subr.mxu0 0.0
    %2680 = vmatpush1.msra.mxu0 0.0
    %2681 = vmatprep.subr.mxu0 0.0
    %2682 = vmatpush1.msra.mxu0 0.0
    %2683 = vmatprep.subr.mxu0 0.0
    %2684 = vmatpush1.msra.mxu0 0.0
    %2685 = vmatprep.mubr.f32.mxu0 0.0
    %2686 = vmatmul.mubr.f32.gmra.mrb[0].mxu0 %v2605
    %v2687 = vpop.f32.mrb[0].mxu0
    %v2688 = vadd.f32 0.0, %v2687
    %v2689 = vpop.f32.mrb[0].mxu0
    %2690 = vmatprep.mubr.f32.mxu0 0.0
    %2691 = vmatmul.mubr.f32.gmra.mrb[0].mxu0 %v2607
    %v2692 = vpop.f32.mrb[0].mxu0
    %v2693 = vadd.f32 0.0, %v2692
    %v2694 = vpop.f32.mrb[0].mxu0
    %2695 = vmatprep.mubr.f32.mxu0 0.0
    %2696 = vmatmul.mubr.f32.gmra.mrb[0].mxu0 %v2609
    %v2697 = vpop.f32.mrb[0].mxu0
    %v2698 = vadd.f32 0.0, %v2697
    %v2699 = vpop.f32.mrb[0].mxu0
    %2700 = vmatprep.mubr.f32.mxu0 0.0
    %2701 = vmatmul.mubr.f32.gmra.mrb[0].mxu0 %v2611
    %v2702 = vpop.f32.mrb[0].mxu0
    %v2703 = vadd.f32 0.0, %v2702
    %v2704 = vpop.f32.mrb[0].mxu0
    %2705 = vmatprep.mubr.f32.mxu0 0.0
    %2706 = vmatmul.mubr.f32.gmra.mrb[0].mxu0 %v2613
    %v2707 = vpop.f32.mrb[0].mxu0
    %v2708 = vadd.f32 0.0, %v2707
    %v2709 = vpop.f32.mrb[0].mxu0
    %2710 = vmatprep.mubr.f32.mxu0 0.0
    %2711 = vmatmul.mubr.f32.gmra.mrb[0].mxu0 %v2615
    %v2712 = vpop.f32.mrb[0].mxu0
    %v2713 = vadd.f32 0.0, %v2712
    %v2714 = vpop.f32.mrb[0].mxu0
    %2715 = vmatprep.mubr.f32.mxu0 0.0
    %2716 = vmatmul.mubr.f32.gmra.mrb[0].mxu0 %v2617
    %v2717 = vpop.f32.mrb[0].mxu0
    %v2718 = vadd.f32 0.0, %v2717
    %v2719 = vpop.f32.mrb[0].mxu0
    %2720 = vmatprep.mubr.f32.mxu0 0.0
    %2721 = vmatmul.mubr.f32.gmra.mrb[0].mxu0 %v2619
    %v2722 = vpop.f32.mrb[0].mxu0
    %v2723 = vadd.f32 0.0, %v2722
    %v2724 = vpop.f32.mrb[0].mxu0
    %2725 = vdwg.mxu0
    %2726 = vrot.lane.b32.xlu0 %v2550, 80
    %v2727 = vpop.permute.xlu0 %2726
    %2728 = vrot.lane.b32.xlu0 %v2551, 80
    %v2729 = vpop.permute.xlu0 %2728
    %2730 = vrot.lane.b32.xlu0 %v2552, 80
    %v2731 = vpop.permute.xlu0 %2730
    %2732 = vrot.lane.b32.xlu0 %v2553, 80
    %v2733 = vpop.permute.xlu0 %2732
    %2734 = vrot.lane.b32.xlu0 %v2554, 80
    %v2735 = vpop.permute.xlu0 %2734
    %2736 = vrot.lane.b32.xlu0 %v2555, 80
    %v2737 = vpop.permute.xlu0 %2736
    %2738 = vrot.lane.b32.xlu0 %v2556, 80
    %v2739 = vpop.permute.xlu0 %2738
    %2740 = vrot.lane.b32.xlu0 %v2557, 80
    %v2741 = vpop.permute.xlu0 %2740
    %v2742 = vsel %vm98, %v2727, 0
    %v2744 = vsel %vm98, %v2729, 0
    %v2746 = vsel %vm98, %v2731, 0
    %v2748 = vsel %vm98, %v2733, 0
    %v2750 = vsel %vm98, %v2735, 0
    %v2752 = vsel %vm98, %v2737, 0
    %v2754 = vsel %vm98, %v2739, 0
    %v2756 = vsel %vm98, %v2741, 0
    %2758 = vmatprep.subr.mxu0 0.0
    %2759 = vmatpush1.msra.mxu0 %v2560
    %2760 = vmatprep.subr.mxu0 0.0
    %2761 = vmatpush1.msra.mxu0 0.0
    %2762 = vmatprep.subr.mxu0 0.0
    %2763 = vmatpush1.msra.mxu0 0.0
    %2764 = vmatprep.subr.mxu0 0.0
    %2765 = vmatpush1.msra.mxu0 0.0
    %2766 = vmatprep.subr.mxu0 0.0
    %2767 = vmatpush1.msra.mxu0 0.0
    %2768 = vmatprep.subr.mxu0 0.0
    %2769 = vmatpush1.msra.mxu0 0.0
    %2770 = vmatprep.subr.mxu0 0.0
    %2771 = vmatpush1.msra.mxu0 0.0
    %2772 = vmatprep.subr.mxu0 0.0
    %2773 = vmatpush1.msra.mxu0 0.0
    %2774 = vmatprep.subr.mxu0 0.0
    %2775 = vmatpush1.msra.mxu0 0.0
    %2776 = vmatprep.subr.mxu0 0.0
    %2777 = vmatpush1.msra.mxu0 0.0
    %2778 = vmatprep.subr.mxu0 0.0
    %2779 = vmatpush1.msra.mxu0 0.0
    %2780 = vmatprep.subr.mxu0 0.0
    %2781 = vmatpush1.msra.mxu0 0.0
    %2782 = vmatprep.subr.mxu0 0.0
    %2783 = vmatpush1.msra.mxu0 0.0
    %2784 = vmatprep.subr.mxu0 0.0
    %2785 = vmatpush1.msra.mxu0 0.0
    %2786 = vmatprep.subr.mxu0 0.0
    %2787 = vmatpush1.msra.mxu0 0.0
    %2788 = vmatprep.subr.mxu0 0.0
    %2789 = vmatpush1.msra.mxu0 0.0
    %2790 = vmatprep.subr.mxu0 0.0
    %2791 = vmatpush1.msra.mxu0 0.0
    %2792 = vmatprep.subr.mxu0 0.0
    %2793 = vmatpush1.msra.mxu0 0.0
    %2794 = vmatprep.subr.mxu0 0.0
    %2795 = vmatpush1.msra.mxu0 0.0
    %2796 = vmatprep.subr.mxu0 0.0
    %2797 = vmatpush1.msra.mxu0 0.0
    %2798 = vmatprep.subr.mxu0 0.0
    %2799 = vmatpush1.msra.mxu0 0.0
    %2800 = vmatprep.subr.mxu0 0.0
    %2801 = vmatpush1.msra.mxu0 0.0
    %2802 = vmatprep.subr.mxu0 0.0
    %2803 = vmatpush1.msra.mxu0 0.0
    %2804 = vmatprep.subr.mxu0 0.0
    %2805 = vmatpush1.msra.mxu0 0.0
    %2806 = vmatprep.subr.mxu0 0.0
    %2807 = vmatpush1.msra.mxu0 0.0
    %2808 = vmatprep.subr.mxu0 0.0
    %2809 = vmatpush1.msra.mxu0 0.0
    %2810 = vmatprep.subr.mxu0 0.0
    %2811 = vmatpush1.msra.mxu0 0.0
    %2812 = vmatprep.subr.mxu0 0.0
    %2813 = vmatpush1.msra.mxu0 0.0
    %2814 = vmatprep.subr.mxu0 0.0
    %2815 = vmatpush1.msra.mxu0 0.0
    %2816 = vmatprep.subr.mxu0 0.0
    %2817 = vmatpush1.msra.mxu0 0.0
    %2818 = vmatprep.subr.mxu0 0.0
    %2819 = vmatpush1.msra.mxu0 0.0
    %2820 = vmatprep.subr.mxu0 0.0
    %2821 = vmatpush1.msra.mxu0 0.0
    %2822 = vmatprep.mubr.f32.mxu0 0.0
    %2823 = vmatmul.mubr.f32.gmra.mrb[0].mxu0 %v2742
    %v2824 = vpop.f32.mrb[0].mxu0
    %v2825 = vadd.f32 %v2688, %v2824
    %v2826 = vpop.f32.mrb[0].mxu0
    %2827 = vmatprep.mubr.f32.mxu0 0.0
    %2828 = vmatmul.mubr.f32.gmra.mrb[0].mxu0 %v2744
    %v2829 = vpop.f32.mrb[0].mxu0
    %v2830 = vadd.f32 %v2693, %v2829
    %v2831 = vpop.f32.mrb[0].mxu0
    %2832 = vmatprep.mubr.f32.mxu0 0.0
    %2833 = vmatmul.mubr.f32.gmra.mrb[0].mxu0 %v2746
    %v2834 = vpop.f32.mrb[0].mxu0
    %v2835 = vadd.f32 %v2698, %v2834
    %v2836 = vpop.f32.mrb[0].mxu0
    %2837 = vmatprep.mubr.f32.mxu0 0.0
    %2838 = vmatmul.mubr.f32.gmra.mrb[0].mxu0 %v2748
    %v2839 = vpop.f32.mrb[0].mxu0
    %v2840 = vadd.f32 %v2703, %v2839
    %v2841 = vpop.f32.mrb[0].mxu0
    %2842 = vmatprep.mubr.f32.mxu0 0.0
    %2843 = vmatmul.mubr.f32.gmra.mrb[0].mxu0 %v2750
    %v2844 = vpop.f32.mrb[0].mxu0
    %v2845 = vadd.f32 %v2708, %v2844
    %v2846 = vpop.f32.mrb[0].mxu0
    %2847 = vmatprep.mubr.f32.mxu0 0.0
    %2848 = vmatmul.mubr.f32.gmra.mrb[0].mxu0 %v2752
    %v2849 = vpop.f32.mrb[0].mxu0
    %v2850 = vadd.f32 %v2713, %v2849
    %v2851 = vpop.f32.mrb[0].mxu0
    %2852 = vmatprep.mubr.f32.mxu0 0.0
    %2853 = vmatmul.mubr.f32.gmra.mrb[0].mxu0 %v2754
    %v2854 = vpop.f32.mrb[0].mxu0
    %v2855 = vadd.f32 %v2718, %v2854
    %v2856 = vpop.f32.mrb[0].mxu0
    %2857 = vmatprep.mubr.f32.mxu0 0.0
    %2858 = vmatmul.mubr.f32.gmra.mrb[0].mxu0 %v2756
    %v2859 = vpop.f32.mrb[0].mxu0
    %v2860 = vadd.f32 %v2723, %v2859
    %v2861 = vpop.f32.mrb[0].mxu0
    %2862 = vdwg.mxu0
    %v2863 = vrot.slane %v2550, 1
    %v2864 = vrot.slane %v2551, 1
    %v2865 = vsel %vm488, %v2863, %v2864
    %v2866 = vrot.slane %v2552, 1
    %v2867 = vsel %vm488, %v2864, %v2866
    %v2868 = vrot.slane %v2553, 1
    %v2869 = vsel %vm488, %v2866, %v2868
    %v2870 = vrot.slane %v2554, 1
    %v2871 = vsel %vm488, %v2868, %v2870
    %v2872 = vrot.slane %v2555, 1
    %v2873 = vsel %vm488, %v2870, %v2872
    %v2874 = vrot.slane %v2556, 1
    %v2875 = vsel %vm488, %v2872, %v2874
    %v2876 = vrot.slane %v2557, 1
    %v2877 = vsel %vm488, %v2874, %v2876
    %v2879 = vsel %vm488, %v2876, 0.0
    %2881 = vrot.lane.b32.xlu0 %v2865, 80
    %v2882 = vpop.permute.xlu0 %2881
    %2883 = vrot.lane.b32.xlu0 %v2867, 80
    %v2884 = vpop.permute.xlu0 %2883
    %2885 = vrot.lane.b32.xlu0 %v2869, 80
    %v2886 = vpop.permute.xlu0 %2885
    %2887 = vrot.lane.b32.xlu0 %v2871, 80
    %v2888 = vpop.permute.xlu0 %2887
    %2889 = vrot.lane.b32.xlu0 %v2873, 80
    %v2890 = vpop.permute.xlu0 %2889
    %2891 = vrot.lane.b32.xlu0 %v2875, 80
    %v2892 = vpop.permute.xlu0 %2891
    %2893 = vrot.lane.b32.xlu0 %v2877, 80
    %v2894 = vpop.permute.xlu0 %2893
    %2895 = vrot.lane.b32.xlu0 %v2879, 80
    %v2896 = vpop.permute.xlu0 %2895
    %v2897 = vsel %vm98, %v2882, 0
    %v2899 = vsel %vm98, %v2884, 0
    %v2901 = vsel %vm98, %v2886, 0
    %v2903 = vsel %vm98, %v2888, 0
    %v2905 = vsel %vm98, %v2890, 0
    %v2907 = vsel %vm98, %v2892, 0
    %v2909 = vsel %vm98, %v2894, 0
    %v2911 = vsel %vm98, %v2896, 0
    %2913 = vmatprep.subr.mxu0 0.0
    %2914 = vmatpush1.msra.mxu0 %v2562
    %2915 = vmatprep.subr.mxu0 0.0
    %2916 = vmatpush1.msra.mxu0 0.0
    %2917 = vmatprep.subr.mxu0 0.0
    %2918 = vmatpush1.msra.mxu0 0.0
    %2919 = vmatprep.subr.mxu0 0.0
    %2920 = vmatpush1.msra.mxu0 0.0
    %2921 = vmatprep.subr.mxu0 0.0
    %2922 = vmatpush1.msra.mxu0 0.0
    %2923 = vmatprep.subr.mxu0 0.0
    %2924 = vmatpush1.msra.mxu0 0.0
    %2925 = vmatprep.subr.mxu0 0.0
    %2926 = vmatpush1.msra.mxu0 0.0
    %2927 = vmatprep.subr.mxu0 0.0
    %2928 = vmatpush1.msra.mxu0 0.0
    %2929 = vmatprep.subr.mxu0 0.0
    %2930 = vmatpush1.msra.mxu0 0.0
    %2931 = vmatprep.subr.mxu0 0.0
    %2932 = vmatpush1.msra.mxu0 0.0
    %2933 = vmatprep.subr.mxu0 0.0
    %2934 = vmatpush1.msra.mxu0 0.0
    %2935 = vmatprep.subr.mxu0 0.0
    %2936 = vmatpush1.msra.mxu0 0.0
    %2937 = vmatprep.subr.mxu0 0.0
    %2938 = vmatpush1.msra.mxu0 0.0
    %2939 = vmatprep.subr.mxu0 0.0
    %2940 = vmatpush1.msra.mxu0 0.0
    %2941 = vmatprep.subr.mxu0 0.0
    %2942 = vmatpush1.msra.mxu0 0.0
    %2943 = vmatprep.subr.mxu0 0.0
    %2944 = vmatpush1.msra.mxu0 0.0
    %2945 = vmatprep.subr.mxu0 0.0
    %2946 = vmatpush1.msra.mxu0 0.0
    %2947 = vmatprep.subr.mxu0 0.0
    %2948 = vmatpush1.msra.mxu0 0.0
    %2949 = vmatprep.subr.mxu0 0.0
    %2950 = vmatpush1.msra.mxu0 0.0
    %2951 = vmatprep.subr.mxu0 0.0
    %2952 = vmatpush1.msra.mxu0 0.0
    %2953 = vmatprep.subr.mxu0 0.0
    %2954 = vmatpush1.msra.mxu0 0.0
    %2955 = vmatprep.subr.mxu0 0.0
    %2956 = vmatpush1.msra.mxu0 0.0
    %2957 = vmatprep.subr.mxu0 0.0
    %2958 = vmatpush1.msra.mxu0 0.0
    %2959 = vmatprep.subr.mxu0 0.0
    %2960 = vmatpush1.msra.mxu0 0.0
    %2961 = vmatprep.subr.mxu0 0.0
    %2962 = vmatpush1.msra.mxu0 0.0
    %2963 = vmatprep.subr.mxu0 0.0
    %2964 = vmatpush1.msra.mxu0 0.0
    %2965 = vmatprep.subr.mxu0 0.0
    %2966 = vmatpush1.msra.mxu0 0.0
    %2967 = vmatprep.subr.mxu0 0.0
    %2968 = vmatpush1.msra.mxu0 0.0
    %2969 = vmatprep.subr.mxu0 0.0
    %2970 = vmatpush1.msra.mxu0 0.0
    %2971 = vmatprep.subr.mxu0 0.0
    %2972 = vmatpush1.msra.mxu0 0.0
    %2973 = vmatprep.subr.mxu0 0.0
    %2974 = vmatpush1.msra.mxu0 0.0
    %2975 = vmatprep.subr.mxu0 0.0
    %2976 = vmatpush1.msra.mxu0 0.0
    %2977 = vmatprep.mubr.f32.mxu0 0.0
    %2978 = vmatmul.mubr.f32.gmra.mrb[0].mxu0 %v2897
    %v2979 = vpop.f32.mrb[0].mxu0
    %v2980 = vadd.f32 0.0, %v2979
    %v2981 = vpop.f32.mrb[0].mxu0
    %2982 = vmatprep.mubr.f32.mxu0 0.0
    %2983 = vmatmul.mubr.f32.gmra.mrb[0].mxu0 %v2899
    %v2984 = vpop.f32.mrb[0].mxu0
    %v2985 = vadd.f32 0.0, %v2984
    %v2986 = vpop.f32.mrb[0].mxu0
    %2987 = vmatprep.mubr.f32.mxu0 0.0
    %2988 = vmatmul.mubr.f32.gmra.mrb[0].mxu0 %v2901
    %v2989 = vpop.f32.mrb[0].mxu0
    %v2990 = vadd.f32 0.0, %v2989
    %v2991 = vpop.f32.mrb[0].mxu0
    %2992 = vmatprep.mubr.f32.mxu0 0.0
    %2993 = vmatmul.mubr.f32.gmra.mrb[0].mxu0 %v2903
    %v2994 = vpop.f32.mrb[0].mxu0
    %v2995 = vadd.f32 0.0, %v2994
    %v2996 = vpop.f32.mrb[0].mxu0
    %2997 = vmatprep.mubr.f32.mxu0 0.0
    %2998 = vmatmul.mubr.f32.gmra.mrb[0].mxu0 %v2905
    %v2999 = vpop.f32.mrb[0].mxu0
    %v3000 = vadd.f32 0.0, %v2999
    %v3001 = vpop.f32.mrb[0].mxu0
    %3002 = vmatprep.mubr.f32.mxu0 0.0
    %3003 = vmatmul.mubr.f32.gmra.mrb[0].mxu0 %v2907
    %v3004 = vpop.f32.mrb[0].mxu0
    %v3005 = vadd.f32 0.0, %v3004
    %v3006 = vpop.f32.mrb[0].mxu0
    %3007 = vmatprep.mubr.f32.mxu0 0.0
    %3008 = vmatmul.mubr.f32.gmra.mrb[0].mxu0 %v2909
    %v3009 = vpop.f32.mrb[0].mxu0
    %v3010 = vadd.f32 0.0, %v3009
    %v3011 = vpop.f32.mrb[0].mxu0
    %3012 = vmatprep.mubr.f32.mxu0 0.0
    %3013 = vmatmul.mubr.f32.gmra.mrb[0].mxu0 %v2911
    %v3014 = vpop.f32.mrb[0].mxu0
    %v3015 = vadd.f32 0.0, %v3014
    %v3016 = vpop.f32.mrb[0].mxu0
    %3017 = vdwg.mxu0
    %v3018 = vadd.f32 %v2825, %v2980
    %v3019 = vadd.f32 %v2830, %v2985
    %v3020 = vadd.f32 %v2835, %v2990
    %v3021 = vadd.f32 %v2840, %v2995
    %v3022 = vadd.f32 %v2845, %v3000
    %v3023 = vadd.f32 %v2850, %v3005
    %v3024 = vadd.f32 %v2855, %v3010
    %v3025 = vadd.f32 %v2860, %v3015
    %v3026 = vlaneseq
    %v3027 = vshrl.u32 %v3026, 7
    %v3028 = vsub.s32 4, %v3027
    %v3029 = vrot.slane %v77, %v3028
    %v3030 = vmul.f32 %v3018, %v3029
    %v3031 = vmul.f32 %v3019, %v3029
    %v3032 = vmul.f32 %v3020, %v3029
    %v3033 = vmul.f32 %v3021, %v3029
    %v3034 = vmul.f32 %v3022, %v3029
    %v3035 = vmul.f32 %v3023, %v3029
    %v3036 = vmul.f32 %v3024, %v3029
    %v3037 = vmul.f32 %v3025, %v3029
    %v3038 = vlaneseq
    %v3039 = vshrl.u32 %v3038, 7
    %v3040 = vsub.s32 5, %v3039
    %v3041 = vrot.slane %v77, %v3040
    %v3042 = vadd.f32 %v3030, %v3041
    %v3043 = vadd.f32 %v3031, %v3041
    %v3044 = vadd.f32 %v3032, %v3041
    %v3045 = vadd.f32 %v3033, %v3041
    %v3046 = vadd.f32 %v3034, %v3041
    %v3047 = vadd.f32 %v3035, %v3041
    %v3048 = vadd.f32 %v3036, %v3041
    %v3049 = vadd.f32 %v3037, %v3041
    %v3050 = vmax.f32 %v3042, 0.0
    %v3051 = vmax.f32 %v3043, 0.0
    %v3052 = vmax.f32 %v3044, 0.0
    %v3053 = vmax.f32 %v3045, 0.0
    %v3054 = vmax.f32 %v3046, 0.0
    %v3055 = vmax.f32 %v3047, 0.0
    %v3056 = vmax.f32 %v3048, 0.0
    %v3057 = vmax.f32 %v3049, 0.0
    %3066 = vrot.lane.b32.xlu0 %v3050, 48
    %v3067 = vpop.permute.xlu0 %3066
    %3068 = vrot.lane.b32.xlu0 %v3051, 48
    %v3069 = vpop.permute.xlu0 %3068
    %3070 = vrot.lane.b32.xlu0 %v3052, 48
    %v3071 = vpop.permute.xlu0 %3070
    %3072 = vrot.lane.b32.xlu0 %v3053, 48
    %v3073 = vpop.permute.xlu0 %3072
    %3074 = vrot.lane.b32.xlu0 %v3054, 48
    %v3075 = vpop.permute.xlu0 %3074
    %3076 = vrot.lane.b32.xlu0 %v3055, 48
    %v3077 = vpop.permute.xlu0 %3076
    %3078 = vrot.lane.b32.xlu0 %v3056, 48
    %v3079 = vpop.permute.xlu0 %3078
    %3080 = vrot.lane.b32.xlu0 %v3057, 48
    %v3081 = vpop.permute.xlu0 %3080
    %v3090 = vsel %vm88, %v3067, 0.0
    %v3091 = vsel %vm89, %v3069, 0.0
    %v3092 = vsel %vm90, %v3071, 0.0
    %v3093 = vsel %vm91, %v3073, 0.0
    %v3094 = vsel %vm92, %v3075, 0.0
    %v3095 = vsel %vm93, %v3077, 0.0
    %v3096 = vsel %vm94, %v3079, 0.0
    %v3097 = vsel %vm95, %v3081, 0.0
    %s3098 = scalar_lea.vmem %s3, 24
    %v3099 = vld [vmem:[%s3098] sm:$0xff]
    %s3100 = scalar_lea.vmem %s3, 32
    %v3101 = vld [vmem:[%s3100] sm:$0xff]
    %s3102 = scalar_lea.vmem %s3, 40
    %v3103 = vld [vmem:[%s3102] sm:$0xff]
    %v3112 = vrot.slane %v3090, 7
    %v3113 = vrot.slane %v3091, 7
    %v3114 = vsel %vm258, %v3112, %v3113
    %v3115 = vrot.slane %v3092, 7
    %v3116 = vsel %vm258, %v3113, %v3115
    %v3117 = vrot.slane %v3093, 7
    %v3118 = vsel %vm258, %v3115, %v3117
    %v3119 = vrot.slane %v3094, 7
    %v3120 = vsel %vm258, %v3117, %v3119
    %v3121 = vrot.slane %v3095, 7
    %v3122 = vsel %vm258, %v3119, %v3121
    %v3123 = vrot.slane %v3096, 7
    %v3124 = vsel %vm258, %v3121, %v3123
    %v3125 = vrot.slane %v3097, 7
    %v3126 = vsel %vm258, %v3123, %v3125
    %3127 = vrot.lane.b32.xlu0 %v3112, 80
    %v3128 = vpop.permute.xlu0 %3127
    %3129 = vrot.lane.b32.xlu0 %v3114, 80
    %v3130 = vpop.permute.xlu0 %3129
    %3131 = vrot.lane.b32.xlu0 %v3116, 80
    %v3132 = vpop.permute.xlu0 %3131
    %3133 = vrot.lane.b32.xlu0 %v3118, 80
    %v3134 = vpop.permute.xlu0 %3133
    %3135 = vrot.lane.b32.xlu0 %v3120, 80
    %v3136 = vpop.permute.xlu0 %3135
    %3137 = vrot.lane.b32.xlu0 %v3122, 80
    %v3138 = vpop.permute.xlu0 %3137
    %3139 = vrot.lane.b32.xlu0 %v3124, 80
    %v3140 = vpop.permute.xlu0 %3139
    %3141 = vrot.lane.b32.xlu0 %v3126, 80
    %v3142 = vpop.permute.xlu0 %3141
    %v3144 = vsel %vm258, 0.0, %v3128
    %v3146 = vsel %vm98, %v3144, 0
    %v3148 = vsel %vm98, %v3130, 0
    %v3150 = vsel %vm98, %v3132, 0
    %v3152 = vsel %vm98, %v3134, 0
    %v3154 = vsel %vm98, %v3136, 0
    %v3156 = vsel %vm98, %v3138, 0
    %v3158 = vsel %vm98, %v3140, 0
    %v3160 = vsel %vm98, %v3142, 0
    %3162 = vmatprep.subr.mxu0 0.0
    %3163 = vmatpush1.msra.mxu0 %v3099
    %3164 = vmatprep.subr.mxu0 0.0
    %3165 = vmatpush1.msra.mxu0 0.0
    %3166 = vmatprep.subr.mxu0 0.0
    %3167 = vmatpush1.msra.mxu0 0.0
    %3168 = vmatprep.subr.mxu0 0.0
    %3169 = vmatpush1.msra.mxu0 0.0
    %3170 = vmatprep.subr.mxu0 0.0
    %3171 = vmatpush1.msra.mxu0 0.0
    %3172 = vmatprep.subr.mxu0 0.0
    %3173 = vmatpush1.msra.mxu0 0.0
    %3174 = vmatprep.subr.mxu0 0.0
    %3175 = vmatpush1.msra.mxu0 0.0
    %3176 = vmatprep.subr.mxu0 0.0
    %3177 = vmatpush1.msra.mxu0 0.0
    %3178 = vmatprep.subr.mxu0 0.0
    %3179 = vmatpush1.msra.mxu0 0.0
    %3180 = vmatprep.subr.mxu0 0.0
    %3181 = vmatpush1.msra.mxu0 0.0
    %3182 = vmatprep.subr.mxu0 0.0
    %3183 = vmatpush1.msra.mxu0 0.0
    %3184 = vmatprep.subr.mxu0 0.0
    %3185 = vmatpush1.msra.mxu0 0.0
    %3186 = vmatprep.subr.mxu0 0.0
    %3187 = vmatpush1.msra.mxu0 0.0
    %3188 = vmatprep.subr.mxu0 0.0
    %3189 = vmatpush1.msra.mxu0 0.0
    %3190 = vmatprep.subr.mxu0 0.0
    %3191 = vmatpush1.msra.mxu0 0.0
    %3192 = vmatprep.subr.mxu0 0.0
    %3193 = vmatpush1.msra.mxu0 0.0
    %3194 = vmatprep.subr.mxu0 0.0
    %3195 = vmatpush1.msra.mxu0 0.0
    %3196 = vmatprep.subr.mxu0 0.0
    %3197 = vmatpush1.msra.mxu0 0.0
    %3198 = vmatprep.subr.mxu0 0.0
    %3199 = vmatpush1.msra.mxu0 0.0
    %3200 = vmatprep.subr.mxu0 0.0
    %3201 = vmatpush1.msra.mxu0 0.0
    %3202 = vmatprep.subr.mxu0 0.0
    %3203 = vmatpush1.msra.mxu0 0.0
    %3204 = vmatprep.subr.mxu0 0.0
    %3205 = vmatpush1.msra.mxu0 0.0
    %3206 = vmatprep.subr.mxu0 0.0
    %3207 = vmatpush1.msra.mxu0 0.0
    %3208 = vmatprep.subr.mxu0 0.0
    %3209 = vmatpush1.msra.mxu0 0.0
    %3210 = vmatprep.subr.mxu0 0.0
    %3211 = vmatpush1.msra.mxu0 0.0
    %3212 = vmatprep.subr.mxu0 0.0
    %3213 = vmatpush1.msra.mxu0 0.0
    %3214 = vmatprep.subr.mxu0 0.0
    %3215 = vmatpush1.msra.mxu0 0.0
    %3216 = vmatprep.subr.mxu0 0.0
    %3217 = vmatpush1.msra.mxu0 0.0
    %3218 = vmatprep.subr.mxu0 0.0
    %3219 = vmatpush1.msra.mxu0 0.0
    %3220 = vmatprep.subr.mxu0 0.0
    %3221 = vmatpush1.msra.mxu0 0.0
    %3222 = vmatprep.subr.mxu0 0.0
    %3223 = vmatpush1.msra.mxu0 0.0
    %3224 = vmatprep.subr.mxu0 0.0
    %3225 = vmatpush1.msra.mxu0 0.0
    %3226 = vmatprep.mubr.f32.mxu0 0.0
    %3227 = vmatmul.mubr.f32.gmra.mrb[0].mxu0 %v3146
    %v3228 = vpop.f32.mrb[0].mxu0
    %v3229 = vadd.f32 0.0, %v3228
    %v3230 = vpop.f32.mrb[0].mxu0
    %3231 = vmatprep.mubr.f32.mxu0 0.0
    %3232 = vmatmul.mubr.f32.gmra.mrb[0].mxu0 %v3148
    %v3233 = vpop.f32.mrb[0].mxu0
    %v3234 = vadd.f32 0.0, %v3233
    %v3235 = vpop.f32.mrb[0].mxu0
    %3236 = vmatprep.mubr.f32.mxu0 0.0
    %3237 = vmatmul.mubr.f32.gmra.mrb[0].mxu0 %v3150
    %v3238 = vpop.f32.mrb[0].mxu0
    %v3239 = vadd.f32 0.0, %v3238
    %v3240 = vpop.f32.mrb[0].mxu0
    %3241 = vmatprep.mubr.f32.mxu0 0.0
    %3242 = vmatmul.mubr.f32.gmra.mrb[0].mxu0 %v3152
    %v3243 = vpop.f32.mrb[0].mxu0
    %v3244 = vadd.f32 0.0, %v3243
    %v3245 = vpop.f32.mrb[0].mxu0
    %3246 = vmatprep.mubr.f32.mxu0 0.0
    %3247 = vmatmul.mubr.f32.gmra.mrb[0].mxu0 %v3154
    %v3248 = vpop.f32.mrb[0].mxu0
    %v3249 = vadd.f32 0.0, %v3248
    %v3250 = vpop.f32.mrb[0].mxu0
    %3251 = vmatprep.mubr.f32.mxu0 0.0
    %3252 = vmatmul.mubr.f32.gmra.mrb[0].mxu0 %v3156
    %v3253 = vpop.f32.mrb[0].mxu0
    %v3254 = vadd.f32 0.0, %v3253
    %v3255 = vpop.f32.mrb[0].mxu0
    %3256 = vmatprep.mubr.f32.mxu0 0.0
    %3257 = vmatmul.mubr.f32.gmra.mrb[0].mxu0 %v3158
    %v3258 = vpop.f32.mrb[0].mxu0
    %v3259 = vadd.f32 0.0, %v3258
    %v3260 = vpop.f32.mrb[0].mxu0
    %3261 = vmatprep.mubr.f32.mxu0 0.0
    %3262 = vmatmul.mubr.f32.gmra.mrb[0].mxu0 %v3160
    %v3263 = vpop.f32.mrb[0].mxu0
    %v3264 = vadd.f32 0.0, %v3263
    %v3265 = vpop.f32.mrb[0].mxu0
    %3266 = vdwg.mxu0
    %3267 = vrot.lane.b32.xlu0 %v3090, 80
    %v3268 = vpop.permute.xlu0 %3267
    %3269 = vrot.lane.b32.xlu0 %v3091, 80
    %v3270 = vpop.permute.xlu0 %3269
    %3271 = vrot.lane.b32.xlu0 %v3092, 80
    %v3272 = vpop.permute.xlu0 %3271
    %3273 = vrot.lane.b32.xlu0 %v3093, 80
    %v3274 = vpop.permute.xlu0 %3273
    %3275 = vrot.lane.b32.xlu0 %v3094, 80
    %v3276 = vpop.permute.xlu0 %3275
    %3277 = vrot.lane.b32.xlu0 %v3095, 80
    %v3278 = vpop.permute.xlu0 %3277
    %3279 = vrot.lane.b32.xlu0 %v3096, 80
    %v3280 = vpop.permute.xlu0 %3279
    %3281 = vrot.lane.b32.xlu0 %v3097, 80
    %v3282 = vpop.permute.xlu0 %3281
    %v3283 = vsel %vm98, %v3268, 0
    %v3285 = vsel %vm98, %v3270, 0
    %v3287 = vsel %vm98, %v3272, 0
    %v3289 = vsel %vm98, %v3274, 0
    %v3291 = vsel %vm98, %v3276, 0
    %v3293 = vsel %vm98, %v3278, 0
    %v3295 = vsel %vm98, %v3280, 0
    %v3297 = vsel %vm98, %v3282, 0
    %3299 = vmatprep.subr.mxu0 0.0
    %3300 = vmatpush1.msra.mxu0 %v3101
    %3301 = vmatprep.subr.mxu0 0.0
    %3302 = vmatpush1.msra.mxu0 0.0
    %3303 = vmatprep.subr.mxu0 0.0
    %3304 = vmatpush1.msra.mxu0 0.0
    %3305 = vmatprep.subr.mxu0 0.0
    %3306 = vmatpush1.msra.mxu0 0.0
    %3307 = vmatprep.subr.mxu0 0.0
    %3308 = vmatpush1.msra.mxu0 0.0
    %3309 = vmatprep.subr.mxu0 0.0
    %3310 = vmatpush1.msra.mxu0 0.0
    %3311 = vmatprep.subr.mxu0 0.0
    %3312 = vmatpush1.msra.mxu0 0.0
    %3313 = vmatprep.subr.mxu0 0.0
    %3314 = vmatpush1.msra.mxu0 0.0
    %3315 = vmatprep.subr.mxu0 0.0
    %3316 = vmatpush1.msra.mxu0 0.0
    %3317 = vmatprep.subr.mxu0 0.0
    %3318 = vmatpush1.msra.mxu0 0.0
    %3319 = vmatprep.subr.mxu0 0.0
    %3320 = vmatpush1.msra.mxu0 0.0
    %3321 = vmatprep.subr.mxu0 0.0
    %3322 = vmatpush1.msra.mxu0 0.0
    %3323 = vmatprep.subr.mxu0 0.0
    %3324 = vmatpush1.msra.mxu0 0.0
    %3325 = vmatprep.subr.mxu0 0.0
    %3326 = vmatpush1.msra.mxu0 0.0
    %3327 = vmatprep.subr.mxu0 0.0
    %3328 = vmatpush1.msra.mxu0 0.0
    %3329 = vmatprep.subr.mxu0 0.0
    %3330 = vmatpush1.msra.mxu0 0.0
    %3331 = vmatprep.subr.mxu0 0.0
    %3332 = vmatpush1.msra.mxu0 0.0
    %3333 = vmatprep.subr.mxu0 0.0
    %3334 = vmatpush1.msra.mxu0 0.0
    %3335 = vmatprep.subr.mxu0 0.0
    %3336 = vmatpush1.msra.mxu0 0.0
    %3337 = vmatprep.subr.mxu0 0.0
    %3338 = vmatpush1.msra.mxu0 0.0
    %3339 = vmatprep.subr.mxu0 0.0
    %3340 = vmatpush1.msra.mxu0 0.0
    %3341 = vmatprep.subr.mxu0 0.0
    %3342 = vmatpush1.msra.mxu0 0.0
    %3343 = vmatprep.subr.mxu0 0.0
    %3344 = vmatpush1.msra.mxu0 0.0
    %3345 = vmatprep.subr.mxu0 0.0
    %3346 = vmatpush1.msra.mxu0 0.0
    %3347 = vmatprep.subr.mxu0 0.0
    %3348 = vmatpush1.msra.mxu0 0.0
    %3349 = vmatprep.subr.mxu0 0.0
    %3350 = vmatpush1.msra.mxu0 0.0
    %3351 = vmatprep.subr.mxu0 0.0
    %3352 = vmatpush1.msra.mxu0 0.0
    %3353 = vmatprep.subr.mxu0 0.0
    %3354 = vmatpush1.msra.mxu0 0.0
    %3355 = vmatprep.subr.mxu0 0.0
    %3356 = vmatpush1.msra.mxu0 0.0
    %3357 = vmatprep.subr.mxu0 0.0
    %3358 = vmatpush1.msra.mxu0 0.0
    %3359 = vmatprep.subr.mxu0 0.0
    %3360 = vmatpush1.msra.mxu0 0.0
    %3361 = vmatprep.subr.mxu0 0.0
    %3362 = vmatpush1.msra.mxu0 0.0
    %3363 = vmatprep.mubr.f32.mxu0 0.0
    %3364 = vmatmul.mubr.f32.gmra.mrb[0].mxu0 %v3283
    %v3365 = vpop.f32.mrb[0].mxu0
    %v3366 = vadd.f32 %v3229, %v3365
    %v3367 = vpop.f32.mrb[0].mxu0
    %3368 = vmatprep.mubr.f32.mxu0 0.0
    %3369 = vmatmul.mubr.f32.gmra.mrb[0].mxu0 %v3285
    %v3370 = vpop.f32.mrb[0].mxu0
    %v3371 = vadd.f32 %v3234, %v3370
    %v3372 = vpop.f32.mrb[0].mxu0
    %3373 = vmatprep.mubr.f32.mxu0 0.0
    %3374 = vmatmul.mubr.f32.gmra.mrb[0].mxu0 %v3287
    %v3375 = vpop.f32.mrb[0].mxu0
    %v3376 = vadd.f32 %v3239, %v3375
    %v3377 = vpop.f32.mrb[0].mxu0
    %3378 = vmatprep.mubr.f32.mxu0 0.0
    %3379 = vmatmul.mubr.f32.gmra.mrb[0].mxu0 %v3289
    %v3380 = vpop.f32.mrb[0].mxu0
    %v3381 = vadd.f32 %v3244, %v3380
    %v3382 = vpop.f32.mrb[0].mxu0
    %3383 = vmatprep.mubr.f32.mxu0 0.0
    %3384 = vmatmul.mubr.f32.gmra.mrb[0].mxu0 %v3291
    %v3385 = vpop.f32.mrb[0].mxu0
    %v3386 = vadd.f32 %v3249, %v3385
    %v3387 = vpop.f32.mrb[0].mxu0
    %3388 = vmatprep.mubr.f32.mxu0 0.0
    %3389 = vmatmul.mubr.f32.gmra.mrb[0].mxu0 %v3293
    %v3390 = vpop.f32.mrb[0].mxu0
    %v3391 = vadd.f32 %v3254, %v3390
    %v3392 = vpop.f32.mrb[0].mxu0
    %3393 = vmatprep.mubr.f32.mxu0 0.0
    %3394 = vmatmul.mubr.f32.gmra.mrb[0].mxu0 %v3295
    %v3395 = vpop.f32.mrb[0].mxu0
    %v3396 = vadd.f32 %v3259, %v3395
    %v3397 = vpop.f32.mrb[0].mxu0
    %3398 = vmatprep.mubr.f32.mxu0 0.0
    %3399 = vmatmul.mubr.f32.gmra.mrb[0].mxu0 %v3297
    %v3400 = vpop.f32.mrb[0].mxu0
    %v3401 = vadd.f32 %v3264, %v3400
    %v3402 = vpop.f32.mrb[0].mxu0
    %3403 = vdwg.mxu0
    %v3404 = vrot.slane %v3090, 1
    %v3405 = vrot.slane %v3091, 1
    %v3406 = vsel %vm488, %v3404, %v3405
    %v3407 = vrot.slane %v3092, 1
    %v3408 = vsel %vm488, %v3405, %v3407
    %v3409 = vrot.slane %v3093, 1
    %v3410 = vsel %vm488, %v3407, %v3409
    %v3411 = vrot.slane %v3094, 1
    %v3412 = vsel %vm488, %v3409, %v3411
    %v3413 = vrot.slane %v3095, 1
    %v3414 = vsel %vm488, %v3411, %v3413
    %v3415 = vrot.slane %v3096, 1
    %v3416 = vsel %vm488, %v3413, %v3415
    %v3417 = vrot.slane %v3097, 1
    %v3418 = vsel %vm488, %v3415, %v3417
    %v3420 = vsel %vm488, %v3417, 0.0
    %3422 = vrot.lane.b32.xlu0 %v3406, 80
    %v3423 = vpop.permute.xlu0 %3422
    %3424 = vrot.lane.b32.xlu0 %v3408, 80
    %v3425 = vpop.permute.xlu0 %3424
    %3426 = vrot.lane.b32.xlu0 %v3410, 80
    %v3427 = vpop.permute.xlu0 %3426
    %3428 = vrot.lane.b32.xlu0 %v3412, 80
    %v3429 = vpop.permute.xlu0 %3428
    %3430 = vrot.lane.b32.xlu0 %v3414, 80
    %v3431 = vpop.permute.xlu0 %3430
    %3432 = vrot.lane.b32.xlu0 %v3416, 80
    %v3433 = vpop.permute.xlu0 %3432
    %3434 = vrot.lane.b32.xlu0 %v3418, 80
    %v3435 = vpop.permute.xlu0 %3434
    %3436 = vrot.lane.b32.xlu0 %v3420, 80
    %v3437 = vpop.permute.xlu0 %3436
    %v3438 = vsel %vm98, %v3423, 0
    %v3440 = vsel %vm98, %v3425, 0
    %v3442 = vsel %vm98, %v3427, 0
    %v3444 = vsel %vm98, %v3429, 0
    %v3446 = vsel %vm98, %v3431, 0
    %v3448 = vsel %vm98, %v3433, 0
    %v3450 = vsel %vm98, %v3435, 0
    %v3452 = vsel %vm98, %v3437, 0
    %3454 = vmatprep.subr.mxu0 0.0
    %3455 = vmatpush1.msra.mxu0 %v3103
    %3456 = vmatprep.subr.mxu0 0.0
    %3457 = vmatpush1.msra.mxu0 0.0
    %3458 = vmatprep.subr.mxu0 0.0
    %3459 = vmatpush1.msra.mxu0 0.0
    %3460 = vmatprep.subr.mxu0 0.0
    %3461 = vmatpush1.msra.mxu0 0.0
    %3462 = vmatprep.subr.mxu0 0.0
    %3463 = vmatpush1.msra.mxu0 0.0
    %3464 = vmatprep.subr.mxu0 0.0
    %3465 = vmatpush1.msra.mxu0 0.0
    %3466 = vmatprep.subr.mxu0 0.0
    %3467 = vmatpush1.msra.mxu0 0.0
    %3468 = vmatprep.subr.mxu0 0.0
    %3469 = vmatpush1.msra.mxu0 0.0
    %3470 = vmatprep.subr.mxu0 0.0
    %3471 = vmatpush1.msra.mxu0 0.0
    %3472 = vmatprep.subr.mxu0 0.0
    %3473 = vmatpush1.msra.mxu0 0.0
    %3474 = vmatprep.subr.mxu0 0.0
    %3475 = vmatpush1.msra.mxu0 0.0
    %3476 = vmatprep.subr.mxu0 0.0
    %3477 = vmatpush1.msra.mxu0 0.0
    %3478 = vmatprep.subr.mxu0 0.0
    %3479 = vmatpush1.msra.mxu0 0.0
    %3480 = vmatprep.subr.mxu0 0.0
    %3481 = vmatpush1.msra.mxu0 0.0
    %3482 = vmatprep.subr.mxu0 0.0
    %3483 = vmatpush1.msra.mxu0 0.0
    %3484 = vmatprep.subr.mxu0 0.0
    %3485 = vmatpush1.msra.mxu0 0.0
    %3486 = vmatprep.subr.mxu0 0.0
    %3487 = vmatpush1.msra.mxu0 0.0
    %3488 = vmatprep.subr.mxu0 0.0
    %3489 = vmatpush1.msra.mxu0 0.0
    %3490 = vmatprep.subr.mxu0 0.0
    %3491 = vmatpush1.msra.mxu0 0.0
    %3492 = vmatprep.subr.mxu0 0.0
    %3493 = vmatpush1.msra.mxu0 0.0
    %3494 = vmatprep.subr.mxu0 0.0
    %3495 = vmatpush1.msra.mxu0 0.0
    %3496 = vmatprep.subr.mxu0 0.0
    %3497 = vmatpush1.msra.mxu0 0.0
    %3498 = vmatprep.subr.mxu0 0.0
    %3499 = vmatpush1.msra.mxu0 0.0
    %3500 = vmatprep.subr.mxu0 0.0
    %3501 = vmatpush1.msra.mxu0 0.0
    %3502 = vmatprep.subr.mxu0 0.0
    %3503 = vmatpush1.msra.mxu0 0.0
    %3504 = vmatprep.subr.mxu0 0.0
    %3505 = vmatpush1.msra.mxu0 0.0
    %3506 = vmatprep.subr.mxu0 0.0
    %3507 = vmatpush1.msra.mxu0 0.0
    %3508 = vmatprep.subr.mxu0 0.0
    %3509 = vmatpush1.msra.mxu0 0.0
    %3510 = vmatprep.subr.mxu0 0.0
    %3511 = vmatpush1.msra.mxu0 0.0
    %3512 = vmatprep.subr.mxu0 0.0
    %3513 = vmatpush1.msra.mxu0 0.0
    %3514 = vmatprep.subr.mxu0 0.0
    %3515 = vmatpush1.msra.mxu0 0.0
    %3516 = vmatprep.subr.mxu0 0.0
    %3517 = vmatpush1.msra.mxu0 0.0
    %3518 = vmatprep.mubr.f32.mxu0 0.0
    %3519 = vmatmul.mubr.f32.gmra.mrb[0].mxu0 %v3438
    %v3520 = vpop.f32.mrb[0].mxu0
    %v3521 = vadd.f32 0.0, %v3520
    %v3522 = vpop.f32.mrb[0].mxu0
    %3523 = vmatprep.mubr.f32.mxu0 0.0
    %3524 = vmatmul.mubr.f32.gmra.mrb[0].mxu0 %v3440
    %v3525 = vpop.f32.mrb[0].mxu0
    %v3526 = vadd.f32 0.0, %v3525
    %v3527 = vpop.f32.mrb[0].mxu0
    %3528 = vmatprep.mubr.f32.mxu0 0.0
    %3529 = vmatmul.mubr.f32.gmra.mrb[0].mxu0 %v3442
    %v3530 = vpop.f32.mrb[0].mxu0
    %v3531 = vadd.f32 0.0, %v3530
    %v3532 = vpop.f32.mrb[0].mxu0
    %3533 = vmatprep.mubr.f32.mxu0 0.0
    %3534 = vmatmul.mubr.f32.gmra.mrb[0].mxu0 %v3444
    %v3535 = vpop.f32.mrb[0].mxu0
    %v3536 = vadd.f32 0.0, %v3535
    %v3537 = vpop.f32.mrb[0].mxu0
    %3538 = vmatprep.mubr.f32.mxu0 0.0
    %3539 = vmatmul.mubr.f32.gmra.mrb[0].mxu0 %v3446
    %v3540 = vpop.f32.mrb[0].mxu0
    %v3541 = vadd.f32 0.0, %v3540
    %v3542 = vpop.f32.mrb[0].mxu0
    %3543 = vmatprep.mubr.f32.mxu0 0.0
    %3544 = vmatmul.mubr.f32.gmra.mrb[0].mxu0 %v3448
    %v3545 = vpop.f32.mrb[0].mxu0
    %v3546 = vadd.f32 0.0, %v3545
    %v3547 = vpop.f32.mrb[0].mxu0
    %3548 = vmatprep.mubr.f32.mxu0 0.0
    %3549 = vmatmul.mubr.f32.gmra.mrb[0].mxu0 %v3450
    %v3550 = vpop.f32.mrb[0].mxu0
    %v3551 = vadd.f32 0.0, %v3550
    %v3552 = vpop.f32.mrb[0].mxu0
    %3553 = vmatprep.mubr.f32.mxu0 0.0
    %3554 = vmatmul.mubr.f32.gmra.mrb[0].mxu0 %v3452
    %v3555 = vpop.f32.mrb[0].mxu0
    %v3556 = vadd.f32 0.0, %v3555
    %v3557 = vpop.f32.mrb[0].mxu0
    %3558 = vdwg.mxu0
    %v3559 = vadd.f32 %v3366, %v3521
    %v3560 = vadd.f32 %v3371, %v3526
    %v3561 = vadd.f32 %v3376, %v3531
    %v3562 = vadd.f32 %v3381, %v3536
    %v3563 = vadd.f32 %v3386, %v3541
    %v3564 = vadd.f32 %v3391, %v3546
    %v3565 = vadd.f32 %v3396, %v3551
    %v3566 = vadd.f32 %v3401, %v3556
    %v3567 = vlaneseq
    %v3568 = vshrl.u32 %v3567, 7
    %v3569 = vsub.s32 6, %v3568
    %v3570 = vrot.slane %v77, %v3569
    %v3571 = vmul.f32 %v3559, %v3570
    %v3572 = vmul.f32 %v3560, %v3570
    %v3573 = vmul.f32 %v3561, %v3570
    %v3574 = vmul.f32 %v3562, %v3570
    %v3575 = vmul.f32 %v3563, %v3570
    %v3576 = vmul.f32 %v3564, %v3570
    %v3577 = vmul.f32 %v3565, %v3570
    %v3578 = vmul.f32 %v3566, %v3570
    %v3579 = vlaneseq
    %v3580 = vshrl.u32 %v3579, 7
    %v3581 = vsub.s32 7, %v3580
    %v3582 = vrot.slane %v77, %v3581
    %v3583 = vadd.f32 %v3571, %v3582
    %v3584 = vadd.f32 %v3572, %v3582
    %v3585 = vadd.f32 %v3573, %v3582
    %v3586 = vadd.f32 %v3574, %v3582
    %v3587 = vadd.f32 %v3575, %v3582
    %v3588 = vadd.f32 %v3576, %v3582
    %v3589 = vadd.f32 %v3577, %v3582
    %v3590 = vadd.f32 %v3578, %v3582
    %v3599 = vadd.f32 %v3583, %v2727
    %v3600 = vadd.f32 %v3584, %v2729
    %v3601 = vadd.f32 %v3585, %v2731
    %v3602 = vadd.f32 %v3586, %v2733
    %v3603 = vadd.f32 %v3587, %v2735
    %v3604 = vadd.f32 %v3588, %v2737
    %v3605 = vadd.f32 %v3589, %v2739
    %v3606 = vadd.f32 %v3590, %v2741
    %v3607 = vmax.f32 %v3599, 0.0
    %v3608 = vmax.f32 %v3600, 0.0
    %v3609 = vmax.f32 %v3601, 0.0
    %v3610 = vmax.f32 %v3602, 0.0
    %v3611 = vmax.f32 %v3603, 0.0
    %v3612 = vmax.f32 %v3604, 0.0
    %v3613 = vmax.f32 %v3605, 0.0
    %v3614 = vmax.f32 %v3606, 0.0
    %3623 = vrot.lane.b32.xlu0 %v3607, 48
    %v3624 = vpop.permute.xlu0 %3623
    %3625 = vrot.lane.b32.xlu0 %v3608, 48
    %v3626 = vpop.permute.xlu0 %3625
    %3627 = vrot.lane.b32.xlu0 %v3609, 48
    %v3628 = vpop.permute.xlu0 %3627
    %3629 = vrot.lane.b32.xlu0 %v3610, 48
    %v3630 = vpop.permute.xlu0 %3629
    %3631 = vrot.lane.b32.xlu0 %v3611, 48
    %v3632 = vpop.permute.xlu0 %3631
    %3633 = vrot.lane.b32.xlu0 %v3612, 48
    %v3634 = vpop.permute.xlu0 %3633
    %3635 = vrot.lane.b32.xlu0 %v3613, 48
    %v3636 = vpop.permute.xlu0 %3635
    %3637 = vrot.lane.b32.xlu0 %v3614, 48
    %v3638 = vpop.permute.xlu0 %3637
    %v3647 = vsel %vm88, %v3624, 0.0
    %v3648 = vsel %vm89, %v3626, 0.0
    %v3649 = vsel %vm90, %v3628, 0.0
    %v3650 = vsel %vm91, %v3630, 0.0
    %v3651 = vsel %vm92, %v3632, 0.0
    %v3652 = vsel %vm93, %v3634, 0.0
    %v3653 = vsel %vm94, %v3636, 0.0
    %v3654 = vsel %vm95, %v3638, 0.0
    %s3655 = scalar_lea.vmem %s3, 48
    %v3656 = vld [vmem:[%s3655] sm:$0xff]
    %s3657 = scalar_lea.vmem %s3, 56
    %v3658 = vld [vmem:[%s3657] sm:$0xff]
    %s3659 = scalar_lea.vmem %s3, 64
    %v3660 = vld [vmem:[%s3659] sm:$0xff]
    %v3669 = vrot.slane %v3647, 7
    %v3670 = vrot.slane %v3648, 7
    %v3671 = vsel %vm258, %v3669, %v3670
    %v3672 = vrot.slane %v3649, 7
    %v3673 = vsel %vm258, %v3670, %v3672
    %v3674 = vrot.slane %v3650, 7
    %v3675 = vsel %vm258, %v3672, %v3674
    %v3676 = vrot.slane %v3651, 7
    %v3677 = vsel %vm258, %v3674, %v3676
    %v3678 = vrot.slane %v3652, 7
    %v3679 = vsel %vm258, %v3676, %v3678
    %v3680 = vrot.slane %v3653, 7
    %v3681 = vsel %vm258, %v3678, %v3680
    %v3682 = vrot.slane %v3654, 7
    %v3683 = vsel %vm258, %v3680, %v3682
    %3684 = vrot.lane.b32.xlu0 %v3669, 80
    %v3685 = vpop.permute.xlu0 %3684
    %3686 = vrot.lane.b32.xlu0 %v3671, 80
    %v3687 = vpop.permute.xlu0 %3686
    %3688 = vrot.lane.b32.xlu0 %v3673, 80
    %v3689 = vpop.permute.xlu0 %3688
    %3690 = vrot.lane.b32.xlu0 %v3675, 80
    %v3691 = vpop.permute.xlu0 %3690
    %3692 = vrot.lane.b32.xlu0 %v3677, 80
    %v3693 = vpop.permute.xlu0 %3692
    %3694 = vrot.lane.b32.xlu0 %v3679, 80
    %v3695 = vpop.permute.xlu0 %3694
    %3696 = vrot.lane.b32.xlu0 %v3681, 80
    %v3697 = vpop.permute.xlu0 %3696
    %3698 = vrot.lane.b32.xlu0 %v3683, 80
    %v3699 = vpop.permute.xlu0 %3698
    %v3701 = vsel %vm258, 0.0, %v3685
    %v3703 = vsel %vm98, %v3701, 0
    %v3705 = vsel %vm98, %v3687, 0
    %v3707 = vsel %vm98, %v3689, 0
    %v3709 = vsel %vm98, %v3691, 0
    %v3711 = vsel %vm98, %v3693, 0
    %v3713 = vsel %vm98, %v3695, 0
    %v3715 = vsel %vm98, %v3697, 0
    %v3717 = vsel %vm98, %v3699, 0
    %3719 = vmatprep.subr.mxu0 0.0
    %3720 = vmatpush1.msra.mxu0 %v3656
    %3721 = vmatprep.subr.mxu0 0.0
    %3722 = vmatpush1.msra.mxu0 0.0
    %3723 = vmatprep.subr.mxu0 0.0
    %3724 = vmatpush1.msra.mxu0 0.0
    %3725 = vmatprep.subr.mxu0 0.0
    %3726 = vmatpush1.msra.mxu0 0.0
    %3727 = vmatprep.subr.mxu0 0.0
    %3728 = vmatpush1.msra.mxu0 0.0
    %3729 = vmatprep.subr.mxu0 0.0
    %3730 = vmatpush1.msra.mxu0 0.0
    %3731 = vmatprep.subr.mxu0 0.0
    %3732 = vmatpush1.msra.mxu0 0.0
    %3733 = vmatprep.subr.mxu0 0.0
    %3734 = vmatpush1.msra.mxu0 0.0
    %3735 = vmatprep.subr.mxu0 0.0
    %3736 = vmatpush1.msra.mxu0 0.0
    %3737 = vmatprep.subr.mxu0 0.0
    %3738 = vmatpush1.msra.mxu0 0.0
    %3739 = vmatprep.subr.mxu0 0.0
    %3740 = vmatpush1.msra.mxu0 0.0
    %3741 = vmatprep.subr.mxu0 0.0
    %3742 = vmatpush1.msra.mxu0 0.0
    %3743 = vmatprep.subr.mxu0 0.0
    %3744 = vmatpush1.msra.mxu0 0.0
    %3745 = vmatprep.subr.mxu0 0.0
    %3746 = vmatpush1.msra.mxu0 0.0
    %3747 = vmatprep.subr.mxu0 0.0
    %3748 = vmatpush1.msra.mxu0 0.0
    %3749 = vmatprep.subr.mxu0 0.0
    %3750 = vmatpush1.msra.mxu0 0.0
    %3751 = vmatprep.subr.mxu0 0.0
    %3752 = vmatpush1.msra.mxu0 0.0
    %3753 = vmatprep.subr.mxu0 0.0
    %3754 = vmatpush1.msra.mxu0 0.0
    %3755 = vmatprep.subr.mxu0 0.0
    %3756 = vmatpush1.msra.mxu0 0.0
    %3757 = vmatprep.subr.mxu0 0.0
    %3758 = vmatpush1.msra.mxu0 0.0
    %3759 = vmatprep.subr.mxu0 0.0
    %3760 = vmatpush1.msra.mxu0 0.0
    %3761 = vmatprep.subr.mxu0 0.0
    %3762 = vmatpush1.msra.mxu0 0.0
    %3763 = vmatprep.subr.mxu0 0.0
    %3764 = vmatpush1.msra.mxu0 0.0
    %3765 = vmatprep.subr.mxu0 0.0
    %3766 = vmatpush1.msra.mxu0 0.0
    %3767 = vmatprep.subr.mxu0 0.0
    %3768 = vmatpush1.msra.mxu0 0.0
    %3769 = vmatprep.subr.mxu0 0.0
    %3770 = vmatpush1.msra.mxu0 0.0
    %3771 = vmatprep.subr.mxu0 0.0
    %3772 = vmatpush1.msra.mxu0 0.0
    %3773 = vmatprep.subr.mxu0 0.0
    %3774 = vmatpush1.msra.mxu0 0.0
    %3775 = vmatprep.subr.mxu0 0.0
    %3776 = vmatpush1.msra.mxu0 0.0
    %3777 = vmatprep.subr.mxu0 0.0
    %3778 = vmatpush1.msra.mxu0 0.0
    %3779 = vmatprep.subr.mxu0 0.0
    %3780 = vmatpush1.msra.mxu0 0.0
    %3781 = vmatprep.subr.mxu0 0.0
    %3782 = vmatpush1.msra.mxu0 0.0
    %3783 = vmatprep.mubr.f32.mxu0 0.0
    %3784 = vmatmul.mubr.f32.gmra.mrb[0].mxu0 %v3703
    %v3785 = vpop.f32.mrb[0].mxu0
    %v3786 = vadd.f32 0.0, %v3785
    %v3787 = vpop.f32.mrb[0].mxu0
    %3788 = vmatprep.mubr.f32.mxu0 0.0
    %3789 = vmatmul.mubr.f32.gmra.mrb[0].mxu0 %v3705
    %v3790 = vpop.f32.mrb[0].mxu0
    %v3791 = vadd.f32 0.0, %v3790
    %v3792 = vpop.f32.mrb[0].mxu0
    %3793 = vmatprep.mubr.f32.mxu0 0.0
    %3794 = vmatmul.mubr.f32.gmra.mrb[0].mxu0 %v3707
    %v3795 = vpop.f32.mrb[0].mxu0
    %v3796 = vadd.f32 0.0, %v3795
    %v3797 = vpop.f32.mrb[0].mxu0
    %3798 = vmatprep.mubr.f32.mxu0 0.0
    %3799 = vmatmul.mubr.f32.gmra.mrb[0].mxu0 %v3709
    %v3800 = vpop.f32.mrb[0].mxu0
    %v3801 = vadd.f32 0.0, %v3800
    %v3802 = vpop.f32.mrb[0].mxu0
    %3803 = vmatprep.mubr.f32.mxu0 0.0
    %3804 = vmatmul.mubr.f32.gmra.mrb[0].mxu0 %v3711
    %v3805 = vpop.f32.mrb[0].mxu0
    %v3806 = vadd.f32 0.0, %v3805
    %v3807 = vpop.f32.mrb[0].mxu0
    %3808 = vmatprep.mubr.f32.mxu0 0.0
    %3809 = vmatmul.mubr.f32.gmra.mrb[0].mxu0 %v3713
    %v3810 = vpop.f32.mrb[0].mxu0
    %v3811 = vadd.f32 0.0, %v3810
    %v3812 = vpop.f32.mrb[0].mxu0
    %3813 = vmatprep.mubr.f32.mxu0 0.0
    %3814 = vmatmul.mubr.f32.gmra.mrb[0].mxu0 %v3715
    %v3815 = vpop.f32.mrb[0].mxu0
    %v3816 = vadd.f32 0.0, %v3815
    %v3817 = vpop.f32.mrb[0].mxu0
    %3818 = vmatprep.mubr.f32.mxu0 0.0
    %3819 = vmatmul.mubr.f32.gmra.mrb[0].mxu0 %v3717
    %v3820 = vpop.f32.mrb[0].mxu0
    %v3821 = vadd.f32 0.0, %v3820
    %v3822 = vpop.f32.mrb[0].mxu0
    %3823 = vdwg.mxu0
    %3824 = vrot.lane.b32.xlu0 %v3647, 80
    %v3825 = vpop.permute.xlu0 %3824
    %3826 = vrot.lane.b32.xlu0 %v3648, 80
    %v3827 = vpop.permute.xlu0 %3826
    %3828 = vrot.lane.b32.xlu0 %v3649, 80
    %v3829 = vpop.permute.xlu0 %3828
    %3830 = vrot.lane.b32.xlu0 %v3650, 80
    %v3831 = vpop.permute.xlu0 %3830
    %3832 = vrot.lane.b32.xlu0 %v3651, 80
    %v3833 = vpop.permute.xlu0 %3832
    %3834 = vrot.lane.b32.xlu0 %v3652, 80
    %v3835 = vpop.permute.xlu0 %3834
    %3836 = vrot.lane.b32.xlu0 %v3653, 80
    %v3837 = vpop.permute.xlu0 %3836
    %3838 = vrot.lane.b32.xlu0 %v3654, 80
    %v3839 = vpop.permute.xlu0 %3838
    %v3840 = vsel %vm98, %v3825, 0
    %v3842 = vsel %vm98, %v3827, 0
    %v3844 = vsel %vm98, %v3829, 0
    %v3846 = vsel %vm98, %v3831, 0
    %v3848 = vsel %vm98, %v3833, 0
    %v3850 = vsel %vm98, %v3835, 0
    %v3852 = vsel %vm98, %v3837, 0
    %v3854 = vsel %vm98, %v3839, 0
    %3856 = vmatprep.subr.mxu0 0.0
    %3857 = vmatpush1.msra.mxu0 %v3658
    %3858 = vmatprep.subr.mxu0 0.0
    %3859 = vmatpush1.msra.mxu0 0.0
    %3860 = vmatprep.subr.mxu0 0.0
    %3861 = vmatpush1.msra.mxu0 0.0
    %3862 = vmatprep.subr.mxu0 0.0
    %3863 = vmatpush1.msra.mxu0 0.0
    %3864 = vmatprep.subr.mxu0 0.0
    %3865 = vmatpush1.msra.mxu0 0.0
    %3866 = vmatprep.subr.mxu0 0.0
    %3867 = vmatpush1.msra.mxu0 0.0
    %3868 = vmatprep.subr.mxu0 0.0
    %3869 = vmatpush1.msra.mxu0 0.0
    %3870 = vmatprep.subr.mxu0 0.0
    %3871 = vmatpush1.msra.mxu0 0.0
    %3872 = vmatprep.subr.mxu0 0.0
    %3873 = vmatpush1.msra.mxu0 0.0
    %3874 = vmatprep.subr.mxu0 0.0
    %3875 = vmatpush1.msra.mxu0 0.0
    %3876 = vmatprep.subr.mxu0 0.0
    %3877 = vmatpush1.msra.mxu0 0.0
    %3878 = vmatprep.subr.mxu0 0.0
    %3879 = vmatpush1.msra.mxu0 0.0
    %3880 = vmatprep.subr.mxu0 0.0
    %3881 = vmatpush1.msra.mxu0 0.0
    %3882 = vmatprep.subr.mxu0 0.0
    %3883 = vmatpush1.msra.mxu0 0.0
    %3884 = vmatprep.subr.mxu0 0.0
    %3885 = vmatpush1.msra.mxu0 0.0
    %3886 = vmatprep.subr.mxu0 0.0
    %3887 = vmatpush1.msra.mxu0 0.0
    %3888 = vmatprep.subr.mxu0 0.0
    %3889 = vmatpush1.msra.mxu0 0.0
    %3890 = vmatprep.subr.mxu0 0.0
    %3891 = vmatpush1.msra.mxu0 0.0
    %3892 = vmatprep.subr.mxu0 0.0
    %3893 = vmatpush1.msra.mxu0 0.0
    %3894 = vmatprep.subr.mxu0 0.0
    %3895 = vmatpush1.msra.mxu0 0.0
    %3896 = vmatprep.subr.mxu0 0.0
    %3897 = vmatpush1.msra.mxu0 0.0
    %3898 = vmatprep.subr.mxu0 0.0
    %3899 = vmatpush1.msra.mxu0 0.0
    %3900 = vmatprep.subr.mxu0 0.0
    %3901 = vmatpush1.msra.mxu0 0.0
    %3902 = vmatprep.subr.mxu0 0.0
    %3903 = vmatpush1.msra.mxu0 0.0
    %3904 = vmatprep.subr.mxu0 0.0
    %3905 = vmatpush1.msra.mxu0 0.0
    %3906 = vmatprep.subr.mxu0 0.0
    %3907 = vmatpush1.msra.mxu0 0.0
    %3908 = vmatprep.subr.mxu0 0.0
    %3909 = vmatpush1.msra.mxu0 0.0
    %3910 = vmatprep.subr.mxu0 0.0
    %3911 = vmatpush1.msra.mxu0 0.0
    %3912 = vmatprep.subr.mxu0 0.0
    %3913 = vmatpush1.msra.mxu0 0.0
    %3914 = vmatprep.subr.mxu0 0.0
    %3915 = vmatpush1.msra.mxu0 0.0
    %3916 = vmatprep.subr.mxu0 0.0
    %3917 = vmatpush1.msra.mxu0 0.0
    %3918 = vmatprep.subr.mxu0 0.0
    %3919 = vmatpush1.msra.mxu0 0.0
    %3920 = vmatprep.mubr.f32.mxu0 0.0
    %3921 = vmatmul.mubr.f32.gmra.mrb[0].mxu0 %v3840
    %v3922 = vpop.f32.mrb[0].mxu0
    %v3923 = vadd.f32 %v3786, %v3922
    %v3924 = vpop.f32.mrb[0].mxu0
    %3925 = vmatprep.mubr.f32.mxu0 0.0
    %3926 = vmatmul.mubr.f32.gmra.mrb[0].mxu0 %v3842
    %v3927 = vpop.f32.mrb[0].mxu0
    %v3928 = vadd.f32 %v3791, %v3927
    %v3929 = vpop.f32.mrb[0].mxu0
    %3930 = vmatprep.mubr.f32.mxu0 0.0
    %3931 = vmatmul.mubr.f32.gmra.mrb[0].mxu0 %v3844
    %v3932 = vpop.f32.mrb[0].mxu0
    %v3933 = vadd.f32 %v3796, %v3932
    %v3934 = vpop.f32.mrb[0].mxu0
    %3935 = vmatprep.mubr.f32.mxu0 0.0
    %3936 = vmatmul.mubr.f32.gmra.mrb[0].mxu0 %v3846
    %v3937 = vpop.f32.mrb[0].mxu0
    %v3938 = vadd.f32 %v3801, %v3937
    %v3939 = vpop.f32.mrb[0].mxu0
    %3940 = vmatprep.mubr.f32.mxu0 0.0
    %3941 = vmatmul.mubr.f32.gmra.mrb[0].mxu0 %v3848
    %v3942 = vpop.f32.mrb[0].mxu0
    %v3943 = vadd.f32 %v3806, %v3942
    %v3944 = vpop.f32.mrb[0].mxu0
    %3945 = vmatprep.mubr.f32.mxu0 0.0
    %3946 = vmatmul.mubr.f32.gmra.mrb[0].mxu0 %v3850
    %v3947 = vpop.f32.mrb[0].mxu0
    %v3948 = vadd.f32 %v3811, %v3947
    %v3949 = vpop.f32.mrb[0].mxu0
    %3950 = vmatprep.mubr.f32.mxu0 0.0
    %3951 = vmatmul.mubr.f32.gmra.mrb[0].mxu0 %v3852
    %v3952 = vpop.f32.mrb[0].mxu0
    %v3953 = vadd.f32 %v3816, %v3952
    %v3954 = vpop.f32.mrb[0].mxu0
    %3955 = vmatprep.mubr.f32.mxu0 0.0
    %3956 = vmatmul.mubr.f32.gmra.mrb[0].mxu0 %v3854
    %v3957 = vpop.f32.mrb[0].mxu0
    %v3958 = vadd.f32 %v3821, %v3957
    %v3959 = vpop.f32.mrb[0].mxu0
    %3960 = vdwg.mxu0
    %v3961 = vrot.slane %v3647, 1
    %v3962 = vrot.slane %v3648, 1
    %v3963 = vsel %vm488, %v3961, %v3962
    %v3964 = vrot.slane %v3649, 1
    %v3965 = vsel %vm488, %v3962, %v3964
    %v3966 = vrot.slane %v3650, 1
    %v3967 = vsel %vm488, %v3964, %v3966
    %v3968 = vrot.slane %v3651, 1
    %v3969 = vsel %vm488, %v3966, %v3968
    %v3970 = vrot.slane %v3652, 1
    %v3971 = vsel %vm488, %v3968, %v3970
    %v3972 = vrot.slane %v3653, 1
    %v3973 = vsel %vm488, %v3970, %v3972
    %v3974 = vrot.slane %v3654, 1
    %v3975 = vsel %vm488, %v3972, %v3974
    %v3977 = vsel %vm488, %v3974, 0.0
    %3979 = vrot.lane.b32.xlu0 %v3963, 80
    %v3980 = vpop.permute.xlu0 %3979
    %3981 = vrot.lane.b32.xlu0 %v3965, 80
    %v3982 = vpop.permute.xlu0 %3981
    %3983 = vrot.lane.b32.xlu0 %v3967, 80
    %v3984 = vpop.permute.xlu0 %3983
    %3985 = vrot.lane.b32.xlu0 %v3969, 80
    %v3986 = vpop.permute.xlu0 %3985
    %3987 = vrot.lane.b32.xlu0 %v3971, 80
    %v3988 = vpop.permute.xlu0 %3987
    %3989 = vrot.lane.b32.xlu0 %v3973, 80
    %v3990 = vpop.permute.xlu0 %3989
    %3991 = vrot.lane.b32.xlu0 %v3975, 80
    %v3992 = vpop.permute.xlu0 %3991
    %3993 = vrot.lane.b32.xlu0 %v3977, 80
    %v3994 = vpop.permute.xlu0 %3993
    %v3995 = vsel %vm98, %v3980, 0
    %v3997 = vsel %vm98, %v3982, 0
    %v3999 = vsel %vm98, %v3984, 0
    %v4001 = vsel %vm98, %v3986, 0
    %v4003 = vsel %vm98, %v3988, 0
    %v4005 = vsel %vm98, %v3990, 0
    %v4007 = vsel %vm98, %v3992, 0
    %v4009 = vsel %vm98, %v3994, 0
    %4011 = vmatprep.subr.mxu0 0.0
    %4012 = vmatpush1.msra.mxu0 %v3660
    %4013 = vmatprep.subr.mxu0 0.0
    %4014 = vmatpush1.msra.mxu0 0.0
    %4015 = vmatprep.subr.mxu0 0.0
    %4016 = vmatpush1.msra.mxu0 0.0
    %4017 = vmatprep.subr.mxu0 0.0
    %4018 = vmatpush1.msra.mxu0 0.0
    %4019 = vmatprep.subr.mxu0 0.0
    %4020 = vmatpush1.msra.mxu0 0.0
    %4021 = vmatprep.subr.mxu0 0.0
    %4022 = vmatpush1.msra.mxu0 0.0
    %4023 = vmatprep.subr.mxu0 0.0
    %4024 = vmatpush1.msra.mxu0 0.0
    %4025 = vmatprep.subr.mxu0 0.0
    %4026 = vmatpush1.msra.mxu0 0.0
    %4027 = vmatprep.subr.mxu0 0.0
    %4028 = vmatpush1.msra.mxu0 0.0
    %4029 = vmatprep.subr.mxu0 0.0
    %4030 = vmatpush1.msra.mxu0 0.0
    %4031 = vmatprep.subr.mxu0 0.0
    %4032 = vmatpush1.msra.mxu0 0.0
    %4033 = vmatprep.subr.mxu0 0.0
    %4034 = vmatpush1.msra.mxu0 0.0
    %4035 = vmatprep.subr.mxu0 0.0
    %4036 = vmatpush1.msra.mxu0 0.0
    %4037 = vmatprep.subr.mxu0 0.0
    %4038 = vmatpush1.msra.mxu0 0.0
    %4039 = vmatprep.subr.mxu0 0.0
    %4040 = vmatpush1.msra.mxu0 0.0
    %4041 = vmatprep.subr.mxu0 0.0
    %4042 = vmatpush1.msra.mxu0 0.0
    %4043 = vmatprep.subr.mxu0 0.0
    %4044 = vmatpush1.msra.mxu0 0.0
    %4045 = vmatprep.subr.mxu0 0.0
    %4046 = vmatpush1.msra.mxu0 0.0
    %4047 = vmatprep.subr.mxu0 0.0
    %4048 = vmatpush1.msra.mxu0 0.0
    %4049 = vmatprep.subr.mxu0 0.0
    %4050 = vmatpush1.msra.mxu0 0.0
    %4051 = vmatprep.subr.mxu0 0.0
    %4052 = vmatpush1.msra.mxu0 0.0
    %4053 = vmatprep.subr.mxu0 0.0
    %4054 = vmatpush1.msra.mxu0 0.0
    %4055 = vmatprep.subr.mxu0 0.0
    %4056 = vmatpush1.msra.mxu0 0.0
    %4057 = vmatprep.subr.mxu0 0.0
    %4058 = vmatpush1.msra.mxu0 0.0
    %4059 = vmatprep.subr.mxu0 0.0
    %4060 = vmatpush1.msra.mxu0 0.0
    %4061 = vmatprep.subr.mxu0 0.0
    %4062 = vmatpush1.msra.mxu0 0.0
    %4063 = vmatprep.subr.mxu0 0.0
    %4064 = vmatpush1.msra.mxu0 0.0
    %4065 = vmatprep.subr.mxu0 0.0
    %4066 = vmatpush1.msra.mxu0 0.0
    %4067 = vmatprep.subr.mxu0 0.0
    %4068 = vmatpush1.msra.mxu0 0.0
    %4069 = vmatprep.subr.mxu0 0.0
    %4070 = vmatpush1.msra.mxu0 0.0
    %4071 = vmatprep.subr.mxu0 0.0
    %4072 = vmatpush1.msra.mxu0 0.0
    %4073 = vmatprep.subr.mxu0 0.0
    %4074 = vmatpush1.msra.mxu0 0.0
    %4075 = vmatprep.mubr.f32.mxu0 0.0
    %4076 = vmatmul.mubr.f32.gmra.mrb[0].mxu0 %v3995
    %v4077 = vpop.f32.mrb[0].mxu0
    %v4078 = vadd.f32 0.0, %v4077
    %v4079 = vpop.f32.mrb[0].mxu0
    %4080 = vmatprep.mubr.f32.mxu0 0.0
    %4081 = vmatmul.mubr.f32.gmra.mrb[0].mxu0 %v3997
    %v4082 = vpop.f32.mrb[0].mxu0
    %v4083 = vadd.f32 0.0, %v4082
    %v4084 = vpop.f32.mrb[0].mxu0
    %4085 = vmatprep.mubr.f32.mxu0 0.0
    %4086 = vmatmul.mubr.f32.gmra.mrb[0].mxu0 %v3999
    %v4087 = vpop.f32.mrb[0].mxu0
    %v4088 = vadd.f32 0.0, %v4087
    %v4089 = vpop.f32.mrb[0].mxu0
    %4090 = vmatprep.mubr.f32.mxu0 0.0
    %4091 = vmatmul.mubr.f32.gmra.mrb[0].mxu0 %v4001
    %v4092 = vpop.f32.mrb[0].mxu0
    %v4093 = vadd.f32 0.0, %v4092
    %v4094 = vpop.f32.mrb[0].mxu0
    %4095 = vmatprep.mubr.f32.mxu0 0.0
    %4096 = vmatmul.mubr.f32.gmra.mrb[0].mxu0 %v4003
    %v4097 = vpop.f32.mrb[0].mxu0
    %v4098 = vadd.f32 0.0, %v4097
    %v4099 = vpop.f32.mrb[0].mxu0
    %4100 = vmatprep.mubr.f32.mxu0 0.0
    %4101 = vmatmul.mubr.f32.gmra.mrb[0].mxu0 %v4005
    %v4102 = vpop.f32.mrb[0].mxu0
    %v4103 = vadd.f32 0.0, %v4102
    %v4104 = vpop.f32.mrb[0].mxu0
    %4105 = vmatprep.mubr.f32.mxu0 0.0
    %4106 = vmatmul.mubr.f32.gmra.mrb[0].mxu0 %v4007
    %v4107 = vpop.f32.mrb[0].mxu0
    %v4108 = vadd.f32 0.0, %v4107
    %v4109 = vpop.f32.mrb[0].mxu0
    %4110 = vmatprep.mubr.f32.mxu0 0.0
    %4111 = vmatmul.mubr.f32.gmra.mrb[0].mxu0 %v4009
    %v4112 = vpop.f32.mrb[0].mxu0
    %v4113 = vadd.f32 0.0, %v4112
    %v4114 = vpop.f32.mrb[0].mxu0
    %4115 = vdwg.mxu0
    %v4116 = vadd.f32 %v3923, %v4078
    %v4117 = vadd.f32 %v3928, %v4083
    %v4118 = vadd.f32 %v3933, %v4088
    %v4119 = vadd.f32 %v3938, %v4093
    %v4120 = vadd.f32 %v3943, %v4098
    %v4121 = vadd.f32 %v3948, %v4103
    %v4122 = vadd.f32 %v3953, %v4108
    %v4123 = vadd.f32 %v3958, %v4113
    %v4124 = vlaneseq
    %v4125 = vshrl.u32 %v4124, 7
    %v4126 = vsub.s32 0, %v4125
    %v4127 = vrot.slane %v78, %v4126
    %v4128 = vmul.f32 %v4116, %v4127
    %v4129 = vmul.f32 %v4117, %v4127
    %v4130 = vmul.f32 %v4118, %v4127
    %v4131 = vmul.f32 %v4119, %v4127
    %v4132 = vmul.f32 %v4120, %v4127
    %v4133 = vmul.f32 %v4121, %v4127
    %v4134 = vmul.f32 %v4122, %v4127
    %v4135 = vmul.f32 %v4123, %v4127
    %v4136 = vlaneseq
    %v4137 = vshrl.u32 %v4136, 7
    %v4138 = vsub.s32 1, %v4137
    %v4139 = vrot.slane %v78, %v4138
    %v4140 = vadd.f32 %v4128, %v4139
    %v4141 = vadd.f32 %v4129, %v4139
    %v4142 = vadd.f32 %v4130, %v4139
    %v4143 = vadd.f32 %v4131, %v4139
    %v4144 = vadd.f32 %v4132, %v4139
    %v4145 = vadd.f32 %v4133, %v4139
    %v4146 = vadd.f32 %v4134, %v4139
    %v4147 = vadd.f32 %v4135, %v4139
    %v4148 = vmax.f32 %v4140, 0.0
    %v4149 = vmax.f32 %v4141, 0.0
    %v4150 = vmax.f32 %v4142, 0.0
    %v4151 = vmax.f32 %v4143, 0.0
    %v4152 = vmax.f32 %v4144, 0.0
    %v4153 = vmax.f32 %v4145, 0.0
    %v4154 = vmax.f32 %v4146, 0.0
    %v4155 = vmax.f32 %v4147, 0.0
    %4164 = vrot.lane.b32.xlu0 %v4148, 48
    %v4165 = vpop.permute.xlu0 %4164
    %4166 = vrot.lane.b32.xlu0 %v4149, 48
    %v4167 = vpop.permute.xlu0 %4166
    %4168 = vrot.lane.b32.xlu0 %v4150, 48
    %v4169 = vpop.permute.xlu0 %4168
    %4170 = vrot.lane.b32.xlu0 %v4151, 48
    %v4171 = vpop.permute.xlu0 %4170
    %4172 = vrot.lane.b32.xlu0 %v4152, 48
    %v4173 = vpop.permute.xlu0 %4172
    %4174 = vrot.lane.b32.xlu0 %v4153, 48
    %v4175 = vpop.permute.xlu0 %4174
    %4176 = vrot.lane.b32.xlu0 %v4154, 48
    %v4177 = vpop.permute.xlu0 %4176
    %4178 = vrot.lane.b32.xlu0 %v4155, 48
    %v4179 = vpop.permute.xlu0 %4178
    %v4188 = vsel %vm88, %v4165, 0.0
    %v4189 = vsel %vm89, %v4167, 0.0
    %v4190 = vsel %vm90, %v4169, 0.0
    %v4191 = vsel %vm91, %v4171, 0.0
    %v4192 = vsel %vm92, %v4173, 0.0
    %v4193 = vsel %vm93, %v4175, 0.0
    %v4194 = vsel %vm94, %v4177, 0.0
    %v4195 = vsel %vm95, %v4179, 0.0
    %s4196 = scalar_lea.vmem %s3, 72
    %v4197 = vld [vmem:[%s4196] sm:$0xff]
    %s4198 = scalar_lea.vmem %s3, 80
    %v4199 = vld [vmem:[%s4198] sm:$0xff]
    %s4200 = scalar_lea.vmem %s3, 88
    %v4201 = vld [vmem:[%s4200] sm:$0xff]
    %v4210 = vrot.slane %v4188, 7
    %v4211 = vrot.slane %v4189, 7
    %v4212 = vsel %vm258, %v4210, %v4211
    %v4213 = vrot.slane %v4190, 7
    %v4214 = vsel %vm258, %v4211, %v4213
    %v4215 = vrot.slane %v4191, 7
    %v4216 = vsel %vm258, %v4213, %v4215
    %v4217 = vrot.slane %v4192, 7
    %v4218 = vsel %vm258, %v4215, %v4217
    %v4219 = vrot.slane %v4193, 7
    %v4220 = vsel %vm258, %v4217, %v4219
    %v4221 = vrot.slane %v4194, 7
    %v4222 = vsel %vm258, %v4219, %v4221
    %v4223 = vrot.slane %v4195, 7
    %v4224 = vsel %vm258, %v4221, %v4223
    %4225 = vrot.lane.b32.xlu0 %v4210, 80
    %v4226 = vpop.permute.xlu0 %4225
    %4227 = vrot.lane.b32.xlu0 %v4212, 80
    %v4228 = vpop.permute.xlu0 %4227
    %4229 = vrot.lane.b32.xlu0 %v4214, 80
    %v4230 = vpop.permute.xlu0 %4229
    %4231 = vrot.lane.b32.xlu0 %v4216, 80
    %v4232 = vpop.permute.xlu0 %4231
    %4233 = vrot.lane.b32.xlu0 %v4218, 80
    %v4234 = vpop.permute.xlu0 %4233
    %4235 = vrot.lane.b32.xlu0 %v4220, 80
    %v4236 = vpop.permute.xlu0 %4235
    %4237 = vrot.lane.b32.xlu0 %v4222, 80
    %v4238 = vpop.permute.xlu0 %4237
    %4239 = vrot.lane.b32.xlu0 %v4224, 80
    %v4240 = vpop.permute.xlu0 %4239
    %v4242 = vsel %vm258, 0.0, %v4226
    %v4244 = vsel %vm98, %v4242, 0
    %v4246 = vsel %vm98, %v4228, 0
    %v4248 = vsel %vm98, %v4230, 0
    %v4250 = vsel %vm98, %v4232, 0
    %v4252 = vsel %vm98, %v4234, 0
    %v4254 = vsel %vm98, %v4236, 0
    %v4256 = vsel %vm98, %v4238, 0
    %v4258 = vsel %vm98, %v4240, 0
    %4260 = vmatprep.subr.mxu0 0.0
    %4261 = vmatpush1.msra.mxu0 %v4197
    %4262 = vmatprep.subr.mxu0 0.0
    %4263 = vmatpush1.msra.mxu0 0.0
    %4264 = vmatprep.subr.mxu0 0.0
    %4265 = vmatpush1.msra.mxu0 0.0
    %4266 = vmatprep.subr.mxu0 0.0
    %4267 = vmatpush1.msra.mxu0 0.0
    %4268 = vmatprep.subr.mxu0 0.0
    %4269 = vmatpush1.msra.mxu0 0.0
    %4270 = vmatprep.subr.mxu0 0.0
    %4271 = vmatpush1.msra.mxu0 0.0
    %4272 = vmatprep.subr.mxu0 0.0
    %4273 = vmatpush1.msra.mxu0 0.0
    %4274 = vmatprep.subr.mxu0 0.0
    %4275 = vmatpush1.msra.mxu0 0.0
    %4276 = vmatprep.subr.mxu0 0.0
    %4277 = vmatpush1.msra.mxu0 0.0
    %4278 = vmatprep.subr.mxu0 0.0
    %4279 = vmatpush1.msra.mxu0 0.0
    %4280 = vmatprep.subr.mxu0 0.0
    %4281 = vmatpush1.msra.mxu0 0.0
    %4282 = vmatprep.subr.mxu0 0.0
    %4283 = vmatpush1.msra.mxu0 0.0
    %4284 = vmatprep.subr.mxu0 0.0
    %4285 = vmatpush1.msra.mxu0 0.0
    %4286 = vmatprep.subr.mxu0 0.0
    %4287 = vmatpush1.msra.mxu0 0.0
    %4288 = vmatprep.subr.mxu0 0.0
    %4289 = vmatpush1.msra.mxu0 0.0
    %4290 = vmatprep.subr.mxu0 0.0
    %4291 = vmatpush1.msra.mxu0 0.0
    %4292 = vmatprep.subr.mxu0 0.0
    %4293 = vmatpush1.msra.mxu0 0.0
    %4294 = vmatprep.subr.mxu0 0.0
    %4295 = vmatpush1.msra.mxu0 0.0
    %4296 = vmatprep.subr.mxu0 0.0
    %4297 = vmatpush1.msra.mxu0 0.0
    %4298 = vmatprep.subr.mxu0 0.0
    %4299 = vmatpush1.msra.mxu0 0.0
    %4300 = vmatprep.subr.mxu0 0.0
    %4301 = vmatpush1.msra.mxu0 0.0
    %4302 = vmatprep.subr.mxu0 0.0
    %4303 = vmatpush1.msra.mxu0 0.0
    %4304 = vmatprep.subr.mxu0 0.0
    %4305 = vmatpush1.msra.mxu0 0.0
    %4306 = vmatprep.subr.mxu0 0.0
    %4307 = vmatpush1.msra.mxu0 0.0
    %4308 = vmatprep.subr.mxu0 0.0
    %4309 = vmatpush1.msra.mxu0 0.0
    %4310 = vmatprep.subr.mxu0 0.0
    %4311 = vmatpush1.msra.mxu0 0.0
    %4312 = vmatprep.subr.mxu0 0.0
    %4313 = vmatpush1.msra.mxu0 0.0
    %4314 = vmatprep.subr.mxu0 0.0
    %4315 = vmatpush1.msra.mxu0 0.0
    %4316 = vmatprep.subr.mxu0 0.0
    %4317 = vmatpush1.msra.mxu0 0.0
    %4318 = vmatprep.subr.mxu0 0.0
    %4319 = vmatpush1.msra.mxu0 0.0
    %4320 = vmatprep.subr.mxu0 0.0
    %4321 = vmatpush1.msra.mxu0 0.0
    %4322 = vmatprep.subr.mxu0 0.0
    %4323 = vmatpush1.msra.mxu0 0.0
    %4324 = vmatprep.mubr.f32.mxu0 0.0
    %4325 = vmatmul.mubr.f32.gmra.mrb[0].mxu0 %v4244
    %v4326 = vpop.f32.mrb[0].mxu0
    %v4327 = vadd.f32 0.0, %v4326
    %v4328 = vpop.f32.mrb[0].mxu0
    %4329 = vmatprep.mubr.f32.mxu0 0.0
    %4330 = vmatmul.mubr.f32.gmra.mrb[0].mxu0 %v4246
    %v4331 = vpop.f32.mrb[0].mxu0
    %v4332 = vadd.f32 0.0, %v4331
    %v4333 = vpop.f32.mrb[0].mxu0
    %4334 = vmatprep.mubr.f32.mxu0 0.0
    %4335 = vmatmul.mubr.f32.gmra.mrb[0].mxu0 %v4248
    %v4336 = vpop.f32.mrb[0].mxu0
    %v4337 = vadd.f32 0.0, %v4336
    %v4338 = vpop.f32.mrb[0].mxu0
    %4339 = vmatprep.mubr.f32.mxu0 0.0
    %4340 = vmatmul.mubr.f32.gmra.mrb[0].mxu0 %v4250
    %v4341 = vpop.f32.mrb[0].mxu0
    %v4342 = vadd.f32 0.0, %v4341
    %v4343 = vpop.f32.mrb[0].mxu0
    %4344 = vmatprep.mubr.f32.mxu0 0.0
    %4345 = vmatmul.mubr.f32.gmra.mrb[0].mxu0 %v4252
    %v4346 = vpop.f32.mrb[0].mxu0
    %v4347 = vadd.f32 0.0, %v4346
    %v4348 = vpop.f32.mrb[0].mxu0
    %4349 = vmatprep.mubr.f32.mxu0 0.0
    %4350 = vmatmul.mubr.f32.gmra.mrb[0].mxu0 %v4254
    %v4351 = vpop.f32.mrb[0].mxu0
    %v4352 = vadd.f32 0.0, %v4351
    %v4353 = vpop.f32.mrb[0].mxu0
    %4354 = vmatprep.mubr.f32.mxu0 0.0
    %4355 = vmatmul.mubr.f32.gmra.mrb[0].mxu0 %v4256
    %v4356 = vpop.f32.mrb[0].mxu0
    %v4357 = vadd.f32 0.0, %v4356
    %v4358 = vpop.f32.mrb[0].mxu0
    %4359 = vmatprep.mubr.f32.mxu0 0.0
    %4360 = vmatmul.mubr.f32.gmra.mrb[0].mxu0 %v4258
    %v4361 = vpop.f32.mrb[0].mxu0
    %v4362 = vadd.f32 0.0, %v4361
    %v4363 = vpop.f32.mrb[0].mxu0
    %4364 = vdwg.mxu0
    %4365 = vrot.lane.b32.xlu0 %v4188, 80
    %v4366 = vpop.permute.xlu0 %4365
    %4367 = vrot.lane.b32.xlu0 %v4189, 80
    %v4368 = vpop.permute.xlu0 %4367
    %4369 = vrot.lane.b32.xlu0 %v4190, 80
    %v4370 = vpop.permute.xlu0 %4369
    %4371 = vrot.lane.b32.xlu0 %v4191, 80
    %v4372 = vpop.permute.xlu0 %4371
    %4373 = vrot.lane.b32.xlu0 %v4192, 80
    %v4374 = vpop.permute.xlu0 %4373
    %4375 = vrot.lane.b32.xlu0 %v4193, 80
    %v4376 = vpop.permute.xlu0 %4375
    %4377 = vrot.lane.b32.xlu0 %v4194, 80
    %v4378 = vpop.permute.xlu0 %4377
    %4379 = vrot.lane.b32.xlu0 %v4195, 80
    %v4380 = vpop.permute.xlu0 %4379
    %v4381 = vsel %vm98, %v4366, 0
    %v4383 = vsel %vm98, %v4368, 0
    %v4385 = vsel %vm98, %v4370, 0
    %v4387 = vsel %vm98, %v4372, 0
    %v4389 = vsel %vm98, %v4374, 0
    %v4391 = vsel %vm98, %v4376, 0
    %v4393 = vsel %vm98, %v4378, 0
    %v4395 = vsel %vm98, %v4380, 0
    %4397 = vmatprep.subr.mxu0 0.0
    %4398 = vmatpush1.msra.mxu0 %v4199
    %4399 = vmatprep.subr.mxu0 0.0
    %4400 = vmatpush1.msra.mxu0 0.0
    %4401 = vmatprep.subr.mxu0 0.0
    %4402 = vmatpush1.msra.mxu0 0.0
    %4403 = vmatprep.subr.mxu0 0.0
    %4404 = vmatpush1.msra.mxu0 0.0
    %4405 = vmatprep.subr.mxu0 0.0
    %4406 = vmatpush1.msra.mxu0 0.0
    %4407 = vmatprep.subr.mxu0 0.0
    %4408 = vmatpush1.msra.mxu0 0.0
    %4409 = vmatprep.subr.mxu0 0.0
    %4410 = vmatpush1.msra.mxu0 0.0
    %4411 = vmatprep.subr.mxu0 0.0
    %4412 = vmatpush1.msra.mxu0 0.0
    %4413 = vmatprep.subr.mxu0 0.0
    %4414 = vmatpush1.msra.mxu0 0.0
    %4415 = vmatprep.subr.mxu0 0.0
    %4416 = vmatpush1.msra.mxu0 0.0
    %4417 = vmatprep.subr.mxu0 0.0
    %4418 = vmatpush1.msra.mxu0 0.0
    %4419 = vmatprep.subr.mxu0 0.0
    %4420 = vmatpush1.msra.mxu0 0.0
    %4421 = vmatprep.subr.mxu0 0.0
    %4422 = vmatpush1.msra.mxu0 0.0
    %4423 = vmatprep.subr.mxu0 0.0
    %4424 = vmatpush1.msra.mxu0 0.0
    %4425 = vmatprep.subr.mxu0 0.0
    %4426 = vmatpush1.msra.mxu0 0.0
    %4427 = vmatprep.subr.mxu0 0.0
    %4428 = vmatpush1.msra.mxu0 0.0
    %4429 = vmatprep.subr.mxu0 0.0
    %4430 = vmatpush1.msra.mxu0 0.0
    %4431 = vmatprep.subr.mxu0 0.0
    %4432 = vmatpush1.msra.mxu0 0.0
    %4433 = vmatprep.subr.mxu0 0.0
    %4434 = vmatpush1.msra.mxu0 0.0
    %4435 = vmatprep.subr.mxu0 0.0
    %4436 = vmatpush1.msra.mxu0 0.0
    %4437 = vmatprep.subr.mxu0 0.0
    %4438 = vmatpush1.msra.mxu0 0.0
    %4439 = vmatprep.subr.mxu0 0.0
    %4440 = vmatpush1.msra.mxu0 0.0
    %4441 = vmatprep.subr.mxu0 0.0
    %4442 = vmatpush1.msra.mxu0 0.0
    %4443 = vmatprep.subr.mxu0 0.0
    %4444 = vmatpush1.msra.mxu0 0.0
    %4445 = vmatprep.subr.mxu0 0.0
    %4446 = vmatpush1.msra.mxu0 0.0
    %4447 = vmatprep.subr.mxu0 0.0
    %4448 = vmatpush1.msra.mxu0 0.0
    %4449 = vmatprep.subr.mxu0 0.0
    %4450 = vmatpush1.msra.mxu0 0.0
    %4451 = vmatprep.subr.mxu0 0.0
    %4452 = vmatpush1.msra.mxu0 0.0
    %4453 = vmatprep.subr.mxu0 0.0
    %4454 = vmatpush1.msra.mxu0 0.0
    %4455 = vmatprep.subr.mxu0 0.0
    %4456 = vmatpush1.msra.mxu0 0.0
    %4457 = vmatprep.subr.mxu0 0.0
    %4458 = vmatpush1.msra.mxu0 0.0
    %4459 = vmatprep.subr.mxu0 0.0
    %4460 = vmatpush1.msra.mxu0 0.0
    %4461 = vmatprep.mubr.f32.mxu0 0.0
    %4462 = vmatmul.mubr.f32.gmra.mrb[0].mxu0 %v4381
    %v4463 = vpop.f32.mrb[0].mxu0
    %v4464 = vadd.f32 %v4327, %v4463
    %v4465 = vpop.f32.mrb[0].mxu0
    %4466 = vmatprep.mubr.f32.mxu0 0.0
    %4467 = vmatmul.mubr.f32.gmra.mrb[0].mxu0 %v4383
    %v4468 = vpop.f32.mrb[0].mxu0
    %v4469 = vadd.f32 %v4332, %v4468
    %v4470 = vpop.f32.mrb[0].mxu0
    %4471 = vmatprep.mubr.f32.mxu0 0.0
    %4472 = vmatmul.mubr.f32.gmra.mrb[0].mxu0 %v4385
    %v4473 = vpop.f32.mrb[0].mxu0
    %v4474 = vadd.f32 %v4337, %v4473
    %v4475 = vpop.f32.mrb[0].mxu0
    %4476 = vmatprep.mubr.f32.mxu0 0.0
    %4477 = vmatmul.mubr.f32.gmra.mrb[0].mxu0 %v4387
    %v4478 = vpop.f32.mrb[0].mxu0
    %v4479 = vadd.f32 %v4342, %v4478
    %v4480 = vpop.f32.mrb[0].mxu0
    %4481 = vmatprep.mubr.f32.mxu0 0.0
    %4482 = vmatmul.mubr.f32.gmra.mrb[0].mxu0 %v4389
    %v4483 = vpop.f32.mrb[0].mxu0
    %v4484 = vadd.f32 %v4347, %v4483
    %v4485 = vpop.f32.mrb[0].mxu0
    %4486 = vmatprep.mubr.f32.mxu0 0.0
    %4487 = vmatmul.mubr.f32.gmra.mrb[0].mxu0 %v4391
    %v4488 = vpop.f32.mrb[0].mxu0
    %v4489 = vadd.f32 %v4352, %v4488
    %v4490 = vpop.f32.mrb[0].mxu0
    %4491 = vmatprep.mubr.f32.mxu0 0.0
    %4492 = vmatmul.mubr.f32.gmra.mrb[0].mxu0 %v4393
    %v4493 = vpop.f32.mrb[0].mxu0
    %v4494 = vadd.f32 %v4357, %v4493
    %v4495 = vpop.f32.mrb[0].mxu0
    %4496 = vmatprep.mubr.f32.mxu0 0.0
    %4497 = vmatmul.mubr.f32.gmra.mrb[0].mxu0 %v4395
    %v4498 = vpop.f32.mrb[0].mxu0
    %v4499 = vadd.f32 %v4362, %v4498
    %v4500 = vpop.f32.mrb[0].mxu0
    %4501 = vdwg.mxu0
    %v4502 = vrot.slane %v4188, 1
    %v4503 = vrot.slane %v4189, 1
    %v4504 = vsel %vm488, %v4502, %v4503
    %v4505 = vrot.slane %v4190, 1
    %v4506 = vsel %vm488, %v4503, %v4505
    %v4507 = vrot.slane %v4191, 1
    %v4508 = vsel %vm488, %v4505, %v4507
    %v4509 = vrot.slane %v4192, 1
    %v4510 = vsel %vm488, %v4507, %v4509
    %v4511 = vrot.slane %v4193, 1
    %v4512 = vsel %vm488, %v4509, %v4511
    %v4513 = vrot.slane %v4194, 1
    %v4514 = vsel %vm488, %v4511, %v4513
    %v4515 = vrot.slane %v4195, 1
    %v4516 = vsel %vm488, %v4513, %v4515
    %v4518 = vsel %vm488, %v4515, 0.0
    %4520 = vrot.lane.b32.xlu0 %v4504, 80
    %v4521 = vpop.permute.xlu0 %4520
    %4522 = vrot.lane.b32.xlu0 %v4506, 80
    %v4523 = vpop.permute.xlu0 %4522
    %4524 = vrot.lane.b32.xlu0 %v4508, 80
    %v4525 = vpop.permute.xlu0 %4524
    %4526 = vrot.lane.b32.xlu0 %v4510, 80
    %v4527 = vpop.permute.xlu0 %4526
    %4528 = vrot.lane.b32.xlu0 %v4512, 80
    %v4529 = vpop.permute.xlu0 %4528
    %4530 = vrot.lane.b32.xlu0 %v4514, 80
    %v4531 = vpop.permute.xlu0 %4530
    %4532 = vrot.lane.b32.xlu0 %v4516, 80
    %v4533 = vpop.permute.xlu0 %4532
    %4534 = vrot.lane.b32.xlu0 %v4518, 80
    %v4535 = vpop.permute.xlu0 %4534
    %v4536 = vsel %vm98, %v4521, 0
    %v4538 = vsel %vm98, %v4523, 0
    %v4540 = vsel %vm98, %v4525, 0
    %v4542 = vsel %vm98, %v4527, 0
    %v4544 = vsel %vm98, %v4529, 0
    %v4546 = vsel %vm98, %v4531, 0
    %v4548 = vsel %vm98, %v4533, 0
    %v4550 = vsel %vm98, %v4535, 0
    %4552 = vmatprep.subr.mxu0 0.0
    %4553 = vmatpush1.msra.mxu0 %v4201
    %4554 = vmatprep.subr.mxu0 0.0
    %4555 = vmatpush1.msra.mxu0 0.0
    %4556 = vmatprep.subr.mxu0 0.0
    %4557 = vmatpush1.msra.mxu0 0.0
    %4558 = vmatprep.subr.mxu0 0.0
    %4559 = vmatpush1.msra.mxu0 0.0
    %4560 = vmatprep.subr.mxu0 0.0
    %4561 = vmatpush1.msra.mxu0 0.0
    %4562 = vmatprep.subr.mxu0 0.0
    %4563 = vmatpush1.msra.mxu0 0.0
    %4564 = vmatprep.subr.mxu0 0.0
    %4565 = vmatpush1.msra.mxu0 0.0
    %4566 = vmatprep.subr.mxu0 0.0
    %4567 = vmatpush1.msra.mxu0 0.0
    %4568 = vmatprep.subr.mxu0 0.0
    %4569 = vmatpush1.msra.mxu0 0.0
    %4570 = vmatprep.subr.mxu0 0.0
    %4571 = vmatpush1.msra.mxu0 0.0
    %4572 = vmatprep.subr.mxu0 0.0
    %4573 = vmatpush1.msra.mxu0 0.0
    %4574 = vmatprep.subr.mxu0 0.0
    %4575 = vmatpush1.msra.mxu0 0.0
    %4576 = vmatprep.subr.mxu0 0.0
    %4577 = vmatpush1.msra.mxu0 0.0
    %4578 = vmatprep.subr.mxu0 0.0
    %4579 = vmatpush1.msra.mxu0 0.0
    %4580 = vmatprep.subr.mxu0 0.0
    %4581 = vmatpush1.msra.mxu0 0.0
    %4582 = vmatprep.subr.mxu0 0.0
    %4583 = vmatpush1.msra.mxu0 0.0
    %4584 = vmatprep.subr.mxu0 0.0
    %4585 = vmatpush1.msra.mxu0 0.0
    %4586 = vmatprep.subr.mxu0 0.0
    %4587 = vmatpush1.msra.mxu0 0.0
    %4588 = vmatprep.subr.mxu0 0.0
    %4589 = vmatpush1.msra.mxu0 0.0
    %4590 = vmatprep.subr.mxu0 0.0
    %4591 = vmatpush1.msra.mxu0 0.0
    %4592 = vmatprep.subr.mxu0 0.0
    %4593 = vmatpush1.msra.mxu0 0.0
    %4594 = vmatprep.subr.mxu0 0.0
    %4595 = vmatpush1.msra.mxu0 0.0
    %4596 = vmatprep.subr.mxu0 0.0
    %4597 = vmatpush1.msra.mxu0 0.0
    %4598 = vmatprep.subr.mxu0 0.0
    %4599 = vmatpush1.msra.mxu0 0.0
    %4600 = vmatprep.subr.mxu0 0.0
    %4601 = vmatpush1.msra.mxu0 0.0
    %4602 = vmatprep.subr.mxu0 0.0
    %4603 = vmatpush1.msra.mxu0 0.0
    %4604 = vmatprep.subr.mxu0 0.0
    %4605 = vmatpush1.msra.mxu0 0.0
    %4606 = vmatprep.subr.mxu0 0.0
    %4607 = vmatpush1.msra.mxu0 0.0
    %4608 = vmatprep.subr.mxu0 0.0
    %4609 = vmatpush1.msra.mxu0 0.0
    %4610 = vmatprep.subr.mxu0 0.0
    %4611 = vmatpush1.msra.mxu0 0.0
    %4612 = vmatprep.subr.mxu0 0.0
    %4613 = vmatpush1.msra.mxu0 0.0
    %4614 = vmatprep.subr.mxu0 0.0
    %4615 = vmatpush1.msra.mxu0 0.0
    %4616 = vmatprep.mubr.f32.mxu0 0.0
    %4617 = vmatmul.mubr.f32.gmra.mrb[0].mxu0 %v4536
    %v4618 = vpop.f32.mrb[0].mxu0
    %v4619 = vadd.f32 0.0, %v4618
    %v4620 = vpop.f32.mrb[0].mxu0
    %4621 = vmatprep.mubr.f32.mxu0 0.0
    %4622 = vmatmul.mubr.f32.gmra.mrb[0].mxu0 %v4538
    %v4623 = vpop.f32.mrb[0].mxu0
    %v4624 = vadd.f32 0.0, %v4623
    %v4625 = vpop.f32.mrb[0].mxu0
    %4626 = vmatprep.mubr.f32.mxu0 0.0
    %4627 = vmatmul.mubr.f32.gmra.mrb[0].mxu0 %v4540
    %v4628 = vpop.f32.mrb[0].mxu0
    %v4629 = vadd.f32 0.0, %v4628
    %v4630 = vpop.f32.mrb[0].mxu0
    %4631 = vmatprep.mubr.f32.mxu0 0.0
    %4632 = vmatmul.mubr.f32.gmra.mrb[0].mxu0 %v4542
    %v4633 = vpop.f32.mrb[0].mxu0
    %v4634 = vadd.f32 0.0, %v4633
    %v4635 = vpop.f32.mrb[0].mxu0
    %4636 = vmatprep.mubr.f32.mxu0 0.0
    %4637 = vmatmul.mubr.f32.gmra.mrb[0].mxu0 %v4544
    %v4638 = vpop.f32.mrb[0].mxu0
    %v4639 = vadd.f32 0.0, %v4638
    %v4640 = vpop.f32.mrb[0].mxu0
    %4641 = vmatprep.mubr.f32.mxu0 0.0
    %4642 = vmatmul.mubr.f32.gmra.mrb[0].mxu0 %v4546
    %v4643 = vpop.f32.mrb[0].mxu0
    %v4644 = vadd.f32 0.0, %v4643
    %v4645 = vpop.f32.mrb[0].mxu0
    %4646 = vmatprep.mubr.f32.mxu0 0.0
    %4647 = vmatmul.mubr.f32.gmra.mrb[0].mxu0 %v4548
    %v4648 = vpop.f32.mrb[0].mxu0
    %v4649 = vadd.f32 0.0, %v4648
    %v4650 = vpop.f32.mrb[0].mxu0
    %4651 = vmatprep.mubr.f32.mxu0 0.0
    %4652 = vmatmul.mubr.f32.gmra.mrb[0].mxu0 %v4550
    %v4653 = vpop.f32.mrb[0].mxu0
    %v4654 = vadd.f32 0.0, %v4653
    %v4655 = vpop.f32.mrb[0].mxu0
    %4656 = vdwg.mxu0
    %v4657 = vadd.f32 %v4464, %v4619
    %v4658 = vadd.f32 %v4469, %v4624
    %v4659 = vadd.f32 %v4474, %v4629
    %v4660 = vadd.f32 %v4479, %v4634
    %v4661 = vadd.f32 %v4484, %v4639
    %v4662 = vadd.f32 %v4489, %v4644
    %v4663 = vadd.f32 %v4494, %v4649
    %v4664 = vadd.f32 %v4499, %v4654
    %v4665 = vlaneseq
    %v4666 = vshrl.u32 %v4665, 7
    %v4667 = vsub.s32 2, %v4666
    %v4668 = vrot.slane %v78, %v4667
    %v4669 = vmul.f32 %v4657, %v4668
    %v4670 = vmul.f32 %v4658, %v4668
    %v4671 = vmul.f32 %v4659, %v4668
    %v4672 = vmul.f32 %v4660, %v4668
    %v4673 = vmul.f32 %v4661, %v4668
    %v4674 = vmul.f32 %v4662, %v4668
    %v4675 = vmul.f32 %v4663, %v4668
    %v4676 = vmul.f32 %v4664, %v4668
    %v4677 = vlaneseq
    %v4678 = vshrl.u32 %v4677, 7
    %v4679 = vsub.s32 3, %v4678
    %v4680 = vrot.slane %v78, %v4679
    %v4681 = vadd.f32 %v4669, %v4680
    %v4682 = vadd.f32 %v4670, %v4680
    %v4683 = vadd.f32 %v4671, %v4680
    %v4684 = vadd.f32 %v4672, %v4680
    %v4685 = vadd.f32 %v4673, %v4680
    %v4686 = vadd.f32 %v4674, %v4680
    %v4687 = vadd.f32 %v4675, %v4680
    %v4688 = vadd.f32 %v4676, %v4680
    %v4697 = vadd.f32 %v4681, %v3825
    %v4698 = vadd.f32 %v4682, %v3827
    %v4699 = vadd.f32 %v4683, %v3829
    %v4700 = vadd.f32 %v4684, %v3831
    %v4701 = vadd.f32 %v4685, %v3833
    %v4702 = vadd.f32 %v4686, %v3835
    %v4703 = vadd.f32 %v4687, %v3837
    %v4704 = vadd.f32 %v4688, %v3839
    %v4705 = vmax.f32 %v4697, 0.0
    %v4706 = vmax.f32 %v4698, 0.0
    %v4707 = vmax.f32 %v4699, 0.0
    %v4708 = vmax.f32 %v4700, 0.0
    %v4709 = vmax.f32 %v4701, 0.0
    %v4710 = vmax.f32 %v4702, 0.0
    %v4711 = vmax.f32 %v4703, 0.0
    %v4712 = vmax.f32 %v4704, 0.0
    %4721 = vrot.lane.b32.xlu0 %v4705, 48
    %v4722 = vpop.permute.xlu0 %4721
    %4723 = vrot.lane.b32.xlu0 %v4706, 48
    %v4724 = vpop.permute.xlu0 %4723
    %4725 = vrot.lane.b32.xlu0 %v4707, 48
    %v4726 = vpop.permute.xlu0 %4725
    %4727 = vrot.lane.b32.xlu0 %v4708, 48
    %v4728 = vpop.permute.xlu0 %4727
    %4729 = vrot.lane.b32.xlu0 %v4709, 48
    %v4730 = vpop.permute.xlu0 %4729
    %4731 = vrot.lane.b32.xlu0 %v4710, 48
    %v4732 = vpop.permute.xlu0 %4731
    %4733 = vrot.lane.b32.xlu0 %v4711, 48
    %v4734 = vpop.permute.xlu0 %4733
    %4735 = vrot.lane.b32.xlu0 %v4712, 48
    %v4736 = vpop.permute.xlu0 %4735
    %v4745 = vsel %vm88, %v4722, 0.0
    %v4746 = vsel %vm89, %v4724, 0.0
    %v4747 = vsel %vm90, %v4726, 0.0
    %v4748 = vsel %vm91, %v4728, 0.0
    %v4749 = vsel %vm92, %v4730, 0.0
    %v4750 = vsel %vm93, %v4732, 0.0
    %v4751 = vsel %vm94, %v4734, 0.0
    %v4752 = vsel %vm95, %v4736, 0.0
    %v4753 = vld [vmem:[#allocation5] sm:$0xff]
    %v4762 = vrot.slane %v4745, 1
    %v4763 = vrot.slane %v4746, 1
    %v4764 = vsel %vm488, %v4762, %v4763
    %v4765 = vrot.slane %v4747, 1
    %v4766 = vsel %vm488, %v4763, %v4765
    %v4767 = vrot.slane %v4748, 1
    %v4768 = vsel %vm488, %v4765, %v4767
    %v4769 = vrot.slane %v4749, 1
    %v4770 = vsel %vm488, %v4767, %v4769
    %v4771 = vrot.slane %v4750, 1
    %v4772 = vsel %vm488, %v4769, %v4771
    %v4773 = vrot.slane %v4751, 1
    %v4774 = vsel %vm488, %v4771, %v4773
    %v4775 = vrot.slane %v4752, 1
    %v4776 = vsel %vm488, %v4773, %v4775
    %v4778 = vsel %vm488, %v4775, 0.0
    %s4779 = scalar_lea.vmem [#allocation5], 8
    %v4780 = vld [vmem:[%s4779] sm:$0xff]
    %4782 = vrot.lane.b32.xlu0 %v4764, 80
    %v4783 = vpop.permute.xlu0 %4782
    %4784 = vrot.lane.b32.xlu0 %v4766, 80
    %v4785 = vpop.permute.xlu0 %4784
    %4786 = vrot.lane.b32.xlu0 %v4768, 80
    %v4787 = vpop.permute.xlu0 %4786
    %4788 = vrot.lane.b32.xlu0 %v4770, 80
    %v4789 = vpop.permute.xlu0 %4788
    %4790 = vrot.lane.b32.xlu0 %v4772, 80
    %v4791 = vpop.permute.xlu0 %4790
    %4792 = vrot.lane.b32.xlu0 %v4774, 80
    %v4793 = vpop.permute.xlu0 %4792
    %4794 = vrot.lane.b32.xlu0 %v4776, 80
    %v4795 = vpop.permute.xlu0 %4794
    %4796 = vrot.lane.b32.xlu0 %v4778, 80
    %v4797 = vpop.permute.xlu0 %4796
    %v4798 = vsel %vm98, %v4783, 0
    %v4800 = vsel %vm98, %v4785, 0
    %v4802 = vsel %vm98, %v4787, 0
    %v4804 = vsel %vm98, %v4789, 0
    %v4806 = vsel %vm98, %v4791, 0
    %v4808 = vsel %vm98, %v4793, 0
    %v4810 = vsel %vm98, %v4795, 0
    %v4812 = vsel %vm98, %v4797, 0
    %4814 = vmatprep.subr.mxu0 0.0
    %4815 = vmatpush1.msra.mxu0 %v4780
    %4816 = vmatprep.subr.mxu0 0.0
    %4817 = vmatpush1.msra.mxu0 0.0
    %4818 = vmatprep.subr.mxu0 0.0
    %4819 = vmatpush1.msra.mxu0 0.0
    %4820 = vmatprep.subr.mxu0 0.0
    %4821 = vmatpush1.msra.mxu0 0.0
    %4822 = vmatprep.subr.mxu0 0.0
    %4823 = vmatpush1.msra.mxu0 0.0
    %4824 = vmatprep.subr.mxu0 0.0
    %4825 = vmatpush1.msra.mxu0 0.0
    %4826 = vmatprep.subr.mxu0 0.0
    %4827 = vmatpush1.msra.mxu0 0.0
    %4828 = vmatprep.subr.mxu0 0.0
    %4829 = vmatpush1.msra.mxu0 0.0
    %4830 = vmatprep.subr.mxu0 0.0
    %4831 = vmatpush1.msra.mxu0 0.0
    %4832 = vmatprep.subr.mxu0 0.0
    %4833 = vmatpush1.msra.mxu0 0.0
    %4834 = vmatprep.subr.mxu0 0.0
    %4835 = vmatpush1.msra.mxu0 0.0
    %4836 = vmatprep.subr.mxu0 0.0
    %4837 = vmatpush1.msra.mxu0 0.0
    %4838 = vmatprep.subr.mxu0 0.0
    %4839 = vmatpush1.msra.mxu0 0.0
    %4840 = vmatprep.subr.mxu0 0.0
    %4841 = vmatpush1.msra.mxu0 0.0
    %4842 = vmatprep.subr.mxu0 0.0
    %4843 = vmatpush1.msra.mxu0 0.0
    %4844 = vmatprep.subr.mxu0 0.0
    %4845 = vmatpush1.msra.mxu0 0.0
    %4846 = vmatprep.subr.mxu0 0.0
    %4847 = vmatpush1.msra.mxu0 0.0
    %4848 = vmatprep.subr.mxu0 0.0
    %4849 = vmatpush1.msra.mxu0 0.0
    %4850 = vmatprep.subr.mxu0 0.0
    %4851 = vmatpush1.msra.mxu0 0.0
    %4852 = vmatprep.subr.mxu0 0.0
    %4853 = vmatpush1.msra.mxu0 0.0
    %4854 = vmatprep.subr.mxu0 0.0
    %4855 = vmatpush1.msra.mxu0 0.0
    %4856 = vmatprep.subr.mxu0 0.0
    %4857 = vmatpush1.msra.mxu0 0.0
    %4858 = vmatprep.subr.mxu0 0.0
    %4859 = vmatpush1.msra.mxu0 0.0
    %4860 = vmatprep.subr.mxu0 0.0
    %4861 = vmatpush1.msra.mxu0 0.0
    %4862 = vmatprep.subr.mxu0 0.0
    %4863 = vmatpush1.msra.mxu0 0.0
    %4864 = vmatprep.subr.mxu0 0.0
    %4865 = vmatpush1.msra.mxu0 0.0
    %4866 = vmatprep.subr.mxu0 0.0
    %4867 = vmatpush1.msra.mxu0 0.0
    %4868 = vmatprep.subr.mxu0 0.0
    %4869 = vmatpush1.msra.mxu0 0.0
    %4870 = vmatprep.subr.mxu0 0.0
    %4871 = vmatpush1.msra.mxu0 0.0
    %4872 = vmatprep.subr.mxu0 0.0
    %4873 = vmatpush1.msra.mxu0 0.0
    %4874 = vmatprep.subr.mxu0 0.0
    %4875 = vmatpush1.msra.mxu0 0.0
    %4876 = vmatprep.subr.mxu0 0.0
    %4877 = vmatpush1.msra.mxu0 0.0
    %4878 = vmatprep.mubr.f32.mxu0 0.0
    %4879 = vmatmul.mubr.f32.gmra.mrb[0].mxu0 %v4798
    %v4880 = vpop.f32.mrb[0].mxu0
    %v4881 = vadd.f32 0.0, %v4880
    %v4882 = vpop.f32.mrb[0].mxu0
    %4883 = vmatprep.mubr.f32.mxu0 0.0
    %4884 = vmatmul.mubr.f32.gmra.mrb[0].mxu0 %v4800
    %v4885 = vpop.f32.mrb[0].mxu0
    %v4886 = vadd.f32 0.0, %v4885
    %v4887 = vpop.f32.mrb[0].mxu0
    %4888 = vmatprep.mubr.f32.mxu0 0.0
    %4889 = vmatmul.mubr.f32.gmra.mrb[0].mxu0 %v4802
    %v4890 = vpop.f32.mrb[0].mxu0
    %v4891 = vadd.f32 0.0, %v4890
    %v4892 = vpop.f32.mrb[0].mxu0
    %4893 = vmatprep.mubr.f32.mxu0 0.0
    %4894 = vmatmul.mubr.f32.gmra.mrb[0].mxu0 %v4804
    %v4895 = vpop.f32.mrb[0].mxu0
    %v4896 = vadd.f32 0.0, %v4895
    %v4897 = vpop.f32.mrb[0].mxu0
    %4898 = vmatprep.mubr.f32.mxu0 0.0
    %4899 = vmatmul.mubr.f32.gmra.mrb[0].mxu0 %v4806
    %v4900 = vpop.f32.mrb[0].mxu0
    %v4901 = vadd.f32 0.0, %v4900
    %v4902 = vpop.f32.mrb[0].mxu0
    %4903 = vmatprep.mubr.f32.mxu0 0.0
    %4904 = vmatmul.mubr.f32.gmra.mrb[0].mxu0 %v4808
    %v4905 = vpop.f32.mrb[0].mxu0
    %v4906 = vadd.f32 0.0, %v4905
    %v4907 = vpop.f32.mrb[0].mxu0
    %4908 = vmatprep.mubr.f32.mxu0 0.0
    %4909 = vmatmul.mubr.f32.gmra.mrb[0].mxu0 %v4810
    %v4910 = vpop.f32.mrb[0].mxu0
    %v4911 = vadd.f32 0.0, %v4910
    %v4912 = vpop.f32.mrb[0].mxu0
    %4913 = vmatprep.mubr.f32.mxu0 0.0
    %4914 = vmatmul.mubr.f32.gmra.mrb[0].mxu0 %v4812
    %v4915 = vpop.f32.mrb[0].mxu0
    %v4916 = vadd.f32 0.0, %v4915
    %v4917 = vpop.f32.mrb[0].mxu0
    %4918 = vdwg.mxu0
    %4919 = vrot.lane.b32.xlu0 %v4745, 80
    %v4920 = vpop.permute.xlu0 %4919
    %4921 = vrot.lane.b32.xlu0 %v4746, 80
    %v4922 = vpop.permute.xlu0 %4921
    %4923 = vrot.lane.b32.xlu0 %v4747, 80
    %v4924 = vpop.permute.xlu0 %4923
    %4925 = vrot.lane.b32.xlu0 %v4748, 80
    %v4926 = vpop.permute.xlu0 %4925
    %4927 = vrot.lane.b32.xlu0 %v4749, 80
    %v4928 = vpop.permute.xlu0 %4927
    %4929 = vrot.lane.b32.xlu0 %v4750, 80
    %v4930 = vpop.permute.xlu0 %4929
    %4931 = vrot.lane.b32.xlu0 %v4751, 80
    %v4932 = vpop.permute.xlu0 %4931
    %4933 = vrot.lane.b32.xlu0 %v4752, 80
    %v4934 = vpop.permute.xlu0 %4933
    %v4935 = vsel %vm98, %v4920, 0
    %v4937 = vsel %vm98, %v4922, 0
    %v4939 = vsel %vm98, %v4924, 0
    %v4941 = vsel %vm98, %v4926, 0
    %v4943 = vsel %vm98, %v4928, 0
    %v4945 = vsel %vm98, %v4930, 0
    %v4947 = vsel %vm98, %v4932, 0
    %v4949 = vsel %vm98, %v4934, 0
    %4951 = vmatprep.subr.mxu0 0.0
    %4952 = vmatpush1.msra.mxu0 %v4753
    %4953 = vmatprep.subr.mxu0 0.0
    %4954 = vmatpush1.msra.mxu0 0.0
    %4955 = vmatprep.subr.mxu0 0.0
    %4956 = vmatpush1.msra.mxu0 0.0
    %4957 = vmatprep.subr.mxu0 0.0
    %4958 = vmatpush1.msra.mxu0 0.0
    %4959 = vmatprep.subr.mxu0 0.0
    %4960 = vmatpush1.msra.mxu0 0.0
    %4961 = vmatprep.subr.mxu0 0.0
    %4962 = vmatpush1.msra.mxu0 0.0
    %4963 = vmatprep.subr.mxu0 0.0
    %4964 = vmatpush1.msra.mxu0 0.0
    %4965 = vmatprep.subr.mxu0 0.0
    %4966 = vmatpush1.msra.mxu0 0.0
    %4967 = vmatprep.subr.mxu0 0.0
    %4968 = vmatpush1.msra.mxu0 0.0
    %4969 = vmatprep.subr.mxu0 0.0
    %4970 = vmatpush1.msra.mxu0 0.0
    %4971 = vmatprep.subr.mxu0 0.0
    %4972 = vmatpush1.msra.mxu0 0.0
    %4973 = vmatprep.subr.mxu0 0.0
    %4974 = vmatpush1.msra.mxu0 0.0
    %4975 = vmatprep.subr.mxu0 0.0
    %4976 = vmatpush1.msra.mxu0 0.0
    %4977 = vmatprep.subr.mxu0 0.0
    %4978 = vmatpush1.msra.mxu0 0.0
    %4979 = vmatprep.subr.mxu0 0.0
    %4980 = vmatpush1.msra.mxu0 0.0
    %4981 = vmatprep.subr.mxu0 0.0
    %4982 = vmatpush1.msra.mxu0 0.0
    %4983 = vmatprep.subr.mxu0 0.0
    %4984 = vmatpush1.msra.mxu0 0.0
    %4985 = vmatprep.subr.mxu0 0.0
    %4986 = vmatpush1.msra.mxu0 0.0
    %4987 = vmatprep.subr.mxu0 0.0
    %4988 = vmatpush1.msra.mxu0 0.0
    %4989 = vmatprep.subr.mxu0 0.0
    %4990 = vmatpush1.msra.mxu0 0.0
    %4991 = vmatprep.subr.mxu0 0.0
    %4992 = vmatpush1.msra.mxu0 0.0
    %4993 = vmatprep.subr.mxu0 0.0
    %4994 = vmatpush1.msra.mxu0 0.0
    %4995 = vmatprep.subr.mxu0 0.0
    %4996 = vmatpush1.msra.mxu0 0.0
    %4997 = vmatprep.subr.mxu0 0.0
    %4998 = vmatpush1.msra.mxu0 0.0
    %4999 = vmatprep.subr.mxu0 0.0
    %5000 = vmatpush1.msra.mxu0 0.0
    %5001 = vmatprep.subr.mxu0 0.0
    %5002 = vmatpush1.msra.mxu0 0.0
    %5003 = vmatprep.subr.mxu0 0.0
    %5004 = vmatpush1.msra.mxu0 0.0
    %5005 = vmatprep.subr.mxu0 0.0
    %5006 = vmatpush1.msra.mxu0 0.0
    %5007 = vmatprep.subr.mxu0 0.0
    %5008 = vmatpush1.msra.mxu0 0.0
    %5009 = vmatprep.subr.mxu0 0.0
    %5010 = vmatpush1.msra.mxu0 0.0
    %5011 = vmatprep.subr.mxu0 0.0
    %5012 = vmatpush1.msra.mxu0 0.0
    %5013 = vmatprep.subr.mxu0 0.0
    %5014 = vmatpush1.msra.mxu0 0.0
    %5015 = vmatprep.mubr.f32.mxu0 0.0
    %5016 = vmatmul.mubr.f32.gmra.mrb[0].mxu0 %v4935
    %v5017 = vpop.f32.mrb[0].mxu0
    %v5018 = vadd.f32 %v4881, %v5017
    %v5019 = vpop.f32.mrb[0].mxu0
    %5020 = vmatprep.mubr.f32.mxu0 0.0
    %5021 = vmatmul.mubr.f32.gmra.mrb[0].mxu0 %v4937
    %v5022 = vpop.f32.mrb[0].mxu0
    %v5023 = vadd.f32 %v4886, %v5022
    %v5024 = vpop.f32.mrb[0].mxu0
    %5025 = vmatprep.mubr.f32.mxu0 0.0
    %5026 = vmatmul.mubr.f32.gmra.mrb[0].mxu0 %v4939
    %v5027 = vpop.f32.mrb[0].mxu0
    %v5028 = vadd.f32 %v4891, %v5027
    %v5029 = vpop.f32.mrb[0].mxu0
    %5030 = vmatprep.mubr.f32.mxu0 0.0
    %5031 = vmatmul.mubr.f32.gmra.mrb[0].mxu0 %v4941
    %v5032 = vpop.f32.mrb[0].mxu0
    %v5033 = vadd.f32 %v4896, %v5032
    %v5034 = vpop.f32.mrb[0].mxu0
    %5035 = vmatprep.mubr.f32.mxu0 0.0
    %5036 = vmatmul.mubr.f32.gmra.mrb[0].mxu0 %v4943
    %v5037 = vpop.f32.mrb[0].mxu0
    %v5038 = vadd.f32 %v4901, %v5037
    %v5039 = vpop.f32.mrb[0].mxu0
    %5040 = vmatprep.mubr.f32.mxu0 0.0
    %5041 = vmatmul.mubr.f32.gmra.mrb[0].mxu0 %v4945
    %v5042 = vpop.f32.mrb[0].mxu0
    %v5043 = vadd.f32 %v4906, %v5042
    %v5044 = vpop.f32.mrb[0].mxu0
    %5045 = vmatprep.mubr.f32.mxu0 0.0
    %5046 = vmatmul.mubr.f32.gmra.mrb[0].mxu0 %v4947
    %v5047 = vpop.f32.mrb[0].mxu0
    %v5048 = vadd.f32 %v4911, %v5047
    %v5049 = vpop.f32.mrb[0].mxu0
    %5050 = vmatprep.mubr.f32.mxu0 0.0
    %5051 = vmatmul.mubr.f32.gmra.mrb[0].mxu0 %v4949
    %v5052 = vpop.f32.mrb[0].mxu0
    %v5053 = vadd.f32 %v4916, %v5052
    %v5054 = vpop.f32.mrb[0].mxu0
    %5055 = vdwg.mxu0
    %vm5056 = vcmask 1045504
    %v5057 = vrot.slane %v4745, 2
    %v5058 = vrot.slane %v4746, 2
    %v5059 = vsel %vm5056, %v5057, %v5058
    %v5060 = vrot.slane %v4747, 2
    %v5061 = vsel %vm5056, %v5058, %v5060
    %v5062 = vrot.slane %v4748, 2
    %v5063 = vsel %vm5056, %v5060, %v5062
    %v5064 = vrot.slane %v4749, 2
    %v5065 = vsel %vm5056, %v5062, %v5064
    %v5066 = vrot.slane %v4750, 2
    %v5067 = vsel %vm5056, %v5064, %v5066
    %v5068 = vrot.slane %v4751, 2
    %v5069 = vsel %vm5056, %v5066, %v5068
    %v5070 = vrot.slane %v4752, 2
    %v5071 = vsel %vm5056, %v5068, %v5070
    %v5073 = vsel %vm5056, %v5070, 0.0
    %s5074 = scalar_lea.vmem [#allocation5], 16
    %v5075 = vld [vmem:[%s5074] sm:$0xff]
    %5077 = vrot.lane.b32.xlu0 %v5059, 80
    %v5078 = vpop.permute.xlu0 %5077
    %5079 = vrot.lane.b32.xlu0 %v5061, 80
    %v5080 = vpop.permute.xlu0 %5079
    %5081 = vrot.lane.b32.xlu0 %v5063, 80
    %v5082 = vpop.permute.xlu0 %5081
    %5083 = vrot.lane.b32.xlu0 %v5065, 80
    %v5084 = vpop.permute.xlu0 %5083
    %5085 = vrot.lane.b32.xlu0 %v5067, 80
    %v5086 = vpop.permute.xlu0 %5085
    %5087 = vrot.lane.b32.xlu0 %v5069, 80
    %v5088 = vpop.permute.xlu0 %5087
    %5089 = vrot.lane.b32.xlu0 %v5071, 80
    %v5090 = vpop.permute.xlu0 %5089
    %5091 = vrot.lane.b32.xlu0 %v5073, 80
    %v5092 = vpop.permute.xlu0 %5091
    %v5093 = vsel %vm98, %v5078, 0
    %v5095 = vsel %vm98, %v5080, 0
    %v5097 = vsel %vm98, %v5082, 0
    %v5099 = vsel %vm98, %v5084, 0
    %v5101 = vsel %vm98, %v5086, 0
    %v5103 = vsel %vm98, %v5088, 0
    %v5105 = vsel %vm98, %v5090, 0
    %v5107 = vsel %vm98, %v5092, 0
    %5109 = vmatprep.subr.mxu0 0.0
    %5110 = vmatpush1.msra.mxu0 %v5075
    %5111 = vmatprep.subr.mxu0 0.0
    %5112 = vmatpush1.msra.mxu0 0.0
    %5113 = vmatprep.subr.mxu0 0.0
    %5114 = vmatpush1.msra.mxu0 0.0
    %5115 = vmatprep.subr.mxu0 0.0
    %5116 = vmatpush1.msra.mxu0 0.0
    %5117 = vmatprep.subr.mxu0 0.0
    %5118 = vmatpush1.msra.mxu0 0.0
    %5119 = vmatprep.subr.mxu0 0.0
    %5120 = vmatpush1.msra.mxu0 0.0
    %5121 = vmatprep.subr.mxu0 0.0
    %5122 = vmatpush1.msra.mxu0 0.0
    %5123 = vmatprep.subr.mxu0 0.0
    %5124 = vmatpush1.msra.mxu0 0.0
    %5125 = vmatprep.subr.mxu0 0.0
    %5126 = vmatpush1.msra.mxu0 0.0
    %5127 = vmatprep.subr.mxu0 0.0
    %5128 = vmatpush1.msra.mxu0 0.0
    %5129 = vmatprep.subr.mxu0 0.0
    %5130 = vmatpush1.msra.mxu0 0.0
    %5131 = vmatprep.subr.mxu0 0.0
    %5132 = vmatpush1.msra.mxu0 0.0
    %5133 = vmatprep.subr.mxu0 0.0
    %5134 = vmatpush1.msra.mxu0 0.0
    %5135 = vmatprep.subr.mxu0 0.0
    %5136 = vmatpush1.msra.mxu0 0.0
    %5137 = vmatprep.subr.mxu0 0.0
    %5138 = vmatpush1.msra.mxu0 0.0
    %5139 = vmatprep.subr.mxu0 0.0
    %5140 = vmatpush1.msra.mxu0 0.0
    %5141 = vmatprep.subr.mxu0 0.0
    %5142 = vmatpush1.msra.mxu0 0.0
    %5143 = vmatprep.subr.mxu0 0.0
    %5144 = vmatpush1.msra.mxu0 0.0
    %5145 = vmatprep.subr.mxu0 0.0
    %5146 = vmatpush1.msra.mxu0 0.0
    %5147 = vmatprep.subr.mxu0 0.0
    %5148 = vmatpush1.msra.mxu0 0.0
    %5149 = vmatprep.subr.mxu0 0.0
    %5150 = vmatpush1.msra.mxu0 0.0
    %5151 = vmatprep.subr.mxu0 0.0
    %5152 = vmatpush1.msra.mxu0 0.0
    %5153 = vmatprep.subr.mxu0 0.0
    %5154 = vmatpush1.msra.mxu0 0.0
    %5155 = vmatprep.subr.mxu0 0.0
    %5156 = vmatpush1.msra.mxu0 0.0
    %5157 = vmatprep.subr.mxu0 0.0
    %5158 = vmatpush1.msra.mxu0 0.0
    %5159 = vmatprep.subr.mxu0 0.0
    %5160 = vmatpush1.msra.mxu0 0.0
    %5161 = vmatprep.subr.mxu0 0.0
    %5162 = vmatpush1.msra.mxu0 0.0
    %5163 = vmatprep.subr.mxu0 0.0
    %5164 = vmatpush1.msra.mxu0 0.0
    %5165 = vmatprep.subr.mxu0 0.0
    %5166 = vmatpush1.msra.mxu0 0.0
    %5167 = vmatprep.subr.mxu0 0.0
    %5168 = vmatpush1.msra.mxu0 0.0
    %5169 = vmatprep.subr.mxu0 0.0
    %5170 = vmatpush1.msra.mxu0 0.0
    %5171 = vmatprep.subr.mxu0 0.0
    %5172 = vmatpush1.msra.mxu0 0.0
    %5173 = vmatprep.mubr.f32.mxu0 0.0
    %5174 = vmatmul.mubr.f32.gmra.mrb[0].mxu0 %v5093
    %v5175 = vpop.f32.mrb[0].mxu0
    %v5176 = vadd.f32 0.0, %v5175
    %v5177 = vpop.f32.mrb[0].mxu0
    %5178 = vmatprep.mubr.f32.mxu0 0.0
    %5179 = vmatmul.mubr.f32.gmra.mrb[0].mxu0 %v5095
    %v5180 = vpop.f32.mrb[0].mxu0
    %v5181 = vadd.f32 0.0, %v5180
    %v5182 = vpop.f32.mrb[0].mxu0
    %5183 = vmatprep.mubr.f32.mxu0 0.0
    %5184 = vmatmul.mubr.f32.gmra.mrb[0].mxu0 %v5097
    %v5185 = vpop.f32.mrb[0].mxu0
    %v5186 = vadd.f32 0.0, %v5185
    %v5187 = vpop.f32.mrb[0].mxu0
    %5188 = vmatprep.mubr.f32.mxu0 0.0
    %5189 = vmatmul.mubr.f32.gmra.mrb[0].mxu0 %v5099
    %v5190 = vpop.f32.mrb[0].mxu0
    %v5191 = vadd.f32 0.0, %v5190
    %v5192 = vpop.f32.mrb[0].mxu0
    %5193 = vmatprep.mubr.f32.mxu0 0.0
    %5194 = vmatmul.mubr.f32.gmra.mrb[0].mxu0 %v5101
    %v5195 = vpop.f32.mrb[0].mxu0
    %v5196 = vadd.f32 0.0, %v5195
    %v5197 = vpop.f32.mrb[0].mxu0
    %5198 = vmatprep.mubr.f32.mxu0 0.0
    %5199 = vmatmul.mubr.f32.gmra.mrb[0].mxu0 %v5103
    %v5200 = vpop.f32.mrb[0].mxu0
    %v5201 = vadd.f32 0.0, %v5200
    %v5202 = vpop.f32.mrb[0].mxu0
    %5203 = vmatprep.mubr.f32.mxu0 0.0
    %5204 = vmatmul.mubr.f32.gmra.mrb[0].mxu0 %v5105
    %v5205 = vpop.f32.mrb[0].mxu0
    %v5206 = vadd.f32 0.0, %v5205
    %v5207 = vpop.f32.mrb[0].mxu0
    %5208 = vmatprep.mubr.f32.mxu0 0.0
    %5209 = vmatmul.mubr.f32.gmra.mrb[0].mxu0 %v5107
    %v5210 = vpop.f32.mrb[0].mxu0
    %v5211 = vadd.f32 0.0, %v5210
    %v5212 = vpop.f32.mrb[0].mxu0
    %5213 = vdwg.mxu0
    %v5214 = vadd.f32 %v5018, %v5176
    %v5215 = vadd.f32 %v5023, %v5181
    %v5216 = vadd.f32 %v5028, %v5186
    %v5217 = vadd.f32 %v5033, %v5191
    %v5218 = vadd.f32 %v5038, %v5196
    %v5219 = vadd.f32 %v5043, %v5201
    %v5220 = vadd.f32 %v5048, %v5206
    %v5221 = vadd.f32 %v5053, %v5211
    %vm5222 = vcmask 1044480
    %v5223 = vrot.slane %v4745, 3
    %v5224 = vrot.slane %v4746, 3
    %v5225 = vsel %vm5222, %v5223, %v5224
    %v5226 = vrot.slane %v4747, 3
    %v5227 = vsel %vm5222, %v5224, %v5226
    %v5228 = vrot.slane %v4748, 3
    %v5229 = vsel %vm5222, %v5226, %v5228
    %v5230 = vrot.slane %v4749, 3
    %v5231 = vsel %vm5222, %v5228, %v5230
    %v5232 = vrot.slane %v4750, 3
    %v5233 = vsel %vm5222, %v5230, %v5232
    %v5234 = vrot.slane %v4751, 3
    %v5235 = vsel %vm5222, %v5232, %v5234
    %v5236 = vrot.slane %v4752, 3
    %v5237 = vsel %vm5222, %v5234, %v5236
    %v5239 = vsel %vm5222, %v5236, 0.0
    %s5240 = scalar_lea.vmem [#allocation5], 24
    %v5241 = vld [vmem:[%s5240] sm:$0xff]
    %5243 = vrot.lane.b32.xlu0 %v5225, 80
    %v5244 = vpop.permute.xlu0 %5243
    %5245 = vrot.lane.b32.xlu0 %v5227, 80
    %v5246 = vpop.permute.xlu0 %5245
    %5247 = vrot.lane.b32.xlu0 %v5229, 80
    %v5248 = vpop.permute.xlu0 %5247
    %5249 = vrot.lane.b32.xlu0 %v5231, 80
    %v5250 = vpop.permute.xlu0 %5249
    %5251 = vrot.lane.b32.xlu0 %v5233, 80
    %v5252 = vpop.permute.xlu0 %5251
    %5253 = vrot.lane.b32.xlu0 %v5235, 80
    %v5254 = vpop.permute.xlu0 %5253
    %5255 = vrot.lane.b32.xlu0 %v5237, 80
    %v5256 = vpop.permute.xlu0 %5255
    %5257 = vrot.lane.b32.xlu0 %v5239, 80
    %v5258 = vpop.permute.xlu0 %5257
    %v5259 = vsel %vm98, %v5244, 0
    %v5261 = vsel %vm98, %v5246, 0
    %v5263 = vsel %vm98, %v5248, 0
    %v5265 = vsel %vm98, %v5250, 0
    %v5267 = vsel %vm98, %v5252, 0
    %v5269 = vsel %vm98, %v5254, 0
    %v5271 = vsel %vm98, %v5256, 0
    %v5273 = vsel %vm98, %v5258, 0
    %5275 = vmatprep.subr.mxu0 0.0
    %5276 = vmatpush1.msra.mxu0 %v5241
    %5277 = vmatprep.subr.mxu0 0.0
    %5278 = vmatpush1.msra.mxu0 0.0
    %5279 = vmatprep.subr.mxu0 0.0
    %5280 = vmatpush1.msra.mxu0 0.0
    %5281 = vmatprep.subr.mxu0 0.0
    %5282 = vmatpush1.msra.mxu0 0.0
    %5283 = vmatprep.subr.mxu0 0.0
    %5284 = vmatpush1.msra.mxu0 0.0
    %5285 = vmatprep.subr.mxu0 0.0
    %5286 = vmatpush1.msra.mxu0 0.0
    %5287 = vmatprep.subr.mxu0 0.0
    %5288 = vmatpush1.msra.mxu0 0.0
    %5289 = vmatprep.subr.mxu0 0.0
    %5290 = vmatpush1.msra.mxu0 0.0
    %5291 = vmatprep.subr.mxu0 0.0
    %5292 = vmatpush1.msra.mxu0 0.0
    %5293 = vmatprep.subr.mxu0 0.0
    %5294 = vmatpush1.msra.mxu0 0.0
    %5295 = vmatprep.subr.mxu0 0.0
    %5296 = vmatpush1.msra.mxu0 0.0
    %5297 = vmatprep.subr.mxu0 0.0
    %5298 = vmatpush1.msra.mxu0 0.0
    %5299 = vmatprep.subr.mxu0 0.0
    %5300 = vmatpush1.msra.mxu0 0.0
    %5301 = vmatprep.subr.mxu0 0.0
    %5302 = vmatpush1.msra.mxu0 0.0
    %5303 = vmatprep.subr.mxu0 0.0
    %5304 = vmatpush1.msra.mxu0 0.0
    %5305 = vmatprep.subr.mxu0 0.0
    %5306 = vmatpush1.msra.mxu0 0.0
    %5307 = vmatprep.subr.mxu0 0.0
    %5308 = vmatpush1.msra.mxu0 0.0
    %5309 = vmatprep.subr.mxu0 0.0
    %5310 = vmatpush1.msra.mxu0 0.0
    %5311 = vmatprep.subr.mxu0 0.0
    %5312 = vmatpush1.msra.mxu0 0.0
    %5313 = vmatprep.subr.mxu0 0.0
    %5314 = vmatpush1.msra.mxu0 0.0
    %5315 = vmatprep.subr.mxu0 0.0
    %5316 = vmatpush1.msra.mxu0 0.0
    %5317 = vmatprep.subr.mxu0 0.0
    %5318 = vmatpush1.msra.mxu0 0.0
    %5319 = vmatprep.subr.mxu0 0.0
    %5320 = vmatpush1.msra.mxu0 0.0
    %5321 = vmatprep.subr.mxu0 0.0
    %5322 = vmatpush1.msra.mxu0 0.0
    %5323 = vmatprep.subr.mxu0 0.0
    %5324 = vmatpush1.msra.mxu0 0.0
    %5325 = vmatprep.subr.mxu0 0.0
    %5326 = vmatpush1.msra.mxu0 0.0
    %5327 = vmatprep.subr.mxu0 0.0
    %5328 = vmatpush1.msra.mxu0 0.0
    %5329 = vmatprep.subr.mxu0 0.0
    %5330 = vmatpush1.msra.mxu0 0.0
    %5331 = vmatprep.subr.mxu0 0.0
    %5332 = vmatpush1.msra.mxu0 0.0
    %5333 = vmatprep.subr.mxu0 0.0
    %5334 = vmatpush1.msra.mxu0 0.0
    %5335 = vmatprep.subr.mxu0 0.0
    %5336 = vmatpush1.msra.mxu0 0.0
    %5337 = vmatprep.subr.mxu0 0.0
    %5338 = vmatpush1.msra.mxu0 0.0
    %5339 = vmatprep.mubr.f32.mxu0 0.0
    %5340 = vmatmul.mubr.f32.gmra.mrb[0].mxu0 %v5259
    %v5341 = vpop.f32.mrb[0].mxu0
    %v5342 = vadd.f32 0.0, %v5341
    %v5343 = vpop.f32.mrb[0].mxu0
    %5344 = vmatprep.mubr.f32.mxu0 0.0
    %5345 = vmatmul.mubr.f32.gmra.mrb[0].mxu0 %v5261
    %v5346 = vpop.f32.mrb[0].mxu0
    %v5347 = vadd.f32 0.0, %v5346
    %v5348 = vpop.f32.mrb[0].mxu0
    %5349 = vmatprep.mubr.f32.mxu0 0.0
    %5350 = vmatmul.mubr.f32.gmra.mrb[0].mxu0 %v5263
    %v5351 = vpop.f32.mrb[0].mxu0
    %v5352 = vadd.f32 0.0, %v5351
    %v5353 = vpop.f32.mrb[0].mxu0
    %5354 = vmatprep.mubr.f32.mxu0 0.0
    %5355 = vmatmul.mubr.f32.gmra.mrb[0].mxu0 %v5265
    %v5356 = vpop.f32.mrb[0].mxu0
    %v5357 = vadd.f32 0.0, %v5356
    %v5358 = vpop.f32.mrb[0].mxu0
    %5359 = vmatprep.mubr.f32.mxu0 0.0
    %5360 = vmatmul.mubr.f32.gmra.mrb[0].mxu0 %v5267
    %v5361 = vpop.f32.mrb[0].mxu0
    %v5362 = vadd.f32 0.0, %v5361
    %v5363 = vpop.f32.mrb[0].mxu0
    %5364 = vmatprep.mubr.f32.mxu0 0.0
    %5365 = vmatmul.mubr.f32.gmra.mrb[0].mxu0 %v5269
    %v5366 = vpop.f32.mrb[0].mxu0
    %v5367 = vadd.f32 0.0, %v5366
    %v5368 = vpop.f32.mrb[0].mxu0
    %5369 = vmatprep.mubr.f32.mxu0 0.0
    %5370 = vmatmul.mubr.f32.gmra.mrb[0].mxu0 %v5271
    %v5371 = vpop.f32.mrb[0].mxu0
    %v5372 = vadd.f32 0.0, %v5371
    %v5373 = vpop.f32.mrb[0].mxu0
    %5374 = vmatprep.mubr.f32.mxu0 0.0
    %5375 = vmatmul.mubr.f32.gmra.mrb[0].mxu0 %v5273
    %v5376 = vpop.f32.mrb[0].mxu0
    %v5377 = vadd.f32 0.0, %v5376
    %v5378 = vpop.f32.mrb[0].mxu0
    %5379 = vdwg.mxu0
    %v5380 = vadd.f32 %v5214, %v5342
    %v5381 = vadd.f32 %v5215, %v5347
    %v5382 = vadd.f32 %v5216, %v5352
    %v5383 = vadd.f32 %v5217, %v5357
    %v5384 = vadd.f32 %v5218, %v5362
    %v5385 = vadd.f32 %v5219, %v5367
    %v5386 = vadd.f32 %v5220, %v5372
    %v5387 = vadd.f32 %v5221, %v5377
    %vm5388 = vcmask 1043456
    %v5389 = vrot.slane %v4745, 4
    %v5390 = vrot.slane %v4746, 4
    %v5391 = vsel %vm5388, %v5389, %v5390
    %v5392 = vrot.slane %v4747, 4
    %v5393 = vsel %vm5388, %v5390, %v5392
    %v5394 = vrot.slane %v4748, 4
    %v5395 = vsel %vm5388, %v5392, %v5394
    %v5396 = vrot.slane %v4749, 4
    %v5397 = vsel %vm5388, %v5394, %v5396
    %v5398 = vrot.slane %v4750, 4
    %v5399 = vsel %vm5388, %v5396, %v5398
    %v5400 = vrot.slane %v4751, 4
    %v5401 = vsel %vm5388, %v5398, %v5400
    %v5402 = vrot.slane %v4752, 4
    %v5403 = vsel %vm5388, %v5400, %v5402
    %v5405 = vsel %vm5388, %v5402, 0.0
    %s5406 = scalar_lea.vmem [#allocation5], 32
    %v5407 = vld [vmem:[%s5406] sm:$0xff]
    %5409 = vrot.lane.b32.xlu0 %v5391, 80
    %v5410 = vpop.permute.xlu0 %5409
    %5411 = vrot.lane.b32.xlu0 %v5393, 80
    %v5412 = vpop.permute.xlu0 %5411
    %5413 = vrot.lane.b32.xlu0 %v5395, 80
    %v5414 = vpop.permute.xlu0 %5413
    %5415 = vrot.lane.b32.xlu0 %v5397, 80
    %v5416 = vpop.permute.xlu0 %5415
    %5417 = vrot.lane.b32.xlu0 %v5399, 80
    %v5418 = vpop.permute.xlu0 %5417
    %5419 = vrot.lane.b32.xlu0 %v5401, 80
    %v5420 = vpop.permute.xlu0 %5419
    %5421 = vrot.lane.b32.xlu0 %v5403, 80
    %v5422 = vpop.permute.xlu0 %5421
    %5423 = vrot.lane.b32.xlu0 %v5405, 80
    %v5424 = vpop.permute.xlu0 %5423
    %v5425 = vsel %vm98, %v5410, 0
    %v5427 = vsel %vm98, %v5412, 0
    %v5429 = vsel %vm98, %v5414, 0
    %v5431 = vsel %vm98, %v5416, 0
    %v5433 = vsel %vm98, %v5418, 0
    %v5435 = vsel %vm98, %v5420, 0
    %v5437 = vsel %vm98, %v5422, 0
    %v5439 = vsel %vm98, %v5424, 0
    %5441 = vmatprep.subr.mxu0 0.0
    %5442 = vmatpush1.msra.mxu0 %v5407
    %5443 = vmatprep.subr.mxu0 0.0
    %5444 = vmatpush1.msra.mxu0 0.0
    %5445 = vmatprep.subr.mxu0 0.0
    %5446 = vmatpush1.msra.mxu0 0.0
    %5447 = vmatprep.subr.mxu0 0.0
    %5448 = vmatpush1.msra.mxu0 0.0
    %5449 = vmatprep.subr.mxu0 0.0
    %5450 = vmatpush1.msra.mxu0 0.0
    %5451 = vmatprep.subr.mxu0 0.0
    %5452 = vmatpush1.msra.mxu0 0.0
    %5453 = vmatprep.subr.mxu0 0.0
    %5454 = vmatpush1.msra.mxu0 0.0
    %5455 = vmatprep.subr.mxu0 0.0
    %5456 = vmatpush1.msra.mxu0 0.0
    %5457 = vmatprep.subr.mxu0 0.0
    %5458 = vmatpush1.msra.mxu0 0.0
    %5459 = vmatprep.subr.mxu0 0.0
    %5460 = vmatpush1.msra.mxu0 0.0
    %5461 = vmatprep.subr.mxu0 0.0
    %5462 = vmatpush1.msra.mxu0 0.0
    %5463 = vmatprep.subr.mxu0 0.0
    %5464 = vmatpush1.msra.mxu0 0.0
    %5465 = vmatprep.subr.mxu0 0.0
    %5466 = vmatpush1.msra.mxu0 0.0
    %5467 = vmatprep.subr.mxu0 0.0
    %5468 = vmatpush1.msra.mxu0 0.0
    %5469 = vmatprep.subr.mxu0 0.0
    %5470 = vmatpush1.msra.mxu0 0.0
    %5471 = vmatprep.subr.mxu0 0.0
    %5472 = vmatpush1.msra.mxu0 0.0
    %5473 = vmatprep.subr.mxu0 0.0
    %5474 = vmatpush1.msra.mxu0 0.0
    %5475 = vmatprep.subr.mxu0 0.0
    %5476 = vmatpush1.msra.mxu0 0.0
    %5477 = vmatprep.subr.mxu0 0.0
    %5478 = vmatpush1.msra.mxu0 0.0
    %5479 = vmatprep.subr.mxu0 0.0
    %5480 = vmatpush1.msra.mxu0 0.0
    %5481 = vmatprep.subr.mxu0 0.0
    %5482 = vmatpush1.msra.mxu0 0.0
    %5483 = vmatprep.subr.mxu0 0.0
    %5484 = vmatpush1.msra.mxu0 0.0
    %5485 = vmatprep.subr.mxu0 0.0
    %5486 = vmatpush1.msra.mxu0 0.0
    %5487 = vmatprep.subr.mxu0 0.0
    %5488 = vmatpush1.msra.mxu0 0.0
    %5489 = vmatprep.subr.mxu0 0.0
    %5490 = vmatpush1.msra.mxu0 0.0
    %5491 = vmatprep.subr.mxu0 0.0
    %5492 = vmatpush1.msra.mxu0 0.0
    %5493 = vmatprep.subr.mxu0 0.0
    %5494 = vmatpush1.msra.mxu0 0.0
    %5495 = vmatprep.subr.mxu0 0.0
    %5496 = vmatpush1.msra.mxu0 0.0
    %5497 = vmatprep.subr.mxu0 0.0
    %5498 = vmatpush1.msra.mxu0 0.0
    %5499 = vmatprep.subr.mxu0 0.0
    %5500 = vmatpush1.msra.mxu0 0.0
    %5501 = vmatprep.subr.mxu0 0.0
    %5502 = vmatpush1.msra.mxu0 0.0
    %5503 = vmatprep.subr.mxu0 0.0
    %5504 = vmatpush1.msra.mxu0 0.0
    %5505 = vmatprep.mubr.f32.mxu0 0.0
    %5506 = vmatmul.mubr.f32.gmra.mrb[0].mxu0 %v5425
    %v5507 = vpop.f32.mrb[0].mxu0
    %v5508 = vadd.f32 0.0, %v5507
    %v5509 = vpop.f32.mrb[0].mxu0
    %5510 = vmatprep.mubr.f32.mxu0 0.0
    %5511 = vmatmul.mubr.f32.gmra.mrb[0].mxu0 %v5427
    %v5512 = vpop.f32.mrb[0].mxu0
    %v5513 = vadd.f32 0.0, %v5512
    %v5514 = vpop.f32.mrb[0].mxu0
    %5515 = vmatprep.mubr.f32.mxu0 0.0
    %5516 = vmatmul.mubr.f32.gmra.mrb[0].mxu0 %v5429
    %v5517 = vpop.f32.mrb[0].mxu0
    %v5518 = vadd.f32 0.0, %v5517
    %v5519 = vpop.f32.mrb[0].mxu0
    %5520 = vmatprep.mubr.f32.mxu0 0.0
    %5521 = vmatmul.mubr.f32.gmra.mrb[0].mxu0 %v5431
    %v5522 = vpop.f32.mrb[0].mxu0
    %v5523 = vadd.f32 0.0, %v5522
    %v5524 = vpop.f32.mrb[0].mxu0
    %5525 = vmatprep.mubr.f32.mxu0 0.0
    %5526 = vmatmul.mubr.f32.gmra.mrb[0].mxu0 %v5433
    %v5527 = vpop.f32.mrb[0].mxu0
    %v5528 = vadd.f32 0.0, %v5527
    %v5529 = vpop.f32.mrb[0].mxu0
    %5530 = vmatprep.mubr.f32.mxu0 0.0
    %5531 = vmatmul.mubr.f32.gmra.mrb[0].mxu0 %v5435
    %v5532 = vpop.f32.mrb[0].mxu0
    %v5533 = vadd.f32 0.0, %v5532
    %v5534 = vpop.f32.mrb[0].mxu0
    %5535 = vmatprep.mubr.f32.mxu0 0.0
    %5536 = vmatmul.mubr.f32.gmra.mrb[0].mxu0 %v5437
    %v5537 = vpop.f32.mrb[0].mxu0
    %v5538 = vadd.f32 0.0, %v5537
    %v5539 = vpop.f32.mrb[0].mxu0
    %5540 = vmatprep.mubr.f32.mxu0 0.0
    %5541 = vmatmul.mubr.f32.gmra.mrb[0].mxu0 %v5439
    %v5542 = vpop.f32.mrb[0].mxu0
    %v5543 = vadd.f32 0.0, %v5542
    %v5544 = vpop.f32.mrb[0].mxu0
    %5545 = vdwg.mxu0
    %v5546 = vadd.f32 %v5380, %v5508
    %v5547 = vadd.f32 %v5381, %v5513
    %v5548 = vadd.f32 %v5382, %v5518
    %v5549 = vadd.f32 %v5383, %v5523
    %v5550 = vadd.f32 %v5384, %v5528
    %v5551 = vadd.f32 %v5385, %v5533
    %v5552 = vadd.f32 %v5386, %v5538
    %v5553 = vadd.f32 %v5387, %v5543
    %vm5554 = vcmask 1042432
    %v5555 = vrot.slane %v4745, 5
    %v5556 = vrot.slane %v4746, 5
    %v5557 = vsel %vm5554, %v5555, %v5556
    %v5558 = vrot.slane %v4747, 5
    %v5559 = vsel %vm5554, %v5556, %v5558
    %v5560 = vrot.slane %v4748, 5
    %v5561 = vsel %vm5554, %v5558, %v5560
    %v5562 = vrot.slane %v4749, 5
    %v5563 = vsel %vm5554, %v5560, %v5562
    %v5564 = vrot.slane %v4750, 5
    %v5565 = vsel %vm5554, %v5562, %v5564
    %v5566 = vrot.slane %v4751, 5
    %v5567 = vsel %vm5554, %v5564, %v5566
    %v5568 = vrot.slane %v4752, 5
    %v5569 = vsel %vm5554, %v5566, %v5568
    %v5571 = vsel %vm5554, %v5568, 0.0
    %s5572 = scalar_lea.vmem [#allocation5], 40
    %v5573 = vld [vmem:[%s5572] sm:$0xff]
    %5575 = vrot.lane.b32.xlu0 %v5557, 80
    %v5576 = vpop.permute.xlu0 %5575
    %5577 = vrot.lane.b32.xlu0 %v5559, 80
    %v5578 = vpop.permute.xlu0 %5577
    %5579 = vrot.lane.b32.xlu0 %v5561, 80
    %v5580 = vpop.permute.xlu0 %5579
    %5581 = vrot.lane.b32.xlu0 %v5563, 80
    %v5582 = vpop.permute.xlu0 %5581
    %5583 = vrot.lane.b32.xlu0 %v5565, 80
    %v5584 = vpop.permute.xlu0 %5583
    %5585 = vrot.lane.b32.xlu0 %v5567, 80
    %v5586 = vpop.permute.xlu0 %5585
    %5587 = vrot.lane.b32.xlu0 %v5569, 80
    %v5588 = vpop.permute.xlu0 %5587
    %5589 = vrot.lane.b32.xlu0 %v5571, 80
    %v5590 = vpop.permute.xlu0 %5589
    %v5591 = vsel %vm98, %v5576, 0
    %v5593 = vsel %vm98, %v5578, 0
    %v5595 = vsel %vm98, %v5580, 0
    %v5597 = vsel %vm98, %v5582, 0
    %v5599 = vsel %vm98, %v5584, 0
    %v5601 = vsel %vm98, %v5586, 0
    %v5603 = vsel %vm98, %v5588, 0
    %v5605 = vsel %vm98, %v5590, 0
    %5607 = vmatprep.subr.mxu0 0.0
    %5608 = vmatpush1.msra.mxu0 %v5573
    %5609 = vmatprep.subr.mxu0 0.0
    %5610 = vmatpush1.msra.mxu0 0.0
    %5611 = vmatprep.subr.mxu0 0.0
    %5612 = vmatpush1.msra.mxu0 0.0
    %5613 = vmatprep.subr.mxu0 0.0
    %5614 = vmatpush1.msra.mxu0 0.0
    %5615 = vmatprep.subr.mxu0 0.0
    %5616 = vmatpush1.msra.mxu0 0.0
    %5617 = vmatprep.subr.mxu0 0.0
    %5618 = vmatpush1.msra.mxu0 0.0
    %5619 = vmatprep.subr.mxu0 0.0
    %5620 = vmatpush1.msra.mxu0 0.0
    %5621 = vmatprep.subr.mxu0 0.0
    %5622 = vmatpush1.msra.mxu0 0.0
    %5623 = vmatprep.subr.mxu0 0.0
    %5624 = vmatpush1.msra.mxu0 0.0
    %5625 = vmatprep.subr.mxu0 0.0
    %5626 = vmatpush1.msra.mxu0 0.0
    %5627 = vmatprep.subr.mxu0 0.0
    %5628 = vmatpush1.msra.mxu0 0.0
    %5629 = vmatprep.subr.mxu0 0.0
    %5630 = vmatpush1.msra.mxu0 0.0
    %5631 = vmatprep.subr.mxu0 0.0
    %5632 = vmatpush1.msra.mxu0 0.0
    %5633 = vmatprep.subr.mxu0 0.0
    %5634 = vmatpush1.msra.mxu0 0.0
    %5635 = vmatprep.subr.mxu0 0.0
    %5636 = vmatpush1.msra.mxu0 0.0
    %5637 = vmatprep.subr.mxu0 0.0
    %5638 = vmatpush1.msra.mxu0 0.0
    %5639 = vmatprep.subr.mxu0 0.0
    %5640 = vmatpush1.msra.mxu0 0.0
    %5641 = vmatprep.subr.mxu0 0.0
    %5642 = vmatpush1.msra.mxu0 0.0
    %5643 = vmatprep.subr.mxu0 0.0
    %5644 = vmatpush1.msra.mxu0 0.0
    %5645 = vmatprep.subr.mxu0 0.0
    %5646 = vmatpush1.msra.mxu0 0.0
    %5647 = vmatprep.subr.mxu0 0.0
    %5648 = vmatpush1.msra.mxu0 0.0
    %5649 = vmatprep.subr.mxu0 0.0
    %5650 = vmatpush1.msra.mxu0 0.0
    %5651 = vmatprep.subr.mxu0 0.0
    %5652 = vmatpush1.msra.mxu0 0.0
    %5653 = vmatprep.subr.mxu0 0.0
    %5654 = vmatpush1.msra.mxu0 0.0
    %5655 = vmatprep.subr.mxu0 0.0
    %5656 = vmatpush1.msra.mxu0 0.0
    %5657 = vmatprep.subr.mxu0 0.0
    %5658 = vmatpush1.msra.mxu0 0.0
    %5659 = vmatprep.subr.mxu0 0.0
    %5660 = vmatpush1.msra.mxu0 0.0
    %5661 = vmatprep.subr.mxu0 0.0
    %5662 = vmatpush1.msra.mxu0 0.0
    %5663 = vmatprep.subr.mxu0 0.0
    %5664 = vmatpush1.msra.mxu0 0.0
    %5665 = vmatprep.subr.mxu0 0.0
    %5666 = vmatpush1.msra.mxu0 0.0
    %5667 = vmatprep.subr.mxu0 0.0
    %5668 = vmatpush1.msra.mxu0 0.0
    %5669 = vmatprep.subr.mxu0 0.0
    %5670 = vmatpush1.msra.mxu0 0.0
    %5671 = vmatprep.mubr.f32.mxu0 0.0
    %5672 = vmatmul.mubr.f32.gmra.mrb[0].mxu0 %v5591
    %v5673 = vpop.f32.mrb[0].mxu0
    %v5674 = vadd.f32 0.0, %v5673
    %v5675 = vpop.f32.mrb[0].mxu0
    %5676 = vmatprep.mubr.f32.mxu0 0.0
    %5677 = vmatmul.mubr.f32.gmra.mrb[0].mxu0 %v5593
    %v5678 = vpop.f32.mrb[0].mxu0
    %v5679 = vadd.f32 0.0, %v5678
    %v5680 = vpop.f32.mrb[0].mxu0
    %5681 = vmatprep.mubr.f32.mxu0 0.0
    %5682 = vmatmul.mubr.f32.gmra.mrb[0].mxu0 %v5595
    %v5683 = vpop.f32.mrb[0].mxu0
    %v5684 = vadd.f32 0.0, %v5683
    %v5685 = vpop.f32.mrb[0].mxu0
    %5686 = vmatprep.mubr.f32.mxu0 0.0
    %5687 = vmatmul.mubr.f32.gmra.mrb[0].mxu0 %v5597
    %v5688 = vpop.f32.mrb[0].mxu0
    %v5689 = vadd.f32 0.0, %v5688
    %v5690 = vpop.f32.mrb[0].mxu0
    %5691 = vmatprep.mubr.f32.mxu0 0.0
    %5692 = vmatmul.mubr.f32.gmra.mrb[0].mxu0 %v5599
    %v5693 = vpop.f32.mrb[0].mxu0
    %v5694 = vadd.f32 0.0, %v5693
    %v5695 = vpop.f32.mrb[0].mxu0
    %5696 = vmatprep.mubr.f32.mxu0 0.0
    %5697 = vmatmul.mubr.f32.gmra.mrb[0].mxu0 %v5601
    %v5698 = vpop.f32.mrb[0].mxu0
    %v5699 = vadd.f32 0.0, %v5698
    %v5700 = vpop.f32.mrb[0].mxu0
    %5701 = vmatprep.mubr.f32.mxu0 0.0
    %5702 = vmatmul.mubr.f32.gmra.mrb[0].mxu0 %v5603
    %v5703 = vpop.f32.mrb[0].mxu0
    %v5704 = vadd.f32 0.0, %v5703
    %v5705 = vpop.f32.mrb[0].mxu0
    %5706 = vmatprep.mubr.f32.mxu0 0.0
    %5707 = vmatmul.mubr.f32.gmra.mrb[0].mxu0 %v5605
    %v5708 = vpop.f32.mrb[0].mxu0
    %v5709 = vadd.f32 0.0, %v5708
    %v5710 = vpop.f32.mrb[0].mxu0
    %5711 = vdwg.mxu0
    %v5712 = vadd.f32 %v5546, %v5674
    %v5713 = vadd.f32 %v5547, %v5679
    %v5714 = vadd.f32 %v5548, %v5684
    %v5715 = vadd.f32 %v5549, %v5689
    %v5716 = vadd.f32 %v5550, %v5694
    %v5717 = vadd.f32 %v5551, %v5699
    %v5718 = vadd.f32 %v5552, %v5704
    %v5719 = vadd.f32 %v5553, %v5709
    %5722 = vrot.lane.b32.xlu0 %v79, 72
    %v5723 = vpop.permute.xlu0 %5722
    %5724 = vrot.lane.b32.xlu0 %v81, 72
    %v5725 = vpop.permute.xlu0 %5724
    %5726 = vrot.lane.b32.xlu0 %v82, 72
    %v5727 = vpop.permute.xlu0 %5726
    %5728 = vrot.lane.b32.xlu0 %v83, 72
    %v5729 = vpop.permute.xlu0 %5728
    %5730 = vrot.lane.b32.xlu0 %v84, 72
    %v5731 = vpop.permute.xlu0 %5730
    %5732 = vrot.lane.b32.xlu0 %v85, 72
    %v5733 = vpop.permute.xlu0 %5732
    %5734 = vrot.lane.b32.xlu0 %v86, 72
    %v5735 = vpop.permute.xlu0 %5734
    %5736 = vrot.lane.b32.xlu0 %v87, 72
    %v5737 = vpop.permute.xlu0 %5736
    %v5746 = vmul.f32 %v5712, %v5723
    %v5747 = vmul.f32 %v5713, %v5725
    %v5748 = vmul.f32 %v5714, %v5727
    %v5749 = vmul.f32 %v5715, %v5729
    %v5750 = vmul.f32 %v5716, %v5731
    %v5751 = vmul.f32 %v5717, %v5733
    %v5752 = vmul.f32 %v5718, %v5735
    %v5753 = vmul.f32 %v5719, %v5737
    %vm5754 = vcmask 523264
    %v5756 = vsel %vm5754, %v80, 0
    %5758 = vmatprep.subr.mxu0 0.0
    %5759 = vmatpush1.msra.mxu0 %v5746
    %5760 = vmatprep.subr.mxu0 0.0
    %5761 = vmatpush1.msra.mxu0 %v5747
    %5762 = vmatprep.subr.mxu0 0.0
    %5763 = vmatpush1.msra.mxu0 %v5748
    %5764 = vmatprep.subr.mxu0 0.0
    %5765 = vmatpush1.msra.mxu0 %v5749
    %5766 = vmatprep.subr.mxu0 0.0
    %5767 = vmatpush1.msra.mxu0 %v5750
    %5768 = vmatprep.subr.mxu0 0.0
    %5769 = vmatpush1.msra.mxu0 %v5751
    %5770 = vmatprep.subr.mxu0 0.0
    %5771 = vmatpush1.msra.mxu0 %v5752
    %5772 = vmatprep.subr.mxu0 0.0
    %5773 = vmatpush1.msra.mxu0 %v5753
    %5774 = vmatprep.subr.mxu0 0.0
    %5775 = vmatpush1.msra.mxu0 0.0
    %5776 = vmatprep.subr.mxu0 0.0
    %5777 = vmatpush1.msra.mxu0 0.0
    %5778 = vmatprep.subr.mxu0 0.0
    %5779 = vmatpush1.msra.mxu0 0.0
    %5780 = vmatprep.subr.mxu0 0.0
    %5781 = vmatpush1.msra.mxu0 0.0
    %5782 = vmatprep.subr.mxu0 0.0
    %5783 = vmatpush1.msra.mxu0 0.0
    %5784 = vmatprep.subr.mxu0 0.0
    %5785 = vmatpush1.msra.mxu0 0.0
    %5786 = vmatprep.subr.mxu0 0.0
    %5787 = vmatpush1.msra.mxu0 0.0
    %5788 = vmatprep.subr.mxu0 0.0
    %5789 = vmatpush1.msra.mxu0 0.0
    %5790 = vmatprep.subr.mxu0 0.0
    %5791 = vmatpush1.msra.mxu0 0.0
    %5792 = vmatprep.subr.mxu0 0.0
    %5793 = vmatpush1.msra.mxu0 0.0
    %5794 = vmatprep.subr.mxu0 0.0
    %5795 = vmatpush1.msra.mxu0 0.0
    %5796 = vmatprep.subr.mxu0 0.0
    %5797 = vmatpush1.msra.mxu0 0.0
    %5798 = vmatprep.subr.mxu0 0.0
    %5799 = vmatpush1.msra.mxu0 0.0
    %5800 = vmatprep.subr.mxu0 0.0
    %5801 = vmatpush1.msra.mxu0 0.0
    %5802 = vmatprep.subr.mxu0 0.0
    %5803 = vmatpush1.msra.mxu0 0.0
    %5804 = vmatprep.subr.mxu0 0.0
    %5805 = vmatpush1.msra.mxu0 0.0
    %5806 = vmatprep.subr.mxu0 0.0
    %5807 = vmatpush1.msra.mxu0 0.0
    %5808 = vmatprep.subr.mxu0 0.0
    %5809 = vmatpush1.msra.mxu0 0.0
    %5810 = vmatprep.subr.mxu0 0.0
    %5811 = vmatpush1.msra.mxu0 0.0
    %5812 = vmatprep.subr.mxu0 0.0
    %5813 = vmatpush1.msra.mxu0 0.0
    %5814 = vmatprep.subr.mxu0 0.0
    %5815 = vmatpush1.msra.mxu0 0.0
    %5816 = vmatprep.subr.mxu0 0.0
    %5817 = vmatpush1.msra.mxu0 0.0
    %5818 = vmatprep.subr.mxu0 0.0
    %5819 = vmatpush1.msra.mxu0 0.0
    %5820 = vmatprep.subr.mxu0 0.0
    %5821 = vmatpush1.msra.mxu0 0.0
    %5822 = vmatprep.mubr.f32.mxu0 0.0
    %5823 = vmatmul.mubr.f32.gmra.mrb[0].mxu0 %v5756
    %v5824 = vpop.f32.mrb[0].mxu0
    %v5825 = vadd.f32 0.0, %v5824
    %v5826 = vpop.f32.mrb[0].mxu0
    %5827 = vdwg.mxu0
    %5829 = vrot.lane.b32.xlu0 %v5825, 32
    %v5830 = vpop.permute.xlu0 %5829
    %vm5832 = vcmask 261120
    %v5833 = vsel %vm5832, %v2337, %v5830
    %5834 = vrot.lane.b32.xlu0 %v80, 64
    %v5835 = vpop.permute.xlu0 %5834
    %v5837 = vadd.f32 %v5833, %v5835
    %vm5838 = vcmp.gt.f32.partialorder %v5837, 0.0
    %v5839 = vmul.f32 %v5837, 1.442695
    %v5840 = vpow.pop %v5839
    %v5841 = vsub.f32 %v5840, 1.0
    %v5842 = vsel %vm5838, %v5837, %v5841
    %v5843 = vmax.f32 %v5842, -1.0
    %v5844 = vmin.f32 %v5843, 1.0
    %v5845 = vround.ne.pseudo %v5844
    %vm5846 = vcmask 386048
    %5847 = vst.msk [vmem:[#allocation8] sm:$0x3] %vm5846, %v5845
    // Predicated region
    $region42: #{tpu_custom_call.1} parent=1 // pred_check
      _
    $region43: #{tpu_custom_call.1} parent=1 // pred_check_branch
      %5849 = sbr.rel (0) target = $region45
    $region44: #{tpu_custom_call.1} parent=1 // pred_region
      %s5851 = ssub.s32 32, 32
      %5852 = vsyncadd [#allocation4], %s5851
      %s5854 = sshll.u32 [#allocation8], 4
      %s5855 = int_to_ptr.vmem [resolvable:$true] %s5854
      %5857 = dma.vmem_to_hbm [thread:$0]  %s5855, 32, %s7, [#allocation4]
    $region45: #{tpu_custom_call.1} parent=1 // pred_fallthru
      _
    // Predicated region
    $region46: #{tpu_custom_call.1} parent=1 // pred_check
      _
    $region47: #{tpu_custom_call.1} parent=1 // pred_check_branch
      %5859 = sbr.rel (0) target = $region49
    $region48: #{tpu_custom_call.1} parent=1 // pred_region
      %5860 = dma.done [#allocation4], 32
    $region49: #{tpu_custom_call.1} parent=1 // pred_fallthru
      _
    %5861 = vsyncpa [#allocation3], 1
    %5862 = vsyncpa [#allocation6], 1
    %5863 = vsyncpa [#allocation4], 1

</llo_original>
